<compile_context>
chip_gen: v7x
topology: tpu7x:2x2x1
jax: 0.10.0
libtpu: 0.0.40
codegen_flags: <defaults>
</compile_context>

<pallas_src>
import numpy as np

import jax
import jax.numpy as jnp
from jax.experimental import pallas as pl
from jax.experimental.pallas import tpu as pltpu


_TAPS = tuple((dy, dx) for dy in (-1, 0, 1) for dx in (-1, 0, 1))


# --------------------------------------------------------------------------- #
# Host-side (run once) weight folding onto the common H/8 base grid.
# --------------------------------------------------------------------------- #

def _fold_conv(w, pin, pout):
    """Conv2d(k=4,s=2,p=1) weight (Cout, Cin, 4, 4) -> (pout^2*Cout, 9*pin^2*Cin).

    Acts on phase-stacked activations at the common base grid; pin = 2*pout.
    K index = tap*(pin^2*Cin) + (py*pin+px)*Cin + ci, tap = (dy+1)*3 + (dx+1).
    """
    w = np.asarray(w, np.float32)
    cout, cin = w.shape[0], w.shape[1]
    assert pin == 2 * pout
    wf = np.zeros((pout * pout * cout, 9, pin * pin * cin), np.float32)
    for qy in range(pout):
        for qx in range(pout):
            r0 = (qy * pout + qx) * cout
            for kh in range(4):
                ey = 2 * qy + kh - 1
                dy, py = ey // pin, ey % pin          # base offset / input phase
                for kw in range(4):
                    ex = 2 * qx + kw - 1
                    dx, px = ex // pin, ex % pin
                    t = (dy + 1) * 3 + (dx + 1)
                    c0 = (py * pin + px) * cin
                    wf[r0:r0 + cout, t, c0:c0 + cin] += w[:, :, kh, kw]
    return wf.reshape(pout * pout * cout, 9 * pin * pin * cin)


def _fold_convT(w, pin, pout):
    """ConvTranspose2d(k=4,s=2,p=1) weight (Cin, Cout, 4, 4) -> folded GEMM weight.

    pout = 2*pin.  out[Y] += w[ci, co, Y+1-2y, X+1-2x] * in[ci, y, x] whenever
    the kernel index is in range; Y = pout*i + qy, y = pin*(i+dy) + py.
    """
    w = np.asarray(w, np.float32)
    cin, cout = w.shape[0], w.shape[1]
    assert pout == 2 * pin
    wf = np.zeros((pout * pout * cout, 9, pin * pin * cin), np.float32)
    for qy in range(pout):
        for qx in range(pout):
            r0 = (qy * pout + qx) * cout
            for py in range(pin):
                for px in range(pin):
                    c0 = (py * pin + px) * cin
                    for dy in (-1, 0, 1):
                        kh = qy + 1 - 2 * py - 2 * pin * dy
                        if not (0 <= kh < 4):
                            continue
                        for dx in (-1, 0, 1):
                            kw = qx + 1 - 2 * px - 2 * pin * dx
                            if not (0 <= kw < 4):
                                continue
                            t = (dy + 1) * 3 + (dx + 1)
                            wf[r0:r0 + cout, t, c0:c0 + cin] += w[:, :, kh, kw].T
    return wf.reshape(pout * pout * cout, 9 * pin * pin * cin)


def _rep_bias(b, pout):
    """Per-Cout bias -> phase-stacked (pout^2*Cout, 1) f32 column."""
    b = np.asarray(b, np.float32)
    return np.tile(b, pout * pout)[:, None]


def prepare_generator(params):
    """One-time, resolution-independent packing of all weights for the kernel."""
    bf, f32 = jnp.bfloat16, jnp.float32
    plan = {
        # encoder: Conv2d(k4,s2,p1); (pin, pout) relative to the H/8 base grid
        "w1": jnp.asarray(_fold_conv(params["enc1_w"], 8, 4), bf),
        "b1": jnp.asarray(_rep_bias(params["enc1_b"], 4), f32),
        "w2": jnp.asarray(_fold_conv(params["enc2_w"], 4, 2), bf),
        "b2": jnp.asarray(_rep_bias(params["enc2_b"], 2), f32),
        "w3": jnp.asarray(_fold_conv(params["enc3_w"], 2, 1), bf),
        "b3": jnp.asarray(_rep_bias(params["enc3_b"], 1), f32),
        # decoder: ConvTranspose2d(k4,s2,p1)
        "w4": jnp.asarray(_fold_convT(params["dec1_w"], 1, 2), bf),
        "b4": jnp.asarray(_rep_bias(params["dec1_b"], 2), f32),
        "w5": jnp.asarray(_fold_convT(params["dec2_w"], 2, 4), bf),
        "b5": jnp.asarray(_rep_bias(params["dec2_b"], 4), f32),
        "w6": jnp.asarray(_fold_convT(params["dec3_w"], 4, 8), bf),
        "b6": jnp.asarray(_rep_bias(params["dec3_b"], 8), f32),
    }
    return plan


# --------------------------------------------------------------------------- #
# Fused Pallas kernel: the whole generator for one batch block per grid step.
# --------------------------------------------------------------------------- #

def _build_kernel(gw, m):
    """gw = W//8 (base-grid width), m = batch_block*(H//8)*(W//8) lane extent."""
    pad = gw + 1                                  # >= max |lane shift|
    bf = jnp.bfloat16

    def layer(y, masks, w_ref, b_ref, act):
        # y: (pin^2*Cin, m) bf16; one big GEMM per layer.
        c = y.shape[0]
        zpad = jnp.zeros((c, pad), bf)
        ypad = jnp.concatenate([zpad, y, zpad], axis=-1)
        pieces = []
        for t, (dy, dx) in enumerate(_TAPS):
            s = pad + dy * gw + dx                # static lane-shift gather
            piece = ypad[:, s:s + m]
            if (dy, dx) != (0, 0):
                piece = piece * masks[t]          # zero out-of-image reads
            pieces.append(piece)
        a = jnp.concatenate(pieces, axis=0)       # (9*pin^2*Cin, m) bf16
        out = jnp.dot(w_ref[...], a, preferred_element_type=jnp.float32)
        out = out + b_ref[...]                    # f32 epilogue
        if act == "relu":
            return jnp.maximum(out, 0.0).astype(bf)
        return jnp.tanh(out)                      # final layer: keep f32

    def kernel(masks_ref, a0_ref,
               w1_ref, b1_ref, w2_ref, b2_ref, w3_ref, b3_ref,
               w4_ref, b4_ref, w5_ref, b5_ref, w6_ref, b6_ref,
               out_ref):
        masks = [masks_ref[t] for t in range(9)]  # each (1, m), 0/1 in bf16
        y = layer(a0_ref[0], masks, w1_ref, b1_ref, "relu")
        y = layer(y, masks, w2_ref, b2_ref, "relu")
        y = layer(y, masks, w3_ref, b3_ref, "relu")
        y = layer(y, masks, w4_ref, b4_ref, "relu")
        y = layer(y, masks, w5_ref, b5_ref, "relu")
        out_ref[0] = layer(y, masks, w6_ref, b6_ref, "tanh")

    return kernel


def generator_forward(plan, x, *, batch_block=None):
    """x: (B, Cin, H, W) float32 NCHW -> (B, Cout, H, W) float32."""
    B, cin, H, W = x.shape
    assert H % 8 == 0 and W % 8 == 0, "spatial size must be divisible by 8"
    gh, gw = H // 8, W // 8
    if batch_block is None:
        batch_block = B                    # fold whole batch into the GEMM lanes
    assert B % batch_block == 0            # (set batch_block=B//2 to use both v7x TCs)
    nb = B // batch_block
    m = batch_block * gh * gw
    cout = plan["b6"].shape[0] // 64

    # ---- boundary: NCHW -> space-to-depth(8), channels on sublanes, ---------
    # ---- (batch, spatial) flattened on lanes.  Pure permutation, no blow-up.
    xr = x.reshape(B, cin, gh, 8, gw, 8)
    xr = jnp.transpose(xr, (0, 3, 5, 1, 2, 4))          # (B, py, px, cin, gh, gw)
    xr = xr.reshape(nb, batch_block, 64 * cin, gh, gw)
    a0 = jnp.transpose(xr, (0, 2, 1, 3, 4)).reshape(nb, 64 * cin, m)
    a0 = a0.astype(jnp.bfloat16)

    # ---- 9 boundary masks (trace-time constants, shared by ALL layers) ------
    ii = np.arange(gh)[:, None]
    jj = np.arange(gw)[None, :]
    mlist = []
    for dy, dx in _TAPS:
        mk = ((ii + dy >= 0) & (ii + dy < gh) & (jj + dx >= 0) & (jj + dx < gw))
        mlist.append(np.tile(mk.reshape(1, -1).astype(np.float32),
                             (1, batch_block)))
    masks = jnp.asarray(np.stack(mlist, 0), jnp.bfloat16)   # (9, 1, m)

    operands = [masks, a0] + [plan[k] for k in
                              ("w1", "b1", "w2", "b2", "w3", "b3",
                               "w4", "b4", "w5", "b5", "w6", "b6")]

    def const_spec(arr):                    # grid-invariant, VMEM-resident operand
        nd = arr.ndim
        return pl.BlockSpec(arr.shape, lambda b, _n=nd: (0,) * _n)

    in_specs = [const_spec(masks),
                pl.BlockSpec((1, 64 * cin, m), lambda b: (b, 0, 0))]
    in_specs += [const_spec(op) for op in operands[2:]]

    out = pl.pallas_call(
        _build_kernel(gw, m),
        out_shape=jax.ShapeDtypeStruct((nb, 64 * cout, m), jnp.float32),
        grid=(nb,),
        in_specs=in_specs,
        out_specs=pl.BlockSpec((1, 64 * cout, m), lambda b: (b, 0, 0)),
        compiler_params=pltpu.CompilerParams(
            dimension_semantics=("parallel",),
            vmem_limit_bytes=64 * 1024 * 1024,
        ),
    )(*operands)

    # ---- boundary: phase-stacked output (space-to-depth(8)) -> NCHW ---------
    y = out.reshape(nb, 8, 8, cout, batch_block, gh, gw)
    y = jnp.transpose(y, (0, 4, 3, 5, 1, 6, 2))   # (nb, bb, cout, i, qy, j, qx)
    return y.reshape(B, cout, H, W)


# --------------------------------------------------------------------------- #
# Parameter init and a pure-JAX f32 reference of the PyTorch module.
# --------------------------------------------------------------------------- #

def init_generator_params(key, in_channels, out_channels, num_filters):
    nf = num_filters
    shapes = [
        ("enc1", (nf, in_channels, 4, 4)),
        ("enc2", (2 * nf, nf, 4, 4)),
        ("enc3", (4 * nf, 2 * nf, 4, 4)),
        ("dec1", (4 * nf, 2 * nf, 4, 4)),      # ConvTranspose2d: (Cin, Cout, k, k)
        ("dec2", (2 * nf, nf, 4, 4)),
        ("dec3", (nf, out_channels, 4, 4)),
    ]
    params = {}
    for name, shp in shapes:
        key, kw, kb = jax.random.split(key, 3)
        params[name + "_w"] = 0.05 * jax.random.normal(kw, shp, jnp.float32)
        nb = shp[0] if name.startswith("enc") else shp[1]
        params[name + "_b"] = 0.05 * jax.random.normal(kb, (nb,), jnp.float32)
    return params


def reference_forward(params, x):
    def conv(h, w, b):
        y = jax.lax.conv_general_dilated(
            h, w, window_strides=(2, 2), padding=((1, 1), (1, 1)),
            dimension_numbers=("NCHW", "OIHW", "NCHW"))
        return y + b[None, :, None, None]

    def convt(h, w, b):
        wc = jnp.flip(w, axis=(2, 3)).transpose(1, 0, 2, 3)
        y = jax.lax.conv_general_dilated(
            h, wc, window_strides=(1, 1), padding=((2, 2), (2, 2)),
            lhs_dilation=(2, 2), dimension_numbers=("NCHW", "OIHW", "NCHW"))
        return y + b[None, :, None, None]

    h = jax.nn.relu(conv(x, params["enc1_w"], params["enc1_b"]))
    h = jax.nn.relu(conv(h, params["enc2_w"], params["enc2_b"]))
    h = jax.nn.relu(conv(h, params["enc3_w"], params["enc3_b"]))
    h = jax.nn.relu(convt(h, params["dec1_w"], params["dec1_b"]))
    h = jax.nn.relu(convt(h, params["dec2_w"], params["dec2_b"]))
    return jnp.tanh(convt(h, params["dec3_w"], params["dec3_b"]))


if __name__ == "__main__":
    key = jax.random.PRNGKey(0)
    in_channels, out_channels, num_filters = 3, 3, 8
    B, H, W = 2, 16, 16

    k_params, k_x = jax.random.split(key)
    params = init_generator_params(k_params, in_channels, out_channels,
                                   num_filters)
    x = jax.random.normal(k_x, (B, in_channels, H, W), jnp.float32)

    plan = prepare_generator(params)            # one-time, resolution-independent
    fwd = jax.jit(generator_forward)
    y = jax.block_until_ready(fwd(plan, x))

    assert y.shape == (B, out_channels, H, W), y.shape
    assert y.dtype == jnp.float32
    assert bool(jnp.all(jnp.isfinite(y)))
    assert bool(jnp.all(jnp.abs(y) <= 1.0))     # tanh output range

    # Verify against the pure-JAX f32 reference of the PyTorch Generator.
    y_ref = reference_forward(params, x)
    max_err = float(jnp.max(jnp.abs(y - y_ref)))
    assert max_err < 2e-2, f"mismatch vs reference: max abs err = {max_err}"

    print("KERNEL_OK")
</pallas_src>

<mosaic_0001>
module attributes {stable_mosaic.version = 11 : i64} {
  func.func @kernel(%arg0: i32, %arg1: memref<9x1x8xbf16, #tpu.memory_space<vmem>>, %arg2: memref<1x192x8xbf16, #tpu.memory_space<vmem>>, %arg3: memref<128x1728xbf16, #tpu.memory_space<vmem>>, %arg4: memref<128x1xf32, #tpu.memory_space<vmem>>, %arg5: memref<64x1152xbf16, #tpu.memory_space<vmem>>, %arg6: memref<64x1xf32, #tpu.memory_space<vmem>>, %arg7: memref<32x576xbf16, #tpu.memory_space<vmem>>, %arg8: memref<32x1xf32, #tpu.memory_space<vmem>>, %arg9: memref<64x288xbf16, #tpu.memory_space<vmem>>, %arg10: memref<64x1xf32, #tpu.memory_space<vmem>>, %arg11: memref<128x576xbf16, #tpu.memory_space<vmem>>, %arg12: memref<128x1xf32, #tpu.memory_space<vmem>>, %arg13: memref<192x1152xbf16, #tpu.memory_space<vmem>>, %arg14: memref<192x1xf32, #tpu.memory_space<vmem>>, %arg15: memref<1x192x8xf32, #tpu.memory_space<vmem>>) attributes {dimension_semantics = [#tpu.dimension_semantics<parallel>], iteration_bounds = array<i64: 1>, scalar_prefetch = 0 : i64, scratch_operands = 0 : i64, tpu.core_type = #tpu.core_type<tc>, window_params = [{pipeline_mode = #tpu.pipeline_mode<synchronous>, transform_indices = @transform_0, window_bounds = array<i64: 9, 1, 8>}, {transform_indices = @transform_1, window_bounds = array<i64: 1, 192, 8>}, {pipeline_mode = #tpu.pipeline_mode<synchronous>, transform_indices = @transform_2, window_bounds = array<i64: 128, 1728>}, {pipeline_mode = #tpu.pipeline_mode<synchronous>, transform_indices = @transform_3, window_bounds = array<i64: 128, 1>}, {pipeline_mode = #tpu.pipeline_mode<synchronous>, transform_indices = @transform_4, window_bounds = array<i64: 64, 1152>}, {pipeline_mode = #tpu.pipeline_mode<synchronous>, transform_indices = @transform_5, window_bounds = array<i64: 64, 1>}, {pipeline_mode = #tpu.pipeline_mode<synchronous>, transform_indices = @transform_6, window_bounds = array<i64: 32, 576>}, {pipeline_mode = #tpu.pipeline_mode<synchronous>, transform_indices = @transform_7, window_bounds = array<i64: 32, 1>}, {pipeline_mode = #tpu.pipeline_mode<synchronous>, transform_indices = @transform_8, window_bounds = array<i64: 64, 288>}, {pipeline_mode = #tpu.pipeline_mode<synchronous>, transform_indices = @transform_9, window_bounds = array<i64: 64, 1>}, {pipeline_mode = #tpu.pipeline_mode<synchronous>, transform_indices = @transform_10, window_bounds = array<i64: 128, 576>}, {pipeline_mode = #tpu.pipeline_mode<synchronous>, transform_indices = @transform_11, window_bounds = array<i64: 128, 1>}, {pipeline_mode = #tpu.pipeline_mode<synchronous>, transform_indices = @transform_12, window_bounds = array<i64: 192, 1152>}, {pipeline_mode = #tpu.pipeline_mode<synchronous>, transform_indices = @transform_13, window_bounds = array<i64: 192, 1>}, {transform_indices = @transform_14, window_bounds = array<i64: 1, 192, 8>}]} {
    %c0 = arith.constant 0 : index
    %c0_0 = arith.constant 0 : index
    %c0_1 = arith.constant 0 : index
    %0 = vector.load %arg1[%c0, %c0_0, %c0_1] : memref<9x1x8xbf16, #tpu.memory_space<vmem>>, vector<1x1x8xbf16>
    %1 = vector.shape_cast %0 : vector<1x1x8xbf16> to vector<1x8xbf16>
    %c1 = arith.constant 1 : index
    %c0_2 = arith.constant 0 : index
    %c0_3 = arith.constant 0 : index
    %2 = vector.load %arg1[%c1, %c0_2, %c0_3] : memref<9x1x8xbf16, #tpu.memory_space<vmem>>, vector<1x1x8xbf16>
    %3 = vector.shape_cast %2 : vector<1x1x8xbf16> to vector<1x8xbf16>
    %c2 = arith.constant 2 : index
    %c0_4 = arith.constant 0 : index
    %c0_5 = arith.constant 0 : index
    %4 = vector.load %arg1[%c2, %c0_4, %c0_5] : memref<9x1x8xbf16, #tpu.memory_space<vmem>>, vector<1x1x8xbf16>
    %5 = vector.shape_cast %4 : vector<1x1x8xbf16> to vector<1x8xbf16>
    %c3 = arith.constant 3 : index
    %c0_6 = arith.constant 0 : index
    %c0_7 = arith.constant 0 : index
    %6 = vector.load %arg1[%c3, %c0_6, %c0_7] : memref<9x1x8xbf16, #tpu.memory_space<vmem>>, vector<1x1x8xbf16>
    %7 = vector.shape_cast %6 : vector<1x1x8xbf16> to vector<1x8xbf16>
    %c5 = arith.constant 5 : index
    %c0_8 = arith.constant 0 : index
    %c0_9 = arith.constant 0 : index
    %8 = vector.load %arg1[%c5, %c0_8, %c0_9] : memref<9x1x8xbf16, #tpu.memory_space<vmem>>, vector<1x1x8xbf16>
    %9 = vector.shape_cast %8 : vector<1x1x8xbf16> to vector<1x8xbf16>
    %c6 = arith.constant 6 : index
    %c0_10 = arith.constant 0 : index
    %c0_11 = arith.constant 0 : index
    %10 = vector.load %arg1[%c6, %c0_10, %c0_11] : memref<9x1x8xbf16, #tpu.memory_space<vmem>>, vector<1x1x8xbf16>
    %11 = vector.shape_cast %10 : vector<1x1x8xbf16> to vector<1x8xbf16>
    %c7 = arith.constant 7 : index
    %c0_12 = arith.constant 0 : index
    %c0_13 = arith.constant 0 : index
    %12 = vector.load %arg1[%c7, %c0_12, %c0_13] : memref<9x1x8xbf16, #tpu.memory_space<vmem>>, vector<1x1x8xbf16>
    %13 = vector.shape_cast %12 : vector<1x1x8xbf16> to vector<1x8xbf16>
    %c8 = arith.constant 8 : index
    %c0_14 = arith.constant 0 : index
    %c0_15 = arith.constant 0 : index
    %14 = vector.load %arg1[%c8, %c0_14, %c0_15] : memref<9x1x8xbf16, #tpu.memory_space<vmem>>, vector<1x1x8xbf16>
    %15 = vector.shape_cast %14 : vector<1x1x8xbf16> to vector<1x8xbf16>
    %c0_16 = arith.constant 0 : index
    %c0_17 = arith.constant 0 : index
    %c0_18 = arith.constant 0 : index
    %16 = vector.load %arg2[%c0_16, %c0_17, %c0_18] : memref<1x192x8xbf16, #tpu.memory_space<vmem>>, vector<1x192x8xbf16>
    %17 = vector.shape_cast %16 : vector<1x192x8xbf16> to vector<192x8xbf16>
    %cst = arith.constant 0.000000e+00 : bf16
    %18 = vector.broadcast %cst : bf16 to vector<192x3xbf16>
    %19 = tpu.concatenate %18, %17, %18 in 1 : vector<192x3xbf16>, vector<192x8xbf16>, vector<192x3xbf16> -> vector<192x14xbf16>
    %20 = vector.extract_strided_slice %19 {offsets = [0, 0], sizes = [192, 8], strides = [1, 1]} : vector<192x14xbf16> to vector<192x8xbf16>
    %21 = vector.broadcast %1 : vector<1x8xbf16> to vector<192x8xbf16>
    %22 = arith.mulf %20, %21 : vector<192x8xbf16>
    %23 = vector.extract_strided_slice %19 {offsets = [0, 1], sizes = [192, 8], strides = [1, 1]} : vector<192x14xbf16> to vector<192x8xbf16>
    %24 = vector.broadcast %3 : vector<1x8xbf16> to vector<192x8xbf16>
    %25 = arith.mulf %23, %24 : vector<192x8xbf16>
    %26 = vector.extract_strided_slice %19 {offsets = [0, 2], sizes = [192, 8], strides = [1, 1]} : vector<192x14xbf16> to vector<192x8xbf16>
    %27 = vector.broadcast %5 : vector<1x8xbf16> to vector<192x8xbf16>
    %28 = arith.mulf %26, %27 : vector<192x8xbf16>
    %29 = vector.extract_strided_slice %19 {offsets = [0, 2], sizes = [192, 8], strides = [1, 1]} : vector<192x14xbf16> to vector<192x8xbf16>
    %30 = vector.broadcast %7 : vector<1x8xbf16> to vector<192x8xbf16>
    %31 = arith.mulf %29, %30 : vector<192x8xbf16>
    %32 = vector.extract_strided_slice %19 {offsets = [0, 3], sizes = [192, 8], strides = [1, 1]} : vector<192x14xbf16> to vector<192x8xbf16>
    %33 = vector.extract_strided_slice %19 {offsets = [0, 4], sizes = [192, 8], strides = [1, 1]} : vector<192x14xbf16> to vector<192x8xbf16>
    %34 = vector.broadcast %9 : vector<1x8xbf16> to vector<192x8xbf16>
    %35 = arith.mulf %33, %34 : vector<192x8xbf16>
    %36 = vector.extract_strided_slice %19 {offsets = [0, 4], sizes = [192, 8], strides = [1, 1]} : vector<192x14xbf16> to vector<192x8xbf16>
    %37 = vector.broadcast %11 : vector<1x8xbf16> to vector<192x8xbf16>
    %38 = arith.mulf %36, %37 : vector<192x8xbf16>
    %39 = vector.extract_strided_slice %19 {offsets = [0, 5], sizes = [192, 8], strides = [1, 1]} : vector<192x14xbf16> to vector<192x8xbf16>
    %40 = vector.broadcast %13 : vector<1x8xbf16> to vector<192x8xbf16>
    %41 = arith.mulf %39, %40 : vector<192x8xbf16>
    %42 = vector.extract_strided_slice %19 {offsets = [0, 6], sizes = [192, 8], strides = [1, 1]} : vector<192x14xbf16> to vector<192x8xbf16>
    %43 = vector.broadcast %15 : vector<1x8xbf16> to vector<192x8xbf16>
    %44 = arith.mulf %42, %43 : vector<192x8xbf16>
    %45 = tpu.concatenate %22, %25, %28, %31, %32, %35, %38, %41, %44 in 0 : vector<192x8xbf16>, vector<192x8xbf16>, vector<192x8xbf16>, vector<192x8xbf16>, vector<192x8xbf16>, vector<192x8xbf16>, vector<192x8xbf16>, vector<192x8xbf16>, vector<192x8xbf16> -> vector<1728x8xbf16>
    %c0_19 = arith.constant 0 : index
    %c0_20 = arith.constant 0 : index
    %46 = vector.load %arg3[%c0_19, %c0_20] : memref<128x1728xbf16, #tpu.memory_space<vmem>>, vector<128x1728xbf16>
    %cst_21 = arith.constant dense<0.000000e+00> : vector<128x8xf32>
    %47 = tpu.matmul %46, %45, %cst_21 {dimension_numbers = #tpu.dot_dimension_numbers<[1], [0], [0], [1], [0, 0, 1, 1], [], []>} : vector<128x1728xbf16>, vector<1728x8xbf16>, vector<128x8xf32> -> vector<128x8xf32>
    %c0_22 = arith.constant 0 : index
    %c0_23 = arith.constant 0 : index
    %48 = vector.load %arg4[%c0_22, %c0_23] : memref<128x1xf32, #tpu.memory_space<vmem>>, vector<128x1xf32>
    %49 = vector.broadcast %48 : vector<128x1xf32> to vector<128x8xf32>
    %50 = arith.addf %47, %49 : vector<128x8xf32>
    %cst_24 = arith.constant 0.000000e+00 : f32
    %51 = vector.broadcast %cst_24 : f32 to vector<128x8xf32>
    %52 = arith.maximumf %50, %51 : vector<128x8xf32>
    %53 = arith.truncf %52 : vector<128x8xf32> to vector<128x8xbf16>
    %cst_25 = arith.constant 0.000000e+00 : bf16
    %54 = vector.broadcast %cst_25 : bf16 to vector<128x3xbf16>
    %55 = tpu.concatenate %54, %53, %54 in 1 : vector<128x3xbf16>, vector<128x8xbf16>, vector<128x3xbf16> -> vector<128x14xbf16>
    %56 = vector.extract_strided_slice %55 {offsets = [0, 0], sizes = [128, 8], strides = [1, 1]} : vector<128x14xbf16> to vector<128x8xbf16>
    %57 = vector.broadcast %1 : vector<1x8xbf16> to vector<128x8xbf16>
    %58 = arith.mulf %56, %57 : vector<128x8xbf16>
    %59 = vector.extract_strided_slice %55 {offsets = [0, 1], sizes = [128, 8], strides = [1, 1]} : vector<128x14xbf16> to vector<128x8xbf16>
    %60 = vector.broadcast %3 : vector<1x8xbf16> to vector<128x8xbf16>
    %61 = arith.mulf %59, %60 : vector<128x8xbf16>
    %62 = vector.extract_strided_slice %55 {offsets = [0, 2], sizes = [128, 8], strides = [1, 1]} : vector<128x14xbf16> to vector<128x8xbf16>
    %63 = vector.broadcast %5 : vector<1x8xbf16> to vector<128x8xbf16>
    %64 = arith.mulf %62, %63 : vector<128x8xbf16>
    %65 = vector.extract_strided_slice %55 {offsets = [0, 2], sizes = [128, 8], strides = [1, 1]} : vector<128x14xbf16> to vector<128x8xbf16>
    %66 = vector.broadcast %7 : vector<1x8xbf16> to vector<128x8xbf16>
    %67 = arith.mulf %65, %66 : vector<128x8xbf16>
    %68 = vector.extract_strided_slice %55 {offsets = [0, 3], sizes = [128, 8], strides = [1, 1]} : vector<128x14xbf16> to vector<128x8xbf16>
    %69 = vector.extract_strided_slice %55 {offsets = [0, 4], sizes = [128, 8], strides = [1, 1]} : vector<128x14xbf16> to vector<128x8xbf16>
    %70 = vector.broadcast %9 : vector<1x8xbf16> to vector<128x8xbf16>
    %71 = arith.mulf %69, %70 : vector<128x8xbf16>
    %72 = vector.extract_strided_slice %55 {offsets = [0, 4], sizes = [128, 8], strides = [1, 1]} : vector<128x14xbf16> to vector<128x8xbf16>
    %73 = vector.broadcast %11 : vector<1x8xbf16> to vector<128x8xbf16>
    %74 = arith.mulf %72, %73 : vector<128x8xbf16>
    %75 = vector.extract_strided_slice %55 {offsets = [0, 5], sizes = [128, 8], strides = [1, 1]} : vector<128x14xbf16> to vector<128x8xbf16>
    %76 = vector.broadcast %13 : vector<1x8xbf16> to vector<128x8xbf16>
    %77 = arith.mulf %75, %76 : vector<128x8xbf16>
    %78 = vector.extract_strided_slice %55 {offsets = [0, 6], sizes = [128, 8], strides = [1, 1]} : vector<128x14xbf16> to vector<128x8xbf16>
    %79 = vector.broadcast %15 : vector<1x8xbf16> to vector<128x8xbf16>
    %80 = arith.mulf %78, %79 : vector<128x8xbf16>
    %81 = tpu.concatenate %58, %61, %64, %67, %68, %71, %74, %77, %80 in 0 : vector<128x8xbf16>, vector<128x8xbf16>, vector<128x8xbf16>, vector<128x8xbf16>, vector<128x8xbf16>, vector<128x8xbf16>, vector<128x8xbf16>, vector<128x8xbf16>, vector<128x8xbf16> -> vector<1152x8xbf16>
    %c0_26 = arith.constant 0 : index
    %c0_27 = arith.constant 0 : index
    %82 = vector.load %arg5[%c0_26, %c0_27] : memref<64x1152xbf16, #tpu.memory_space<vmem>>, vector<64x1152xbf16>
    %cst_28 = arith.constant dense<0.000000e+00> : vector<64x8xf32>
    %83 = tpu.matmul %82, %81, %cst_28 {dimension_numbers = #tpu.dot_dimension_numbers<[1], [0], [0], [1], [0, 0, 1, 1], [], []>} : vector<64x1152xbf16>, vector<1152x8xbf16>, vector<64x8xf32> -> vector<64x8xf32>
    %c0_29 = arith.constant 0 : index
    %c0_30 = arith.constant 0 : index
    %84 = vector.load %arg6[%c0_29, %c0_30] : memref<64x1xf32, #tpu.memory_space<vmem>>, vector<64x1xf32>
    %85 = vector.broadcast %84 : vector<64x1xf32> to vector<64x8xf32>
    %86 = arith.addf %83, %85 : vector<64x8xf32>
    %cst_31 = arith.constant 0.000000e+00 : f32
    %87 = vector.broadcast %cst_31 : f32 to vector<64x8xf32>
    %88 = arith.maximumf %86, %87 : vector<64x8xf32>
    %89 = arith.truncf %88 : vector<64x8xf32> to vector<64x8xbf16>
    %cst_32 = arith.constant 0.000000e+00 : bf16
    %90 = vector.broadcast %cst_32 : bf16 to vector<64x3xbf16>
    %91 = tpu.concatenate %90, %89, %90 in 1 : vector<64x3xbf16>, vector<64x8xbf16>, vector<64x3xbf16> -> vector<64x14xbf16>
    %92 = vector.extract_strided_slice %91 {offsets = [0, 0], sizes = [64, 8], strides = [1, 1]} : vector<64x14xbf16> to vector<64x8xbf16>
    %93 = vector.broadcast %1 : vector<1x8xbf16> to vector<64x8xbf16>
    %94 = arith.mulf %92, %93 : vector<64x8xbf16>
    %95 = vector.extract_strided_slice %91 {offsets = [0, 1], sizes = [64, 8], strides = [1, 1]} : vector<64x14xbf16> to vector<64x8xbf16>
    %96 = vector.broadcast %3 : vector<1x8xbf16> to vector<64x8xbf16>
    %97 = arith.mulf %95, %96 : vector<64x8xbf16>
    %98 = vector.extract_strided_slice %91 {offsets = [0, 2], sizes = [64, 8], strides = [1, 1]} : vector<64x14xbf16> to vector<64x8xbf16>
    %99 = vector.broadcast %5 : vector<1x8xbf16> to vector<64x8xbf16>
    %100 = arith.mulf %98, %99 : vector<64x8xbf16>
    %101 = vector.extract_strided_slice %91 {offsets = [0, 2], sizes = [64, 8], strides = [1, 1]} : vector<64x14xbf16> to vector<64x8xbf16>
    %102 = vector.broadcast %7 : vector<1x8xbf16> to vector<64x8xbf16>
    %103 = arith.mulf %101, %102 : vector<64x8xbf16>
    %104 = vector.extract_strided_slice %91 {offsets = [0, 3], sizes = [64, 8], strides = [1, 1]} : vector<64x14xbf16> to vector<64x8xbf16>
    %105 = vector.extract_strided_slice %91 {offsets = [0, 4], sizes = [64, 8], strides = [1, 1]} : vector<64x14xbf16> to vector<64x8xbf16>
    %106 = vector.broadcast %9 : vector<1x8xbf16> to vector<64x8xbf16>
    %107 = arith.mulf %105, %106 : vector<64x8xbf16>
    %108 = vector.extract_strided_slice %91 {offsets = [0, 4], sizes = [64, 8], strides = [1, 1]} : vector<64x14xbf16> to vector<64x8xbf16>
    %109 = vector.broadcast %11 : vector<1x8xbf16> to vector<64x8xbf16>
    %110 = arith.mulf %108, %109 : vector<64x8xbf16>
    %111 = vector.extract_strided_slice %91 {offsets = [0, 5], sizes = [64, 8], strides = [1, 1]} : vector<64x14xbf16> to vector<64x8xbf16>
    %112 = vector.broadcast %13 : vector<1x8xbf16> to vector<64x8xbf16>
    %113 = arith.mulf %111, %112 : vector<64x8xbf16>
    %114 = vector.extract_strided_slice %91 {offsets = [0, 6], sizes = [64, 8], strides = [1, 1]} : vector<64x14xbf16> to vector<64x8xbf16>
    %115 = vector.broadcast %15 : vector<1x8xbf16> to vector<64x8xbf16>
    %116 = arith.mulf %114, %115 : vector<64x8xbf16>
    %117 = tpu.concatenate %94, %97, %100, %103, %104, %107, %110, %113, %116 in 0 : vector<64x8xbf16>, vector<64x8xbf16>, vector<64x8xbf16>, vector<64x8xbf16>, vector<64x8xbf16>, vector<64x8xbf16>, vector<64x8xbf16>, vector<64x8xbf16>, vector<64x8xbf16> -> vector<576x8xbf16>
    %c0_33 = arith.constant 0 : index
    %c0_34 = arith.constant 0 : index
    %118 = vector.load %arg7[%c0_33, %c0_34] : memref<32x576xbf16, #tpu.memory_space<vmem>>, vector<32x576xbf16>
    %cst_35 = arith.constant dense<0.000000e+00> : vector<32x8xf32>
    %119 = tpu.matmul %118, %117, %cst_35 {dimension_numbers = #tpu.dot_dimension_numbers<[1], [0], [0], [1], [0, 0, 1, 1], [], []>} : vector<32x576xbf16>, vector<576x8xbf16>, vector<32x8xf32> -> vector<32x8xf32>
    %c0_36 = arith.constant 0 : index
    %c0_37 = arith.constant 0 : index
    %120 = vector.load %arg8[%c0_36, %c0_37] : memref<32x1xf32, #tpu.memory_space<vmem>>, vector<32x1xf32>
    %121 = vector.broadcast %120 : vector<32x1xf32> to vector<32x8xf32>
    %122 = arith.addf %119, %121 : vector<32x8xf32>
    %cst_38 = arith.constant 0.000000e+00 : f32
    %123 = vector.broadcast %cst_38 : f32 to vector<32x8xf32>
    %124 = arith.maximumf %122, %123 : vector<32x8xf32>
    %125 = arith.truncf %124 : vector<32x8xf32> to vector<32x8xbf16>
    %cst_39 = arith.constant 0.000000e+00 : bf16
    %126 = vector.broadcast %cst_39 : bf16 to vector<32x3xbf16>
    %127 = tpu.concatenate %126, %125, %126 in 1 : vector<32x3xbf16>, vector<32x8xbf16>, vector<32x3xbf16> -> vector<32x14xbf16>
    %128 = vector.extract_strided_slice %127 {offsets = [0, 0], sizes = [32, 8], strides = [1, 1]} : vector<32x14xbf16> to vector<32x8xbf16>
    %129 = vector.broadcast %1 : vector<1x8xbf16> to vector<32x8xbf16>
    %130 = arith.mulf %128, %129 : vector<32x8xbf16>
    %131 = vector.extract_strided_slice %127 {offsets = [0, 1], sizes = [32, 8], strides = [1, 1]} : vector<32x14xbf16> to vector<32x8xbf16>
    %132 = vector.broadcast %3 : vector<1x8xbf16> to vector<32x8xbf16>
    %133 = arith.mulf %131, %132 : vector<32x8xbf16>
    %134 = vector.extract_strided_slice %127 {offsets = [0, 2], sizes = [32, 8], strides = [1, 1]} : vector<32x14xbf16> to vector<32x8xbf16>
    %135 = vector.broadcast %5 : vector<1x8xbf16> to vector<32x8xbf16>
    %136 = arith.mulf %134, %135 : vector<32x8xbf16>
    %137 = vector.extract_strided_slice %127 {offsets = [0, 2], sizes = [32, 8], strides = [1, 1]} : vector<32x14xbf16> to vector<32x8xbf16>
    %138 = vector.broadcast %7 : vector<1x8xbf16> to vector<32x8xbf16>
    %139 = arith.mulf %137, %138 : vector<32x8xbf16>
    %140 = vector.extract_strided_slice %127 {offsets = [0, 3], sizes = [32, 8], strides = [1, 1]} : vector<32x14xbf16> to vector<32x8xbf16>
    %141 = vector.extract_strided_slice %127 {offsets = [0, 4], sizes = [32, 8], strides = [1, 1]} : vector<32x14xbf16> to vector<32x8xbf16>
    %142 = vector.broadcast %9 : vector<1x8xbf16> to vector<32x8xbf16>
    %143 = arith.mulf %141, %142 : vector<32x8xbf16>
    %144 = vector.extract_strided_slice %127 {offsets = [0, 4], sizes = [32, 8], strides = [1, 1]} : vector<32x14xbf16> to vector<32x8xbf16>
    %145 = vector.broadcast %11 : vector<1x8xbf16> to vector<32x8xbf16>
    %146 = arith.mulf %144, %145 : vector<32x8xbf16>
    %147 = vector.extract_strided_slice %127 {offsets = [0, 5], sizes = [32, 8], strides = [1, 1]} : vector<32x14xbf16> to vector<32x8xbf16>
    %148 = vector.broadcast %13 : vector<1x8xbf16> to vector<32x8xbf16>
    %149 = arith.mulf %147, %148 : vector<32x8xbf16>
    %150 = vector.extract_strided_slice %127 {offsets = [0, 6], sizes = [32, 8], strides = [1, 1]} : vector<32x14xbf16> to vector<32x8xbf16>
    %151 = vector.broadcast %15 : vector<1x8xbf16> to vector<32x8xbf16>
    %152 = arith.mulf %150, %151 : vector<32x8xbf16>
    %153 = tpu.concatenate %130, %133, %136, %139, %140, %143, %146, %149, %152 in 0 : vector<32x8xbf16>, vector<32x8xbf16>, vector<32x8xbf16>, vector<32x8xbf16>, vector<32x8xbf16>, vector<32x8xbf16>, vector<32x8xbf16>, vector<32x8xbf16>, vector<32x8xbf16> -> vector<288x8xbf16>
    %c0_40 = arith.constant 0 : index
    %c0_41 = arith.constant 0 : index
    %154 = vector.load %arg9[%c0_40, %c0_41] : memref<64x288xbf16, #tpu.memory_space<vmem>>, vector<64x288xbf16>
    %cst_42 = arith.constant dense<0.000000e+00> : vector<64x8xf32>
    %155 = tpu.matmul %154, %153, %cst_42 {dimension_numbers = #tpu.dot_dimension_numbers<[1], [0], [0], [1], [0, 0, 1, 1], [], []>} : vector<64x288xbf16>, vector<288x8xbf16>, vector<64x8xf32> -> vector<64x8xf32>
    %c0_43 = arith.constant 0 : index
    %c0_44 = arith.constant 0 : index
    %156 = vector.load %arg10[%c0_43, %c0_44] : memref<64x1xf32, #tpu.memory_space<vmem>>, vector<64x1xf32>
    %157 = vector.broadcast %156 : vector<64x1xf32> to vector<64x8xf32>
    %158 = arith.addf %155, %157 : vector<64x8xf32>
    %cst_45 = arith.constant 0.000000e+00 : f32
    %159 = vector.broadcast %cst_45 : f32 to vector<64x8xf32>
    %160 = arith.maximumf %158, %159 : vector<64x8xf32>
    %161 = arith.truncf %160 : vector<64x8xf32> to vector<64x8xbf16>
    %cst_46 = arith.constant 0.000000e+00 : bf16
    %162 = vector.broadcast %cst_46 : bf16 to vector<64x3xbf16>
    %163 = tpu.concatenate %162, %161, %162 in 1 : vector<64x3xbf16>, vector<64x8xbf16>, vector<64x3xbf16> -> vector<64x14xbf16>
    %164 = vector.extract_strided_slice %163 {offsets = [0, 0], sizes = [64, 8], strides = [1, 1]} : vector<64x14xbf16> to vector<64x8xbf16>
    %165 = vector.broadcast %1 : vector<1x8xbf16> to vector<64x8xbf16>
    %166 = arith.mulf %164, %165 : vector<64x8xbf16>
    %167 = vector.extract_strided_slice %163 {offsets = [0, 1], sizes = [64, 8], strides = [1, 1]} : vector<64x14xbf16> to vector<64x8xbf16>
    %168 = vector.broadcast %3 : vector<1x8xbf16> to vector<64x8xbf16>
    %169 = arith.mulf %167, %168 : vector<64x8xbf16>
    %170 = vector.extract_strided_slice %163 {offsets = [0, 2], sizes = [64, 8], strides = [1, 1]} : vector<64x14xbf16> to vector<64x8xbf16>
    %171 = vector.broadcast %5 : vector<1x8xbf16> to vector<64x8xbf16>
    %172 = arith.mulf %170, %171 : vector<64x8xbf16>
    %173 = vector.extract_strided_slice %163 {offsets = [0, 2], sizes = [64, 8], strides = [1, 1]} : vector<64x14xbf16> to vector<64x8xbf16>
    %174 = vector.broadcast %7 : vector<1x8xbf16> to vector<64x8xbf16>
    %175 = arith.mulf %173, %174 : vector<64x8xbf16>
    %176 = vector.extract_strided_slice %163 {offsets = [0, 3], sizes = [64, 8], strides = [1, 1]} : vector<64x14xbf16> to vector<64x8xbf16>
    %177 = vector.extract_strided_slice %163 {offsets = [0, 4], sizes = [64, 8], strides = [1, 1]} : vector<64x14xbf16> to vector<64x8xbf16>
    %178 = vector.broadcast %9 : vector<1x8xbf16> to vector<64x8xbf16>
    %179 = arith.mulf %177, %178 : vector<64x8xbf16>
    %180 = vector.extract_strided_slice %163 {offsets = [0, 4], sizes = [64, 8], strides = [1, 1]} : vector<64x14xbf16> to vector<64x8xbf16>
    %181 = vector.broadcast %11 : vector<1x8xbf16> to vector<64x8xbf16>
    %182 = arith.mulf %180, %181 : vector<64x8xbf16>
    %183 = vector.extract_strided_slice %163 {offsets = [0, 5], sizes = [64, 8], strides = [1, 1]} : vector<64x14xbf16> to vector<64x8xbf16>
    %184 = vector.broadcast %13 : vector<1x8xbf16> to vector<64x8xbf16>
    %185 = arith.mulf %183, %184 : vector<64x8xbf16>
    %186 = vector.extract_strided_slice %163 {offsets = [0, 6], sizes = [64, 8], strides = [1, 1]} : vector<64x14xbf16> to vector<64x8xbf16>
    %187 = vector.broadcast %15 : vector<1x8xbf16> to vector<64x8xbf16>
    %188 = arith.mulf %186, %187 : vector<64x8xbf16>
    %189 = tpu.concatenate %166, %169, %172, %175, %176, %179, %182, %185, %188 in 0 : vector<64x8xbf16>, vector<64x8xbf16>, vector<64x8xbf16>, vector<64x8xbf16>, vector<64x8xbf16>, vector<64x8xbf16>, vector<64x8xbf16>, vector<64x8xbf16>, vector<64x8xbf16> -> vector<576x8xbf16>
    %c0_47 = arith.constant 0 : index
    %c0_48 = arith.constant 0 : index
    %190 = vector.load %arg11[%c0_47, %c0_48] : memref<128x576xbf16, #tpu.memory_space<vmem>>, vector<128x576xbf16>
    %cst_49 = arith.constant dense<0.000000e+00> : vector<128x8xf32>
    %191 = tpu.matmul %190, %189, %cst_49 {dimension_numbers = #tpu.dot_dimension_numbers<[1], [0], [0], [1], [0, 0, 1, 1], [], []>} : vector<128x576xbf16>, vector<576x8xbf16>, vector<128x8xf32> -> vector<128x8xf32>
    %c0_50 = arith.constant 0 : index
    %c0_51 = arith.constant 0 : index
    %192 = vector.load %arg12[%c0_50, %c0_51] : memref<128x1xf32, #tpu.memory_space<vmem>>, vector<128x1xf32>
    %193 = vector.broadcast %192 : vector<128x1xf32> to vector<128x8xf32>
    %194 = arith.addf %191, %193 : vector<128x8xf32>
    %cst_52 = arith.constant 0.000000e+00 : f32
    %195 = vector.broadcast %cst_52 : f32 to vector<128x8xf32>
    %196 = arith.maximumf %194, %195 : vector<128x8xf32>
    %197 = arith.truncf %196 : vector<128x8xf32> to vector<128x8xbf16>
    %cst_53 = arith.constant 0.000000e+00 : bf16
    %198 = vector.broadcast %cst_53 : bf16 to vector<128x3xbf16>
    %199 = tpu.concatenate %198, %197, %198 in 1 : vector<128x3xbf16>, vector<128x8xbf16>, vector<128x3xbf16> -> vector<128x14xbf16>
    %200 = vector.extract_strided_slice %199 {offsets = [0, 0], sizes = [128, 8], strides = [1, 1]} : vector<128x14xbf16> to vector<128x8xbf16>
    %201 = vector.broadcast %1 : vector<1x8xbf16> to vector<128x8xbf16>
    %202 = arith.mulf %200, %201 : vector<128x8xbf16>
    %203 = vector.extract_strided_slice %199 {offsets = [0, 1], sizes = [128, 8], strides = [1, 1]} : vector<128x14xbf16> to vector<128x8xbf16>
    %204 = vector.broadcast %3 : vector<1x8xbf16> to vector<128x8xbf16>
    %205 = arith.mulf %203, %204 : vector<128x8xbf16>
    %206 = vector.extract_strided_slice %199 {offsets = [0, 2], sizes = [128, 8], strides = [1, 1]} : vector<128x14xbf16> to vector<128x8xbf16>
    %207 = vector.broadcast %5 : vector<1x8xbf16> to vector<128x8xbf16>
    %208 = arith.mulf %206, %207 : vector<128x8xbf16>
    %209 = vector.extract_strided_slice %199 {offsets = [0, 2], sizes = [128, 8], strides = [1, 1]} : vector<128x14xbf16> to vector<128x8xbf16>
    %210 = vector.broadcast %7 : vector<1x8xbf16> to vector<128x8xbf16>
    %211 = arith.mulf %209, %210 : vector<128x8xbf16>
    %212 = vector.extract_strided_slice %199 {offsets = [0, 3], sizes = [128, 8], strides = [1, 1]} : vector<128x14xbf16> to vector<128x8xbf16>
    %213 = vector.extract_strided_slice %199 {offsets = [0, 4], sizes = [128, 8], strides = [1, 1]} : vector<128x14xbf16> to vector<128x8xbf16>
    %214 = vector.broadcast %9 : vector<1x8xbf16> to vector<128x8xbf16>
    %215 = arith.mulf %213, %214 : vector<128x8xbf16>
    %216 = vector.extract_strided_slice %199 {offsets = [0, 4], sizes = [128, 8], strides = [1, 1]} : vector<128x14xbf16> to vector<128x8xbf16>
    %217 = vector.broadcast %11 : vector<1x8xbf16> to vector<128x8xbf16>
    %218 = arith.mulf %216, %217 : vector<128x8xbf16>
    %219 = vector.extract_strided_slice %199 {offsets = [0, 5], sizes = [128, 8], strides = [1, 1]} : vector<128x14xbf16> to vector<128x8xbf16>
    %220 = vector.broadcast %13 : vector<1x8xbf16> to vector<128x8xbf16>
    %221 = arith.mulf %219, %220 : vector<128x8xbf16>
    %222 = vector.extract_strided_slice %199 {offsets = [0, 6], sizes = [128, 8], strides = [1, 1]} : vector<128x14xbf16> to vector<128x8xbf16>
    %223 = vector.broadcast %15 : vector<1x8xbf16> to vector<128x8xbf16>
    %224 = arith.mulf %222, %223 : vector<128x8xbf16>
    %225 = tpu.concatenate %202, %205, %208, %211, %212, %215, %218, %221, %224 in 0 : vector<128x8xbf16>, vector<128x8xbf16>, vector<128x8xbf16>, vector<128x8xbf16>, vector<128x8xbf16>, vector<128x8xbf16>, vector<128x8xbf16>, vector<128x8xbf16>, vector<128x8xbf16> -> vector<1152x8xbf16>
    %c0_54 = arith.constant 0 : index
    %c0_55 = arith.constant 0 : index
    %226 = vector.load %arg13[%c0_54, %c0_55] : memref<192x1152xbf16, #tpu.memory_space<vmem>>, vector<192x1152xbf16>
    %cst_56 = arith.constant dense<0.000000e+00> : vector<192x8xf32>
    %227 = tpu.matmul %226, %225, %cst_56 {dimension_numbers = #tpu.dot_dimension_numbers<[1], [0], [0], [1], [0, 0, 1, 1], [], []>} : vector<192x1152xbf16>, vector<1152x8xbf16>, vector<192x8xf32> -> vector<192x8xf32>
    %c0_57 = arith.constant 0 : index
    %c0_58 = arith.constant 0 : index
    %228 = vector.load %arg14[%c0_57, %c0_58] : memref<192x1xf32, #tpu.memory_space<vmem>>, vector<192x1xf32>
    %229 = vector.broadcast %228 : vector<192x1xf32> to vector<192x8xf32>
    %230 = arith.addf %227, %229 : vector<192x8xf32>
    %231 = math.tanh %230 : vector<192x8xf32>
    %c0_59 = arith.constant 0 : index
    %c0_60 = arith.constant 0 : index
    %c0_61 = arith.constant 0 : index
    %232 = vector.load %arg15[%c0_59, %c0_60, %c0_61] : memref<1x192x8xf32, #tpu.memory_space<vmem>>, vector<1x192x8xf32>
    %233 = vector.shape_cast %232 : vector<1x192x8xf32> to vector<192x8xf32>
    %234 = vector.shape_cast %231 : vector<192x8xf32> to vector<1x192x8xf32>
    tpu.vector_store %arg15[%c0_59, %c0_60, %c0_61], %234 {strides = array<i32>} : memref<1x192x8xf32, #tpu.memory_space<vmem>>, vector<1x192x8xf32>,
    return
  }
  func.func @transform_0(%arg0: i32) -> (i32, i32, i32) {
    %c0_i32 = arith.constant 0 : i32
    %c0_i32_0 = arith.constant 0 : i32
    %c0_i32_1 = arith.constant 0 : i32
    %c0_i32_2 = arith.constant 0 : i32
    return %c0_i32, %c0_i32_0, %c0_i32_1 : i32, i32, i32
  }
  func.func @transform_1(%arg0: i32) -> (i32, i32, i32) {
    %c0_i32 = arith.constant 0 : i32
    %c0_i32_0 = arith.constant 0 : i32
    %c0_i32_1 = arith.constant 0 : i32
    return %arg0, %c0_i32, %c0_i32_0 : i32, i32, i32
  }
  func.func @transform_2(%arg0: i32) -> (i32, i32) {
    %c0_i32 = arith.constant 0 : i32
    %c0_i32_0 = arith.constant 0 : i32
    %c0_i32_1 = arith.constant 0 : i32
    return %c0_i32, %c0_i32_0 : i32, i32
  }
  func.func @transform_3(%arg0: i32) -> (i32, i32) {
    %c0_i32 = arith.constant 0 : i32
    %c0_i32_0 = arith.constant 0 : i32
    %c0_i32_1 = arith.constant 0 : i32
    return %c0_i32, %c0_i32_0 : i32, i32
  }
  func.func @transform_4(%arg0: i32) -> (i32, i32) {
    %c0_i32 = arith.constant 0 : i32
    %c0_i32_0 = arith.constant 0 : i32
    %c0_i32_1 = arith.constant 0 : i32
    return %c0_i32, %c0_i32_0 : i32, i32
  }
  func.func @transform_5(%arg0: i32) -> (i32, i32) {
    %c0_i32 = arith.constant 0 : i32
    %c0_i32_0 = arith.constant 0 : i32
    %c0_i32_1 = arith.constant 0 : i32
    return %c0_i32, %c0_i32_0 : i32, i32
  }
  func.func @transform_6(%arg0: i32) -> (i32, i32) {
    %c0_i32 = arith.constant 0 : i32
    %c0_i32_0 = arith.constant 0 : i32
    %c0_i32_1 = arith.constant 0 : i32
    return %c0_i32, %c0_i32_0 : i32, i32
  }
  func.func @transform_7(%arg0: i32) -> (i32, i32) {
    %c0_i32 = arith.constant 0 : i32
    %c0_i32_0 = arith.constant 0 : i32
    %c0_i32_1 = arith.constant 0 : i32
    return %c0_i32, %c0_i32_0 : i32, i32
  }
  func.func @transform_8(%arg0: i32) -> (i32, i32) {
    %c0_i32 = arith.constant 0 : i32
    %c0_i32_0 = arith.constant 0 : i32
    %c0_i32_1 = arith.constant 0 : i32
    return %c0_i32, %c0_i32_0 : i32, i32
  }
  func.func @transform_9(%arg0: i32) -> (i32, i32) {
    %c0_i32 = arith.constant 0 : i32
    %c0_i32_0 = arith.constant 0 : i32
    %c0_i32_1 = arith.constant 0 : i32
    return %c0_i32, %c0_i32_0 : i32, i32
  }
  func.func @transform_10(%arg0: i32) -> (i32, i32) {
    %c0_i32 = arith.constant 0 : i32
    %c0_i32_0 = arith.constant 0 : i32
    %c0_i32_1 = arith.constant 0 : i32
    return %c0_i32, %c0_i32_0 : i32, i32
  }
  func.func @transform_11(%arg0: i32) -> (i32, i32) {
    %c0_i32 = arith.constant 0 : i32
    %c0_i32_0 = arith.constant 0 : i32
    %c0_i32_1 = arith.constant 0 : i32
    return %c0_i32, %c0_i32_0 : i32, i32
  }
  func.func @transform_12(%arg0: i32) -> (i32, i32) {
    %c0_i32 = arith.constant 0 : i32
    %c0_i32_0 = arith.constant 0 : i32
    %c0_i32_1 = arith.constant 0 : i32
    return %c0_i32, %c0_i32_0 : i32, i32
  }
  func.func @transform_13(%arg0: i32) -> (i32, i32) {
    %c0_i32 = arith.constant 0 : i32
    %c0_i32_0 = arith.constant 0 : i32
    %c0_i32_1 = arith.constant 0 : i32
    return %c0_i32, %c0_i32_0 : i32, i32
  }
  func.func @transform_14(%arg0: i32) -> (i32, i32, i32) {
    %c0_i32 = arith.constant 0 : i32
    %c0_i32_0 = arith.constant 0 : i32
    %c0_i32_1 = arith.constant 0 : i32
    return %arg0, %c0_i32, %c0_i32_0 : i32, i32, i32
  }
}

</mosaic_0001>

<llo_original>
// kernel: generator_forward.1
$region0: #{generator_forward.1}
  #allocation0 [shape = 'u32[]', space=smem, size = 0x4, offset = 0x4, fixed_abs, tag = 'smem constant byte address 0x4 - core index']
  #allocation1 [shape = 'u32[144,128]{1,0:T(1,128)}', space=vmem, size = 0x12000, scoped, tag = 'internal scratch']
  %s0 = inlined_call_operand.hbm [shape: bf16[9,1,8], index: 0, kind: input, shape index: {}]
  %s1 = inlined_call_operand.hbm [shape: bf16[1,192,8], index: 1, kind: input, shape index: {}]
  %s2 = inlined_call_operand.hbm [shape: bf16[128,1728], index: 2, kind: input, shape index: {}]
  %s3 = inlined_call_operand.hbm [shape: f32[128,1], index: 3, kind: input, shape index: {}]
  %s4 = inlined_call_operand.hbm [shape: bf16[64,1152], index: 4, kind: input, shape index: {}]
  %s5 = inlined_call_operand.hbm [shape: f32[64,1], index: 5, kind: input, shape index: {}]
  %s6 = inlined_call_operand.hbm [shape: bf16[32,576], index: 6, kind: input, shape index: {}]
  %s7 = inlined_call_operand.hbm [shape: f32[32,1], index: 7, kind: input, shape index: {}]
  %s8 = inlined_call_operand.hbm [shape: bf16[64,288], index: 8, kind: input, shape index: {}]
  %s9 = inlined_call_operand.hbm [shape: f32[64,1], index: 9, kind: input, shape index: {}]
  %s10 = inlined_call_operand.hbm [shape: bf16[128,576], index: 10, kind: input, shape index: {}]
  %s11 = inlined_call_operand.hbm [shape: f32[128,1], index: 11, kind: input, shape index: {}]
  %s12 = inlined_call_operand.hbm [shape: bf16[192,1152], index: 12, kind: input, shape index: {}]
  %s13 = inlined_call_operand.hbm [shape: f32[192,1], index: 13, kind: input, shape index: {}]
  %s14 = inlined_call_operand.hbm [shape: f32[1,192,8], index: 14, kind: output, shape index: {}]
  %s15 = sld [smem:[#allocation0]]
  $region122: #{generator_forward.1} parent=0
    _
  %s17 = ssub.s32 1, %s15
  %s18 = scalar_select 0, %s17, %s15
  $region1: #{generator_forward.1} parent=0
    #allocation2 [shape = 'u8[4608]{0}', space=vmem, size = 0x1400, scoped, tag = 'input window, operand 0, single buffered']
    #allocation3 [shape = 's32[1]{0}', space=sflag, size = 0x4, scoped, tag = 'scoped memory for generator_forward.1']
    #allocation4 [shape = 's32[1]{0}', space=sflag, size = 0x4, scoped, tag = 'scoped memory for generator_forward.1']
    #allocation5 [shape = 'u8[49152]{0}', space=vmem, size = 0xc000, scoped, tag = 'input window, operand 1, single buffered']
    #allocation6 [shape = 's32[1]{0}', space=sflag, size = 0x4, scoped, tag = 'scoped memory for generator_forward.1']
    #allocation7 [shape = 'u8[458752]{0}', space=vmem, size = 0x70000, scoped, tag = 'input window, operand 2, single buffered']
    #allocation8 [shape = 'u8[65536]{0}', space=vmem, size = 0x10000, scoped, tag = 'input window, operand 3, single buffered']
    #allocation9 [shape = 's32[1]{0}', space=sflag, size = 0x4, scoped, tag = 'scoped memory for generator_forward.1']
    #allocation10 [shape = 'u8[147456]{0}', space=vmem, size = 0x24000, scoped, tag = 'input window, operand 4, single buffered']
    #allocation11 [shape = 'u8[32768]{0}', space=vmem, size = 0x8000, scoped, tag = 'input window, operand 5, single buffered']
    #allocation12 [shape = 's32[1]{0}', space=sflag, size = 0x4, scoped, tag = 'scoped memory for generator_forward.1']
    #allocation13 [shape = 'u8[40960]{0}', space=vmem, size = 0xa000, scoped, tag = 'input window, operand 6, single buffered']
    #allocation14 [shape = 'u8[16384]{0}', space=vmem, size = 0x4000, scoped, tag = 'input window, operand 7, single buffered']
    #allocation15 [shape = 's32[1]{0}', space=sflag, size = 0x4, scoped, tag = 'scoped memory for generator_forward.1']
    #allocation16 [shape = 'u8[49152]{0}', space=vmem, size = 0xc000, scoped, tag = 'input window, operand 8, single buffered']
    #allocation17 [shape = 'u8[32768]{0}', space=vmem, size = 0x8000, scoped, tag = 'input window, operand 9, single buffered']
    #allocation18 [shape = 's32[1]{0}', space=sflag, size = 0x4, scoped, tag = 'scoped memory for generator_forward.1']
    #allocation19 [shape = 'u8[163840]{0}', space=vmem, size = 0x28000, scoped, tag = 'input window, operand 10, single buffered']
    #allocation20 [shape = 'u8[65536]{0}', space=vmem, size = 0x10000, scoped, tag = 'input window, operand 11, single buffered']
    #allocation21 [shape = 's32[1]{0}', space=sflag, size = 0x4, scoped, tag = 'scoped memory for generator_forward.1']
    #allocation22 [shape = 'u8[442368]{0}', space=vmem, size = 0x6c000, scoped, tag = 'input window, operand 12, single buffered']
    #allocation23 [shape = 'u8[98304]{0}', space=vmem, size = 0x18000, scoped, tag = 'input window, operand 13, single buffered']
    #allocation24 [shape = 's32[1]{0}', space=sflag, size = 0x4, scoped, tag = 'scoped memory for generator_forward.1']
    #allocation25 [shape = 'u8[98304]{0}', space=vmem, size = 0x18000, scoped, tag = 'output window, operand 0, single buffered']
    %19 = vsyncpa [#allocation3], 0
    %20 = vsyncpa [#allocation6], 0
    %21 = vsyncpa [#allocation9], 0
    %22 = vsyncpa [#allocation12], 0
    %23 = vsyncpa [#allocation15], 0
    %24 = vsyncpa [#allocation18], 0
    %25 = vsyncpa [#allocation21], 0
    %26 = vsyncpa [#allocation24], 0
    %27 = vsyncpa [#allocation4], 0
    // Predicated region
    $region2: #{generator_forward.1} parent=1 // pred_check
      _
    $region3: #{generator_forward.1} parent=1 // pred_check_branch
      %29 = sbr.rel (0) target = $region5
    $region4: #{generator_forward.1} parent=1 // pred_region
      %s31 = ssub.s32 144, 144
      %32 = vsyncadd [#allocation3], %s31
      %s33 = sshll.u32 [#allocation2], 4
      %s34 = int_to_ptr.vmem [resolvable:$true] %s33
      %39 = dma.hbm_to_vmem [thread:$0]  %s0, 144, %s34, [#allocation3], 16, 16, 1
    $region5: #{generator_forward.1} parent=1 // pred_fallthru
      _
    // Predicated region
    $region6: #{generator_forward.1} parent=1 // pred_check
      _
    $region7: #{generator_forward.1} parent=1 // pred_check_branch
      %41 = sbr.rel (0) target = $region9
    $region8: #{generator_forward.1} parent=1 // pred_region
      %s43 = ssub.s32 1536, 1536
      %44 = vsyncadd [#allocation6], %s43
      %s45 = sshll.u32 [#allocation5], 4
      %s46 = int_to_ptr.vmem [resolvable:$true] %s45
      %51 = dma.hbm_to_vmem [thread:$0]  %s1, 1536, %s46, [#allocation6], 64, 64, 4
    $region9: #{generator_forward.1} parent=1 // pred_fallthru
      _
    // Predicated region
    $region10: #{generator_forward.1} parent=1 // pred_check
      _
    $region11: #{generator_forward.1} parent=1 // pred_check_branch
      %53 = sbr.rel (0) target = $region13
    $region12: #{generator_forward.1} parent=1 // pred_region
      %s55 = ssub.s32 14336, 14336
      %56 = vsyncadd [#allocation6], %s55
      %s57 = sshll.u32 [#allocation7], 4
      %s58 = int_to_ptr.vmem [resolvable:$true] %s57
      %63 = dma.hbm_to_vmem [thread:$0]  %s2, 14336, %s58, [#allocation6], 896, 896, 56
    $region13: #{generator_forward.1} parent=1 // pred_fallthru
      _
    // Predicated region
    $region14: #{generator_forward.1} parent=1 // pred_check
      _
    $region15: #{generator_forward.1} parent=1 // pred_check_branch
      %65 = sbr.rel (0) target = $region17
    $region16: #{generator_forward.1} parent=1 // pred_region
      %s67 = ssub.s32 2048, 2048
      %68 = vsyncadd [#allocation9], %s67
      %s69 = sshll.u32 [#allocation8], 4
      %s70 = int_to_ptr.vmem [resolvable:$true] %s69
      %75 = dma.hbm_to_vmem [thread:$0]  %s3, 2048, %s70, [#allocation9], 128, 128, 8
    $region17: #{generator_forward.1} parent=1 // pred_fallthru
      _
    // Predicated region
    $region18: #{generator_forward.1} parent=1 // pred_check
      _
    $region19: #{generator_forward.1} parent=1 // pred_check_branch
      %77 = sbr.rel (0) target = $region21
    $region20: #{generator_forward.1} parent=1 // pred_region
      %s79 = ssub.s32 4608, 4608
      %80 = vsyncadd [#allocation9], %s79
      %s81 = sshll.u32 [#allocation10], 4
      %s82 = int_to_ptr.vmem [resolvable:$true] %s81
      %87 = dma.hbm_to_vmem [thread:$0]  %s4, 4608, %s82, [#allocation9], 576, 576, 36
    $region21: #{generator_forward.1} parent=1 // pred_fallthru
      _
    // Predicated region
    $region22: #{generator_forward.1} parent=1 // pred_check
      _
    $region23: #{generator_forward.1} parent=1 // pred_check_branch
      %89 = sbr.rel (0) target = $region25
    $region24: #{generator_forward.1} parent=1 // pred_region
      %s91 = ssub.s32 1024, 1024
      %92 = vsyncadd [#allocation12], %s91
      %s93 = sshll.u32 [#allocation11], 4
      %s94 = int_to_ptr.vmem [resolvable:$true] %s93
      %99 = dma.hbm_to_vmem [thread:$0]  %s5, 1024, %s94, [#allocation12], 128, 128, 8
    $region25: #{generator_forward.1} parent=1 // pred_fallthru
      _
    // Predicated region
    $region26: #{generator_forward.1} parent=1 // pred_check
      _
    $region27: #{generator_forward.1} parent=1 // pred_check_branch
      %101 = sbr.rel (0) target = $region29
    $region28: #{generator_forward.1} parent=1 // pred_region
      %s103 = ssub.s32 1280, 1280
      %104 = vsyncadd [#allocation12], %s103
      %s105 = sshll.u32 [#allocation13], 4
      %s106 = int_to_ptr.vmem [resolvable:$true] %s105
      %111 = dma.hbm_to_vmem [thread:$0]  %s6, 1280, %s106, [#allocation12], 320, 320, 20
    $region29: #{generator_forward.1} parent=1 // pred_fallthru
      _
    // Predicated region
    $region30: #{generator_forward.1} parent=1 // pred_check
      _
    $region31: #{generator_forward.1} parent=1 // pred_check_branch
      %113 = sbr.rel (0) target = $region33
    $region32: #{generator_forward.1} parent=1 // pred_region
      %s115 = ssub.s32 512, 512
      %116 = vsyncadd [#allocation15], %s115
      %s117 = sshll.u32 [#allocation14], 4
      %s118 = int_to_ptr.vmem [resolvable:$true] %s117
      %123 = dma.hbm_to_vmem [thread:$0]  %s7, 512, %s118, [#allocation15], 128, 128, 8
    $region33: #{generator_forward.1} parent=1 // pred_fallthru
      _
    // Predicated region
    $region34: #{generator_forward.1} parent=1 // pred_check
      _
    $region35: #{generator_forward.1} parent=1 // pred_check_branch
      %125 = sbr.rel (0) target = $region37
    $region36: #{generator_forward.1} parent=1 // pred_region
      %s127 = ssub.s32 1536, 1536
      %128 = vsyncadd [#allocation15], %s127
      %s129 = sshll.u32 [#allocation16], 4
      %s130 = int_to_ptr.vmem [resolvable:$true] %s129
      %135 = dma.hbm_to_vmem [thread:$0]  %s8, 1536, %s130, [#allocation15], 192, 192, 12
    $region37: #{generator_forward.1} parent=1 // pred_fallthru
      _
    // Predicated region
    $region38: #{generator_forward.1} parent=1 // pred_check
      _
    $region39: #{generator_forward.1} parent=1 // pred_check_branch
      %137 = sbr.rel (0) target = $region41
    $region40: #{generator_forward.1} parent=1 // pred_region
      %s139 = ssub.s32 1024, 1024
      %140 = vsyncadd [#allocation18], %s139
      %s141 = sshll.u32 [#allocation17], 4
      %s142 = int_to_ptr.vmem [resolvable:$true] %s141
      %147 = dma.hbm_to_vmem [thread:$0]  %s9, 1024, %s142, [#allocation18], 128, 128, 8
    $region41: #{generator_forward.1} parent=1 // pred_fallthru
      _
    // Predicated region
    $region42: #{generator_forward.1} parent=1 // pred_check
      _
    $region43: #{generator_forward.1} parent=1 // pred_check_branch
      %149 = sbr.rel (0) target = $region45
    $region44: #{generator_forward.1} parent=1 // pred_region
      %s151 = ssub.s32 5120, 5120
      %152 = vsyncadd [#allocation18], %s151
      %s153 = sshll.u32 [#allocation19], 4
      %s154 = int_to_ptr.vmem [resolvable:$true] %s153
      %159 = dma.hbm_to_vmem [thread:$0]  %s10, 5120, %s154, [#allocation18], 320, 320, 20
    $region45: #{generator_forward.1} parent=1 // pred_fallthru
      _
    // Predicated region
    $region46: #{generator_forward.1} parent=1 // pred_check
      _
    $region47: #{generator_forward.1} parent=1 // pred_check_branch
      %161 = sbr.rel (0) target = $region49
    $region48: #{generator_forward.1} parent=1 // pred_region
      %s163 = ssub.s32 2048, 2048
      %164 = vsyncadd [#allocation21], %s163
      %s165 = sshll.u32 [#allocation20], 4
      %s166 = int_to_ptr.vmem [resolvable:$true] %s165
      %171 = dma.hbm_to_vmem [thread:$0]  %s11, 2048, %s166, [#allocation21], 128, 128, 8
    $region49: #{generator_forward.1} parent=1 // pred_fallthru
      _
    // Predicated region
    $region50: #{generator_forward.1} parent=1 // pred_check
      _
    $region51: #{generator_forward.1} parent=1 // pred_check_branch
      %173 = sbr.rel (0) target = $region53
    $region52: #{generator_forward.1} parent=1 // pred_region
      %s175 = ssub.s32 13824, 13824
      %176 = vsyncadd [#allocation21], %s175
      %s177 = sshll.u32 [#allocation22], 4
      %s178 = int_to_ptr.vmem [resolvable:$true] %s177
      %183 = dma.hbm_to_vmem [thread:$0]  %s12, 13824, %s178, [#allocation21], 576, 576, 36
    $region53: #{generator_forward.1} parent=1 // pred_fallthru
      _
    // Predicated region
    $region54: #{generator_forward.1} parent=1 // pred_check
      _
    $region55: #{generator_forward.1} parent=1 // pred_check_branch
      %185 = sbr.rel (0) target = $region57
    $region56: #{generator_forward.1} parent=1 // pred_region
      %s187 = ssub.s32 3072, 3072
      %188 = vsyncadd [#allocation24], %s187
      %s189 = sshll.u32 [#allocation23], 4
      %s190 = int_to_ptr.vmem [resolvable:$true] %s189
      %195 = dma.hbm_to_vmem [thread:$0]  %s13, 3072, %s190, [#allocation24], 128, 128, 8
    $region57: #{generator_forward.1} parent=1 // pred_fallthru
      _
    // Predicated region
    $region58: #{generator_forward.1} parent=1 // pred_check
      _
    $region59: #{generator_forward.1} parent=1 // pred_check_branch
      %197 = sbr.rel (0) target = $region61
    $region60: #{generator_forward.1} parent=1 // pred_region
      %198 = dma.done [#allocation3], 144
    $region61: #{generator_forward.1} parent=1 // pred_fallthru
      _
    // Predicated region
    $region62: #{generator_forward.1} parent=1 // pred_check
      _
    $region63: #{generator_forward.1} parent=1 // pred_check_branch
      %200 = sbr.rel (0) target = $region65
    $region64: #{generator_forward.1} parent=1 // pred_region
      %201 = dma.done [#allocation6], 1536
    $region65: #{generator_forward.1} parent=1 // pred_fallthru
      _
    // Predicated region
    $region66: #{generator_forward.1} parent=1 // pred_check
      _
    $region67: #{generator_forward.1} parent=1 // pred_check_branch
      %203 = sbr.rel (0) target = $region69
    $region68: #{generator_forward.1} parent=1 // pred_region
      %204 = dma.done [#allocation6], 14336
    $region69: #{generator_forward.1} parent=1 // pred_fallthru
      _
    // Predicated region
    $region70: #{generator_forward.1} parent=1 // pred_check
      _
    $region71: #{generator_forward.1} parent=1 // pred_check_branch
      %206 = sbr.rel (0) target = $region73
    $region72: #{generator_forward.1} parent=1 // pred_region
      %207 = dma.done [#allocation9], 2048
    $region73: #{generator_forward.1} parent=1 // pred_fallthru
      _
    // Predicated region
    $region74: #{generator_forward.1} parent=1 // pred_check
      _
    $region75: #{generator_forward.1} parent=1 // pred_check_branch
      %209 = sbr.rel (0) target = $region77
    $region76: #{generator_forward.1} parent=1 // pred_region
      %210 = dma.done [#allocation9], 4608
    $region77: #{generator_forward.1} parent=1 // pred_fallthru
      _
    // Predicated region
    $region78: #{generator_forward.1} parent=1 // pred_check
      _
    $region79: #{generator_forward.1} parent=1 // pred_check_branch
      %212 = sbr.rel (0) target = $region81
    $region80: #{generator_forward.1} parent=1 // pred_region
      %213 = dma.done [#allocation12], 1024
    $region81: #{generator_forward.1} parent=1 // pred_fallthru
      _
    // Predicated region
    $region82: #{generator_forward.1} parent=1 // pred_check
      _
    $region83: #{generator_forward.1} parent=1 // pred_check_branch
      %215 = sbr.rel (0) target = $region85
    $region84: #{generator_forward.1} parent=1 // pred_region
      %216 = dma.done [#allocation12], 1280
    $region85: #{generator_forward.1} parent=1 // pred_fallthru
      _
    // Predicated region
    $region86: #{generator_forward.1} parent=1 // pred_check
      _
    $region87: #{generator_forward.1} parent=1 // pred_check_branch
      %218 = sbr.rel (0) target = $region89
    $region88: #{generator_forward.1} parent=1 // pred_region
      %219 = dma.done [#allocation15], 512
    $region89: #{generator_forward.1} parent=1 // pred_fallthru
      _
    // Predicated region
    $region90: #{generator_forward.1} parent=1 // pred_check
      _
    $region91: #{generator_forward.1} parent=1 // pred_check_branch
      %221 = sbr.rel (0) target = $region93
    $region92: #{generator_forward.1} parent=1 // pred_region
      %222 = dma.done [#allocation15], 1536
    $region93: #{generator_forward.1} parent=1 // pred_fallthru
      _
    // Predicated region
    $region94: #{generator_forward.1} parent=1 // pred_check
      _
    $region95: #{generator_forward.1} parent=1 // pred_check_branch
      %224 = sbr.rel (0) target = $region97
    $region96: #{generator_forward.1} parent=1 // pred_region
      %225 = dma.done [#allocation18], 1024
    $region97: #{generator_forward.1} parent=1 // pred_fallthru
      _
    // Predicated region
    $region98: #{generator_forward.1} parent=1 // pred_check
      _
    $region99: #{generator_forward.1} parent=1 // pred_check_branch
      %227 = sbr.rel (0) target = $region101
    $region100: #{generator_forward.1} parent=1 // pred_region
      %228 = dma.done [#allocation18], 5120
    $region101: #{generator_forward.1} parent=1 // pred_fallthru
      _
    // Predicated region
    $region102: #{generator_forward.1} parent=1 // pred_check
      _
    $region103: #{generator_forward.1} parent=1 // pred_check_branch
      %230 = sbr.rel (0) target = $region105
    $region104: #{generator_forward.1} parent=1 // pred_region
      %231 = dma.done [#allocation21], 2048
    $region105: #{generator_forward.1} parent=1 // pred_fallthru
      _
    // Predicated region
    $region106: #{generator_forward.1} parent=1 // pred_check
      _
    $region107: #{generator_forward.1} parent=1 // pred_check_branch
      %233 = sbr.rel (0) target = $region109
    $region108: #{generator_forward.1} parent=1 // pred_region
      %234 = dma.done [#allocation21], 13824
    $region109: #{generator_forward.1} parent=1 // pred_fallthru
      _
    // Predicated region
    $region110: #{generator_forward.1} parent=1 // pred_check
      _
    $region111: #{generator_forward.1} parent=1 // pred_check_branch
      %236 = sbr.rel (0) target = $region113
    $region112: #{generator_forward.1} parent=1 // pred_region
      %237 = dma.done [#allocation24], 3072
    $region113: #{generator_forward.1} parent=1 // pred_fallthru
      _
    %v239 = vld [vmem:[#allocation2] sm:$0x1]
    %s240 = scalar_lea.vmem [#allocation2], 1
    %v241 = vld [vmem:[%s240] sm:$0x1]
    %s242 = scalar_lea.vmem [#allocation2], 2
    %v243 = vld [vmem:[%s242] sm:$0x1]
    %s244 = scalar_lea.vmem [#allocation2], 3
    %v245 = vld [vmem:[%s244] sm:$0x1]
    %s246 = scalar_lea.vmem [#allocation2], 5
    %v247 = vld [vmem:[%s246] sm:$0x1]
    %s248 = scalar_lea.vmem [#allocation2], 6
    %v249 = vld [vmem:[%s248] sm:$0x1]
    %s250 = scalar_lea.vmem [#allocation2], 7
    %v251 = vld [vmem:[%s250] sm:$0x1]
    %s252 = scalar_lea.vmem [#allocation2], 8
    %v253 = vld [vmem:[%s252] sm:$0x1]
    %v254 = vld [vmem:[#allocation5] sm:$0xf]
    %v255 = vld [vmem:[#allocation5 + $0x4] sm:$0xf]
    %v256 = vld [vmem:[#allocation5 + $0x8] sm:$0xf]
    %v257 = vld [vmem:[#allocation5 + $0xc] sm:$0xf]
    %v258 = vld [vmem:[#allocation5 + $0x10] sm:$0xf]
    %v259 = vld [vmem:[#allocation5 + $0x14] sm:$0xf]
    %v260 = vld [vmem:[#allocation5 + $0x18] sm:$0xf]
    %v261 = vld [vmem:[#allocation5 + $0x1c] sm:$0xf]
    %v262 = vld [vmem:[#allocation5 + $0x20] sm:$0xf]
    %v263 = vld [vmem:[#allocation5 + $0x24] sm:$0xf]
    %v264 = vld [vmem:[#allocation5 + $0x28] sm:$0xf]
    %v265 = vld [vmem:[#allocation5 + $0x2c] sm:$0xf]
    %v266 = vld [vmem:[#allocation5 + $0x30] sm:$0xf]
    %v267 = vld [vmem:[#allocation5 + $0x34] sm:$0xf]
    %v268 = vld [vmem:[#allocation5 + $0x38] sm:$0xf]
    %v269 = vld [vmem:[#allocation5 + $0x3c] sm:$0xf]
    %v270 = vld [vmem:[#allocation5 + $0x40] sm:$0xf]
    %v271 = vld [vmem:[#allocation5 + $0x44] sm:$0xf]
    %v272 = vld [vmem:[#allocation5 + $0x48] sm:$0xf]
    %v273 = vld [vmem:[#allocation5 + $0x4c] sm:$0xf]
    %v274 = vld [vmem:[#allocation5 + $0x50] sm:$0xf]
    %v275 = vld [vmem:[#allocation5 + $0x54] sm:$0xf]
    %v276 = vld [vmem:[#allocation5 + $0x58] sm:$0xf]
    %v277 = vld [vmem:[#allocation5 + $0x5c] sm:$0xf]
    %v302 = vunpack.c.l.b16 %v254
    %v303 = vunpack.c.l.b16 %v255
    %v304 = vunpack.c.l.b16 %v256
    %v305 = vunpack.c.l.b16 %v257
    %v306 = vunpack.c.l.b16 %v258
    %v307 = vunpack.c.l.b16 %v259
    %v308 = vunpack.c.l.b16 %v260
    %v309 = vunpack.c.l.b16 %v261
    %v310 = vunpack.c.l.b16 %v262
    %v311 = vunpack.c.l.b16 %v263
    %v312 = vunpack.c.l.b16 %v264
    %v313 = vunpack.c.l.b16 %v265
    %v314 = vunpack.c.l.b16 %v266
    %v315 = vunpack.c.l.b16 %v267
    %v316 = vunpack.c.l.b16 %v268
    %v317 = vunpack.c.l.b16 %v269
    %v318 = vunpack.c.l.b16 %v270
    %v319 = vunpack.c.l.b16 %v271
    %v320 = vunpack.c.l.b16 %v272
    %v321 = vunpack.c.l.b16 %v273
    %v322 = vunpack.c.l.b16 %v274
    %v323 = vunpack.c.l.b16 %v275
    %v324 = vunpack.c.l.b16 %v276
    %v325 = vunpack.c.l.b16 %v277
    %v326 = vpack.c.b16 %v303, %v302
    %v327 = vpack.c.b16 %v305, %v304
    %v328 = vpack.c.b16 %v307, %v306
    %v329 = vpack.c.b16 %v309, %v308
    %v330 = vpack.c.b16 %v311, %v310
    %v331 = vpack.c.b16 %v313, %v312
    %v332 = vpack.c.b16 %v315, %v314
    %v333 = vpack.c.b16 %v317, %v316
    %v334 = vpack.c.b16 %v319, %v318
    %v335 = vpack.c.b16 %v321, %v320
    %v336 = vpack.c.b16 %v323, %v322
    %v337 = vpack.c.b16 %v325, %v324
    %338 = vrot.lane.b32.xlu0 %v326, 3
    %v339 = vpop.permute.xlu0 %338
    %340 = vrot.lane.b32.xlu0 %v327, 3
    %v341 = vpop.permute.xlu0 %340
    %342 = vrot.lane.b32.xlu0 %v328, 3
    %v343 = vpop.permute.xlu0 %342
    %344 = vrot.lane.b32.xlu0 %v329, 3
    %v345 = vpop.permute.xlu0 %344
    %346 = vrot.lane.b32.xlu0 %v330, 3
    %v347 = vpop.permute.xlu0 %346
    %348 = vrot.lane.b32.xlu0 %v331, 3
    %v349 = vpop.permute.xlu0 %348
    %350 = vrot.lane.b32.xlu0 %v332, 3
    %v351 = vpop.permute.xlu0 %350
    %352 = vrot.lane.b32.xlu0 %v333, 3
    %v353 = vpop.permute.xlu0 %352
    %354 = vrot.lane.b32.xlu0 %v334, 3
    %v355 = vpop.permute.xlu0 %354
    %356 = vrot.lane.b32.xlu0 %v335, 3
    %v357 = vpop.permute.xlu0 %356
    %358 = vrot.lane.b32.xlu0 %v336, 3
    %v359 = vpop.permute.xlu0 %358
    %360 = vrot.lane.b32.xlu0 %v337, 3
    %v361 = vpop.permute.xlu0 %360
    %vm362 = vcmask 23552
    %v365 = vsel %vm362, 0, %v339
    %v367 = vsel %vm362, 0, %v341
    %v369 = vsel %vm362, 0, %v343
    %v371 = vsel %vm362, 0, %v345
    %v373 = vsel %vm362, 0, %v347
    %v375 = vsel %vm362, 0, %v349
    %v377 = vsel %vm362, 0, %v351
    %v379 = vsel %vm362, 0, %v353
    %v381 = vsel %vm362, 0, %v355
    %v383 = vsel %vm362, 0, %v357
    %v385 = vsel %vm362, 0, %v359
    %v387 = vsel %vm362, 0, %v361
    %vm388 = vcmask 89088
    %v389 = vsel %vm388, %v365, 0
    %v391 = vsel %vm388, %v367, 0
    %v393 = vsel %vm388, %v369, 0
    %v395 = vsel %vm388, %v371, 0
    %v397 = vsel %vm388, %v373, 0
    %v399 = vsel %vm388, %v375, 0
    %v401 = vsel %vm388, %v377, 0
    %v403 = vsel %vm388, %v379, 0
    %v405 = vsel %vm388, %v381, 0
    %v407 = vsel %vm388, %v383, 0
    %v409 = vsel %vm388, %v385, 0
    %v411 = vsel %vm388, %v387, 0
    %v414 = vpack.i.b16 %v239, %v239
    %v416 = vlaneseq
    %v417 = vshrl.u32 %v416, 7
    %v418 = vsub.s32 0, %v417
    %v419 = vrot.slane %v414, %v418
    %v420 = vmul.bf16 %v389, %v419
    %v421 = vmul.bf16 %v391, %v419
    %v422 = vmul.bf16 %v393, %v419
    %v423 = vmul.bf16 %v395, %v419
    %v424 = vmul.bf16 %v397, %v419
    %v425 = vmul.bf16 %v399, %v419
    %v426 = vmul.bf16 %v401, %v419
    %v427 = vmul.bf16 %v403, %v419
    %v428 = vmul.bf16 %v405, %v419
    %v429 = vmul.bf16 %v407, %v419
    %v430 = vmul.bf16 %v409, %v419
    %v431 = vmul.bf16 %v411, %v419
    %v433 = vpack.i.b16 %v241, %v241
    %v435 = vlaneseq
    %v436 = vshrl.u32 %v435, 7
    %v437 = vsub.s32 0, %v436
    %v438 = vrot.slane %v433, %v437
    %440 = vrot.lane.b32.xlu0 %v438, 1
    %v441 = vpop.permute.xlu0 %440
    %v443 = vmul.bf16 %v389, %v441
    %v444 = vmul.bf16 %v391, %v441
    %v445 = vmul.bf16 %v393, %v441
    %v446 = vmul.bf16 %v395, %v441
    %v447 = vmul.bf16 %v397, %v441
    %v448 = vmul.bf16 %v399, %v441
    %v449 = vmul.bf16 %v401, %v441
    %v450 = vmul.bf16 %v403, %v441
    %v451 = vmul.bf16 %v405, %v441
    %v452 = vmul.bf16 %v407, %v441
    %v453 = vmul.bf16 %v409, %v441
    %v454 = vmul.bf16 %v411, %v441
    %v456 = vpack.i.b16 %v243, %v243
    %v458 = vlaneseq
    %v459 = vshrl.u32 %v458, 7
    %v460 = vsub.s32 0, %v459
    %v461 = vrot.slane %v456, %v460
    %463 = vrot.lane.b32.xlu0 %v461, 2
    %v464 = vpop.permute.xlu0 %463
    %v466 = vmul.bf16 %v389, %v464
    %v467 = vmul.bf16 %v391, %v464
    %v468 = vmul.bf16 %v393, %v464
    %v469 = vmul.bf16 %v395, %v464
    %v470 = vmul.bf16 %v397, %v464
    %v471 = vmul.bf16 %v399, %v464
    %v472 = vmul.bf16 %v401, %v464
    %v473 = vmul.bf16 %v403, %v464
    %v474 = vmul.bf16 %v405, %v464
    %v475 = vmul.bf16 %v407, %v464
    %v476 = vmul.bf16 %v409, %v464
    %v477 = vmul.bf16 %v411, %v464
    %v479 = vpack.i.b16 %v245, %v245
    %v481 = vlaneseq
    %v482 = vshrl.u32 %v481, 7
    %v483 = vsub.s32 0, %v482
    %v484 = vrot.slane %v479, %v483
    %486 = vrot.lane.b32.xlu0 %v484, 2
    %v487 = vpop.permute.xlu0 %486
    %v489 = vmul.bf16 %v389, %v487
    %v490 = vmul.bf16 %v391, %v487
    %v491 = vmul.bf16 %v393, %v487
    %v492 = vmul.bf16 %v395, %v487
    %v493 = vmul.bf16 %v397, %v487
    %v494 = vmul.bf16 %v399, %v487
    %v495 = vmul.bf16 %v401, %v487
    %v496 = vmul.bf16 %v403, %v487
    %v497 = vmul.bf16 %v405, %v487
    %v498 = vmul.bf16 %v407, %v487
    %v499 = vmul.bf16 %v409, %v487
    %v500 = vmul.bf16 %v411, %v487
    %v502 = vpack.i.b16 %v247, %v247
    %v504 = vlaneseq
    %v505 = vshrl.u32 %v504, 7
    %v506 = vsub.s32 0, %v505
    %v507 = vrot.slane %v502, %v506
    %509 = vrot.lane.b32.xlu0 %v507, 4
    %v510 = vpop.permute.xlu0 %509
    %v512 = vmul.bf16 %v389, %v510
    %v513 = vmul.bf16 %v391, %v510
    %v514 = vmul.bf16 %v393, %v510
    %v515 = vmul.bf16 %v395, %v510
    %v516 = vmul.bf16 %v397, %v510
    %v517 = vmul.bf16 %v399, %v510
    %v518 = vmul.bf16 %v401, %v510
    %v519 = vmul.bf16 %v403, %v510
    %v520 = vmul.bf16 %v405, %v510
    %v521 = vmul.bf16 %v407, %v510
    %v522 = vmul.bf16 %v409, %v510
    %v523 = vmul.bf16 %v411, %v510
    %v525 = vpack.i.b16 %v249, %v249
    %v527 = vlaneseq
    %v528 = vshrl.u32 %v527, 7
    %v529 = vsub.s32 0, %v528
    %v530 = vrot.slane %v525, %v529
    %532 = vrot.lane.b32.xlu0 %v530, 4
    %v533 = vpop.permute.xlu0 %532
    %v535 = vmul.bf16 %v389, %v533
    %v536 = vmul.bf16 %v391, %v533
    %v537 = vmul.bf16 %v393, %v533
    %v538 = vmul.bf16 %v395, %v533
    %v539 = vmul.bf16 %v397, %v533
    %v540 = vmul.bf16 %v399, %v533
    %v541 = vmul.bf16 %v401, %v533
    %v542 = vmul.bf16 %v403, %v533
    %v543 = vmul.bf16 %v405, %v533
    %v544 = vmul.bf16 %v407, %v533
    %v545 = vmul.bf16 %v409, %v533
    %v546 = vmul.bf16 %v411, %v533
    %v548 = vpack.i.b16 %v251, %v251
    %v550 = vlaneseq
    %v551 = vshrl.u32 %v550, 7
    %v552 = vsub.s32 0, %v551
    %v553 = vrot.slane %v548, %v552
    %555 = vrot.lane.b32.xlu0 %v553, 5
    %v556 = vpop.permute.xlu0 %555
    %v558 = vmul.bf16 %v389, %v556
    %v559 = vmul.bf16 %v391, %v556
    %v560 = vmul.bf16 %v393, %v556
    %v561 = vmul.bf16 %v395, %v556
    %v562 = vmul.bf16 %v397, %v556
    %v563 = vmul.bf16 %v399, %v556
    %v564 = vmul.bf16 %v401, %v556
    %v565 = vmul.bf16 %v403, %v556
    %v566 = vmul.bf16 %v405, %v556
    %v567 = vmul.bf16 %v407, %v556
    %v568 = vmul.bf16 %v409, %v556
    %v569 = vmul.bf16 %v411, %v556
    %v571 = vpack.i.b16 %v253, %v253
    %v573 = vlaneseq
    %v574 = vshrl.u32 %v573, 7
    %v575 = vsub.s32 0, %v574
    %v576 = vrot.slane %v571, %v575
    %578 = vrot.lane.b32.xlu0 %v576, 6
    %v579 = vpop.permute.xlu0 %578
    %v581 = vmul.bf16 %v389, %v579
    %v582 = vmul.bf16 %v391, %v579
    %v583 = vmul.bf16 %v393, %v579
    %v584 = vmul.bf16 %v395, %v579
    %v585 = vmul.bf16 %v397, %v579
    %v586 = vmul.bf16 %v399, %v579
    %v587 = vmul.bf16 %v401, %v579
    %v588 = vmul.bf16 %v403, %v579
    %v589 = vmul.bf16 %v405, %v579
    %v590 = vmul.bf16 %v407, %v579
    %v591 = vmul.bf16 %v409, %v579
    %v592 = vmul.bf16 %v411, %v579
    %605 = vrot.lane.b32.xlu0 %v443, 127
    %v606 = vpop.permute.xlu0 %605
    %607 = vrot.lane.b32.xlu0 %v444, 127
    %v608 = vpop.permute.xlu0 %607
    %609 = vrot.lane.b32.xlu0 %v445, 127
    %v610 = vpop.permute.xlu0 %609
    %611 = vrot.lane.b32.xlu0 %v446, 127
    %v612 = vpop.permute.xlu0 %611
    %613 = vrot.lane.b32.xlu0 %v447, 127
    %v614 = vpop.permute.xlu0 %613
    %615 = vrot.lane.b32.xlu0 %v448, 127
    %v616 = vpop.permute.xlu0 %615
    %617 = vrot.lane.b32.xlu0 %v449, 127
    %v618 = vpop.permute.xlu0 %617
    %619 = vrot.lane.b32.xlu0 %v450, 127
    %v620 = vpop.permute.xlu0 %619
    %621 = vrot.lane.b32.xlu0 %v451, 127
    %v622 = vpop.permute.xlu0 %621
    %623 = vrot.lane.b32.xlu0 %v452, 127
    %v624 = vpop.permute.xlu0 %623
    %625 = vrot.lane.b32.xlu0 %v453, 127
    %v626 = vpop.permute.xlu0 %625
    %627 = vrot.lane.b32.xlu0 %v454, 127
    %v628 = vpop.permute.xlu0 %627
    %653 = vrot.lane.b32.xlu0 %v466, 126
    %v654 = vpop.permute.xlu0 %653
    %655 = vrot.lane.b32.xlu0 %v467, 126
    %v656 = vpop.permute.xlu0 %655
    %657 = vrot.lane.b32.xlu0 %v468, 126
    %v658 = vpop.permute.xlu0 %657
    %659 = vrot.lane.b32.xlu0 %v469, 126
    %v660 = vpop.permute.xlu0 %659
    %661 = vrot.lane.b32.xlu0 %v470, 126
    %v662 = vpop.permute.xlu0 %661
    %663 = vrot.lane.b32.xlu0 %v471, 126
    %v664 = vpop.permute.xlu0 %663
    %665 = vrot.lane.b32.xlu0 %v472, 126
    %v666 = vpop.permute.xlu0 %665
    %667 = vrot.lane.b32.xlu0 %v473, 126
    %v668 = vpop.permute.xlu0 %667
    %669 = vrot.lane.b32.xlu0 %v474, 126
    %v670 = vpop.permute.xlu0 %669
    %671 = vrot.lane.b32.xlu0 %v475, 126
    %v672 = vpop.permute.xlu0 %671
    %673 = vrot.lane.b32.xlu0 %v476, 126
    %v674 = vpop.permute.xlu0 %673
    %675 = vrot.lane.b32.xlu0 %v477, 126
    %v676 = vpop.permute.xlu0 %675
    %701 = vrot.lane.b32.xlu0 %v489, 126
    %v702 = vpop.permute.xlu0 %701
    %703 = vrot.lane.b32.xlu0 %v490, 126
    %v704 = vpop.permute.xlu0 %703
    %705 = vrot.lane.b32.xlu0 %v491, 126
    %v706 = vpop.permute.xlu0 %705
    %707 = vrot.lane.b32.xlu0 %v492, 126
    %v708 = vpop.permute.xlu0 %707
    %709 = vrot.lane.b32.xlu0 %v493, 126
    %v710 = vpop.permute.xlu0 %709
    %711 = vrot.lane.b32.xlu0 %v494, 126
    %v712 = vpop.permute.xlu0 %711
    %713 = vrot.lane.b32.xlu0 %v495, 126
    %v714 = vpop.permute.xlu0 %713
    %715 = vrot.lane.b32.xlu0 %v496, 126
    %v716 = vpop.permute.xlu0 %715
    %717 = vrot.lane.b32.xlu0 %v497, 126
    %v718 = vpop.permute.xlu0 %717
    %719 = vrot.lane.b32.xlu0 %v498, 126
    %v720 = vpop.permute.xlu0 %719
    %721 = vrot.lane.b32.xlu0 %v499, 126
    %v722 = vpop.permute.xlu0 %721
    %723 = vrot.lane.b32.xlu0 %v500, 126
    %v724 = vpop.permute.xlu0 %723
    %749 = vrot.lane.b32.xlu0 %v389, 125
    %v750 = vpop.permute.xlu0 %749
    %751 = vrot.lane.b32.xlu0 %v391, 125
    %v752 = vpop.permute.xlu0 %751
    %753 = vrot.lane.b32.xlu0 %v393, 125
    %v754 = vpop.permute.xlu0 %753
    %755 = vrot.lane.b32.xlu0 %v395, 125
    %v756 = vpop.permute.xlu0 %755
    %757 = vrot.lane.b32.xlu0 %v397, 125
    %v758 = vpop.permute.xlu0 %757
    %759 = vrot.lane.b32.xlu0 %v399, 125
    %v760 = vpop.permute.xlu0 %759
    %761 = vrot.lane.b32.xlu0 %v401, 125
    %v762 = vpop.permute.xlu0 %761
    %763 = vrot.lane.b32.xlu0 %v403, 125
    %v764 = vpop.permute.xlu0 %763
    %765 = vrot.lane.b32.xlu0 %v405, 125
    %v766 = vpop.permute.xlu0 %765
    %767 = vrot.lane.b32.xlu0 %v407, 125
    %v768 = vpop.permute.xlu0 %767
    %769 = vrot.lane.b32.xlu0 %v409, 125
    %v770 = vpop.permute.xlu0 %769
    %771 = vrot.lane.b32.xlu0 %v411, 125
    %v772 = vpop.permute.xlu0 %771
    %797 = vrot.lane.b32.xlu0 %v512, 124
    %v798 = vpop.permute.xlu0 %797
    %799 = vrot.lane.b32.xlu0 %v513, 124
    %v800 = vpop.permute.xlu0 %799
    %801 = vrot.lane.b32.xlu0 %v514, 124
    %v802 = vpop.permute.xlu0 %801
    %803 = vrot.lane.b32.xlu0 %v515, 124
    %v804 = vpop.permute.xlu0 %803
    %805 = vrot.lane.b32.xlu0 %v516, 124
    %v806 = vpop.permute.xlu0 %805
    %807 = vrot.lane.b32.xlu0 %v517, 124
    %v808 = vpop.permute.xlu0 %807
    %809 = vrot.lane.b32.xlu0 %v518, 124
    %v810 = vpop.permute.xlu0 %809
    %811 = vrot.lane.b32.xlu0 %v519, 124
    %v812 = vpop.permute.xlu0 %811
    %813 = vrot.lane.b32.xlu0 %v520, 124
    %v814 = vpop.permute.xlu0 %813
    %815 = vrot.lane.b32.xlu0 %v521, 124
    %v816 = vpop.permute.xlu0 %815
    %817 = vrot.lane.b32.xlu0 %v522, 124
    %v818 = vpop.permute.xlu0 %817
    %819 = vrot.lane.b32.xlu0 %v523, 124
    %v820 = vpop.permute.xlu0 %819
    %845 = vrot.lane.b32.xlu0 %v535, 124
    %v846 = vpop.permute.xlu0 %845
    %847 = vrot.lane.b32.xlu0 %v536, 124
    %v848 = vpop.permute.xlu0 %847
    %849 = vrot.lane.b32.xlu0 %v537, 124
    %v850 = vpop.permute.xlu0 %849
    %851 = vrot.lane.b32.xlu0 %v538, 124
    %v852 = vpop.permute.xlu0 %851
    %853 = vrot.lane.b32.xlu0 %v539, 124
    %v854 = vpop.permute.xlu0 %853
    %855 = vrot.lane.b32.xlu0 %v540, 124
    %v856 = vpop.permute.xlu0 %855
    %857 = vrot.lane.b32.xlu0 %v541, 124
    %v858 = vpop.permute.xlu0 %857
    %859 = vrot.lane.b32.xlu0 %v542, 124
    %v860 = vpop.permute.xlu0 %859
    %861 = vrot.lane.b32.xlu0 %v543, 124
    %v862 = vpop.permute.xlu0 %861
    %863 = vrot.lane.b32.xlu0 %v544, 124
    %v864 = vpop.permute.xlu0 %863
    %865 = vrot.lane.b32.xlu0 %v545, 124
    %v866 = vpop.permute.xlu0 %865
    %867 = vrot.lane.b32.xlu0 %v546, 124
    %v868 = vpop.permute.xlu0 %867
    %893 = vrot.lane.b32.xlu0 %v558, 123
    %v894 = vpop.permute.xlu0 %893
    %895 = vrot.lane.b32.xlu0 %v559, 123
    %v896 = vpop.permute.xlu0 %895
    %897 = vrot.lane.b32.xlu0 %v560, 123
    %v898 = vpop.permute.xlu0 %897
    %899 = vrot.lane.b32.xlu0 %v561, 123
    %v900 = vpop.permute.xlu0 %899
    %901 = vrot.lane.b32.xlu0 %v562, 123
    %v902 = vpop.permute.xlu0 %901
    %903 = vrot.lane.b32.xlu0 %v563, 123
    %v904 = vpop.permute.xlu0 %903
    %905 = vrot.lane.b32.xlu0 %v564, 123
    %v906 = vpop.permute.xlu0 %905
    %907 = vrot.lane.b32.xlu0 %v565, 123
    %v908 = vpop.permute.xlu0 %907
    %909 = vrot.lane.b32.xlu0 %v566, 123
    %v910 = vpop.permute.xlu0 %909
    %911 = vrot.lane.b32.xlu0 %v567, 123
    %v912 = vpop.permute.xlu0 %911
    %913 = vrot.lane.b32.xlu0 %v568, 123
    %v914 = vpop.permute.xlu0 %913
    %915 = vrot.lane.b32.xlu0 %v569, 123
    %v916 = vpop.permute.xlu0 %915
    %941 = vrot.lane.b32.xlu0 %v581, 122
    %v942 = vpop.permute.xlu0 %941
    %943 = vrot.lane.b32.xlu0 %v582, 122
    %v944 = vpop.permute.xlu0 %943
    %945 = vrot.lane.b32.xlu0 %v583, 122
    %v946 = vpop.permute.xlu0 %945
    %947 = vrot.lane.b32.xlu0 %v584, 122
    %v948 = vpop.permute.xlu0 %947
    %949 = vrot.lane.b32.xlu0 %v585, 122
    %v950 = vpop.permute.xlu0 %949
    %951 = vrot.lane.b32.xlu0 %v586, 122
    %v952 = vpop.permute.xlu0 %951
    %953 = vrot.lane.b32.xlu0 %v587, 122
    %v954 = vpop.permute.xlu0 %953
    %955 = vrot.lane.b32.xlu0 %v588, 122
    %v956 = vpop.permute.xlu0 %955
    %957 = vrot.lane.b32.xlu0 %v589, 122
    %v958 = vpop.permute.xlu0 %957
    %959 = vrot.lane.b32.xlu0 %v590, 122
    %v960 = vpop.permute.xlu0 %959
    %961 = vrot.lane.b32.xlu0 %v591, 122
    %v962 = vpop.permute.xlu0 %961
    %963 = vrot.lane.b32.xlu0 %v592, 122
    %v964 = vpop.permute.xlu0 %963
    %v977 = vld [vmem:[#allocation7] sm:$0xff]
    %v978 = vld [vmem:[#allocation7 + $0x8] sm:$0xff]
    %v979 = vld [vmem:[#allocation7 + $0x10] sm:$0xff]
    %v980 = vld [vmem:[#allocation7 + $0x18] sm:$0xff]
    %v981 = vld [vmem:[#allocation7 + $0x20] sm:$0xff]
    %v982 = vld [vmem:[#allocation7 + $0x28] sm:$0xff]
    %v983 = vld [vmem:[#allocation7 + $0x30] sm:$0xff]
    %v984 = vld [vmem:[#allocation7 + $0x38] sm:$0xff]
    %v985 = vld [vmem:[#allocation7 + $0x40] sm:$0xff]
    %v986 = vld [vmem:[#allocation7 + $0x48] sm:$0xff]
    %v987 = vld [vmem:[#allocation7 + $0x50] sm:$0xff]
    %v988 = vld [vmem:[#allocation7 + $0x58] sm:$0xff]
    %v989 = vld [vmem:[#allocation7 + $0x60] sm:$0xff]
    %v990 = vld [vmem:[#allocation7 + $0x68] sm:$0xff]
    %v991 = vld [vmem:[#allocation7 + $0x70] sm:$0xff]
    %v992 = vld [vmem:[#allocation7 + $0x78] sm:$0xff]
    %v993 = vld [vmem:[#allocation7 + $0x80] sm:$0xff]
    %v994 = vld [vmem:[#allocation7 + $0x88] sm:$0xff]
    %v995 = vld [vmem:[#allocation7 + $0x90] sm:$0xff]
    %v996 = vld [vmem:[#allocation7 + $0x98] sm:$0xff]
    %v997 = vld [vmem:[#allocation7 + $0xa0] sm:$0xff]
    %v998 = vld [vmem:[#allocation7 + $0xa8] sm:$0xff]
    %v999 = vld [vmem:[#allocation7 + $0xb0] sm:$0xff]
    %v1000 = vld [vmem:[#allocation7 + $0xb8] sm:$0xff]
    %v1001 = vld [vmem:[#allocation7 + $0xc0] sm:$0xff]
    %v1002 = vld [vmem:[#allocation7 + $0xc8] sm:$0xff]
    %v1003 = vld [vmem:[#allocation7 + $0xd0] sm:$0xff]
    %v1004 = vld [vmem:[#allocation7 + $0xd8] sm:$0xff]
    %v1005 = vld [vmem:[#allocation7 + $0xe0] sm:$0xff]
    %v1006 = vld [vmem:[#allocation7 + $0xe8] sm:$0xff]
    %v1007 = vld [vmem:[#allocation7 + $0xf0] sm:$0xff]
    %v1008 = vld [vmem:[#allocation7 + $0xf8] sm:$0xff]
    %v1009 = vld [vmem:[#allocation7 + $0x100] sm:$0xff]
    %v1010 = vld [vmem:[#allocation7 + $0x108] sm:$0xff]
    %v1011 = vld [vmem:[#allocation7 + $0x110] sm:$0xff]
    %v1012 = vld [vmem:[#allocation7 + $0x118] sm:$0xff]
    %v1013 = vld [vmem:[#allocation7 + $0x120] sm:$0xff]
    %v1014 = vld [vmem:[#allocation7 + $0x128] sm:$0xff]
    %v1015 = vld [vmem:[#allocation7 + $0x130] sm:$0xff]
    %v1016 = vld [vmem:[#allocation7 + $0x138] sm:$0xff]
    %v1017 = vld [vmem:[#allocation7 + $0x140] sm:$0xff]
    %v1018 = vld [vmem:[#allocation7 + $0x148] sm:$0xff]
    %v1019 = vld [vmem:[#allocation7 + $0x150] sm:$0xff]
    %v1020 = vld [vmem:[#allocation7 + $0x158] sm:$0xff]
    %v1021 = vld [vmem:[#allocation7 + $0x160] sm:$0xff]
    %v1022 = vld [vmem:[#allocation7 + $0x168] sm:$0xff]
    %v1023 = vld [vmem:[#allocation7 + $0x170] sm:$0xff]
    %v1024 = vld [vmem:[#allocation7 + $0x178] sm:$0xff]
    %v1025 = vld [vmem:[#allocation7 + $0x180] sm:$0xff]
    %v1026 = vld [vmem:[#allocation7 + $0x188] sm:$0xff]
    %v1027 = vld [vmem:[#allocation7 + $0x190] sm:$0xff]
    %v1028 = vld [vmem:[#allocation7 + $0x198] sm:$0xff]
    %v1029 = vld [vmem:[#allocation7 + $0x1a0] sm:$0xff]
    %v1030 = vld [vmem:[#allocation7 + $0x1a8] sm:$0xff]
    %v1031 = vld [vmem:[#allocation7 + $0x1b0] sm:$0xff]
    %v1032 = vld [vmem:[#allocation7 + $0x1b8] sm:$0xff]
    %v1033 = vld [vmem:[#allocation7 + $0x1c0] sm:$0xff]
    %v1034 = vld [vmem:[#allocation7 + $0x1c8] sm:$0xff]
    %v1035 = vld [vmem:[#allocation7 + $0x1d0] sm:$0xff]
    %v1036 = vld [vmem:[#allocation7 + $0x1d8] sm:$0xff]
    %v1037 = vld [vmem:[#allocation7 + $0x1e0] sm:$0xff]
    %v1038 = vld [vmem:[#allocation7 + $0x1e8] sm:$0xff]
    %v1039 = vld [vmem:[#allocation7 + $0x1f0] sm:$0xff]
    %v1040 = vld [vmem:[#allocation7 + $0x1f8] sm:$0xff]
    %v1041 = vld [vmem:[#allocation7 + $0x200] sm:$0xff]
    %v1042 = vld [vmem:[#allocation7 + $0x208] sm:$0xff]
    %v1043 = vld [vmem:[#allocation7 + $0x210] sm:$0xff]
    %v1044 = vld [vmem:[#allocation7 + $0x218] sm:$0xff]
    %v1045 = vld [vmem:[#allocation7 + $0x220] sm:$0xff]
    %v1046 = vld [vmem:[#allocation7 + $0x228] sm:$0xff]
    %v1047 = vld [vmem:[#allocation7 + $0x230] sm:$0xff]
    %v1048 = vld [vmem:[#allocation7 + $0x238] sm:$0xff]
    %v1049 = vld [vmem:[#allocation7 + $0x240] sm:$0xff]
    %v1050 = vld [vmem:[#allocation7 + $0x248] sm:$0xff]
    %v1051 = vld [vmem:[#allocation7 + $0x250] sm:$0xff]
    %v1052 = vld [vmem:[#allocation7 + $0x258] sm:$0xff]
    %v1053 = vld [vmem:[#allocation7 + $0x260] sm:$0xff]
    %v1054 = vld [vmem:[#allocation7 + $0x268] sm:$0xff]
    %v1055 = vld [vmem:[#allocation7 + $0x270] sm:$0xff]
    %v1056 = vld [vmem:[#allocation7 + $0x278] sm:$0xff]
    %v1057 = vld [vmem:[#allocation7 + $0x280] sm:$0xff]
    %v1058 = vld [vmem:[#allocation7 + $0x288] sm:$0xff]
    %v1059 = vld [vmem:[#allocation7 + $0x290] sm:$0xff]
    %v1060 = vld [vmem:[#allocation7 + $0x298] sm:$0xff]
    %v1061 = vld [vmem:[#allocation7 + $0x2a0] sm:$0xff]
    %v1062 = vld [vmem:[#allocation7 + $0x2a8] sm:$0xff]
    %v1063 = vld [vmem:[#allocation7 + $0x2b0] sm:$0xff]
    %v1064 = vld [vmem:[#allocation7 + $0x2b8] sm:$0xff]
    %v1065 = vld [vmem:[#allocation7 + $0x2c0] sm:$0xff]
    %v1066 = vld [vmem:[#allocation7 + $0x2c8] sm:$0xff]
    %v1067 = vld [vmem:[#allocation7 + $0x2d0] sm:$0xff]
    %v1068 = vld [vmem:[#allocation7 + $0x2d8] sm:$0xff]
    %v1069 = vld [vmem:[#allocation7 + $0x2e0] sm:$0xff]
    %v1070 = vld [vmem:[#allocation7 + $0x2e8] sm:$0xff]
    %v1071 = vld [vmem:[#allocation7 + $0x2f0] sm:$0xff]
    %v1072 = vld [vmem:[#allocation7 + $0x2f8] sm:$0xff]
    %v1073 = vld [vmem:[#allocation7 + $0x300] sm:$0xff]
    %v1074 = vld [vmem:[#allocation7 + $0x308] sm:$0xff]
    %v1075 = vld [vmem:[#allocation7 + $0x310] sm:$0xff]
    %v1076 = vld [vmem:[#allocation7 + $0x318] sm:$0xff]
    %v1077 = vld [vmem:[#allocation7 + $0x320] sm:$0xff]
    %v1078 = vld [vmem:[#allocation7 + $0x328] sm:$0xff]
    %v1079 = vld [vmem:[#allocation7 + $0x330] sm:$0xff]
    %v1080 = vld [vmem:[#allocation7 + $0x338] sm:$0xff]
    %v1081 = vld [vmem:[#allocation7 + $0x340] sm:$0xff]
    %v1082 = vld [vmem:[#allocation7 + $0x348] sm:$0xff]
    %v1083 = vld [vmem:[#allocation7 + $0x350] sm:$0xff]
    %v1084 = vld [vmem:[#allocation7 + $0x358] sm:$0xff]
    %v1085 = vld [vmem:[#allocation7 + $0x360] sm:$0xff]
    %v1086 = vld [vmem:[#allocation7 + $0x368] sm:$0xff]
    %v1087 = vld [vmem:[#allocation7 + $0x370] sm:$0xff]
    %v1088 = vld [vmem:[#allocation7 + $0x378] sm:$0xff]
    %v1089 = vld [vmem:[#allocation8] sm:$0xff]
    %v1090 = vld [vmem:[#allocation8 + $0x8] sm:$0xff]
    %v1091 = vld [vmem:[#allocation8 + $0x10] sm:$0xff]
    %v1092 = vld [vmem:[#allocation8 + $0x18] sm:$0xff]
    %v1093 = vld [vmem:[#allocation8 + $0x20] sm:$0xff]
    %v1094 = vld [vmem:[#allocation8 + $0x28] sm:$0xff]
    %v1095 = vld [vmem:[#allocation8 + $0x30] sm:$0xff]
    %v1096 = vld [vmem:[#allocation8 + $0x38] sm:$0xff]
    %v1097 = vld [vmem:[#allocation8 + $0x40] sm:$0xff]
    %v1098 = vld [vmem:[#allocation8 + $0x48] sm:$0xff]
    %v1099 = vld [vmem:[#allocation8 + $0x50] sm:$0xff]
    %v1100 = vld [vmem:[#allocation8 + $0x58] sm:$0xff]
    %v1101 = vld [vmem:[#allocation8 + $0x60] sm:$0xff]
    %v1102 = vld [vmem:[#allocation8 + $0x68] sm:$0xff]
    %v1103 = vld [vmem:[#allocation8 + $0x70] sm:$0xff]
    %v1104 = vld [vmem:[#allocation8 + $0x78] sm:$0xff]
    %1106 = vset.pattern.permute.xlu0 0
    %1107 = vperm.xlu0 %1106, %v1089
    %v1108 = vpop.permute.xlu0 %1107
    %1111 = vset.pattern.permute.xlu0 0
    %1112 = vperm.xlu0 %1111, %v1090
    %v1113 = vpop.permute.xlu0 %1112
    %1116 = vset.pattern.permute.xlu0 0
    %1117 = vperm.xlu0 %1116, %v1091
    %v1118 = vpop.permute.xlu0 %1117
    %1121 = vset.pattern.permute.xlu0 0
    %1122 = vperm.xlu0 %1121, %v1092
    %v1123 = vpop.permute.xlu0 %1122
    %1126 = vset.pattern.permute.xlu0 0
    %1127 = vperm.xlu0 %1126, %v1093
    %v1128 = vpop.permute.xlu0 %1127
    %1131 = vset.pattern.permute.xlu0 0
    %1132 = vperm.xlu0 %1131, %v1094
    %v1133 = vpop.permute.xlu0 %1132
    %1136 = vset.pattern.permute.xlu0 0
    %1137 = vperm.xlu0 %1136, %v1095
    %v1138 = vpop.permute.xlu0 %1137
    %1141 = vset.pattern.permute.xlu0 0
    %1142 = vperm.xlu0 %1141, %v1096
    %v1143 = vpop.permute.xlu0 %1142
    %1146 = vset.pattern.permute.xlu0 0
    %1147 = vperm.xlu0 %1146, %v1097
    %v1148 = vpop.permute.xlu0 %1147
    %1151 = vset.pattern.permute.xlu0 0
    %1152 = vperm.xlu0 %1151, %v1098
    %v1153 = vpop.permute.xlu0 %1152
    %1156 = vset.pattern.permute.xlu0 0
    %1157 = vperm.xlu0 %1156, %v1099
    %v1158 = vpop.permute.xlu0 %1157
    %1161 = vset.pattern.permute.xlu0 0
    %1162 = vperm.xlu0 %1161, %v1100
    %v1163 = vpop.permute.xlu0 %1162
    %1166 = vset.pattern.permute.xlu0 0
    %1167 = vperm.xlu0 %1166, %v1101
    %v1168 = vpop.permute.xlu0 %1167
    %1171 = vset.pattern.permute.xlu0 0
    %1172 = vperm.xlu0 %1171, %v1102
    %v1173 = vpop.permute.xlu0 %1172
    %1176 = vset.pattern.permute.xlu0 0
    %1177 = vperm.xlu0 %1176, %v1103
    %v1178 = vpop.permute.xlu0 %1177
    %1181 = vset.pattern.permute.xlu0 0
    %1182 = vperm.xlu0 %1181, %v1104
    %v1183 = vpop.permute.xlu0 %1182
    %v1297 = vunpack.c.l.b16 %v977
    %v1298 = vunpack.c.h.b16 %v977
    %v1299 = vunpack.c.l.b16 %v978
    %v1300 = vunpack.c.h.b16 %v978
    %v1301 = vunpack.c.l.b16 %v979
    %v1302 = vunpack.c.h.b16 %v979
    %v1303 = vunpack.c.l.b16 %v980
    %v1304 = vunpack.c.h.b16 %v980
    %v1305 = vunpack.c.l.b16 %v981
    %v1306 = vunpack.c.h.b16 %v981
    %v1307 = vunpack.c.l.b16 %v982
    %v1308 = vunpack.c.h.b16 %v982
    %v1309 = vunpack.c.l.b16 %v983
    %v1310 = vunpack.c.h.b16 %v983
    %v1311 = vunpack.c.l.b16 %v984
    %v1312 = vunpack.c.h.b16 %v984
    %v1313 = vunpack.c.l.b16 %v985
    %v1314 = vunpack.c.h.b16 %v985
    %v1315 = vunpack.c.l.b16 %v986
    %v1316 = vunpack.c.h.b16 %v986
    %v1317 = vunpack.c.l.b16 %v987
    %v1318 = vunpack.c.h.b16 %v987
    %v1319 = vunpack.c.l.b16 %v988
    %v1320 = vunpack.c.h.b16 %v988
    %v1321 = vunpack.c.l.b16 %v989
    %v1322 = vunpack.c.h.b16 %v989
    %v1323 = vunpack.c.l.b16 %v990
    %v1324 = vunpack.c.h.b16 %v990
    %v1325 = vunpack.c.l.b16 %v991
    %v1326 = vunpack.c.h.b16 %v991
    %v1327 = vunpack.c.l.b16 %v992
    %v1328 = vunpack.c.h.b16 %v992
    %v1329 = vunpack.c.l.b16 %v993
    %v1330 = vunpack.c.h.b16 %v993
    %v1331 = vunpack.c.l.b16 %v994
    %v1332 = vunpack.c.h.b16 %v994
    %v1333 = vunpack.c.l.b16 %v995
    %v1334 = vunpack.c.h.b16 %v995
    %v1335 = vunpack.c.l.b16 %v996
    %v1336 = vunpack.c.h.b16 %v996
    %v1337 = vunpack.c.l.b16 %v997
    %v1338 = vunpack.c.h.b16 %v997
    %v1339 = vunpack.c.l.b16 %v998
    %v1340 = vunpack.c.h.b16 %v998
    %v1341 = vunpack.c.l.b16 %v999
    %v1342 = vunpack.c.h.b16 %v999
    %v1343 = vunpack.c.l.b16 %v1000
    %v1344 = vunpack.c.h.b16 %v1000
    %v1345 = vunpack.c.l.b16 %v1001
    %v1346 = vunpack.c.h.b16 %v1001
    %v1347 = vunpack.c.l.b16 %v1002
    %v1348 = vunpack.c.h.b16 %v1002
    %v1349 = vunpack.c.l.b16 %v1003
    %v1350 = vunpack.c.h.b16 %v1003
    %v1351 = vunpack.c.l.b16 %v1004
    %v1352 = vunpack.c.h.b16 %v1004
    %v1353 = vunpack.c.l.b16 %v1005
    %v1354 = vunpack.c.h.b16 %v1005
    %v1355 = vunpack.c.l.b16 %v1006
    %v1356 = vunpack.c.h.b16 %v1006
    %v1357 = vunpack.c.l.b16 %v1007
    %v1358 = vunpack.c.h.b16 %v1007
    %v1359 = vunpack.c.l.b16 %v1008
    %v1360 = vunpack.c.h.b16 %v1008
    %v1361 = vunpack.c.l.b16 %v1009
    %v1362 = vunpack.c.h.b16 %v1009
    %v1363 = vunpack.c.l.b16 %v1010
    %v1364 = vunpack.c.h.b16 %v1010
    %v1365 = vunpack.c.l.b16 %v1011
    %v1366 = vunpack.c.h.b16 %v1011
    %v1367 = vunpack.c.l.b16 %v1012
    %v1368 = vunpack.c.h.b16 %v1012
    %v1369 = vunpack.c.l.b16 %v1013
    %v1370 = vunpack.c.h.b16 %v1013
    %v1371 = vunpack.c.l.b16 %v1014
    %v1372 = vunpack.c.h.b16 %v1014
    %v1373 = vunpack.c.l.b16 %v1015
    %v1374 = vunpack.c.h.b16 %v1015
    %v1375 = vunpack.c.l.b16 %v1016
    %v1376 = vunpack.c.h.b16 %v1016
    %v1377 = vunpack.c.l.b16 %v1017
    %v1378 = vunpack.c.h.b16 %v1017
    %v1379 = vunpack.c.l.b16 %v1018
    %v1380 = vunpack.c.h.b16 %v1018
    %v1381 = vunpack.c.l.b16 %v1019
    %v1382 = vunpack.c.h.b16 %v1019
    %v1383 = vunpack.c.l.b16 %v1020
    %v1384 = vunpack.c.h.b16 %v1020
    %v1385 = vunpack.c.l.b16 %v1021
    %v1386 = vunpack.c.h.b16 %v1021
    %v1387 = vunpack.c.l.b16 %v1022
    %v1388 = vunpack.c.h.b16 %v1022
    %v1389 = vunpack.c.l.b16 %v1023
    %v1390 = vunpack.c.h.b16 %v1023
    %v1391 = vunpack.c.l.b16 %v1024
    %v1392 = vunpack.c.h.b16 %v1024
    %v1393 = vunpack.c.l.b16 %v1025
    %v1394 = vunpack.c.h.b16 %v1025
    %v1395 = vunpack.c.l.b16 %v1026
    %v1396 = vunpack.c.h.b16 %v1026
    %v1397 = vunpack.c.l.b16 %v1027
    %v1398 = vunpack.c.h.b16 %v1027
    %v1399 = vunpack.c.l.b16 %v1028
    %v1400 = vunpack.c.h.b16 %v1028
    %v1401 = vunpack.c.l.b16 %v1029
    %v1402 = vunpack.c.h.b16 %v1029
    %v1403 = vunpack.c.l.b16 %v1030
    %v1404 = vunpack.c.h.b16 %v1030
    %v1405 = vunpack.c.l.b16 %v1031
    %v1406 = vunpack.c.h.b16 %v1031
    %v1407 = vunpack.c.l.b16 %v1032
    %v1408 = vunpack.c.h.b16 %v1032
    %v1409 = vunpack.c.l.b16 %v1033
    %v1410 = vunpack.c.h.b16 %v1033
    %v1411 = vunpack.c.l.b16 %v1034
    %v1412 = vunpack.c.h.b16 %v1034
    %v1413 = vunpack.c.l.b16 %v1035
    %v1414 = vunpack.c.h.b16 %v1035
    %v1415 = vunpack.c.l.b16 %v1036
    %v1416 = vunpack.c.h.b16 %v1036
    %v1417 = vunpack.c.l.b16 %v1037
    %v1418 = vunpack.c.h.b16 %v1037
    %v1419 = vunpack.c.l.b16 %v1038
    %v1420 = vunpack.c.h.b16 %v1038
    %v1421 = vunpack.c.l.b16 %v1039
    %v1422 = vunpack.c.h.b16 %v1039
    %v1423 = vunpack.c.l.b16 %v1040
    %v1424 = vunpack.c.h.b16 %v1040
    %v1425 = vunpack.c.l.b16 %v1041
    %v1426 = vunpack.c.h.b16 %v1041
    %v1427 = vunpack.c.l.b16 %v1042
    %v1428 = vunpack.c.h.b16 %v1042
    %v1429 = vunpack.c.l.b16 %v1043
    %v1430 = vunpack.c.h.b16 %v1043
    %v1431 = vunpack.c.l.b16 %v1044
    %v1432 = vunpack.c.h.b16 %v1044
    %v1433 = vunpack.c.l.b16 %v1045
    %v1434 = vunpack.c.h.b16 %v1045
    %v1435 = vunpack.c.l.b16 %v1046
    %v1436 = vunpack.c.h.b16 %v1046
    %v1437 = vunpack.c.l.b16 %v1047
    %v1438 = vunpack.c.h.b16 %v1047
    %v1439 = vunpack.c.l.b16 %v1048
    %v1440 = vunpack.c.h.b16 %v1048
    %v1441 = vunpack.c.l.b16 %v1049
    %v1442 = vunpack.c.h.b16 %v1049
    %v1443 = vunpack.c.l.b16 %v1050
    %v1444 = vunpack.c.h.b16 %v1050
    %v1445 = vunpack.c.l.b16 %v1051
    %v1446 = vunpack.c.h.b16 %v1051
    %v1447 = vunpack.c.l.b16 %v1052
    %v1448 = vunpack.c.h.b16 %v1052
    %v1449 = vunpack.c.l.b16 %v1053
    %v1450 = vunpack.c.h.b16 %v1053
    %v1451 = vunpack.c.l.b16 %v1054
    %v1452 = vunpack.c.h.b16 %v1054
    %v1453 = vunpack.c.l.b16 %v1055
    %v1454 = vunpack.c.h.b16 %v1055
    %v1455 = vunpack.c.l.b16 %v1056
    %v1456 = vunpack.c.h.b16 %v1056
    %v1457 = vunpack.c.l.b16 %v1057
    %v1458 = vunpack.c.h.b16 %v1057
    %v1459 = vunpack.c.l.b16 %v1058
    %v1460 = vunpack.c.h.b16 %v1058
    %v1461 = vunpack.c.l.b16 %v1059
    %v1462 = vunpack.c.h.b16 %v1059
    %v1463 = vunpack.c.l.b16 %v1060
    %v1464 = vunpack.c.h.b16 %v1060
    %v1465 = vunpack.c.l.b16 %v1061
    %v1466 = vunpack.c.h.b16 %v1061
    %v1467 = vunpack.c.l.b16 %v1062
    %v1468 = vunpack.c.h.b16 %v1062
    %v1469 = vunpack.c.l.b16 %v1063
    %v1470 = vunpack.c.h.b16 %v1063
    %v1471 = vunpack.c.l.b16 %v1064
    %v1472 = vunpack.c.h.b16 %v1064
    %v1473 = vunpack.c.l.b16 %v1065
    %v1474 = vunpack.c.h.b16 %v1065
    %v1475 = vunpack.c.l.b16 %v1066
    %v1476 = vunpack.c.h.b16 %v1066
    %v1477 = vunpack.c.l.b16 %v1067
    %v1478 = vunpack.c.h.b16 %v1067
    %v1479 = vunpack.c.l.b16 %v1068
    %v1480 = vunpack.c.h.b16 %v1068
    %v1481 = vunpack.c.l.b16 %v1069
    %v1482 = vunpack.c.h.b16 %v1069
    %v1483 = vunpack.c.l.b16 %v1070
    %v1484 = vunpack.c.h.b16 %v1070
    %v1485 = vunpack.c.l.b16 %v1071
    %v1486 = vunpack.c.h.b16 %v1071
    %v1487 = vunpack.c.l.b16 %v1072
    %v1488 = vunpack.c.h.b16 %v1072
    %v1489 = vunpack.c.l.b16 %v1073
    %v1490 = vunpack.c.h.b16 %v1073
    %v1491 = vunpack.c.l.b16 %v1074
    %v1492 = vunpack.c.h.b16 %v1074
    %v1493 = vunpack.c.l.b16 %v1075
    %v1494 = vunpack.c.h.b16 %v1075
    %v1495 = vunpack.c.l.b16 %v1076
    %v1496 = vunpack.c.h.b16 %v1076
    %v1497 = vunpack.c.l.b16 %v1077
    %v1498 = vunpack.c.h.b16 %v1077
    %v1499 = vunpack.c.l.b16 %v1078
    %v1500 = vunpack.c.h.b16 %v1078
    %v1501 = vunpack.c.l.b16 %v1079
    %v1502 = vunpack.c.h.b16 %v1079
    %v1503 = vunpack.c.l.b16 %v1080
    %v1504 = vunpack.c.h.b16 %v1080
    %v1505 = vunpack.c.l.b16 %v1081
    %v1506 = vunpack.c.h.b16 %v1081
    %v1507 = vunpack.c.l.b16 %v1082
    %v1508 = vunpack.c.h.b16 %v1082
    %v1509 = vunpack.c.l.b16 %v1083
    %v1510 = vunpack.c.h.b16 %v1083
    %v1511 = vunpack.c.l.b16 %v1084
    %v1512 = vunpack.c.h.b16 %v1084
    %v1513 = vunpack.c.l.b16 %v1085
    %v1514 = vunpack.c.h.b16 %v1085
    %v1515 = vunpack.c.l.b16 %v1086
    %v1516 = vunpack.c.h.b16 %v1086
    %v1517 = vunpack.c.l.b16 %v1087
    %v1518 = vunpack.c.h.b16 %v1087
    %v1519 = vunpack.c.l.b16 %v1088
    %v1520 = vunpack.c.h.b16 %v1088
    %v1521 = vpack.c.b16 %v1311, %v1297
    %v1522 = vpack.c.b16 %v1312, %v1298
    %v1523 = vpack.c.b16 %v1313, %v1299
    %v1524 = vpack.c.b16 %v1314, %v1300
    %v1525 = vpack.c.b16 %v1315, %v1301
    %v1526 = vpack.c.b16 %v1316, %v1302
    %v1527 = vpack.c.b16 %v1317, %v1303
    %v1528 = vpack.c.b16 %v1318, %v1304
    %v1529 = vpack.c.b16 %v1319, %v1305
    %v1530 = vpack.c.b16 %v1320, %v1306
    %v1531 = vpack.c.b16 %v1321, %v1307
    %v1532 = vpack.c.b16 %v1322, %v1308
    %v1533 = vpack.c.b16 %v1323, %v1309
    %v1534 = vpack.c.b16 %v1324, %v1310
    %v1535 = vpack.c.b16 %v1339, %v1325
    %v1536 = vpack.c.b16 %v1340, %v1326
    %v1537 = vpack.c.b16 %v1341, %v1327
    %v1538 = vpack.c.b16 %v1342, %v1328
    %v1539 = vpack.c.b16 %v1343, %v1329
    %v1540 = vpack.c.b16 %v1344, %v1330
    %v1541 = vpack.c.b16 %v1345, %v1331
    %v1542 = vpack.c.b16 %v1346, %v1332
    %v1543 = vpack.c.b16 %v1347, %v1333
    %v1544 = vpack.c.b16 %v1348, %v1334
    %v1545 = vpack.c.b16 %v1349, %v1335
    %v1546 = vpack.c.b16 %v1350, %v1336
    %v1547 = vpack.c.b16 %v1351, %v1337
    %v1548 = vpack.c.b16 %v1352, %v1338
    %v1549 = vpack.c.b16 %v1367, %v1353
    %v1550 = vpack.c.b16 %v1368, %v1354
    %v1551 = vpack.c.b16 %v1369, %v1355
    %v1552 = vpack.c.b16 %v1370, %v1356
    %v1553 = vpack.c.b16 %v1371, %v1357
    %v1554 = vpack.c.b16 %v1372, %v1358
    %v1555 = vpack.c.b16 %v1373, %v1359
    %v1556 = vpack.c.b16 %v1374, %v1360
    %v1557 = vpack.c.b16 %v1375, %v1361
    %v1558 = vpack.c.b16 %v1376, %v1362
    %v1559 = vpack.c.b16 %v1377, %v1363
    %v1560 = vpack.c.b16 %v1378, %v1364
    %v1561 = vpack.c.b16 %v1379, %v1365
    %v1562 = vpack.c.b16 %v1380, %v1366
    %v1563 = vpack.c.b16 %v1395, %v1381
    %v1564 = vpack.c.b16 %v1396, %v1382
    %v1565 = vpack.c.b16 %v1397, %v1383
    %v1566 = vpack.c.b16 %v1398, %v1384
    %v1567 = vpack.c.b16 %v1399, %v1385
    %v1568 = vpack.c.b16 %v1400, %v1386
    %v1569 = vpack.c.b16 %v1401, %v1387
    %v1570 = vpack.c.b16 %v1402, %v1388
    %v1571 = vpack.c.b16 %v1403, %v1389
    %v1572 = vpack.c.b16 %v1404, %v1390
    %v1573 = vpack.c.b16 %v1405, %v1391
    %v1574 = vpack.c.b16 %v1406, %v1392
    %v1575 = vpack.c.b16 %v1407, %v1393
    %v1576 = vpack.c.b16 %v1408, %v1394
    %v1577 = vpack.c.b16 %v1423, %v1409
    %v1578 = vpack.c.b16 %v1424, %v1410
    %v1579 = vpack.c.b16 %v1425, %v1411
    %v1580 = vpack.c.b16 %v1426, %v1412
    %v1581 = vpack.c.b16 %v1427, %v1413
    %v1582 = vpack.c.b16 %v1428, %v1414
    %v1583 = vpack.c.b16 %v1429, %v1415
    %v1584 = vpack.c.b16 %v1430, %v1416
    %v1585 = vpack.c.b16 %v1431, %v1417
    %v1586 = vpack.c.b16 %v1432, %v1418
    %v1587 = vpack.c.b16 %v1433, %v1419
    %v1588 = vpack.c.b16 %v1434, %v1420
    %v1589 = vpack.c.b16 %v1435, %v1421
    %v1590 = vpack.c.b16 %v1436, %v1422
    %v1591 = vpack.c.b16 %v1451, %v1437
    %v1592 = vpack.c.b16 %v1452, %v1438
    %v1593 = vpack.c.b16 %v1453, %v1439
    %v1594 = vpack.c.b16 %v1454, %v1440
    %v1595 = vpack.c.b16 %v1455, %v1441
    %v1596 = vpack.c.b16 %v1456, %v1442
    %v1597 = vpack.c.b16 %v1457, %v1443
    %v1598 = vpack.c.b16 %v1458, %v1444
    %v1599 = vpack.c.b16 %v1459, %v1445
    %v1600 = vpack.c.b16 %v1460, %v1446
    %v1601 = vpack.c.b16 %v1461, %v1447
    %v1602 = vpack.c.b16 %v1462, %v1448
    %v1603 = vpack.c.b16 %v1463, %v1449
    %v1604 = vpack.c.b16 %v1464, %v1450
    %v1605 = vpack.c.b16 %v1479, %v1465
    %v1606 = vpack.c.b16 %v1480, %v1466
    %v1607 = vpack.c.b16 %v1481, %v1467
    %v1608 = vpack.c.b16 %v1482, %v1468
    %v1609 = vpack.c.b16 %v1483, %v1469
    %v1610 = vpack.c.b16 %v1484, %v1470
    %v1611 = vpack.c.b16 %v1485, %v1471
    %v1612 = vpack.c.b16 %v1486, %v1472
    %v1613 = vpack.c.b16 %v1487, %v1473
    %v1614 = vpack.c.b16 %v1488, %v1474
    %v1615 = vpack.c.b16 %v1489, %v1475
    %v1616 = vpack.c.b16 %v1490, %v1476
    %v1617 = vpack.c.b16 %v1491, %v1477
    %v1618 = vpack.c.b16 %v1492, %v1478
    %v1619 = vpack.c.b16 %v1507, %v1493
    %v1620 = vpack.c.b16 %v1508, %v1494
    %v1621 = vpack.c.b16 %v1509, %v1495
    %v1622 = vpack.c.b16 %v1510, %v1496
    %v1623 = vpack.c.b16 %v1511, %v1497
    %v1624 = vpack.c.b16 %v1512, %v1498
    %v1625 = vpack.c.b16 %v1513, %v1499
    %v1626 = vpack.c.b16 %v1514, %v1500
    %v1627 = vpack.c.b16 %v1515, %v1501
    %v1628 = vpack.c.b16 %v1516, %v1502
    %v1629 = vpack.c.b16 %v1517, %v1503
    %v1630 = vpack.c.b16 %v1518, %v1504
    %v1631 = vpack.c.b16 %v1519, %v1505
    %v1632 = vpack.c.b16 %v1520, %v1506
    %vm1737 = vcmask 523264
    %v1739 = vsel %vm1737, %v1534, 0
    %v1742 = vsel %vm1737, %v1548, 0
    %v1745 = vsel %vm1737, %v1562, 0
    %v1748 = vsel %vm1737, %v1576, 0
    %v1751 = vsel %vm1737, %v1590, 0
    %v1754 = vsel %vm1737, %v1604, 0
    %v1757 = vsel %vm1737, %v1618, 0
    %v1760 = vsel %vm1737, %v1632, 0
    %1762 = vmatprep.subr.bf16.mxu0 0
    %1763 = vmatpush1.bf16.msra.mxu0 %v420
    %1764 = vmatprep.subr.bf16.mxu0 0
    %1765 = vmatpush1.bf16.msra.mxu0 %v421
    %1766 = vmatprep.subr.bf16.mxu0 0
    %1767 = vmatpush1.bf16.msra.mxu0 %v422
    %1768 = vmatprep.subr.bf16.mxu0 0
    %1769 = vmatpush1.bf16.msra.mxu0 %v423
    %1770 = vmatprep.subr.bf16.mxu0 0
    %1771 = vmatpush1.bf16.msra.mxu0 %v424
    %1772 = vmatprep.subr.bf16.mxu0 0
    %1773 = vmatpush1.bf16.msra.mxu0 %v425
    %1774 = vmatprep.subr.bf16.mxu0 0
    %1775 = vmatpush1.bf16.msra.mxu0 %v426
    %1776 = vmatprep.subr.bf16.mxu0 0
    %1777 = vmatpush1.bf16.msra.mxu0 %v427
    %1778 = vmatprep.subr.bf16.mxu0 0
    %1779 = vmatpush1.bf16.msra.mxu0 %v428
    %1780 = vmatprep.subr.bf16.mxu0 0
    %1781 = vmatpush1.bf16.msra.mxu0 %v429
    %1782 = vmatprep.subr.bf16.mxu0 0
    %1783 = vmatpush1.bf16.msra.mxu0 %v430
    %1784 = vmatprep.subr.bf16.mxu0 0
    %1785 = vmatpush1.bf16.msra.mxu0 %v431
    %1786 = vmatprep.subr.bf16.mxu0 0
    %1787 = vmatpush1.bf16.msra.mxu0 %v606
    %1788 = vmatprep.subr.bf16.mxu0 0
    %1789 = vmatpush1.bf16.msra.mxu0 %v608
    %1790 = vmatprep.subr.bf16.mxu0 0
    %1791 = vmatpush1.bf16.msra.mxu0 %v610
    %1792 = vmatprep.subr.bf16.mxu0 0
    %1793 = vmatpush1.bf16.msra.mxu0 %v612
    %1794 = vmatprep.mubr.bf16.mxu0 %v1522
    %1795 = vmatmul.mubr.bf16.gmra.mrb[0].mxu0 %v1521
    %v1796 = vpop.f32.mrb[0].mxu0
    %v1797 = vadd.f32 %v1108, %v1796
    %v1798 = vpop.f32.mrb[0].mxu0
    %v1799 = vpop.f32.mrb[0].mxu0
    %v1800 = vadd.f32 %v1113, %v1799
    %v1801 = vpop.f32.mrb[0].mxu0
    %1802 = vmatprep.mubr.bf16.mxu0 %v1536
    %1803 = vmatmul.mubr.bf16.gmra.mrb[0].mxu0 %v1535
    %v1804 = vpop.f32.mrb[0].mxu0
    %v1805 = vadd.f32 %v1118, %v1804
    %v1806 = vpop.f32.mrb[0].mxu0
    %v1807 = vpop.f32.mrb[0].mxu0
    %v1808 = vadd.f32 %v1123, %v1807
    %v1809 = vpop.f32.mrb[0].mxu0
    %1810 = vmatprep.mubr.bf16.mxu0 %v1550
    %1811 = vmatmul.mubr.bf16.gmra.mrb[0].mxu0 %v1549
    %v1812 = vpop.f32.mrb[0].mxu0
    %v1813 = vadd.f32 %v1128, %v1812
    %v1814 = vpop.f32.mrb[0].mxu0
    %v1815 = vpop.f32.mrb[0].mxu0
    %v1816 = vadd.f32 %v1133, %v1815
    %v1817 = vpop.f32.mrb[0].mxu0
    %1818 = vmatprep.mubr.bf16.mxu0 %v1564
    %1819 = vmatmul.mubr.bf16.gmra.mrb[0].mxu0 %v1563
    %v1820 = vpop.f32.mrb[0].mxu0
    %v1821 = vadd.f32 %v1138, %v1820
    %v1822 = vpop.f32.mrb[0].mxu0
    %v1823 = vpop.f32.mrb[0].mxu0
    %v1824 = vadd.f32 %v1143, %v1823
    %v1825 = vpop.f32.mrb[0].mxu0
    %1826 = vmatprep.mubr.bf16.mxu0 %v1578
    %1827 = vmatmul.mubr.bf16.gmra.mrb[0].mxu0 %v1577
    %v1828 = vpop.f32.mrb[0].mxu0
    %v1829 = vadd.f32 %v1148, %v1828
    %v1830 = vpop.f32.mrb[0].mxu0
    %v1831 = vpop.f32.mrb[0].mxu0
    %v1832 = vadd.f32 %v1153, %v1831
    %v1833 = vpop.f32.mrb[0].mxu0
    %1834 = vmatprep.mubr.bf16.mxu0 %v1592
    %1835 = vmatmul.mubr.bf16.gmra.mrb[0].mxu0 %v1591
    %v1836 = vpop.f32.mrb[0].mxu0
    %v1837 = vadd.f32 %v1158, %v1836
    %v1838 = vpop.f32.mrb[0].mxu0
    %v1839 = vpop.f32.mrb[0].mxu0
    %v1840 = vadd.f32 %v1163, %v1839
    %v1841 = vpop.f32.mrb[0].mxu0
    %1842 = vmatprep.mubr.bf16.mxu0 %v1606
    %1843 = vmatmul.mubr.bf16.gmra.mrb[0].mxu0 %v1605
    %v1844 = vpop.f32.mrb[0].mxu0
    %v1845 = vadd.f32 %v1168, %v1844
    %v1846 = vpop.f32.mrb[0].mxu0
    %v1847 = vpop.f32.mrb[0].mxu0
    %v1848 = vadd.f32 %v1173, %v1847
    %v1849 = vpop.f32.mrb[0].mxu0
    %1850 = vmatprep.mubr.bf16.mxu0 %v1620
    %1851 = vmatmul.mubr.bf16.gmra.mrb[0].mxu0 %v1619
    %v1852 = vpop.f32.mrb[0].mxu0
    %v1853 = vadd.f32 %v1178, %v1852
    %v1854 = vpop.f32.mrb[0].mxu0
    %v1855 = vpop.f32.mrb[0].mxu0
    %v1856 = vadd.f32 %v1183, %v1855
    %v1857 = vpop.f32.mrb[0].mxu0
    %1858 = vdwg.mxu0
    %1859 = vmatprep.subr.bf16.mxu0 0
    %1860 = vmatpush1.bf16.msra.mxu0 %v614
    %1861 = vmatprep.subr.bf16.mxu0 0
    %1862 = vmatpush1.bf16.msra.mxu0 %v616
    %1863 = vmatprep.subr.bf16.mxu0 0
    %1864 = vmatpush1.bf16.msra.mxu0 %v618
    %1865 = vmatprep.subr.bf16.mxu0 0
    %1866 = vmatpush1.bf16.msra.mxu0 %v620
    %1867 = vmatprep.subr.bf16.mxu0 0
    %1868 = vmatpush1.bf16.msra.mxu0 %v622
    %1869 = vmatprep.subr.bf16.mxu0 0
    %1870 = vmatpush1.bf16.msra.mxu0 %v624
    %1871 = vmatprep.subr.bf16.mxu0 0
    %1872 = vmatpush1.bf16.msra.mxu0 %v626
    %1873 = vmatprep.subr.bf16.mxu0 0
    %1874 = vmatpush1.bf16.msra.mxu0 %v628
    %1875 = vmatprep.subr.bf16.mxu0 0
    %1876 = vmatpush1.bf16.msra.mxu0 %v654
    %1877 = vmatprep.subr.bf16.mxu0 0
    %1878 = vmatpush1.bf16.msra.mxu0 %v656
    %1879 = vmatprep.subr.bf16.mxu0 0
    %1880 = vmatpush1.bf16.msra.mxu0 %v658
    %1881 = vmatprep.subr.bf16.mxu0 0
    %1882 = vmatpush1.bf16.msra.mxu0 %v660
    %1883 = vmatprep.subr.bf16.mxu0 0
    %1884 = vmatpush1.bf16.msra.mxu0 %v662
    %1885 = vmatprep.subr.bf16.mxu0 0
    %1886 = vmatpush1.bf16.msra.mxu0 %v664
    %1887 = vmatprep.subr.bf16.mxu0 0
    %1888 = vmatpush1.bf16.msra.mxu0 %v666
    %1889 = vmatprep.subr.bf16.mxu0 0
    %1890 = vmatpush1.bf16.msra.mxu0 %v668
    %1891 = vmatprep.mubr.bf16.mxu0 %v1524
    %1892 = vmatmul.mubr.bf16.gmra.mrb[0].mxu0 %v1523
    %v1893 = vpop.f32.mrb[0].mxu0
    %v1894 = vadd.f32 %v1797, %v1893
    %v1895 = vpop.f32.mrb[0].mxu0
    %v1896 = vpop.f32.mrb[0].mxu0
    %v1897 = vadd.f32 %v1800, %v1896
    %v1898 = vpop.f32.mrb[0].mxu0
    %1899 = vmatprep.mubr.bf16.mxu0 %v1538
    %1900 = vmatmul.mubr.bf16.gmra.mrb[0].mxu0 %v1537
    %v1901 = vpop.f32.mrb[0].mxu0
    %v1902 = vadd.f32 %v1805, %v1901
    %v1903 = vpop.f32.mrb[0].mxu0
    %v1904 = vpop.f32.mrb[0].mxu0
    %v1905 = vadd.f32 %v1808, %v1904
    %v1906 = vpop.f32.mrb[0].mxu0
    %1907 = vmatprep.mubr.bf16.mxu0 %v1552
    %1908 = vmatmul.mubr.bf16.gmra.mrb[0].mxu0 %v1551
    %v1909 = vpop.f32.mrb[0].mxu0
    %v1910 = vadd.f32 %v1813, %v1909
    %v1911 = vpop.f32.mrb[0].mxu0
    %v1912 = vpop.f32.mrb[0].mxu0
    %v1913 = vadd.f32 %v1816, %v1912
    %v1914 = vpop.f32.mrb[0].mxu0
    %1915 = vmatprep.mubr.bf16.mxu0 %v1566
    %1916 = vmatmul.mubr.bf16.gmra.mrb[0].mxu0 %v1565
    %v1917 = vpop.f32.mrb[0].mxu0
    %v1918 = vadd.f32 %v1821, %v1917
    %v1919 = vpop.f32.mrb[0].mxu0
    %v1920 = vpop.f32.mrb[0].mxu0
    %v1921 = vadd.f32 %v1824, %v1920
    %v1922 = vpop.f32.mrb[0].mxu0
    %1923 = vmatprep.mubr.bf16.mxu0 %v1580
    %1924 = vmatmul.mubr.bf16.gmra.mrb[0].mxu0 %v1579
    %v1925 = vpop.f32.mrb[0].mxu0
    %v1926 = vadd.f32 %v1829, %v1925
    %v1927 = vpop.f32.mrb[0].mxu0
    %v1928 = vpop.f32.mrb[0].mxu0
    %v1929 = vadd.f32 %v1832, %v1928
    %v1930 = vpop.f32.mrb[0].mxu0
    %1931 = vmatprep.mubr.bf16.mxu0 %v1594
    %1932 = vmatmul.mubr.bf16.gmra.mrb[0].mxu0 %v1593
    %v1933 = vpop.f32.mrb[0].mxu0
    %v1934 = vadd.f32 %v1837, %v1933
    %v1935 = vpop.f32.mrb[0].mxu0
    %v1936 = vpop.f32.mrb[0].mxu0
    %v1937 = vadd.f32 %v1840, %v1936
    %v1938 = vpop.f32.mrb[0].mxu0
    %1939 = vmatprep.mubr.bf16.mxu0 %v1608
    %1940 = vmatmul.mubr.bf16.gmra.mrb[0].mxu0 %v1607
    %v1941 = vpop.f32.mrb[0].mxu0
    %v1942 = vadd.f32 %v1845, %v1941
    %v1943 = vpop.f32.mrb[0].mxu0
    %v1944 = vpop.f32.mrb[0].mxu0
    %v1945 = vadd.f32 %v1848, %v1944
    %v1946 = vpop.f32.mrb[0].mxu0
    %1947 = vmatprep.mubr.bf16.mxu0 %v1622
    %1948 = vmatmul.mubr.bf16.gmra.mrb[0].mxu0 %v1621
    %v1949 = vpop.f32.mrb[0].mxu0
    %v1950 = vadd.f32 %v1853, %v1949
    %v1951 = vpop.f32.mrb[0].mxu0
    %v1952 = vpop.f32.mrb[0].mxu0
    %v1953 = vadd.f32 %v1856, %v1952
    %v1954 = vpop.f32.mrb[0].mxu0
    %1955 = vdwg.mxu0
    %1956 = vmatprep.subr.bf16.mxu0 0
    %1957 = vmatpush1.bf16.msra.mxu0 %v670
    %1958 = vmatprep.subr.bf16.mxu0 0
    %1959 = vmatpush1.bf16.msra.mxu0 %v672
    %1960 = vmatprep.subr.bf16.mxu0 0
    %1961 = vmatpush1.bf16.msra.mxu0 %v674
    %1962 = vmatprep.subr.bf16.mxu0 0
    %1963 = vmatpush1.bf16.msra.mxu0 %v676
    %1964 = vmatprep.subr.bf16.mxu0 0
    %1965 = vmatpush1.bf16.msra.mxu0 %v702
    %1966 = vmatprep.subr.bf16.mxu0 0
    %1967 = vmatpush1.bf16.msra.mxu0 %v704
    %1968 = vmatprep.subr.bf16.mxu0 0
    %1969 = vmatpush1.bf16.msra.mxu0 %v706
    %1970 = vmatprep.subr.bf16.mxu0 0
    %1971 = vmatpush1.bf16.msra.mxu0 %v708
    %1972 = vmatprep.subr.bf16.mxu0 0
    %1973 = vmatpush1.bf16.msra.mxu0 %v710
    %1974 = vmatprep.subr.bf16.mxu0 0
    %1975 = vmatpush1.bf16.msra.mxu0 %v712
    %1976 = vmatprep.subr.bf16.mxu0 0
    %1977 = vmatpush1.bf16.msra.mxu0 %v714
    %1978 = vmatprep.subr.bf16.mxu0 0
    %1979 = vmatpush1.bf16.msra.mxu0 %v716
    %1980 = vmatprep.subr.bf16.mxu0 0
    %1981 = vmatpush1.bf16.msra.mxu0 %v718
    %1982 = vmatprep.subr.bf16.mxu0 0
    %1983 = vmatpush1.bf16.msra.mxu0 %v720
    %1984 = vmatprep.subr.bf16.mxu0 0
    %1985 = vmatpush1.bf16.msra.mxu0 %v722
    %1986 = vmatprep.subr.bf16.mxu0 0
    %1987 = vmatpush1.bf16.msra.mxu0 %v724
    %1988 = vmatprep.mubr.bf16.mxu0 %v1526
    %1989 = vmatmul.mubr.bf16.gmra.mrb[0].mxu0 %v1525
    %v1990 = vpop.f32.mrb[0].mxu0
    %v1991 = vadd.f32 %v1894, %v1990
    %v1992 = vpop.f32.mrb[0].mxu0
    %v1993 = vpop.f32.mrb[0].mxu0
    %v1994 = vadd.f32 %v1897, %v1993
    %v1995 = vpop.f32.mrb[0].mxu0
    %1996 = vmatprep.mubr.bf16.mxu0 %v1540
    %1997 = vmatmul.mubr.bf16.gmra.mrb[0].mxu0 %v1539
    %v1998 = vpop.f32.mrb[0].mxu0
    %v1999 = vadd.f32 %v1902, %v1998
    %v2000 = vpop.f32.mrb[0].mxu0
    %v2001 = vpop.f32.mrb[0].mxu0
    %v2002 = vadd.f32 %v1905, %v2001
    %v2003 = vpop.f32.mrb[0].mxu0
    %2004 = vmatprep.mubr.bf16.mxu0 %v1554
    %2005 = vmatmul.mubr.bf16.gmra.mrb[0].mxu0 %v1553
    %v2006 = vpop.f32.mrb[0].mxu0
    %v2007 = vadd.f32 %v1910, %v2006
    %v2008 = vpop.f32.mrb[0].mxu0
    %v2009 = vpop.f32.mrb[0].mxu0
    %v2010 = vadd.f32 %v1913, %v2009
    %v2011 = vpop.f32.mrb[0].mxu0
    %2012 = vmatprep.mubr.bf16.mxu0 %v1568
    %2013 = vmatmul.mubr.bf16.gmra.mrb[0].mxu0 %v1567
    %v2014 = vpop.f32.mrb[0].mxu0
    %v2015 = vadd.f32 %v1918, %v2014
    %v2016 = vpop.f32.mrb[0].mxu0
    %v2017 = vpop.f32.mrb[0].mxu0
    %v2018 = vadd.f32 %v1921, %v2017
    %v2019 = vpop.f32.mrb[0].mxu0
    %2020 = vmatprep.mubr.bf16.mxu0 %v1582
    %2021 = vmatmul.mubr.bf16.gmra.mrb[0].mxu0 %v1581
    %v2022 = vpop.f32.mrb[0].mxu0
    %v2023 = vadd.f32 %v1926, %v2022
    %v2024 = vpop.f32.mrb[0].mxu0
    %v2025 = vpop.f32.mrb[0].mxu0
    %v2026 = vadd.f32 %v1929, %v2025
    %v2027 = vpop.f32.mrb[0].mxu0
    %2028 = vmatprep.mubr.bf16.mxu0 %v1596
    %2029 = vmatmul.mubr.bf16.gmra.mrb[0].mxu0 %v1595
    %v2030 = vpop.f32.mrb[0].mxu0
    %v2031 = vadd.f32 %v1934, %v2030
    %v2032 = vpop.f32.mrb[0].mxu0
    %v2033 = vpop.f32.mrb[0].mxu0
    %v2034 = vadd.f32 %v1937, %v2033
    %v2035 = vpop.f32.mrb[0].mxu0
    %2036 = vmatprep.mubr.bf16.mxu0 %v1610
    %2037 = vmatmul.mubr.bf16.gmra.mrb[0].mxu0 %v1609
    %v2038 = vpop.f32.mrb[0].mxu0
    %v2039 = vadd.f32 %v1942, %v2038
    %v2040 = vpop.f32.mrb[0].mxu0
    %v2041 = vpop.f32.mrb[0].mxu0
    %v2042 = vadd.f32 %v1945, %v2041
    %v2043 = vpop.f32.mrb[0].mxu0
    %2044 = vmatprep.mubr.bf16.mxu0 %v1624
    %2045 = vmatmul.mubr.bf16.gmra.mrb[0].mxu0 %v1623
    %v2046 = vpop.f32.mrb[0].mxu0
    %v2047 = vadd.f32 %v1950, %v2046
    %v2048 = vpop.f32.mrb[0].mxu0
    %v2049 = vpop.f32.mrb[0].mxu0
    %v2050 = vadd.f32 %v1953, %v2049
    %v2051 = vpop.f32.mrb[0].mxu0
    %2052 = vdwg.mxu0
    %2053 = vmatprep.subr.bf16.mxu0 0
    %2054 = vmatpush1.bf16.msra.mxu0 %v750
    %2055 = vmatprep.subr.bf16.mxu0 0
    %2056 = vmatpush1.bf16.msra.mxu0 %v752
    %2057 = vmatprep.subr.bf16.mxu0 0
    %2058 = vmatpush1.bf16.msra.mxu0 %v754
    %2059 = vmatprep.subr.bf16.mxu0 0
    %2060 = vmatpush1.bf16.msra.mxu0 %v756
    %2061 = vmatprep.subr.bf16.mxu0 0
    %2062 = vmatpush1.bf16.msra.mxu0 %v758
    %2063 = vmatprep.subr.bf16.mxu0 0
    %2064 = vmatpush1.bf16.msra.mxu0 %v760
    %2065 = vmatprep.subr.bf16.mxu0 0
    %2066 = vmatpush1.bf16.msra.mxu0 %v762
    %2067 = vmatprep.subr.bf16.mxu0 0
    %2068 = vmatpush1.bf16.msra.mxu0 %v764
    %2069 = vmatprep.subr.bf16.mxu0 0
    %2070 = vmatpush1.bf16.msra.mxu0 %v766
    %2071 = vmatprep.subr.bf16.mxu0 0
    %2072 = vmatpush1.bf16.msra.mxu0 %v768
    %2073 = vmatprep.subr.bf16.mxu0 0
    %2074 = vmatpush1.bf16.msra.mxu0 %v770
    %2075 = vmatprep.subr.bf16.mxu0 0
    %2076 = vmatpush1.bf16.msra.mxu0 %v772
    %2077 = vmatprep.subr.bf16.mxu0 0
    %2078 = vmatpush1.bf16.msra.mxu0 %v798
    %2079 = vmatprep.subr.bf16.mxu0 0
    %2080 = vmatpush1.bf16.msra.mxu0 %v800
    %2081 = vmatprep.subr.bf16.mxu0 0
    %2082 = vmatpush1.bf16.msra.mxu0 %v802
    %2083 = vmatprep.subr.bf16.mxu0 0
    %2084 = vmatpush1.bf16.msra.mxu0 %v804
    %2085 = vmatprep.mubr.bf16.mxu0 %v1528
    %2086 = vmatmul.mubr.bf16.gmra.mrb[0].mxu0 %v1527
    %v2087 = vpop.f32.mrb[0].mxu0
    %v2088 = vadd.f32 %v1991, %v2087
    %v2089 = vpop.f32.mrb[0].mxu0
    %v2090 = vpop.f32.mrb[0].mxu0
    %v2091 = vadd.f32 %v1994, %v2090
    %v2092 = vpop.f32.mrb[0].mxu0
    %2093 = vmatprep.mubr.bf16.mxu0 %v1542
    %2094 = vmatmul.mubr.bf16.gmra.mrb[0].mxu0 %v1541
    %v2095 = vpop.f32.mrb[0].mxu0
    %v2096 = vadd.f32 %v1999, %v2095
    %v2097 = vpop.f32.mrb[0].mxu0
    %v2098 = vpop.f32.mrb[0].mxu0
    %v2099 = vadd.f32 %v2002, %v2098
    %v2100 = vpop.f32.mrb[0].mxu0
    %2101 = vmatprep.mubr.bf16.mxu0 %v1556
    %2102 = vmatmul.mubr.bf16.gmra.mrb[0].mxu0 %v1555
    %v2103 = vpop.f32.mrb[0].mxu0
    %v2104 = vadd.f32 %v2007, %v2103
    %v2105 = vpop.f32.mrb[0].mxu0
    %v2106 = vpop.f32.mrb[0].mxu0
    %v2107 = vadd.f32 %v2010, %v2106
    %v2108 = vpop.f32.mrb[0].mxu0
    %2109 = vmatprep.mubr.bf16.mxu0 %v1570
    %2110 = vmatmul.mubr.bf16.gmra.mrb[0].mxu0 %v1569
    %v2111 = vpop.f32.mrb[0].mxu0
    %v2112 = vadd.f32 %v2015, %v2111
    %v2113 = vpop.f32.mrb[0].mxu0
    %v2114 = vpop.f32.mrb[0].mxu0
    %v2115 = vadd.f32 %v2018, %v2114
    %v2116 = vpop.f32.mrb[0].mxu0
    %2117 = vmatprep.mubr.bf16.mxu0 %v1584
    %2118 = vmatmul.mubr.bf16.gmra.mrb[0].mxu0 %v1583
    %v2119 = vpop.f32.mrb[0].mxu0
    %v2120 = vadd.f32 %v2023, %v2119
    %v2121 = vpop.f32.mrb[0].mxu0
    %v2122 = vpop.f32.mrb[0].mxu0
    %v2123 = vadd.f32 %v2026, %v2122
    %v2124 = vpop.f32.mrb[0].mxu0
    %2125 = vmatprep.mubr.bf16.mxu0 %v1598
    %2126 = vmatmul.mubr.bf16.gmra.mrb[0].mxu0 %v1597
    %v2127 = vpop.f32.mrb[0].mxu0
    %v2128 = vadd.f32 %v2031, %v2127
    %v2129 = vpop.f32.mrb[0].mxu0
    %v2130 = vpop.f32.mrb[0].mxu0
    %v2131 = vadd.f32 %v2034, %v2130
    %v2132 = vpop.f32.mrb[0].mxu0
    %2133 = vmatprep.mubr.bf16.mxu0 %v1612
    %2134 = vmatmul.mubr.bf16.gmra.mrb[0].mxu0 %v1611
    %v2135 = vpop.f32.mrb[0].mxu0
    %v2136 = vadd.f32 %v2039, %v2135
    %v2137 = vpop.f32.mrb[0].mxu0
    %v2138 = vpop.f32.mrb[0].mxu0
    %v2139 = vadd.f32 %v2042, %v2138
    %v2140 = vpop.f32.mrb[0].mxu0
    %2141 = vmatprep.mubr.bf16.mxu0 %v1626
    %2142 = vmatmul.mubr.bf16.gmra.mrb[0].mxu0 %v1625
    %v2143 = vpop.f32.mrb[0].mxu0
    %v2144 = vadd.f32 %v2047, %v2143
    %v2145 = vpop.f32.mrb[0].mxu0
    %v2146 = vpop.f32.mrb[0].mxu0
    %v2147 = vadd.f32 %v2050, %v2146
    %v2148 = vpop.f32.mrb[0].mxu0
    %2149 = vdwg.mxu0
    %2150 = vmatprep.subr.bf16.mxu0 0
    %2151 = vmatpush1.bf16.msra.mxu0 %v806
    %2152 = vmatprep.subr.bf16.mxu0 0
    %2153 = vmatpush1.bf16.msra.mxu0 %v808
    %2154 = vmatprep.subr.bf16.mxu0 0
    %2155 = vmatpush1.bf16.msra.mxu0 %v810
    %2156 = vmatprep.subr.bf16.mxu0 0
    %2157 = vmatpush1.bf16.msra.mxu0 %v812
    %2158 = vmatprep.subr.bf16.mxu0 0
    %2159 = vmatpush1.bf16.msra.mxu0 %v814
    %2160 = vmatprep.subr.bf16.mxu0 0
    %2161 = vmatpush1.bf16.msra.mxu0 %v816
    %2162 = vmatprep.subr.bf16.mxu0 0
    %2163 = vmatpush1.bf16.msra.mxu0 %v818
    %2164 = vmatprep.subr.bf16.mxu0 0
    %2165 = vmatpush1.bf16.msra.mxu0 %v820
    %2166 = vmatprep.subr.bf16.mxu0 0
    %2167 = vmatpush1.bf16.msra.mxu0 %v846
    %2168 = vmatprep.subr.bf16.mxu0 0
    %2169 = vmatpush1.bf16.msra.mxu0 %v848
    %2170 = vmatprep.subr.bf16.mxu0 0
    %2171 = vmatpush1.bf16.msra.mxu0 %v850
    %2172 = vmatprep.subr.bf16.mxu0 0
    %2173 = vmatpush1.bf16.msra.mxu0 %v852
    %2174 = vmatprep.subr.bf16.mxu0 0
    %2175 = vmatpush1.bf16.msra.mxu0 %v854
    %2176 = vmatprep.subr.bf16.mxu0 0
    %2177 = vmatpush1.bf16.msra.mxu0 %v856
    %2178 = vmatprep.subr.bf16.mxu0 0
    %2179 = vmatpush1.bf16.msra.mxu0 %v858
    %2180 = vmatprep.subr.bf16.mxu0 0
    %2181 = vmatpush1.bf16.msra.mxu0 %v860
    %2182 = vmatprep.mubr.bf16.mxu0 %v1530
    %2183 = vmatmul.mubr.bf16.gmra.mrb[0].mxu0 %v1529
    %v2184 = vpop.f32.mrb[0].mxu0
    %v2185 = vadd.f32 %v2088, %v2184
    %v2186 = vpop.f32.mrb[0].mxu0
    %v2187 = vpop.f32.mrb[0].mxu0
    %v2188 = vadd.f32 %v2091, %v2187
    %v2189 = vpop.f32.mrb[0].mxu0
    %2190 = vmatprep.mubr.bf16.mxu0 %v1544
    %2191 = vmatmul.mubr.bf16.gmra.mrb[0].mxu0 %v1543
    %v2192 = vpop.f32.mrb[0].mxu0
    %v2193 = vadd.f32 %v2096, %v2192
    %v2194 = vpop.f32.mrb[0].mxu0
    %v2195 = vpop.f32.mrb[0].mxu0
    %v2196 = vadd.f32 %v2099, %v2195
    %v2197 = vpop.f32.mrb[0].mxu0
    %2198 = vmatprep.mubr.bf16.mxu0 %v1558
    %2199 = vmatmul.mubr.bf16.gmra.mrb[0].mxu0 %v1557
    %v2200 = vpop.f32.mrb[0].mxu0
    %v2201 = vadd.f32 %v2104, %v2200
    %v2202 = vpop.f32.mrb[0].mxu0
    %v2203 = vpop.f32.mrb[0].mxu0
    %v2204 = vadd.f32 %v2107, %v2203
    %v2205 = vpop.f32.mrb[0].mxu0
    %2206 = vmatprep.mubr.bf16.mxu0 %v1572
    %2207 = vmatmul.mubr.bf16.gmra.mrb[0].mxu0 %v1571
    %v2208 = vpop.f32.mrb[0].mxu0
    %v2209 = vadd.f32 %v2112, %v2208
    %v2210 = vpop.f32.mrb[0].mxu0
    %v2211 = vpop.f32.mrb[0].mxu0
    %v2212 = vadd.f32 %v2115, %v2211
    %v2213 = vpop.f32.mrb[0].mxu0
    %2214 = vmatprep.mubr.bf16.mxu0 %v1586
    %2215 = vmatmul.mubr.bf16.gmra.mrb[0].mxu0 %v1585
    %v2216 = vpop.f32.mrb[0].mxu0
    %v2217 = vadd.f32 %v2120, %v2216
    %v2218 = vpop.f32.mrb[0].mxu0
    %v2219 = vpop.f32.mrb[0].mxu0
    %v2220 = vadd.f32 %v2123, %v2219
    %v2221 = vpop.f32.mrb[0].mxu0
    %2222 = vmatprep.mubr.bf16.mxu0 %v1600
    %2223 = vmatmul.mubr.bf16.gmra.mrb[0].mxu0 %v1599
    %v2224 = vpop.f32.mrb[0].mxu0
    %v2225 = vadd.f32 %v2128, %v2224
    %v2226 = vpop.f32.mrb[0].mxu0
    %v2227 = vpop.f32.mrb[0].mxu0
    %v2228 = vadd.f32 %v2131, %v2227
    %v2229 = vpop.f32.mrb[0].mxu0
    %2230 = vmatprep.mubr.bf16.mxu0 %v1614
    %2231 = vmatmul.mubr.bf16.gmra.mrb[0].mxu0 %v1613
    %v2232 = vpop.f32.mrb[0].mxu0
    %v2233 = vadd.f32 %v2136, %v2232
    %v2234 = vpop.f32.mrb[0].mxu0
    %v2235 = vpop.f32.mrb[0].mxu0
    %v2236 = vadd.f32 %v2139, %v2235
    %v2237 = vpop.f32.mrb[0].mxu0
    %2238 = vmatprep.mubr.bf16.mxu0 %v1628
    %2239 = vmatmul.mubr.bf16.gmra.mrb[0].mxu0 %v1627
    %v2240 = vpop.f32.mrb[0].mxu0
    %v2241 = vadd.f32 %v2144, %v2240
    %v2242 = vpop.f32.mrb[0].mxu0
    %v2243 = vpop.f32.mrb[0].mxu0
    %v2244 = vadd.f32 %v2147, %v2243
    %v2245 = vpop.f32.mrb[0].mxu0
    %2246 = vdwg.mxu0
    %2247 = vmatprep.subr.bf16.mxu0 0
    %2248 = vmatpush1.bf16.msra.mxu0 %v862
    %2249 = vmatprep.subr.bf16.mxu0 0
    %2250 = vmatpush1.bf16.msra.mxu0 %v864
    %2251 = vmatprep.subr.bf16.mxu0 0
    %2252 = vmatpush1.bf16.msra.mxu0 %v866
    %2253 = vmatprep.subr.bf16.mxu0 0
    %2254 = vmatpush1.bf16.msra.mxu0 %v868
    %2255 = vmatprep.subr.bf16.mxu0 0
    %2256 = vmatpush1.bf16.msra.mxu0 %v894
    %2257 = vmatprep.subr.bf16.mxu0 0
    %2258 = vmatpush1.bf16.msra.mxu0 %v896
    %2259 = vmatprep.subr.bf16.mxu0 0
    %2260 = vmatpush1.bf16.msra.mxu0 %v898
    %2261 = vmatprep.subr.bf16.mxu0 0
    %2262 = vmatpush1.bf16.msra.mxu0 %v900
    %2263 = vmatprep.subr.bf16.mxu0 0
    %2264 = vmatpush1.bf16.msra.mxu0 %v902
    %2265 = vmatprep.subr.bf16.mxu0 0
    %2266 = vmatpush1.bf16.msra.mxu0 %v904
    %2267 = vmatprep.subr.bf16.mxu0 0
    %2268 = vmatpush1.bf16.msra.mxu0 %v906
    %2269 = vmatprep.subr.bf16.mxu0 0
    %2270 = vmatpush1.bf16.msra.mxu0 %v908
    %2271 = vmatprep.subr.bf16.mxu0 0
    %2272 = vmatpush1.bf16.msra.mxu0 %v910
    %2273 = vmatprep.subr.bf16.mxu0 0
    %2274 = vmatpush1.bf16.msra.mxu0 %v912
    %2275 = vmatprep.subr.bf16.mxu0 0
    %2276 = vmatpush1.bf16.msra.mxu0 %v914
    %2277 = vmatprep.subr.bf16.mxu0 0
    %2278 = vmatpush1.bf16.msra.mxu0 %v916
    %2279 = vmatprep.mubr.bf16.mxu0 %v1532
    %2280 = vmatmul.mubr.bf16.gmra.mrb[0].mxu0 %v1531
    %v2281 = vpop.f32.mrb[0].mxu0
    %v2282 = vadd.f32 %v2185, %v2281
    %v2283 = vpop.f32.mrb[0].mxu0
    %v2284 = vpop.f32.mrb[0].mxu0
    %v2285 = vadd.f32 %v2188, %v2284
    %v2286 = vpop.f32.mrb[0].mxu0
    %2287 = vmatprep.mubr.bf16.mxu0 %v1546
    %2288 = vmatmul.mubr.bf16.gmra.mrb[0].mxu0 %v1545
    %v2289 = vpop.f32.mrb[0].mxu0
    %v2290 = vadd.f32 %v2193, %v2289
    %v2291 = vpop.f32.mrb[0].mxu0
    %v2292 = vpop.f32.mrb[0].mxu0
    %v2293 = vadd.f32 %v2196, %v2292
    %v2294 = vpop.f32.mrb[0].mxu0
    %2295 = vmatprep.mubr.bf16.mxu0 %v1560
    %2296 = vmatmul.mubr.bf16.gmra.mrb[0].mxu0 %v1559
    %v2297 = vpop.f32.mrb[0].mxu0
    %v2298 = vadd.f32 %v2201, %v2297
    %v2299 = vpop.f32.mrb[0].mxu0
    %v2300 = vpop.f32.mrb[0].mxu0
    %v2301 = vadd.f32 %v2204, %v2300
    %v2302 = vpop.f32.mrb[0].mxu0
    %2303 = vmatprep.mubr.bf16.mxu0 %v1574
    %2304 = vmatmul.mubr.bf16.gmra.mrb[0].mxu0 %v1573
    %v2305 = vpop.f32.mrb[0].mxu0
    %v2306 = vadd.f32 %v2209, %v2305
    %v2307 = vpop.f32.mrb[0].mxu0
    %v2308 = vpop.f32.mrb[0].mxu0
    %v2309 = vadd.f32 %v2212, %v2308
    %v2310 = vpop.f32.mrb[0].mxu0
    %2311 = vmatprep.mubr.bf16.mxu0 %v1588
    %2312 = vmatmul.mubr.bf16.gmra.mrb[0].mxu0 %v1587
    %v2313 = vpop.f32.mrb[0].mxu0
    %v2314 = vadd.f32 %v2217, %v2313
    %v2315 = vpop.f32.mrb[0].mxu0
    %v2316 = vpop.f32.mrb[0].mxu0
    %v2317 = vadd.f32 %v2220, %v2316
    %v2318 = vpop.f32.mrb[0].mxu0
    %2319 = vmatprep.mubr.bf16.mxu0 %v1602
    %2320 = vmatmul.mubr.bf16.gmra.mrb[0].mxu0 %v1601
    %v2321 = vpop.f32.mrb[0].mxu0
    %v2322 = vadd.f32 %v2225, %v2321
    %v2323 = vpop.f32.mrb[0].mxu0
    %v2324 = vpop.f32.mrb[0].mxu0
    %v2325 = vadd.f32 %v2228, %v2324
    %v2326 = vpop.f32.mrb[0].mxu0
    %2327 = vmatprep.mubr.bf16.mxu0 %v1616
    %2328 = vmatmul.mubr.bf16.gmra.mrb[0].mxu0 %v1615
    %v2329 = vpop.f32.mrb[0].mxu0
    %v2330 = vadd.f32 %v2233, %v2329
    %v2331 = vpop.f32.mrb[0].mxu0
    %v2332 = vpop.f32.mrb[0].mxu0
    %v2333 = vadd.f32 %v2236, %v2332
    %v2334 = vpop.f32.mrb[0].mxu0
    %2335 = vmatprep.mubr.bf16.mxu0 %v1630
    %2336 = vmatmul.mubr.bf16.gmra.mrb[0].mxu0 %v1629
    %v2337 = vpop.f32.mrb[0].mxu0
    %v2338 = vadd.f32 %v2241, %v2337
    %v2339 = vpop.f32.mrb[0].mxu0
    %v2340 = vpop.f32.mrb[0].mxu0
    %v2341 = vadd.f32 %v2244, %v2340
    %v2342 = vpop.f32.mrb[0].mxu0
    %2343 = vdwg.mxu0
    %2344 = vmatprep.subr.bf16.mxu0 0
    %2345 = vmatpush1.bf16.msra.mxu0 %v942
    %2346 = vmatprep.subr.bf16.mxu0 0
    %2347 = vmatpush1.bf16.msra.mxu0 %v944
    %2348 = vmatprep.subr.bf16.mxu0 0
    %2349 = vmatpush1.bf16.msra.mxu0 %v946
    %2350 = vmatprep.subr.bf16.mxu0 0
    %2351 = vmatpush1.bf16.msra.mxu0 %v948
    %2352 = vmatprep.subr.bf16.mxu0 0
    %2353 = vmatpush1.bf16.msra.mxu0 %v950
    %2354 = vmatprep.subr.bf16.mxu0 0
    %2355 = vmatpush1.bf16.msra.mxu0 %v952
    %2356 = vmatprep.subr.bf16.mxu0 0
    %2357 = vmatpush1.bf16.msra.mxu0 %v954
    %2358 = vmatprep.subr.bf16.mxu0 0
    %2359 = vmatpush1.bf16.msra.mxu0 %v956
    %2360 = vmatprep.subr.bf16.mxu0 0
    %2361 = vmatpush1.bf16.msra.mxu0 %v958
    %2362 = vmatprep.subr.bf16.mxu0 0
    %2363 = vmatpush1.bf16.msra.mxu0 %v960
    %2364 = vmatprep.subr.bf16.mxu0 0
    %2365 = vmatpush1.bf16.msra.mxu0 %v962
    %2366 = vmatprep.subr.bf16.mxu0 0
    %2367 = vmatpush1.bf16.msra.mxu0 %v964
    %2368 = vmatprep.subr.bf16.mxu0 0
    %2369 = vmatpush1.bf16.msra.mxu0 0
    %2370 = vmatprep.subr.bf16.mxu0 0
    %2371 = vmatpush1.bf16.msra.mxu0 0
    %2372 = vmatprep.subr.bf16.mxu0 0
    %2373 = vmatpush1.bf16.msra.mxu0 0
    %2374 = vmatprep.subr.bf16.mxu0 0
    %2375 = vmatpush1.bf16.msra.mxu0 0
    %2376 = vmatprep.mubr.bf16.mxu0 %v1739
    %2377 = vmatmul.mubr.bf16.gmra.mrb[0].mxu0 %v1533
    %v2378 = vpop.f32.mrb[0].mxu0
    %v2379 = vadd.f32 %v2282, %v2378
    %v2380 = vpop.f32.mrb[0].mxu0
    %v2381 = vpop.f32.mrb[0].mxu0
    %v2382 = vadd.f32 %v2285, %v2381
    %v2383 = vpop.f32.mrb[0].mxu0
    %2384 = vmatprep.mubr.bf16.mxu0 %v1742
    %2385 = vmatmul.mubr.bf16.gmra.mrb[0].mxu0 %v1547
    %v2386 = vpop.f32.mrb[0].mxu0
    %v2387 = vadd.f32 %v2290, %v2386
    %v2388 = vpop.f32.mrb[0].mxu0
    %v2389 = vpop.f32.mrb[0].mxu0
    %v2390 = vadd.f32 %v2293, %v2389
    %v2391 = vpop.f32.mrb[0].mxu0
    %2392 = vmatprep.mubr.bf16.mxu0 %v1745
    %2393 = vmatmul.mubr.bf16.gmra.mrb[0].mxu0 %v1561
    %v2394 = vpop.f32.mrb[0].mxu0
    %v2395 = vadd.f32 %v2298, %v2394
    %v2396 = vpop.f32.mrb[0].mxu0
    %v2397 = vpop.f32.mrb[0].mxu0
    %v2398 = vadd.f32 %v2301, %v2397
    %v2399 = vpop.f32.mrb[0].mxu0
    %2400 = vmatprep.mubr.bf16.mxu0 %v1748
    %2401 = vmatmul.mubr.bf16.gmra.mrb[0].mxu0 %v1575
    %v2402 = vpop.f32.mrb[0].mxu0
    %v2403 = vadd.f32 %v2306, %v2402
    %v2404 = vpop.f32.mrb[0].mxu0
    %v2405 = vpop.f32.mrb[0].mxu0
    %v2406 = vadd.f32 %v2309, %v2405
    %v2407 = vpop.f32.mrb[0].mxu0
    %2408 = vmatprep.mubr.bf16.mxu0 %v1751
    %2409 = vmatmul.mubr.bf16.gmra.mrb[0].mxu0 %v1589
    %v2410 = vpop.f32.mrb[0].mxu0
    %v2411 = vadd.f32 %v2314, %v2410
    %v2412 = vpop.f32.mrb[0].mxu0
    %v2413 = vpop.f32.mrb[0].mxu0
    %v2414 = vadd.f32 %v2317, %v2413
    %v2415 = vpop.f32.mrb[0].mxu0
    %2416 = vmatprep.mubr.bf16.mxu0 %v1754
    %2417 = vmatmul.mubr.bf16.gmra.mrb[0].mxu0 %v1603
    %v2418 = vpop.f32.mrb[0].mxu0
    %v2419 = vadd.f32 %v2322, %v2418
    %v2420 = vpop.f32.mrb[0].mxu0
    %v2421 = vpop.f32.mrb[0].mxu0
    %v2422 = vadd.f32 %v2325, %v2421
    %v2423 = vpop.f32.mrb[0].mxu0
    %2424 = vmatprep.mubr.bf16.mxu0 %v1757
    %2425 = vmatmul.mubr.bf16.gmra.mrb[0].mxu0 %v1617
    %v2426 = vpop.f32.mrb[0].mxu0
    %v2427 = vadd.f32 %v2330, %v2426
    %v2428 = vpop.f32.mrb[0].mxu0
    %v2429 = vpop.f32.mrb[0].mxu0
    %v2430 = vadd.f32 %v2333, %v2429
    %v2431 = vpop.f32.mrb[0].mxu0
    %2432 = vmatprep.mubr.bf16.mxu0 %v1760
    %2433 = vmatmul.mubr.bf16.gmra.mrb[0].mxu0 %v1631
    %v2434 = vpop.f32.mrb[0].mxu0
    %v2435 = vadd.f32 %v2338, %v2434
    %v2436 = vpop.f32.mrb[0].mxu0
    %v2437 = vpop.f32.mrb[0].mxu0
    %v2438 = vadd.f32 %v2341, %v2437
    %v2439 = vpop.f32.mrb[0].mxu0
    %2440 = vdwg.mxu0
    %v2441 = vmax.f32 %v2379, 0.0
    %v2442 = vmax.f32 %v2382, 0.0
    %v2443 = vmax.f32 %v2387, 0.0
    %v2444 = vmax.f32 %v2390, 0.0
    %v2445 = vmax.f32 %v2395, 0.0
    %v2446 = vmax.f32 %v2398, 0.0
    %v2447 = vmax.f32 %v2403, 0.0
    %v2448 = vmax.f32 %v2406, 0.0
    %v2449 = vmax.f32 %v2411, 0.0
    %v2450 = vmax.f32 %v2414, 0.0
    %v2451 = vmax.f32 %v2419, 0.0
    %v2452 = vmax.f32 %v2422, 0.0
    %v2453 = vmax.f32 %v2427, 0.0
    %v2454 = vmax.f32 %v2430, 0.0
    %v2455 = vmax.f32 %v2435, 0.0
    %v2456 = vmax.f32 %v2438, 0.0
    %v2457 = vpack.c.bf16 %v2442, %v2441
    %v2458 = vpack.c.bf16 %v2444, %v2443
    %v2459 = vpack.c.bf16 %v2446, %v2445
    %v2460 = vpack.c.bf16 %v2448, %v2447
    %v2461 = vpack.c.bf16 %v2450, %v2449
    %v2462 = vpack.c.bf16 %v2452, %v2451
    %v2463 = vpack.c.bf16 %v2454, %v2453
    %v2464 = vpack.c.bf16 %v2456, %v2455
    %2473 = vrot.lane.b32.xlu0 %v2457, 3
    %v2474 = vpop.permute.xlu0 %2473
    %2475 = vrot.lane.b32.xlu0 %v2458, 3
    %v2476 = vpop.permute.xlu0 %2475
    %2477 = vrot.lane.b32.xlu0 %v2459, 3
    %v2478 = vpop.permute.xlu0 %2477
    %2479 = vrot.lane.b32.xlu0 %v2460, 3
    %v2480 = vpop.permute.xlu0 %2479
    %2481 = vrot.lane.b32.xlu0 %v2461, 3
    %v2482 = vpop.permute.xlu0 %2481
    %2483 = vrot.lane.b32.xlu0 %v2462, 3
    %v2484 = vpop.permute.xlu0 %2483
    %2485 = vrot.lane.b32.xlu0 %v2463, 3
    %v2486 = vpop.permute.xlu0 %2485
    %2487 = vrot.lane.b32.xlu0 %v2464, 3
    %v2488 = vpop.permute.xlu0 %2487
    %v2490 = vsel %vm362, 0, %v2474
    %v2492 = vsel %vm362, 0, %v2476
    %v2494 = vsel %vm362, 0, %v2478
    %v2496 = vsel %vm362, 0, %v2480
    %v2498 = vsel %vm362, 0, %v2482
    %v2500 = vsel %vm362, 0, %v2484
    %v2502 = vsel %vm362, 0, %v2486
    %v2504 = vsel %vm362, 0, %v2488
    %v2505 = vsel %vm388, %v2490, 0
    %v2507 = vsel %vm388, %v2492, 0
    %v2509 = vsel %vm388, %v2494, 0
    %v2511 = vsel %vm388, %v2496, 0
    %v2513 = vsel %vm388, %v2498, 0
    %v2515 = vsel %vm388, %v2500, 0
    %v2517 = vsel %vm388, %v2502, 0
    %v2519 = vsel %vm388, %v2504, 0
    %v2521 = vmul.bf16 %v2505, %v419
    %v2522 = vmul.bf16 %v2507, %v419
    %v2523 = vmul.bf16 %v2509, %v419
    %v2524 = vmul.bf16 %v2511, %v419
    %v2525 = vmul.bf16 %v2513, %v419
    %v2526 = vmul.bf16 %v2515, %v419
    %v2527 = vmul.bf16 %v2517, %v419
    %v2528 = vmul.bf16 %v2519, %v419
    %v2529 = vmul.bf16 %v2505, %v441
    %v2530 = vmul.bf16 %v2507, %v441
    %v2531 = vmul.bf16 %v2509, %v441
    %v2532 = vmul.bf16 %v2511, %v441
    %v2533 = vmul.bf16 %v2513, %v441
    %v2534 = vmul.bf16 %v2515, %v441
    %v2535 = vmul.bf16 %v2517, %v441
    %v2536 = vmul.bf16 %v2519, %v441
    %v2537 = vmul.bf16 %v2505, %v464
    %v2538 = vmul.bf16 %v2507, %v464
    %v2539 = vmul.bf16 %v2509, %v464
    %v2540 = vmul.bf16 %v2511, %v464
    %v2541 = vmul.bf16 %v2513, %v464
    %v2542 = vmul.bf16 %v2515, %v464
    %v2543 = vmul.bf16 %v2517, %v464
    %v2544 = vmul.bf16 %v2519, %v464
    %v2545 = vmul.bf16 %v2505, %v487
    %v2546 = vmul.bf16 %v2507, %v487
    %v2547 = vmul.bf16 %v2509, %v487
    %v2548 = vmul.bf16 %v2511, %v487
    %v2549 = vmul.bf16 %v2513, %v487
    %v2550 = vmul.bf16 %v2515, %v487
    %v2551 = vmul.bf16 %v2517, %v487
    %v2552 = vmul.bf16 %v2519, %v487
    %v2553 = vmul.bf16 %v2505, %v510
    %v2554 = vmul.bf16 %v2507, %v510
    %v2555 = vmul.bf16 %v2509, %v510
    %v2556 = vmul.bf16 %v2511, %v510
    %v2557 = vmul.bf16 %v2513, %v510
    %v2558 = vmul.bf16 %v2515, %v510
    %v2559 = vmul.bf16 %v2517, %v510
    %v2560 = vmul.bf16 %v2519, %v510
    %v2561 = vmul.bf16 %v2505, %v533
    %v2562 = vmul.bf16 %v2507, %v533
    %v2563 = vmul.bf16 %v2509, %v533
    %v2564 = vmul.bf16 %v2511, %v533
    %v2565 = vmul.bf16 %v2513, %v533
    %v2566 = vmul.bf16 %v2515, %v533
    %v2567 = vmul.bf16 %v2517, %v533
    %v2568 = vmul.bf16 %v2519, %v533
    %v2569 = vmul.bf16 %v2505, %v556
    %v2570 = vmul.bf16 %v2507, %v556
    %v2571 = vmul.bf16 %v2509, %v556
    %v2572 = vmul.bf16 %v2511, %v556
    %v2573 = vmul.bf16 %v2513, %v556
    %v2574 = vmul.bf16 %v2515, %v556
    %v2575 = vmul.bf16 %v2517, %v556
    %v2576 = vmul.bf16 %v2519, %v556
    %v2577 = vmul.bf16 %v2505, %v579
    %v2578 = vmul.bf16 %v2507, %v579
    %v2579 = vmul.bf16 %v2509, %v579
    %v2580 = vmul.bf16 %v2511, %v579
    %v2581 = vmul.bf16 %v2513, %v579
    %v2582 = vmul.bf16 %v2515, %v579
    %v2583 = vmul.bf16 %v2517, %v579
    %v2584 = vmul.bf16 %v2519, %v579
    %2593 = vrot.lane.b32.xlu0 %v2529, 127
    %v2594 = vpop.permute.xlu0 %2593
    %2595 = vrot.lane.b32.xlu0 %v2530, 127
    %v2596 = vpop.permute.xlu0 %2595
    %2597 = vrot.lane.b32.xlu0 %v2531, 127
    %v2598 = vpop.permute.xlu0 %2597
    %2599 = vrot.lane.b32.xlu0 %v2532, 127
    %v2600 = vpop.permute.xlu0 %2599
    %2601 = vrot.lane.b32.xlu0 %v2533, 127
    %v2602 = vpop.permute.xlu0 %2601
    %2603 = vrot.lane.b32.xlu0 %v2534, 127
    %v2604 = vpop.permute.xlu0 %2603
    %2605 = vrot.lane.b32.xlu0 %v2535, 127
    %v2606 = vpop.permute.xlu0 %2605
    %2607 = vrot.lane.b32.xlu0 %v2536, 127
    %v2608 = vpop.permute.xlu0 %2607
    %2625 = vrot.lane.b32.xlu0 %v2537, 126
    %v2626 = vpop.permute.xlu0 %2625
    %2627 = vrot.lane.b32.xlu0 %v2538, 126
    %v2628 = vpop.permute.xlu0 %2627
    %2629 = vrot.lane.b32.xlu0 %v2539, 126
    %v2630 = vpop.permute.xlu0 %2629
    %2631 = vrot.lane.b32.xlu0 %v2540, 126
    %v2632 = vpop.permute.xlu0 %2631
    %2633 = vrot.lane.b32.xlu0 %v2541, 126
    %v2634 = vpop.permute.xlu0 %2633
    %2635 = vrot.lane.b32.xlu0 %v2542, 126
    %v2636 = vpop.permute.xlu0 %2635
    %2637 = vrot.lane.b32.xlu0 %v2543, 126
    %v2638 = vpop.permute.xlu0 %2637
    %2639 = vrot.lane.b32.xlu0 %v2544, 126
    %v2640 = vpop.permute.xlu0 %2639
    %2657 = vrot.lane.b32.xlu0 %v2545, 126
    %v2658 = vpop.permute.xlu0 %2657
    %2659 = vrot.lane.b32.xlu0 %v2546, 126
    %v2660 = vpop.permute.xlu0 %2659
    %2661 = vrot.lane.b32.xlu0 %v2547, 126
    %v2662 = vpop.permute.xlu0 %2661
    %2663 = vrot.lane.b32.xlu0 %v2548, 126
    %v2664 = vpop.permute.xlu0 %2663
    %2665 = vrot.lane.b32.xlu0 %v2549, 126
    %v2666 = vpop.permute.xlu0 %2665
    %2667 = vrot.lane.b32.xlu0 %v2550, 126
    %v2668 = vpop.permute.xlu0 %2667
    %2669 = vrot.lane.b32.xlu0 %v2551, 126
    %v2670 = vpop.permute.xlu0 %2669
    %2671 = vrot.lane.b32.xlu0 %v2552, 126
    %v2672 = vpop.permute.xlu0 %2671
    %2689 = vrot.lane.b32.xlu0 %v2505, 125
    %v2690 = vpop.permute.xlu0 %2689
    %2691 = vrot.lane.b32.xlu0 %v2507, 125
    %v2692 = vpop.permute.xlu0 %2691
    %2693 = vrot.lane.b32.xlu0 %v2509, 125
    %v2694 = vpop.permute.xlu0 %2693
    %2695 = vrot.lane.b32.xlu0 %v2511, 125
    %v2696 = vpop.permute.xlu0 %2695
    %2697 = vrot.lane.b32.xlu0 %v2513, 125
    %v2698 = vpop.permute.xlu0 %2697
    %2699 = vrot.lane.b32.xlu0 %v2515, 125
    %v2700 = vpop.permute.xlu0 %2699
    %2701 = vrot.lane.b32.xlu0 %v2517, 125
    %v2702 = vpop.permute.xlu0 %2701
    %2703 = vrot.lane.b32.xlu0 %v2519, 125
    %v2704 = vpop.permute.xlu0 %2703
    %2721 = vrot.lane.b32.xlu0 %v2553, 124
    %v2722 = vpop.permute.xlu0 %2721
    %2723 = vrot.lane.b32.xlu0 %v2554, 124
    %v2724 = vpop.permute.xlu0 %2723
    %2725 = vrot.lane.b32.xlu0 %v2555, 124
    %v2726 = vpop.permute.xlu0 %2725
    %2727 = vrot.lane.b32.xlu0 %v2556, 124
    %v2728 = vpop.permute.xlu0 %2727
    %2729 = vrot.lane.b32.xlu0 %v2557, 124
    %v2730 = vpop.permute.xlu0 %2729
    %2731 = vrot.lane.b32.xlu0 %v2558, 124
    %v2732 = vpop.permute.xlu0 %2731
    %2733 = vrot.lane.b32.xlu0 %v2559, 124
    %v2734 = vpop.permute.xlu0 %2733
    %2735 = vrot.lane.b32.xlu0 %v2560, 124
    %v2736 = vpop.permute.xlu0 %2735
    %2753 = vrot.lane.b32.xlu0 %v2561, 124
    %v2754 = vpop.permute.xlu0 %2753
    %2755 = vrot.lane.b32.xlu0 %v2562, 124
    %v2756 = vpop.permute.xlu0 %2755
    %2757 = vrot.lane.b32.xlu0 %v2563, 124
    %v2758 = vpop.permute.xlu0 %2757
    %2759 = vrot.lane.b32.xlu0 %v2564, 124
    %v2760 = vpop.permute.xlu0 %2759
    %2761 = vrot.lane.b32.xlu0 %v2565, 124
    %v2762 = vpop.permute.xlu0 %2761
    %2763 = vrot.lane.b32.xlu0 %v2566, 124
    %v2764 = vpop.permute.xlu0 %2763
    %2765 = vrot.lane.b32.xlu0 %v2567, 124
    %v2766 = vpop.permute.xlu0 %2765
    %2767 = vrot.lane.b32.xlu0 %v2568, 124
    %v2768 = vpop.permute.xlu0 %2767
    %2785 = vrot.lane.b32.xlu0 %v2569, 123
    %v2786 = vpop.permute.xlu0 %2785
    %2787 = vrot.lane.b32.xlu0 %v2570, 123
    %v2788 = vpop.permute.xlu0 %2787
    %2789 = vrot.lane.b32.xlu0 %v2571, 123
    %v2790 = vpop.permute.xlu0 %2789
    %2791 = vrot.lane.b32.xlu0 %v2572, 123
    %v2792 = vpop.permute.xlu0 %2791
    %2793 = vrot.lane.b32.xlu0 %v2573, 123
    %v2794 = vpop.permute.xlu0 %2793
    %2795 = vrot.lane.b32.xlu0 %v2574, 123
    %v2796 = vpop.permute.xlu0 %2795
    %2797 = vrot.lane.b32.xlu0 %v2575, 123
    %v2798 = vpop.permute.xlu0 %2797
    %2799 = vrot.lane.b32.xlu0 %v2576, 123
    %v2800 = vpop.permute.xlu0 %2799
    %2817 = vrot.lane.b32.xlu0 %v2577, 122
    %v2818 = vpop.permute.xlu0 %2817
    %2819 = vrot.lane.b32.xlu0 %v2578, 122
    %v2820 = vpop.permute.xlu0 %2819
    %2821 = vrot.lane.b32.xlu0 %v2579, 122
    %v2822 = vpop.permute.xlu0 %2821
    %2823 = vrot.lane.b32.xlu0 %v2580, 122
    %v2824 = vpop.permute.xlu0 %2823
    %2825 = vrot.lane.b32.xlu0 %v2581, 122
    %v2826 = vpop.permute.xlu0 %2825
    %2827 = vrot.lane.b32.xlu0 %v2582, 122
    %v2828 = vpop.permute.xlu0 %2827
    %2829 = vrot.lane.b32.xlu0 %v2583, 122
    %v2830 = vpop.permute.xlu0 %2829
    %2831 = vrot.lane.b32.xlu0 %v2584, 122
    %v2832 = vpop.permute.xlu0 %2831
    %v2841 = vld [vmem:[#allocation10] sm:$0xff]
    %v2842 = vld [vmem:[#allocation10 + $0x8] sm:$0xff]
    %v2843 = vld [vmem:[#allocation10 + $0x10] sm:$0xff]
    %v2844 = vld [vmem:[#allocation10 + $0x18] sm:$0xff]
    %v2845 = vld [vmem:[#allocation10 + $0x20] sm:$0xf]
    %v2846 = vld [vmem:[#allocation10 + $0x24] sm:$0xff]
    %v2847 = vld [vmem:[#allocation10 + $0x2c] sm:$0xff]
    %v2848 = vld [vmem:[#allocation10 + $0x34] sm:$0xff]
    %v2849 = vld [vmem:[#allocation10 + $0x3c] sm:$0xff]
    %v2850 = vld [vmem:[#allocation10 + $0x44] sm:$0xf]
    %v2851 = vld [vmem:[#allocation10 + $0x48] sm:$0xff]
    %v2852 = vld [vmem:[#allocation10 + $0x50] sm:$0xff]
    %v2853 = vld [vmem:[#allocation10 + $0x58] sm:$0xff]
    %v2854 = vld [vmem:[#allocation10 + $0x60] sm:$0xff]
    %v2855 = vld [vmem:[#allocation10 + $0x68] sm:$0xf]
    %v2856 = vld [vmem:[#allocation10 + $0x6c] sm:$0xff]
    %v2857 = vld [vmem:[#allocation10 + $0x74] sm:$0xff]
    %v2858 = vld [vmem:[#allocation10 + $0x7c] sm:$0xff]
    %v2859 = vld [vmem:[#allocation10 + $0x84] sm:$0xff]
    %v2860 = vld [vmem:[#allocation10 + $0x8c] sm:$0xf]
    %v2861 = vld [vmem:[#allocation10 + $0x90] sm:$0xff]
    %v2862 = vld [vmem:[#allocation10 + $0x98] sm:$0xff]
    %v2863 = vld [vmem:[#allocation10 + $0xa0] sm:$0xff]
    %v2864 = vld [vmem:[#allocation10 + $0xa8] sm:$0xff]
    %v2865 = vld [vmem:[#allocation10 + $0xb0] sm:$0xf]
    %v2866 = vld [vmem:[#allocation10 + $0xb4] sm:$0xff]
    %v2867 = vld [vmem:[#allocation10 + $0xbc] sm:$0xff]
    %v2868 = vld [vmem:[#allocation10 + $0xc4] sm:$0xff]
    %v2869 = vld [vmem:[#allocation10 + $0xcc] sm:$0xff]
    %v2870 = vld [vmem:[#allocation10 + $0xd4] sm:$0xf]
    %v2871 = vld [vmem:[#allocation10 + $0xd8] sm:$0xff]
    %v2872 = vld [vmem:[#allocation10 + $0xe0] sm:$0xff]
    %v2873 = vld [vmem:[#allocation10 + $0xe8] sm:$0xff]
    %v2874 = vld [vmem:[#allocation10 + $0xf0] sm:$0xff]
    %v2875 = vld [vmem:[#allocation10 + $0xf8] sm:$0xf]
    %v2876 = vld [vmem:[#allocation10 + $0xfc] sm:$0xff]
    %v2877 = vld [vmem:[#allocation10 + $0x104] sm:$0xff]
    %v2878 = vld [vmem:[#allocation10 + $0x10c] sm:$0xff]
    %v2879 = vld [vmem:[#allocation10 + $0x114] sm:$0xff]
    %v2880 = vld [vmem:[#allocation10 + $0x11c] sm:$0xf]
    %v2881 = vld [vmem:[#allocation11] sm:$0xff]
    %v2882 = vld [vmem:[#allocation11 + $0x8] sm:$0xff]
    %v2883 = vld [vmem:[#allocation11 + $0x10] sm:$0xff]
    %v2884 = vld [vmem:[#allocation11 + $0x18] sm:$0xff]
    %v2885 = vld [vmem:[#allocation11 + $0x20] sm:$0xff]
    %v2886 = vld [vmem:[#allocation11 + $0x28] sm:$0xff]
    %v2887 = vld [vmem:[#allocation11 + $0x30] sm:$0xff]
    %v2888 = vld [vmem:[#allocation11 + $0x38] sm:$0xff]
    %2890 = vset.pattern.permute.xlu0 0
    %2891 = vperm.xlu0 %2890, %v2881
    %v2892 = vpop.permute.xlu0 %2891
    %2895 = vset.pattern.permute.xlu0 0
    %2896 = vperm.xlu0 %2895, %v2882
    %v2897 = vpop.permute.xlu0 %2896
    %2900 = vset.pattern.permute.xlu0 0
    %2901 = vperm.xlu0 %2900, %v2883
    %v2902 = vpop.permute.xlu0 %2901
    %2905 = vset.pattern.permute.xlu0 0
    %2906 = vperm.xlu0 %2905, %v2884
    %v2907 = vpop.permute.xlu0 %2906
    %2910 = vset.pattern.permute.xlu0 0
    %2911 = vperm.xlu0 %2910, %v2885
    %v2912 = vpop.permute.xlu0 %2911
    %2915 = vset.pattern.permute.xlu0 0
    %2916 = vperm.xlu0 %2915, %v2886
    %v2917 = vpop.permute.xlu0 %2916
    %2920 = vset.pattern.permute.xlu0 0
    %2921 = vperm.xlu0 %2920, %v2887
    %v2922 = vpop.permute.xlu0 %2921
    %2925 = vset.pattern.permute.xlu0 0
    %2926 = vperm.xlu0 %2925, %v2888
    %v2927 = vpop.permute.xlu0 %2926
    %v2969 = vunpack.c.l.b16 %v2841
    %v2970 = vunpack.c.h.b16 %v2841
    %v2971 = vunpack.c.l.b16 %v2842
    %v2972 = vunpack.c.h.b16 %v2842
    %v2973 = vunpack.c.l.b16 %v2843
    %v2974 = vunpack.c.h.b16 %v2843
    %v2975 = vunpack.c.l.b16 %v2844
    %v2976 = vunpack.c.h.b16 %v2844
    %v2977 = vunpack.c.l.b16 %v2845
    %v2978 = vunpack.c.l.b16 %v2846
    %v2979 = vunpack.c.h.b16 %v2846
    %v2980 = vunpack.c.l.b16 %v2847
    %v2981 = vunpack.c.h.b16 %v2847
    %v2982 = vunpack.c.l.b16 %v2848
    %v2983 = vunpack.c.h.b16 %v2848
    %v2984 = vunpack.c.l.b16 %v2849
    %v2985 = vunpack.c.h.b16 %v2849
    %v2986 = vunpack.c.l.b16 %v2850
    %v2987 = vunpack.c.l.b16 %v2851
    %v2988 = vunpack.c.h.b16 %v2851
    %v2989 = vunpack.c.l.b16 %v2852
    %v2990 = vunpack.c.h.b16 %v2852
    %v2991 = vunpack.c.l.b16 %v2853
    %v2992 = vunpack.c.h.b16 %v2853
    %v2993 = vunpack.c.l.b16 %v2854
    %v2994 = vunpack.c.h.b16 %v2854
    %v2995 = vunpack.c.l.b16 %v2855
    %v2996 = vunpack.c.l.b16 %v2856
    %v2997 = vunpack.c.h.b16 %v2856
    %v2998 = vunpack.c.l.b16 %v2857
    %v2999 = vunpack.c.h.b16 %v2857
    %v3000 = vunpack.c.l.b16 %v2858
    %v3001 = vunpack.c.h.b16 %v2858
    %v3002 = vunpack.c.l.b16 %v2859
    %v3003 = vunpack.c.h.b16 %v2859
    %v3004 = vunpack.c.l.b16 %v2860
    %v3005 = vunpack.c.l.b16 %v2861
    %v3006 = vunpack.c.h.b16 %v2861
    %v3007 = vunpack.c.l.b16 %v2862
    %v3008 = vunpack.c.h.b16 %v2862
    %v3009 = vunpack.c.l.b16 %v2863
    %v3010 = vunpack.c.h.b16 %v2863
    %v3011 = vunpack.c.l.b16 %v2864
    %v3012 = vunpack.c.h.b16 %v2864
    %v3013 = vunpack.c.l.b16 %v2865
    %v3014 = vunpack.c.l.b16 %v2866
    %v3015 = vunpack.c.h.b16 %v2866
    %v3016 = vunpack.c.l.b16 %v2867
    %v3017 = vunpack.c.h.b16 %v2867
    %v3018 = vunpack.c.l.b16 %v2868
    %v3019 = vunpack.c.h.b16 %v2868
    %v3020 = vunpack.c.l.b16 %v2869
    %v3021 = vunpack.c.h.b16 %v2869
    %v3022 = vunpack.c.l.b16 %v2870
    %v3023 = vunpack.c.l.b16 %v2871
    %v3024 = vunpack.c.h.b16 %v2871
    %v3025 = vunpack.c.l.b16 %v2872
    %v3026 = vunpack.c.h.b16 %v2872
    %v3027 = vunpack.c.l.b16 %v2873
    %v3028 = vunpack.c.h.b16 %v2873
    %v3029 = vunpack.c.l.b16 %v2874
    %v3030 = vunpack.c.h.b16 %v2874
    %v3031 = vunpack.c.l.b16 %v2875
    %v3032 = vunpack.c.l.b16 %v2876
    %v3033 = vunpack.c.h.b16 %v2876
    %v3034 = vunpack.c.l.b16 %v2877
    %v3035 = vunpack.c.h.b16 %v2877
    %v3036 = vunpack.c.l.b16 %v2878
    %v3037 = vunpack.c.h.b16 %v2878
    %v3038 = vunpack.c.l.b16 %v2879
    %v3039 = vunpack.c.h.b16 %v2879
    %v3040 = vunpack.c.l.b16 %v2880
    %v3041 = vpack.c.b16 %v2978, %v2969
    %v3042 = vpack.c.b16 %v2979, %v2970
    %v3043 = vpack.c.b16 %v2980, %v2971
    %v3044 = vpack.c.b16 %v2981, %v2972
    %v3045 = vpack.c.b16 %v2982, %v2973
    %v3046 = vpack.c.b16 %v2983, %v2974
    %v3047 = vpack.c.b16 %v2984, %v2975
    %v3048 = vpack.c.b16 %v2985, %v2976
    %v3049 = vpack.c.b16 %v2986, %v2977
    %v3050 = vpack.c.b16 %v2996, %v2987
    %v3051 = vpack.c.b16 %v2997, %v2988
    %v3052 = vpack.c.b16 %v2998, %v2989
    %v3053 = vpack.c.b16 %v2999, %v2990
    %v3054 = vpack.c.b16 %v3000, %v2991
    %v3055 = vpack.c.b16 %v3001, %v2992
    %v3056 = vpack.c.b16 %v3002, %v2993
    %v3057 = vpack.c.b16 %v3003, %v2994
    %v3058 = vpack.c.b16 %v3004, %v2995
    %v3059 = vpack.c.b16 %v3014, %v3005
    %v3060 = vpack.c.b16 %v3015, %v3006
    %v3061 = vpack.c.b16 %v3016, %v3007
    %v3062 = vpack.c.b16 %v3017, %v3008
    %v3063 = vpack.c.b16 %v3018, %v3009
    %v3064 = vpack.c.b16 %v3019, %v3010
    %v3065 = vpack.c.b16 %v3020, %v3011
    %v3066 = vpack.c.b16 %v3021, %v3012
    %v3067 = vpack.c.b16 %v3022, %v3013
    %v3068 = vpack.c.b16 %v3032, %v3023
    %v3069 = vpack.c.b16 %v3033, %v3024
    %v3070 = vpack.c.b16 %v3034, %v3025
    %v3071 = vpack.c.b16 %v3035, %v3026
    %v3072 = vpack.c.b16 %v3036, %v3027
    %v3073 = vpack.c.b16 %v3037, %v3028
    %v3074 = vpack.c.b16 %v3038, %v3029
    %v3075 = vpack.c.b16 %v3039, %v3030
    %v3076 = vpack.c.b16 %v3040, %v3031
    %3113 = vmatprep.subr.bf16.mxu0 0
    %3114 = vmatpush1.bf16.msra.mxu0 %v2521
    %3115 = vmatprep.subr.bf16.mxu0 0
    %3116 = vmatpush1.bf16.msra.mxu0 %v2522
    %3117 = vmatprep.subr.bf16.mxu0 0
    %3118 = vmatpush1.bf16.msra.mxu0 %v2523
    %3119 = vmatprep.subr.bf16.mxu0 0
    %3120 = vmatpush1.bf16.msra.mxu0 %v2524
    %3121 = vmatprep.subr.bf16.mxu0 0
    %3122 = vmatpush1.bf16.msra.mxu0 %v2525
    %3123 = vmatprep.subr.bf16.mxu0 0
    %3124 = vmatpush1.bf16.msra.mxu0 %v2526
    %3125 = vmatprep.subr.bf16.mxu0 0
    %3126 = vmatpush1.bf16.msra.mxu0 %v2527
    %3127 = vmatprep.subr.bf16.mxu0 0
    %3128 = vmatpush1.bf16.msra.mxu0 %v2528
    %3129 = vmatprep.subr.bf16.mxu0 0
    %3130 = vmatpush1.bf16.msra.mxu0 %v2594
    %3131 = vmatprep.subr.bf16.mxu0 0
    %3132 = vmatpush1.bf16.msra.mxu0 %v2596
    %3133 = vmatprep.subr.bf16.mxu0 0
    %3134 = vmatpush1.bf16.msra.mxu0 %v2598
    %3135 = vmatprep.subr.bf16.mxu0 0
    %3136 = vmatpush1.bf16.msra.mxu0 %v2600
    %3137 = vmatprep.subr.bf16.mxu0 0
    %3138 = vmatpush1.bf16.msra.mxu0 %v2602
    %3139 = vmatprep.subr.bf16.mxu0 0
    %3140 = vmatpush1.bf16.msra.mxu0 %v2604
    %3141 = vmatprep.subr.bf16.mxu0 0
    %3142 = vmatpush1.bf16.msra.mxu0 %v2606
    %3143 = vmatprep.subr.bf16.mxu0 0
    %3144 = vmatpush1.bf16.msra.mxu0 %v2608
    %3145 = vmatprep.mubr.bf16.mxu0 %v3042
    %3146 = vmatmul.mubr.bf16.gmra.mrb[0].mxu0 %v3041
    %v3147 = vpop.f32.mrb[0].mxu0
    %v3148 = vadd.f32 %v2892, %v3147
    %v3149 = vpop.f32.mrb[0].mxu0
    %v3150 = vpop.f32.mrb[0].mxu0
    %v3151 = vadd.f32 %v2897, %v3150
    %v3152 = vpop.f32.mrb[0].mxu0
    %3153 = vmatprep.mubr.bf16.mxu0 %v3051
    %3154 = vmatmul.mubr.bf16.gmra.mrb[0].mxu0 %v3050
    %v3155 = vpop.f32.mrb[0].mxu0
    %v3156 = vadd.f32 %v2902, %v3155
    %v3157 = vpop.f32.mrb[0].mxu0
    %v3158 = vpop.f32.mrb[0].mxu0
    %v3159 = vadd.f32 %v2907, %v3158
    %v3160 = vpop.f32.mrb[0].mxu0
    %3161 = vmatprep.mubr.bf16.mxu0 %v3060
    %3162 = vmatmul.mubr.bf16.gmra.mrb[0].mxu0 %v3059
    %v3163 = vpop.f32.mrb[0].mxu0
    %v3164 = vadd.f32 %v2912, %v3163
    %v3165 = vpop.f32.mrb[0].mxu0
    %v3166 = vpop.f32.mrb[0].mxu0
    %v3167 = vadd.f32 %v2917, %v3166
    %v3168 = vpop.f32.mrb[0].mxu0
    %3169 = vmatprep.mubr.bf16.mxu0 %v3069
    %3170 = vmatmul.mubr.bf16.gmra.mrb[0].mxu0 %v3068
    %v3171 = vpop.f32.mrb[0].mxu0
    %v3172 = vadd.f32 %v2922, %v3171
    %v3173 = vpop.f32.mrb[0].mxu0
    %v3174 = vpop.f32.mrb[0].mxu0
    %v3175 = vadd.f32 %v2927, %v3174
    %v3176 = vpop.f32.mrb[0].mxu0
    %3177 = vdwg.mxu0
    %3178 = vmatprep.subr.bf16.mxu0 0
    %3179 = vmatpush1.bf16.msra.mxu0 %v2626
    %3180 = vmatprep.subr.bf16.mxu0 0
    %3181 = vmatpush1.bf16.msra.mxu0 %v2628
    %3182 = vmatprep.subr.bf16.mxu0 0
    %3183 = vmatpush1.bf16.msra.mxu0 %v2630
    %3184 = vmatprep.subr.bf16.mxu0 0
    %3185 = vmatpush1.bf16.msra.mxu0 %v2632
    %3186 = vmatprep.subr.bf16.mxu0 0
    %3187 = vmatpush1.bf16.msra.mxu0 %v2634
    %3188 = vmatprep.subr.bf16.mxu0 0
    %3189 = vmatpush1.bf16.msra.mxu0 %v2636
    %3190 = vmatprep.subr.bf16.mxu0 0
    %3191 = vmatpush1.bf16.msra.mxu0 %v2638
    %3192 = vmatprep.subr.bf16.mxu0 0
    %3193 = vmatpush1.bf16.msra.mxu0 %v2640
    %3194 = vmatprep.subr.bf16.mxu0 0
    %3195 = vmatpush1.bf16.msra.mxu0 %v2658
    %3196 = vmatprep.subr.bf16.mxu0 0
    %3197 = vmatpush1.bf16.msra.mxu0 %v2660
    %3198 = vmatprep.subr.bf16.mxu0 0
    %3199 = vmatpush1.bf16.msra.mxu0 %v2662
    %3200 = vmatprep.subr.bf16.mxu0 0
    %3201 = vmatpush1.bf16.msra.mxu0 %v2664
    %3202 = vmatprep.subr.bf16.mxu0 0
    %3203 = vmatpush1.bf16.msra.mxu0 %v2666
    %3204 = vmatprep.subr.bf16.mxu0 0
    %3205 = vmatpush1.bf16.msra.mxu0 %v2668
    %3206 = vmatprep.subr.bf16.mxu0 0
    %3207 = vmatpush1.bf16.msra.mxu0 %v2670
    %3208 = vmatprep.subr.bf16.mxu0 0
    %3209 = vmatpush1.bf16.msra.mxu0 %v2672
    %3210 = vmatprep.mubr.bf16.mxu0 %v3044
    %3211 = vmatmul.mubr.bf16.gmra.mrb[0].mxu0 %v3043
    %v3212 = vpop.f32.mrb[0].mxu0
    %v3213 = vadd.f32 %v3148, %v3212
    %v3214 = vpop.f32.mrb[0].mxu0
    %v3215 = vpop.f32.mrb[0].mxu0
    %v3216 = vadd.f32 %v3151, %v3215
    %v3217 = vpop.f32.mrb[0].mxu0
    %3218 = vmatprep.mubr.bf16.mxu0 %v3053
    %3219 = vmatmul.mubr.bf16.gmra.mrb[0].mxu0 %v3052
    %v3220 = vpop.f32.mrb[0].mxu0
    %v3221 = vadd.f32 %v3156, %v3220
    %v3222 = vpop.f32.mrb[0].mxu0
    %v3223 = vpop.f32.mrb[0].mxu0
    %v3224 = vadd.f32 %v3159, %v3223
    %v3225 = vpop.f32.mrb[0].mxu0
    %3226 = vmatprep.mubr.bf16.mxu0 %v3062
    %3227 = vmatmul.mubr.bf16.gmra.mrb[0].mxu0 %v3061
    %v3228 = vpop.f32.mrb[0].mxu0
    %v3229 = vadd.f32 %v3164, %v3228
    %v3230 = vpop.f32.mrb[0].mxu0
    %v3231 = vpop.f32.mrb[0].mxu0
    %v3232 = vadd.f32 %v3167, %v3231
    %v3233 = vpop.f32.mrb[0].mxu0
    %3234 = vmatprep.mubr.bf16.mxu0 %v3071
    %3235 = vmatmul.mubr.bf16.gmra.mrb[0].mxu0 %v3070
    %v3236 = vpop.f32.mrb[0].mxu0
    %v3237 = vadd.f32 %v3172, %v3236
    %v3238 = vpop.f32.mrb[0].mxu0
    %v3239 = vpop.f32.mrb[0].mxu0
    %v3240 = vadd.f32 %v3175, %v3239
    %v3241 = vpop.f32.mrb[0].mxu0
    %3242 = vdwg.mxu0
    %3243 = vmatprep.subr.bf16.mxu0 0
    %3244 = vmatpush1.bf16.msra.mxu0 %v2690
    %3245 = vmatprep.subr.bf16.mxu0 0
    %3246 = vmatpush1.bf16.msra.mxu0 %v2692
    %3247 = vmatprep.subr.bf16.mxu0 0
    %3248 = vmatpush1.bf16.msra.mxu0 %v2694
    %3249 = vmatprep.subr.bf16.mxu0 0
    %3250 = vmatpush1.bf16.msra.mxu0 %v2696
    %3251 = vmatprep.subr.bf16.mxu0 0
    %3252 = vmatpush1.bf16.msra.mxu0 %v2698
    %3253 = vmatprep.subr.bf16.mxu0 0
    %3254 = vmatpush1.bf16.msra.mxu0 %v2700
    %3255 = vmatprep.subr.bf16.mxu0 0
    %3256 = vmatpush1.bf16.msra.mxu0 %v2702
    %3257 = vmatprep.subr.bf16.mxu0 0
    %3258 = vmatpush1.bf16.msra.mxu0 %v2704
    %3259 = vmatprep.subr.bf16.mxu0 0
    %3260 = vmatpush1.bf16.msra.mxu0 %v2722
    %3261 = vmatprep.subr.bf16.mxu0 0
    %3262 = vmatpush1.bf16.msra.mxu0 %v2724
    %3263 = vmatprep.subr.bf16.mxu0 0
    %3264 = vmatpush1.bf16.msra.mxu0 %v2726
    %3265 = vmatprep.subr.bf16.mxu0 0
    %3266 = vmatpush1.bf16.msra.mxu0 %v2728
    %3267 = vmatprep.subr.bf16.mxu0 0
    %3268 = vmatpush1.bf16.msra.mxu0 %v2730
    %3269 = vmatprep.subr.bf16.mxu0 0
    %3270 = vmatpush1.bf16.msra.mxu0 %v2732
    %3271 = vmatprep.subr.bf16.mxu0 0
    %3272 = vmatpush1.bf16.msra.mxu0 %v2734
    %3273 = vmatprep.subr.bf16.mxu0 0
    %3274 = vmatpush1.bf16.msra.mxu0 %v2736
    %3275 = vmatprep.mubr.bf16.mxu0 %v3046
    %3276 = vmatmul.mubr.bf16.gmra.mrb[0].mxu0 %v3045
    %v3277 = vpop.f32.mrb[0].mxu0
    %v3278 = vadd.f32 %v3213, %v3277
    %v3279 = vpop.f32.mrb[0].mxu0
    %v3280 = vpop.f32.mrb[0].mxu0
    %v3281 = vadd.f32 %v3216, %v3280
    %v3282 = vpop.f32.mrb[0].mxu0
    %3283 = vmatprep.mubr.bf16.mxu0 %v3055
    %3284 = vmatmul.mubr.bf16.gmra.mrb[0].mxu0 %v3054
    %v3285 = vpop.f32.mrb[0].mxu0
    %v3286 = vadd.f32 %v3221, %v3285
    %v3287 = vpop.f32.mrb[0].mxu0
    %v3288 = vpop.f32.mrb[0].mxu0
    %v3289 = vadd.f32 %v3224, %v3288
    %v3290 = vpop.f32.mrb[0].mxu0
    %3291 = vmatprep.mubr.bf16.mxu0 %v3064
    %3292 = vmatmul.mubr.bf16.gmra.mrb[0].mxu0 %v3063
    %v3293 = vpop.f32.mrb[0].mxu0
    %v3294 = vadd.f32 %v3229, %v3293
    %v3295 = vpop.f32.mrb[0].mxu0
    %v3296 = vpop.f32.mrb[0].mxu0
    %v3297 = vadd.f32 %v3232, %v3296
    %v3298 = vpop.f32.mrb[0].mxu0
    %3299 = vmatprep.mubr.bf16.mxu0 %v3073
    %3300 = vmatmul.mubr.bf16.gmra.mrb[0].mxu0 %v3072
    %v3301 = vpop.f32.mrb[0].mxu0
    %v3302 = vadd.f32 %v3237, %v3301
    %v3303 = vpop.f32.mrb[0].mxu0
    %v3304 = vpop.f32.mrb[0].mxu0
    %v3305 = vadd.f32 %v3240, %v3304
    %v3306 = vpop.f32.mrb[0].mxu0
    %3307 = vdwg.mxu0
    %3308 = vmatprep.subr.bf16.mxu0 0
    %3309 = vmatpush1.bf16.msra.mxu0 %v2754
    %3310 = vmatprep.subr.bf16.mxu0 0
    %3311 = vmatpush1.bf16.msra.mxu0 %v2756
    %3312 = vmatprep.subr.bf16.mxu0 0
    %3313 = vmatpush1.bf16.msra.mxu0 %v2758
    %3314 = vmatprep.subr.bf16.mxu0 0
    %3315 = vmatpush1.bf16.msra.mxu0 %v2760
    %3316 = vmatprep.subr.bf16.mxu0 0
    %3317 = vmatpush1.bf16.msra.mxu0 %v2762
    %3318 = vmatprep.subr.bf16.mxu0 0
    %3319 = vmatpush1.bf16.msra.mxu0 %v2764
    %3320 = vmatprep.subr.bf16.mxu0 0
    %3321 = vmatpush1.bf16.msra.mxu0 %v2766
    %3322 = vmatprep.subr.bf16.mxu0 0
    %3323 = vmatpush1.bf16.msra.mxu0 %v2768
    %3324 = vmatprep.subr.bf16.mxu0 0
    %3325 = vmatpush1.bf16.msra.mxu0 %v2786
    %3326 = vmatprep.subr.bf16.mxu0 0
    %3327 = vmatpush1.bf16.msra.mxu0 %v2788
    %3328 = vmatprep.subr.bf16.mxu0 0
    %3329 = vmatpush1.bf16.msra.mxu0 %v2790
    %3330 = vmatprep.subr.bf16.mxu0 0
    %3331 = vmatpush1.bf16.msra.mxu0 %v2792
    %3332 = vmatprep.subr.bf16.mxu0 0
    %3333 = vmatpush1.bf16.msra.mxu0 %v2794
    %3334 = vmatprep.subr.bf16.mxu0 0
    %3335 = vmatpush1.bf16.msra.mxu0 %v2796
    %3336 = vmatprep.subr.bf16.mxu0 0
    %3337 = vmatpush1.bf16.msra.mxu0 %v2798
    %3338 = vmatprep.subr.bf16.mxu0 0
    %3339 = vmatpush1.bf16.msra.mxu0 %v2800
    %3340 = vmatprep.mubr.bf16.mxu0 %v3048
    %3341 = vmatmul.mubr.bf16.gmra.mrb[0].mxu0 %v3047
    %v3342 = vpop.f32.mrb[0].mxu0
    %v3343 = vadd.f32 %v3278, %v3342
    %v3344 = vpop.f32.mrb[0].mxu0
    %v3345 = vpop.f32.mrb[0].mxu0
    %v3346 = vadd.f32 %v3281, %v3345
    %v3347 = vpop.f32.mrb[0].mxu0
    %3348 = vmatprep.mubr.bf16.mxu0 %v3057
    %3349 = vmatmul.mubr.bf16.gmra.mrb[0].mxu0 %v3056
    %v3350 = vpop.f32.mrb[0].mxu0
    %v3351 = vadd.f32 %v3286, %v3350
    %v3352 = vpop.f32.mrb[0].mxu0
    %v3353 = vpop.f32.mrb[0].mxu0
    %v3354 = vadd.f32 %v3289, %v3353
    %v3355 = vpop.f32.mrb[0].mxu0
    %3356 = vmatprep.mubr.bf16.mxu0 %v3066
    %3357 = vmatmul.mubr.bf16.gmra.mrb[0].mxu0 %v3065
    %v3358 = vpop.f32.mrb[0].mxu0
    %v3359 = vadd.f32 %v3294, %v3358
    %v3360 = vpop.f32.mrb[0].mxu0
    %v3361 = vpop.f32.mrb[0].mxu0
    %v3362 = vadd.f32 %v3297, %v3361
    %v3363 = vpop.f32.mrb[0].mxu0
    %3364 = vmatprep.mubr.bf16.mxu0 %v3075
    %3365 = vmatmul.mubr.bf16.gmra.mrb[0].mxu0 %v3074
    %v3366 = vpop.f32.mrb[0].mxu0
    %v3367 = vadd.f32 %v3302, %v3366
    %v3368 = vpop.f32.mrb[0].mxu0
    %v3369 = vpop.f32.mrb[0].mxu0
    %v3370 = vadd.f32 %v3305, %v3369
    %v3371 = vpop.f32.mrb[0].mxu0
    %3372 = vdwg.mxu0
    %3373 = vmatprep.subr.bf16.mxu0 0
    %3374 = vmatpush1.bf16.msra.mxu0 %v2818
    %3375 = vmatprep.subr.bf16.mxu0 0
    %3376 = vmatpush1.bf16.msra.mxu0 %v2820
    %3377 = vmatprep.subr.bf16.mxu0 0
    %3378 = vmatpush1.bf16.msra.mxu0 %v2822
    %3379 = vmatprep.subr.bf16.mxu0 0
    %3380 = vmatpush1.bf16.msra.mxu0 %v2824
    %3381 = vmatprep.subr.bf16.mxu0 0
    %3382 = vmatpush1.bf16.msra.mxu0 %v2826
    %3383 = vmatprep.subr.bf16.mxu0 0
    %3384 = vmatpush1.bf16.msra.mxu0 %v2828
    %3385 = vmatprep.subr.bf16.mxu0 0
    %3386 = vmatpush1.bf16.msra.mxu0 %v2830
    %3387 = vmatprep.subr.bf16.mxu0 0
    %3388 = vmatpush1.bf16.msra.mxu0 %v2832
    %3389 = vmatprep.subr.bf16.mxu0 0
    %3390 = vmatpush1.bf16.msra.mxu0 0
    %3391 = vmatprep.subr.bf16.mxu0 0
    %3392 = vmatpush1.bf16.msra.mxu0 0
    %3393 = vmatprep.subr.bf16.mxu0 0
    %3394 = vmatpush1.bf16.msra.mxu0 0
    %3395 = vmatprep.subr.bf16.mxu0 0
    %3396 = vmatpush1.bf16.msra.mxu0 0
    %3397 = vmatprep.subr.bf16.mxu0 0
    %3398 = vmatpush1.bf16.msra.mxu0 0
    %3399 = vmatprep.subr.bf16.mxu0 0
    %3400 = vmatpush1.bf16.msra.mxu0 0
    %3401 = vmatprep.subr.bf16.mxu0 0
    %3402 = vmatpush1.bf16.msra.mxu0 0
    %3403 = vmatprep.subr.bf16.mxu0 0
    %3404 = vmatpush1.bf16.msra.mxu0 0
    %3405 = vmatprep.mubr.bf16.mxu0 0
    %3406 = vmatmul.mubr.bf16.gmra.mrb[0].mxu0 %v3049
    %v3407 = vpop.f32.mrb[0].mxu0
    %v3408 = vadd.f32 %v3343, %v3407
    %v3409 = vpop.f32.mrb[0].mxu0
    %v3410 = vpop.f32.mrb[0].mxu0
    %v3411 = vadd.f32 %v3346, %v3410
    %v3412 = vpop.f32.mrb[0].mxu0
    %3413 = vmatprep.mubr.bf16.mxu0 0
    %3414 = vmatmul.mubr.bf16.gmra.mrb[0].mxu0 %v3058
    %v3415 = vpop.f32.mrb[0].mxu0
    %v3416 = vadd.f32 %v3351, %v3415
    %v3417 = vpop.f32.mrb[0].mxu0
    %v3418 = vpop.f32.mrb[0].mxu0
    %v3419 = vadd.f32 %v3354, %v3418
    %v3420 = vpop.f32.mrb[0].mxu0
    %3421 = vmatprep.mubr.bf16.mxu0 0
    %3422 = vmatmul.mubr.bf16.gmra.mrb[0].mxu0 %v3067
    %v3423 = vpop.f32.mrb[0].mxu0
    %v3424 = vadd.f32 %v3359, %v3423
    %v3425 = vpop.f32.mrb[0].mxu0
    %v3426 = vpop.f32.mrb[0].mxu0
    %v3427 = vadd.f32 %v3362, %v3426
    %v3428 = vpop.f32.mrb[0].mxu0
    %3429 = vmatprep.mubr.bf16.mxu0 0
    %3430 = vmatmul.mubr.bf16.gmra.mrb[0].mxu0 %v3076
    %v3431 = vpop.f32.mrb[0].mxu0
    %v3432 = vadd.f32 %v3367, %v3431
    %v3433 = vpop.f32.mrb[0].mxu0
    %v3434 = vpop.f32.mrb[0].mxu0
    %v3435 = vadd.f32 %v3370, %v3434
    %v3436 = vpop.f32.mrb[0].mxu0
    %3437 = vdwg.mxu0
    %v3438 = vmax.f32 %v3408, 0.0
    %v3439 = vmax.f32 %v3411, 0.0
    %v3440 = vmax.f32 %v3416, 0.0
    %v3441 = vmax.f32 %v3419, 0.0
    %v3442 = vmax.f32 %v3424, 0.0
    %v3443 = vmax.f32 %v3427, 0.0
    %v3444 = vmax.f32 %v3432, 0.0
    %v3445 = vmax.f32 %v3435, 0.0
    %v3446 = vpack.c.bf16 %v3439, %v3438
    %v3447 = vpack.c.bf16 %v3441, %v3440
    %v3448 = vpack.c.bf16 %v3443, %v3442
    %v3449 = vpack.c.bf16 %v3445, %v3444
    %3454 = vrot.lane.b32.xlu0 %v3446, 3
    %v3455 = vpop.permute.xlu0 %3454
    %3456 = vrot.lane.b32.xlu0 %v3447, 3
    %v3457 = vpop.permute.xlu0 %3456
    %3458 = vrot.lane.b32.xlu0 %v3448, 3
    %v3459 = vpop.permute.xlu0 %3458
    %3460 = vrot.lane.b32.xlu0 %v3449, 3
    %v3461 = vpop.permute.xlu0 %3460
    %v3463 = vsel %vm362, 0, %v3455
    %v3465 = vsel %vm362, 0, %v3457
    %v3467 = vsel %vm362, 0, %v3459
    %v3469 = vsel %vm362, 0, %v3461
    %v3470 = vsel %vm388, %v3463, 0
    %v3472 = vsel %vm388, %v3465, 0
    %v3474 = vsel %vm388, %v3467, 0
    %v3476 = vsel %vm388, %v3469, 0
    %v3478 = vmul.bf16 %v3470, %v419
    %v3479 = vmul.bf16 %v3472, %v419
    %v3480 = vmul.bf16 %v3474, %v419
    %v3481 = vmul.bf16 %v3476, %v419
    %v3482 = vmul.bf16 %v3470, %v441
    %v3483 = vmul.bf16 %v3472, %v441
    %v3484 = vmul.bf16 %v3474, %v441
    %v3485 = vmul.bf16 %v3476, %v441
    %v3486 = vmul.bf16 %v3470, %v464
    %v3487 = vmul.bf16 %v3472, %v464
    %v3488 = vmul.bf16 %v3474, %v464
    %v3489 = vmul.bf16 %v3476, %v464
    %v3490 = vmul.bf16 %v3470, %v487
    %v3491 = vmul.bf16 %v3472, %v487
    %v3492 = vmul.bf16 %v3474, %v487
    %v3493 = vmul.bf16 %v3476, %v487
    %v3494 = vmul.bf16 %v3470, %v510
    %v3495 = vmul.bf16 %v3472, %v510
    %v3496 = vmul.bf16 %v3474, %v510
    %v3497 = vmul.bf16 %v3476, %v510
    %v3498 = vmul.bf16 %v3470, %v533
    %v3499 = vmul.bf16 %v3472, %v533
    %v3500 = vmul.bf16 %v3474, %v533
    %v3501 = vmul.bf16 %v3476, %v533
    %v3502 = vmul.bf16 %v3470, %v556
    %v3503 = vmul.bf16 %v3472, %v556
    %v3504 = vmul.bf16 %v3474, %v556
    %v3505 = vmul.bf16 %v3476, %v556
    %v3506 = vmul.bf16 %v3470, %v579
    %v3507 = vmul.bf16 %v3472, %v579
    %v3508 = vmul.bf16 %v3474, %v579
    %v3509 = vmul.bf16 %v3476, %v579
    %3514 = vrot.lane.b32.xlu0 %v3482, 127
    %v3515 = vpop.permute.xlu0 %3514
    %3516 = vrot.lane.b32.xlu0 %v3483, 127
    %v3517 = vpop.permute.xlu0 %3516
    %3518 = vrot.lane.b32.xlu0 %v3484, 127
    %v3519 = vpop.permute.xlu0 %3518
    %3520 = vrot.lane.b32.xlu0 %v3485, 127
    %v3521 = vpop.permute.xlu0 %3520
    %3530 = vrot.lane.b32.xlu0 %v3486, 126
    %v3531 = vpop.permute.xlu0 %3530
    %3532 = vrot.lane.b32.xlu0 %v3487, 126
    %v3533 = vpop.permute.xlu0 %3532
    %3534 = vrot.lane.b32.xlu0 %v3488, 126
    %v3535 = vpop.permute.xlu0 %3534
    %3536 = vrot.lane.b32.xlu0 %v3489, 126
    %v3537 = vpop.permute.xlu0 %3536
    %3546 = vrot.lane.b32.xlu0 %v3490, 126
    %v3547 = vpop.permute.xlu0 %3546
    %3548 = vrot.lane.b32.xlu0 %v3491, 126
    %v3549 = vpop.permute.xlu0 %3548
    %3550 = vrot.lane.b32.xlu0 %v3492, 126
    %v3551 = vpop.permute.xlu0 %3550
    %3552 = vrot.lane.b32.xlu0 %v3493, 126
    %v3553 = vpop.permute.xlu0 %3552
    %3562 = vrot.lane.b32.xlu0 %v3470, 125
    %v3563 = vpop.permute.xlu0 %3562
    %3564 = vrot.lane.b32.xlu0 %v3472, 125
    %v3565 = vpop.permute.xlu0 %3564
    %3566 = vrot.lane.b32.xlu0 %v3474, 125
    %v3567 = vpop.permute.xlu0 %3566
    %3568 = vrot.lane.b32.xlu0 %v3476, 125
    %v3569 = vpop.permute.xlu0 %3568
    %3578 = vrot.lane.b32.xlu0 %v3494, 124
    %v3579 = vpop.permute.xlu0 %3578
    %3580 = vrot.lane.b32.xlu0 %v3495, 124
    %v3581 = vpop.permute.xlu0 %3580
    %3582 = vrot.lane.b32.xlu0 %v3496, 124
    %v3583 = vpop.permute.xlu0 %3582
    %3584 = vrot.lane.b32.xlu0 %v3497, 124
    %v3585 = vpop.permute.xlu0 %3584
    %3594 = vrot.lane.b32.xlu0 %v3498, 124
    %v3595 = vpop.permute.xlu0 %3594
    %3596 = vrot.lane.b32.xlu0 %v3499, 124
    %v3597 = vpop.permute.xlu0 %3596
    %3598 = vrot.lane.b32.xlu0 %v3500, 124
    %v3599 = vpop.permute.xlu0 %3598
    %3600 = vrot.lane.b32.xlu0 %v3501, 124
    %v3601 = vpop.permute.xlu0 %3600
    %3610 = vrot.lane.b32.xlu0 %v3502, 123
    %v3611 = vpop.permute.xlu0 %3610
    %3612 = vrot.lane.b32.xlu0 %v3503, 123
    %v3613 = vpop.permute.xlu0 %3612
    %3614 = vrot.lane.b32.xlu0 %v3504, 123
    %v3615 = vpop.permute.xlu0 %3614
    %3616 = vrot.lane.b32.xlu0 %v3505, 123
    %v3617 = vpop.permute.xlu0 %3616
    %3626 = vrot.lane.b32.xlu0 %v3506, 122
    %v3627 = vpop.permute.xlu0 %3626
    %3628 = vrot.lane.b32.xlu0 %v3507, 122
    %v3629 = vpop.permute.xlu0 %3628
    %3630 = vrot.lane.b32.xlu0 %v3508, 122
    %v3631 = vpop.permute.xlu0 %3630
    %3632 = vrot.lane.b32.xlu0 %v3509, 122
    %v3633 = vpop.permute.xlu0 %3632
    %v3638 = vld [vmem:[#allocation13] sm:$0xff]
    %v3639 = vld [vmem:[#allocation13 + $0x8] sm:$0xff]
    %v3640 = vld [vmem:[#allocation13 + $0x10] sm:$0xf]
    %v3641 = vld [vmem:[#allocation13 + $0x14] sm:$0xff]
    %v3642 = vld [vmem:[#allocation13 + $0x1c] sm:$0xff]
    %v3643 = vld [vmem:[#allocation13 + $0x24] sm:$0xf]
    %v3644 = vld [vmem:[#allocation13 + $0x28] sm:$0xff]
    %v3645 = vld [vmem:[#allocation13 + $0x30] sm:$0xff]
    %v3646 = vld [vmem:[#allocation13 + $0x38] sm:$0xf]
    %v3647 = vld [vmem:[#allocation13 + $0x3c] sm:$0xff]
    %v3648 = vld [vmem:[#allocation13 + $0x44] sm:$0xff]
    %v3649 = vld [vmem:[#allocation13 + $0x4c] sm:$0xf]
    %v3650 = vld [vmem:[#allocation14] sm:$0xff]
    %v3651 = vld [vmem:[#allocation14 + $0x8] sm:$0xff]
    %v3652 = vld [vmem:[#allocation14 + $0x10] sm:$0xff]
    %v3653 = vld [vmem:[#allocation14 + $0x18] sm:$0xff]
    %3655 = vset.pattern.permute.xlu0 0
    %3656 = vperm.xlu0 %3655, %v3650
    %v3657 = vpop.permute.xlu0 %3656
    %3660 = vset.pattern.permute.xlu0 0
    %3661 = vperm.xlu0 %3660, %v3651
    %v3662 = vpop.permute.xlu0 %3661
    %3665 = vset.pattern.permute.xlu0 0
    %3666 = vperm.xlu0 %3665, %v3652
    %v3667 = vpop.permute.xlu0 %3666
    %3670 = vset.pattern.permute.xlu0 0
    %3671 = vperm.xlu0 %3670, %v3653
    %v3672 = vpop.permute.xlu0 %3671
    %v3686 = vunpack.c.l.b16 %v3638
    %v3687 = vunpack.c.h.b16 %v3638
    %v3688 = vunpack.c.l.b16 %v3639
    %v3689 = vunpack.c.h.b16 %v3639
    %v3690 = vunpack.c.l.b16 %v3640
    %v3691 = vunpack.c.l.b16 %v3641
    %v3692 = vunpack.c.h.b16 %v3641
    %v3693 = vunpack.c.l.b16 %v3642
    %v3694 = vunpack.c.h.b16 %v3642
    %v3695 = vunpack.c.l.b16 %v3643
    %v3696 = vunpack.c.l.b16 %v3644
    %v3697 = vunpack.c.h.b16 %v3644
    %v3698 = vunpack.c.l.b16 %v3645
    %v3699 = vunpack.c.h.b16 %v3645
    %v3700 = vunpack.c.l.b16 %v3646
    %v3701 = vunpack.c.l.b16 %v3647
    %v3702 = vunpack.c.h.b16 %v3647
    %v3703 = vunpack.c.l.b16 %v3648
    %v3704 = vunpack.c.h.b16 %v3648
    %v3705 = vunpack.c.l.b16 %v3649
    %v3706 = vpack.c.b16 %v3691, %v3686
    %v3707 = vpack.c.b16 %v3692, %v3687
    %v3708 = vpack.c.b16 %v3693, %v3688
    %v3709 = vpack.c.b16 %v3694, %v3689
    %v3710 = vpack.c.b16 %v3695, %v3690
    %v3711 = vpack.c.b16 %v3701, %v3696
    %v3712 = vpack.c.b16 %v3702, %v3697
    %v3713 = vpack.c.b16 %v3703, %v3698
    %v3714 = vpack.c.b16 %v3704, %v3699
    %v3715 = vpack.c.b16 %v3705, %v3700
    %v3725 = vsel %vm1737, %v3710, 0
    %v3728 = vsel %vm1737, %v3715, 0
    %3730 = vmatprep.subr.bf16.mxu0 0
    %3731 = vmatpush1.bf16.msra.mxu0 %v3478
    %3732 = vmatprep.subr.bf16.mxu0 0
    %3733 = vmatpush1.bf16.msra.mxu0 %v3479
    %3734 = vmatprep.subr.bf16.mxu0 0
    %3735 = vmatpush1.bf16.msra.mxu0 %v3480
    %3736 = vmatprep.subr.bf16.mxu0 0
    %3737 = vmatpush1.bf16.msra.mxu0 %v3481
    %3738 = vmatprep.subr.bf16.mxu0 0
    %3739 = vmatpush1.bf16.msra.mxu0 %v3515
    %3740 = vmatprep.subr.bf16.mxu0 0
    %3741 = vmatpush1.bf16.msra.mxu0 %v3517
    %3742 = vmatprep.subr.bf16.mxu0 0
    %3743 = vmatpush1.bf16.msra.mxu0 %v3519
    %3744 = vmatprep.subr.bf16.mxu0 0
    %3745 = vmatpush1.bf16.msra.mxu0 %v3521
    %3746 = vmatprep.subr.bf16.mxu0 0
    %3747 = vmatpush1.bf16.msra.mxu0 %v3531
    %3748 = vmatprep.subr.bf16.mxu0 0
    %3749 = vmatpush1.bf16.msra.mxu0 %v3533
    %3750 = vmatprep.subr.bf16.mxu0 0
    %3751 = vmatpush1.bf16.msra.mxu0 %v3535
    %3752 = vmatprep.subr.bf16.mxu0 0
    %3753 = vmatpush1.bf16.msra.mxu0 %v3537
    %3754 = vmatprep.subr.bf16.mxu0 0
    %3755 = vmatpush1.bf16.msra.mxu0 %v3547
    %3756 = vmatprep.subr.bf16.mxu0 0
    %3757 = vmatpush1.bf16.msra.mxu0 %v3549
    %3758 = vmatprep.subr.bf16.mxu0 0
    %3759 = vmatpush1.bf16.msra.mxu0 %v3551
    %3760 = vmatprep.subr.bf16.mxu0 0
    %3761 = vmatpush1.bf16.msra.mxu0 %v3553
    %3762 = vmatprep.mubr.bf16.mxu0 %v3707
    %3763 = vmatmul.mubr.bf16.gmra.mrb[0].mxu0 %v3706
    %v3764 = vpop.f32.mrb[0].mxu0
    %v3765 = vadd.f32 %v3657, %v3764
    %v3766 = vpop.f32.mrb[0].mxu0
    %v3767 = vpop.f32.mrb[0].mxu0
    %v3768 = vadd.f32 %v3662, %v3767
    %v3769 = vpop.f32.mrb[0].mxu0
    %3770 = vmatprep.mubr.bf16.mxu0 %v3712
    %3771 = vmatmul.mubr.bf16.gmra.mrb[0].mxu0 %v3711
    %v3772 = vpop.f32.mrb[0].mxu0
    %v3773 = vadd.f32 %v3667, %v3772
    %v3774 = vpop.f32.mrb[0].mxu0
    %v3775 = vpop.f32.mrb[0].mxu0
    %v3776 = vadd.f32 %v3672, %v3775
    %v3777 = vpop.f32.mrb[0].mxu0
    %3778 = vdwg.mxu0
    %3779 = vmatprep.subr.bf16.mxu0 0
    %3780 = vmatpush1.bf16.msra.mxu0 %v3563
    %3781 = vmatprep.subr.bf16.mxu0 0
    %3782 = vmatpush1.bf16.msra.mxu0 %v3565
    %3783 = vmatprep.subr.bf16.mxu0 0
    %3784 = vmatpush1.bf16.msra.mxu0 %v3567
    %3785 = vmatprep.subr.bf16.mxu0 0
    %3786 = vmatpush1.bf16.msra.mxu0 %v3569
    %3787 = vmatprep.subr.bf16.mxu0 0
    %3788 = vmatpush1.bf16.msra.mxu0 %v3579
    %3789 = vmatprep.subr.bf16.mxu0 0
    %3790 = vmatpush1.bf16.msra.mxu0 %v3581
    %3791 = vmatprep.subr.bf16.mxu0 0
    %3792 = vmatpush1.bf16.msra.mxu0 %v3583
    %3793 = vmatprep.subr.bf16.mxu0 0
    %3794 = vmatpush1.bf16.msra.mxu0 %v3585
    %3795 = vmatprep.subr.bf16.mxu0 0
    %3796 = vmatpush1.bf16.msra.mxu0 %v3595
    %3797 = vmatprep.subr.bf16.mxu0 0
    %3798 = vmatpush1.bf16.msra.mxu0 %v3597
    %3799 = vmatprep.subr.bf16.mxu0 0
    %3800 = vmatpush1.bf16.msra.mxu0 %v3599
    %3801 = vmatprep.subr.bf16.mxu0 0
    %3802 = vmatpush1.bf16.msra.mxu0 %v3601
    %3803 = vmatprep.subr.bf16.mxu0 0
    %3804 = vmatpush1.bf16.msra.mxu0 %v3611
    %3805 = vmatprep.subr.bf16.mxu0 0
    %3806 = vmatpush1.bf16.msra.mxu0 %v3613
    %3807 = vmatprep.subr.bf16.mxu0 0
    %3808 = vmatpush1.bf16.msra.mxu0 %v3615
    %3809 = vmatprep.subr.bf16.mxu0 0
    %3810 = vmatpush1.bf16.msra.mxu0 %v3617
    %3811 = vmatprep.mubr.bf16.mxu0 %v3709
    %3812 = vmatmul.mubr.bf16.gmra.mrb[0].mxu0 %v3708
    %v3813 = vpop.f32.mrb[0].mxu0
    %v3814 = vadd.f32 %v3765, %v3813
    %v3815 = vpop.f32.mrb[0].mxu0
    %v3816 = vpop.f32.mrb[0].mxu0
    %v3817 = vadd.f32 %v3768, %v3816
    %v3818 = vpop.f32.mrb[0].mxu0
    %3819 = vmatprep.mubr.bf16.mxu0 %v3714
    %3820 = vmatmul.mubr.bf16.gmra.mrb[0].mxu0 %v3713
    %v3821 = vpop.f32.mrb[0].mxu0
    %v3822 = vadd.f32 %v3773, %v3821
    %v3823 = vpop.f32.mrb[0].mxu0
    %v3824 = vpop.f32.mrb[0].mxu0
    %v3825 = vadd.f32 %v3776, %v3824
    %v3826 = vpop.f32.mrb[0].mxu0
    %3827 = vdwg.mxu0
    %3828 = vmatprep.subr.bf16.mxu0 0
    %3829 = vmatpush1.bf16.msra.mxu0 %v3627
    %3830 = vmatprep.subr.bf16.mxu0 0
    %3831 = vmatpush1.bf16.msra.mxu0 %v3629
    %3832 = vmatprep.subr.bf16.mxu0 0
    %3833 = vmatpush1.bf16.msra.mxu0 %v3631
    %3834 = vmatprep.subr.bf16.mxu0 0
    %3835 = vmatpush1.bf16.msra.mxu0 %v3633
    %3836 = vmatprep.subr.bf16.mxu0 0
    %3837 = vmatpush1.bf16.msra.mxu0 0
    %3838 = vmatprep.subr.bf16.mxu0 0
    %3839 = vmatpush1.bf16.msra.mxu0 0
    %3840 = vmatprep.subr.bf16.mxu0 0
    %3841 = vmatpush1.bf16.msra.mxu0 0
    %3842 = vmatprep.subr.bf16.mxu0 0
    %3843 = vmatpush1.bf16.msra.mxu0 0
    %3844 = vmatprep.subr.bf16.mxu0 0
    %3845 = vmatpush1.bf16.msra.mxu0 0
    %3846 = vmatprep.subr.bf16.mxu0 0
    %3847 = vmatpush1.bf16.msra.mxu0 0
    %3848 = vmatprep.subr.bf16.mxu0 0
    %3849 = vmatpush1.bf16.msra.mxu0 0
    %3850 = vmatprep.subr.bf16.mxu0 0
    %3851 = vmatpush1.bf16.msra.mxu0 0
    %3852 = vmatprep.subr.bf16.mxu0 0
    %3853 = vmatpush1.bf16.msra.mxu0 0
    %3854 = vmatprep.subr.bf16.mxu0 0
    %3855 = vmatpush1.bf16.msra.mxu0 0
    %3856 = vmatprep.subr.bf16.mxu0 0
    %3857 = vmatpush1.bf16.msra.mxu0 0
    %3858 = vmatprep.subr.bf16.mxu0 0
    %3859 = vmatpush1.bf16.msra.mxu0 0
    %3860 = vmatprep.mubr.bf16.mxu0 0
    %3861 = vmatmul.mubr.bf16.gmra.mrb[0].mxu0 %v3725
    %v3862 = vpop.f32.mrb[0].mxu0
    %v3863 = vadd.f32 %v3814, %v3862
    %v3864 = vpop.f32.mrb[0].mxu0
    %v3865 = vpop.f32.mrb[0].mxu0
    %v3866 = vadd.f32 %v3817, %v3865
    %v3867 = vpop.f32.mrb[0].mxu0
    %3868 = vmatprep.mubr.bf16.mxu0 0
    %3869 = vmatmul.mubr.bf16.gmra.mrb[0].mxu0 %v3728
    %v3870 = vpop.f32.mrb[0].mxu0
    %v3871 = vadd.f32 %v3822, %v3870
    %v3872 = vpop.f32.mrb[0].mxu0
    %v3873 = vpop.f32.mrb[0].mxu0
    %v3874 = vadd.f32 %v3825, %v3873
    %v3875 = vpop.f32.mrb[0].mxu0
    %3876 = vdwg.mxu0
    %v3877 = vmax.f32 %v3863, 0.0
    %v3878 = vmax.f32 %v3866, 0.0
    %v3879 = vmax.f32 %v3871, 0.0
    %v3880 = vmax.f32 %v3874, 0.0
    %v3881 = vpack.c.bf16 %v3878, %v3877
    %v3882 = vpack.c.bf16 %v3880, %v3879
    %3885 = vrot.lane.b32.xlu0 %v3881, 3
    %v3886 = vpop.permute.xlu0 %3885
    %3887 = vrot.lane.b32.xlu0 %v3882, 3
    %v3888 = vpop.permute.xlu0 %3887
    %v3890 = vsel %vm362, 0, %v3886
    %v3892 = vsel %vm362, 0, %v3888
    %v3893 = vsel %vm388, %v3890, 0
    %v3895 = vsel %vm388, %v3892, 0
    %v3897 = vmul.bf16 %v3893, %v419
    %v3898 = vmul.bf16 %v3895, %v419
    %v3899 = vmul.bf16 %v3893, %v441
    %v3900 = vmul.bf16 %v3895, %v441
    %v3901 = vmul.bf16 %v3893, %v464
    %v3902 = vmul.bf16 %v3895, %v464
    %v3903 = vmul.bf16 %v3893, %v487
    %v3904 = vmul.bf16 %v3895, %v487
    %v3905 = vmul.bf16 %v3893, %v510
    %v3906 = vmul.bf16 %v3895, %v510
    %v3907 = vmul.bf16 %v3893, %v533
    %v3908 = vmul.bf16 %v3895, %v533
    %v3909 = vmul.bf16 %v3893, %v556
    %v3910 = vmul.bf16 %v3895, %v556
    %v3911 = vmul.bf16 %v3893, %v579
    %v3912 = vmul.bf16 %v3895, %v579
    %3915 = vrot.lane.b32.xlu0 %v3899, 127
    %v3916 = vpop.permute.xlu0 %3915
    %3917 = vrot.lane.b32.xlu0 %v3900, 127
    %v3918 = vpop.permute.xlu0 %3917
    %3923 = vrot.lane.b32.xlu0 %v3901, 126
    %v3924 = vpop.permute.xlu0 %3923
    %3925 = vrot.lane.b32.xlu0 %v3902, 126
    %v3926 = vpop.permute.xlu0 %3925
    %3931 = vrot.lane.b32.xlu0 %v3903, 126
    %v3932 = vpop.permute.xlu0 %3931
    %3933 = vrot.lane.b32.xlu0 %v3904, 126
    %v3934 = vpop.permute.xlu0 %3933
    %3939 = vrot.lane.b32.xlu0 %v3893, 125
    %v3940 = vpop.permute.xlu0 %3939
    %3941 = vrot.lane.b32.xlu0 %v3895, 125
    %v3942 = vpop.permute.xlu0 %3941
    %3947 = vrot.lane.b32.xlu0 %v3905, 124
    %v3948 = vpop.permute.xlu0 %3947
    %3949 = vrot.lane.b32.xlu0 %v3906, 124
    %v3950 = vpop.permute.xlu0 %3949
    %3955 = vrot.lane.b32.xlu0 %v3907, 124
    %v3956 = vpop.permute.xlu0 %3955
    %3957 = vrot.lane.b32.xlu0 %v3908, 124
    %v3958 = vpop.permute.xlu0 %3957
    %3963 = vrot.lane.b32.xlu0 %v3909, 123
    %v3964 = vpop.permute.xlu0 %3963
    %3965 = vrot.lane.b32.xlu0 %v3910, 123
    %v3966 = vpop.permute.xlu0 %3965
    %3971 = vrot.lane.b32.xlu0 %v3911, 122
    %v3972 = vpop.permute.xlu0 %3971
    %3973 = vrot.lane.b32.xlu0 %v3912, 122
    %v3974 = vpop.permute.xlu0 %3973
    %v3977 = vld [vmem:[#allocation16] sm:$0xff]
    %v3978 = vld [vmem:[#allocation16 + $0x8] sm:$0xf]
    %v3979 = vld [vmem:[#allocation16 + $0xc] sm:$0xff]
    %v3980 = vld [vmem:[#allocation16 + $0x14] sm:$0xf]
    %v3981 = vld [vmem:[#allocation16 + $0x18] sm:$0xff]
    %v3982 = vld [vmem:[#allocation16 + $0x20] sm:$0xf]
    %v3983 = vld [vmem:[#allocation16 + $0x24] sm:$0xff]
    %v3984 = vld [vmem:[#allocation16 + $0x2c] sm:$0xf]
    %v3985 = vld [vmem:[#allocation16 + $0x30] sm:$0xff]
    %v3986 = vld [vmem:[#allocation16 + $0x38] sm:$0xf]
    %v3987 = vld [vmem:[#allocation16 + $0x3c] sm:$0xff]
    %v3988 = vld [vmem:[#allocation16 + $0x44] sm:$0xf]
    %v3989 = vld [vmem:[#allocation16 + $0x48] sm:$0xff]
    %v3990 = vld [vmem:[#allocation16 + $0x50] sm:$0xf]
    %v3991 = vld [vmem:[#allocation16 + $0x54] sm:$0xff]
    %v3992 = vld [vmem:[#allocation16 + $0x5c] sm:$0xf]
    %v3993 = vld [vmem:[#allocation17] sm:$0xff]
    %v3994 = vld [vmem:[#allocation17 + $0x8] sm:$0xff]
    %v3995 = vld [vmem:[#allocation17 + $0x10] sm:$0xff]
    %v3996 = vld [vmem:[#allocation17 + $0x18] sm:$0xff]
    %v3997 = vld [vmem:[#allocation17 + $0x20] sm:$0xff]
    %v3998 = vld [vmem:[#allocation17 + $0x28] sm:$0xff]
    %v3999 = vld [vmem:[#allocation17 + $0x30] sm:$0xff]
    %v4000 = vld [vmem:[#allocation17 + $0x38] sm:$0xff]
    %4002 = vset.pattern.permute.xlu0 0
    %4003 = vperm.xlu0 %4002, %v3993
    %v4004 = vpop.permute.xlu0 %4003
    %4007 = vset.pattern.permute.xlu0 0
    %4008 = vperm.xlu0 %4007, %v3994
    %v4009 = vpop.permute.xlu0 %4008
    %4012 = vset.pattern.permute.xlu0 0
    %4013 = vperm.xlu0 %4012, %v3995
    %v4014 = vpop.permute.xlu0 %4013
    %4017 = vset.pattern.permute.xlu0 0
    %4018 = vperm.xlu0 %4017, %v3996
    %v4019 = vpop.permute.xlu0 %4018
    %4022 = vset.pattern.permute.xlu0 0
    %4023 = vperm.xlu0 %4022, %v3997
    %v4024 = vpop.permute.xlu0 %4023
    %4027 = vset.pattern.permute.xlu0 0
    %4028 = vperm.xlu0 %4027, %v3998
    %v4029 = vpop.permute.xlu0 %4028
    %4032 = vset.pattern.permute.xlu0 0
    %4033 = vperm.xlu0 %4032, %v3999
    %v4034 = vpop.permute.xlu0 %4033
    %4037 = vset.pattern.permute.xlu0 0
    %4038 = vperm.xlu0 %4037, %v4000
    %v4039 = vpop.permute.xlu0 %4038
    %v4057 = vunpack.c.l.b16 %v3977
    %v4058 = vunpack.c.h.b16 %v3977
    %v4059 = vunpack.c.l.b16 %v3978
    %v4060 = vunpack.c.l.b16 %v3979
    %v4061 = vunpack.c.h.b16 %v3979
    %v4062 = vunpack.c.l.b16 %v3980
    %v4063 = vunpack.c.l.b16 %v3981
    %v4064 = vunpack.c.h.b16 %v3981
    %v4065 = vunpack.c.l.b16 %v3982
    %v4066 = vunpack.c.l.b16 %v3983
    %v4067 = vunpack.c.h.b16 %v3983
    %v4068 = vunpack.c.l.b16 %v3984
    %v4069 = vunpack.c.l.b16 %v3985
    %v4070 = vunpack.c.h.b16 %v3985
    %v4071 = vunpack.c.l.b16 %v3986
    %v4072 = vunpack.c.l.b16 %v3987
    %v4073 = vunpack.c.h.b16 %v3987
    %v4074 = vunpack.c.l.b16 %v3988
    %v4075 = vunpack.c.l.b16 %v3989
    %v4076 = vunpack.c.h.b16 %v3989
    %v4077 = vunpack.c.l.b16 %v3990
    %v4078 = vunpack.c.l.b16 %v3991
    %v4079 = vunpack.c.h.b16 %v3991
    %v4080 = vunpack.c.l.b16 %v3992
    %v4081 = vpack.c.b16 %v4060, %v4057
    %v4082 = vpack.c.b16 %v4061, %v4058
    %v4083 = vpack.c.b16 %v4062, %v4059
    %v4084 = vpack.c.b16 %v4066, %v4063
    %v4085 = vpack.c.b16 %v4067, %v4064
    %v4086 = vpack.c.b16 %v4068, %v4065
    %v4087 = vpack.c.b16 %v4072, %v4069
    %v4088 = vpack.c.b16 %v4073, %v4070
    %v4089 = vpack.c.b16 %v4074, %v4071
    %v4090 = vpack.c.b16 %v4078, %v4075
    %v4091 = vpack.c.b16 %v4079, %v4076
    %v4092 = vpack.c.b16 %v4080, %v4077
    %vm4101 = vcmask 261120
    %v4103 = vsel %vm4101, %v4083, 0
    %v4106 = vsel %vm4101, %v4086, 0
    %v4109 = vsel %vm4101, %v4089, 0
    %v4112 = vsel %vm4101, %v4092, 0
    %4114 = vmatprep.subr.bf16.mxu0 0
    %4115 = vmatpush1.bf16.msra.mxu0 %v3897
    %4116 = vmatprep.subr.bf16.mxu0 0
    %4117 = vmatpush1.bf16.msra.mxu0 %v3898
    %4118 = vmatprep.subr.bf16.mxu0 0
    %4119 = vmatpush1.bf16.msra.mxu0 %v3916
    %4120 = vmatprep.subr.bf16.mxu0 0
    %4121 = vmatpush1.bf16.msra.mxu0 %v3918
    %4122 = vmatprep.subr.bf16.mxu0 0
    %4123 = vmatpush1.bf16.msra.mxu0 %v3924
    %4124 = vmatprep.subr.bf16.mxu0 0
    %4125 = vmatpush1.bf16.msra.mxu0 %v3926
    %4126 = vmatprep.subr.bf16.mxu0 0
    %4127 = vmatpush1.bf16.msra.mxu0 %v3932
    %4128 = vmatprep.subr.bf16.mxu0 0
    %4129 = vmatpush1.bf16.msra.mxu0 %v3934
    %4130 = vmatprep.subr.bf16.mxu0 0
    %4131 = vmatpush1.bf16.msra.mxu0 %v3940
    %4132 = vmatprep.subr.bf16.mxu0 0
    %4133 = vmatpush1.bf16.msra.mxu0 %v3942
    %4134 = vmatprep.subr.bf16.mxu0 0
    %4135 = vmatpush1.bf16.msra.mxu0 %v3948
    %4136 = vmatprep.subr.bf16.mxu0 0
    %4137 = vmatpush1.bf16.msra.mxu0 %v3950
    %4138 = vmatprep.subr.bf16.mxu0 0
    %4139 = vmatpush1.bf16.msra.mxu0 %v3956
    %4140 = vmatprep.subr.bf16.mxu0 0
    %4141 = vmatpush1.bf16.msra.mxu0 %v3958
    %4142 = vmatprep.subr.bf16.mxu0 0
    %4143 = vmatpush1.bf16.msra.mxu0 %v3964
    %4144 = vmatprep.subr.bf16.mxu0 0
    %4145 = vmatpush1.bf16.msra.mxu0 %v3966
    %4146 = vmatprep.mubr.bf16.mxu0 %v4082
    %4147 = vmatmul.mubr.bf16.gmra.mrb[0].mxu0 %v4081
    %v4148 = vpop.f32.mrb[0].mxu0
    %v4149 = vadd.f32 %v4004, %v4148
    %v4150 = vpop.f32.mrb[0].mxu0
    %v4151 = vpop.f32.mrb[0].mxu0
    %v4152 = vadd.f32 %v4009, %v4151
    %v4153 = vpop.f32.mrb[0].mxu0
    %4154 = vmatprep.mubr.bf16.mxu0 %v4085
    %4155 = vmatmul.mubr.bf16.gmra.mrb[0].mxu0 %v4084
    %v4156 = vpop.f32.mrb[0].mxu0
    %v4157 = vadd.f32 %v4014, %v4156
    %v4158 = vpop.f32.mrb[0].mxu0
    %v4159 = vpop.f32.mrb[0].mxu0
    %v4160 = vadd.f32 %v4019, %v4159
    %v4161 = vpop.f32.mrb[0].mxu0
    %4162 = vmatprep.mubr.bf16.mxu0 %v4088
    %4163 = vmatmul.mubr.bf16.gmra.mrb[0].mxu0 %v4087
    %v4164 = vpop.f32.mrb[0].mxu0
    %v4165 = vadd.f32 %v4024, %v4164
    %v4166 = vpop.f32.mrb[0].mxu0
    %v4167 = vpop.f32.mrb[0].mxu0
    %v4168 = vadd.f32 %v4029, %v4167
    %v4169 = vpop.f32.mrb[0].mxu0
    %4170 = vmatprep.mubr.bf16.mxu0 %v4091
    %4171 = vmatmul.mubr.bf16.gmra.mrb[0].mxu0 %v4090
    %v4172 = vpop.f32.mrb[0].mxu0
    %v4173 = vadd.f32 %v4034, %v4172
    %v4174 = vpop.f32.mrb[0].mxu0
    %v4175 = vpop.f32.mrb[0].mxu0
    %v4176 = vadd.f32 %v4039, %v4175
    %v4177 = vpop.f32.mrb[0].mxu0
    %4178 = vdwg.mxu0
    %4179 = vmatprep.subr.bf16.mxu0 0
    %4180 = vmatpush1.bf16.msra.mxu0 %v3972
    %4181 = vmatprep.subr.bf16.mxu0 0
    %4182 = vmatpush1.bf16.msra.mxu0 %v3974
    %4183 = vmatprep.subr.bf16.mxu0 0
    %4184 = vmatpush1.bf16.msra.mxu0 0
    %4185 = vmatprep.subr.bf16.mxu0 0
    %4186 = vmatpush1.bf16.msra.mxu0 0
    %4187 = vmatprep.subr.bf16.mxu0 0
    %4188 = vmatpush1.bf16.msra.mxu0 0
    %4189 = vmatprep.subr.bf16.mxu0 0
    %4190 = vmatpush1.bf16.msra.mxu0 0
    %4191 = vmatprep.subr.bf16.mxu0 0
    %4192 = vmatpush1.bf16.msra.mxu0 0
    %4193 = vmatprep.subr.bf16.mxu0 0
    %4194 = vmatpush1.bf16.msra.mxu0 0
    %4195 = vmatprep.subr.bf16.mxu0 0
    %4196 = vmatpush1.bf16.msra.mxu0 0
    %4197 = vmatprep.subr.bf16.mxu0 0
    %4198 = vmatpush1.bf16.msra.mxu0 0
    %4199 = vmatprep.subr.bf16.mxu0 0
    %4200 = vmatpush1.bf16.msra.mxu0 0
    %4201 = vmatprep.subr.bf16.mxu0 0
    %4202 = vmatpush1.bf16.msra.mxu0 0
    %4203 = vmatprep.subr.bf16.mxu0 0
    %4204 = vmatpush1.bf16.msra.mxu0 0
    %4205 = vmatprep.subr.bf16.mxu0 0
    %4206 = vmatpush1.bf16.msra.mxu0 0
    %4207 = vmatprep.subr.bf16.mxu0 0
    %4208 = vmatpush1.bf16.msra.mxu0 0
    %4209 = vmatprep.subr.bf16.mxu0 0
    %4210 = vmatpush1.bf16.msra.mxu0 0
    %4211 = vmatprep.mubr.bf16.mxu0 0
    %4212 = vmatmul.mubr.bf16.gmra.mrb[0].mxu0 %v4103
    %v4213 = vpop.f32.mrb[0].mxu0
    %v4214 = vadd.f32 %v4149, %v4213
    %v4215 = vpop.f32.mrb[0].mxu0
    %v4216 = vpop.f32.mrb[0].mxu0
    %v4217 = vadd.f32 %v4152, %v4216
    %v4218 = vpop.f32.mrb[0].mxu0
    %4219 = vmatprep.mubr.bf16.mxu0 0
    %4220 = vmatmul.mubr.bf16.gmra.mrb[0].mxu0 %v4106
    %v4221 = vpop.f32.mrb[0].mxu0
    %v4222 = vadd.f32 %v4157, %v4221
    %v4223 = vpop.f32.mrb[0].mxu0
    %v4224 = vpop.f32.mrb[0].mxu0
    %v4225 = vadd.f32 %v4160, %v4224
    %v4226 = vpop.f32.mrb[0].mxu0
    %4227 = vmatprep.mubr.bf16.mxu0 0
    %4228 = vmatmul.mubr.bf16.gmra.mrb[0].mxu0 %v4109
    %v4229 = vpop.f32.mrb[0].mxu0
    %v4230 = vadd.f32 %v4165, %v4229
    %v4231 = vpop.f32.mrb[0].mxu0
    %v4232 = vpop.f32.mrb[0].mxu0
    %v4233 = vadd.f32 %v4168, %v4232
    %v4234 = vpop.f32.mrb[0].mxu0
    %4235 = vmatprep.mubr.bf16.mxu0 0
    %4236 = vmatmul.mubr.bf16.gmra.mrb[0].mxu0 %v4112
    %v4237 = vpop.f32.mrb[0].mxu0
    %v4238 = vadd.f32 %v4173, %v4237
    %v4239 = vpop.f32.mrb[0].mxu0
    %v4240 = vpop.f32.mrb[0].mxu0
    %v4241 = vadd.f32 %v4176, %v4240
    %v4242 = vpop.f32.mrb[0].mxu0
    %4243 = vdwg.mxu0
    %v4244 = vmax.f32 %v4214, 0.0
    %v4245 = vmax.f32 %v4217, 0.0
    %v4246 = vmax.f32 %v4222, 0.0
    %v4247 = vmax.f32 %v4225, 0.0
    %v4248 = vmax.f32 %v4230, 0.0
    %v4249 = vmax.f32 %v4233, 0.0
    %v4250 = vmax.f32 %v4238, 0.0
    %v4251 = vmax.f32 %v4241, 0.0
    %v4252 = vpack.c.bf16 %v4245, %v4244
    %v4253 = vpack.c.bf16 %v4247, %v4246
    %v4254 = vpack.c.bf16 %v4249, %v4248
    %v4255 = vpack.c.bf16 %v4251, %v4250
    %4260 = vrot.lane.b32.xlu0 %v4252, 3
    %v4261 = vpop.permute.xlu0 %4260
    %4262 = vrot.lane.b32.xlu0 %v4253, 3
    %v4263 = vpop.permute.xlu0 %4262
    %4264 = vrot.lane.b32.xlu0 %v4254, 3
    %v4265 = vpop.permute.xlu0 %4264
    %4266 = vrot.lane.b32.xlu0 %v4255, 3
    %v4267 = vpop.permute.xlu0 %4266
    %v4269 = vsel %vm362, 0, %v4261
    %v4271 = vsel %vm362, 0, %v4263
    %v4273 = vsel %vm362, 0, %v4265
    %v4275 = vsel %vm362, 0, %v4267
    %v4276 = vsel %vm388, %v4269, 0
    %v4278 = vsel %vm388, %v4271, 0
    %v4280 = vsel %vm388, %v4273, 0
    %v4282 = vsel %vm388, %v4275, 0
    %v4284 = vmul.bf16 %v4276, %v419
    %v4285 = vmul.bf16 %v4278, %v419
    %v4286 = vmul.bf16 %v4280, %v419
    %v4287 = vmul.bf16 %v4282, %v419
    %v4288 = vmul.bf16 %v4276, %v441
    %v4289 = vmul.bf16 %v4278, %v441
    %v4290 = vmul.bf16 %v4280, %v441
    %v4291 = vmul.bf16 %v4282, %v441
    %v4292 = vmul.bf16 %v4276, %v464
    %v4293 = vmul.bf16 %v4278, %v464
    %v4294 = vmul.bf16 %v4280, %v464
    %v4295 = vmul.bf16 %v4282, %v464
    %v4296 = vmul.bf16 %v4276, %v487
    %v4297 = vmul.bf16 %v4278, %v487
    %v4298 = vmul.bf16 %v4280, %v487
    %v4299 = vmul.bf16 %v4282, %v487
    %v4300 = vmul.bf16 %v4276, %v510
    %v4301 = vmul.bf16 %v4278, %v510
    %v4302 = vmul.bf16 %v4280, %v510
    %v4303 = vmul.bf16 %v4282, %v510
    %v4304 = vmul.bf16 %v4276, %v533
    %v4305 = vmul.bf16 %v4278, %v533
    %v4306 = vmul.bf16 %v4280, %v533
    %v4307 = vmul.bf16 %v4282, %v533
    %v4308 = vmul.bf16 %v4276, %v556
    %v4309 = vmul.bf16 %v4278, %v556
    %v4310 = vmul.bf16 %v4280, %v556
    %v4311 = vmul.bf16 %v4282, %v556
    %v4312 = vmul.bf16 %v4276, %v579
    %v4313 = vmul.bf16 %v4278, %v579
    %v4314 = vmul.bf16 %v4280, %v579
    %v4315 = vmul.bf16 %v4282, %v579
    %4320 = vrot.lane.b32.xlu0 %v4288, 127
    %v4321 = vpop.permute.xlu0 %4320
    %4322 = vrot.lane.b32.xlu0 %v4289, 127
    %v4323 = vpop.permute.xlu0 %4322
    %4324 = vrot.lane.b32.xlu0 %v4290, 127
    %v4325 = vpop.permute.xlu0 %4324
    %4326 = vrot.lane.b32.xlu0 %v4291, 127
    %v4327 = vpop.permute.xlu0 %4326
    %4336 = vrot.lane.b32.xlu0 %v4292, 126
    %v4337 = vpop.permute.xlu0 %4336
    %4338 = vrot.lane.b32.xlu0 %v4293, 126
    %v4339 = vpop.permute.xlu0 %4338
    %4340 = vrot.lane.b32.xlu0 %v4294, 126
    %v4341 = vpop.permute.xlu0 %4340
    %4342 = vrot.lane.b32.xlu0 %v4295, 126
    %v4343 = vpop.permute.xlu0 %4342
    %4352 = vrot.lane.b32.xlu0 %v4296, 126
    %v4353 = vpop.permute.xlu0 %4352
    %4354 = vrot.lane.b32.xlu0 %v4297, 126
    %v4355 = vpop.permute.xlu0 %4354
    %4356 = vrot.lane.b32.xlu0 %v4298, 126
    %v4357 = vpop.permute.xlu0 %4356
    %4358 = vrot.lane.b32.xlu0 %v4299, 126
    %v4359 = vpop.permute.xlu0 %4358
    %4368 = vrot.lane.b32.xlu0 %v4276, 125
    %v4369 = vpop.permute.xlu0 %4368
    %4370 = vrot.lane.b32.xlu0 %v4278, 125
    %v4371 = vpop.permute.xlu0 %4370
    %4372 = vrot.lane.b32.xlu0 %v4280, 125
    %v4373 = vpop.permute.xlu0 %4372
    %4374 = vrot.lane.b32.xlu0 %v4282, 125
    %v4375 = vpop.permute.xlu0 %4374
    %4384 = vrot.lane.b32.xlu0 %v4300, 124
    %v4385 = vpop.permute.xlu0 %4384
    %4386 = vrot.lane.b32.xlu0 %v4301, 124
    %v4387 = vpop.permute.xlu0 %4386
    %4388 = vrot.lane.b32.xlu0 %v4302, 124
    %v4389 = vpop.permute.xlu0 %4388
    %4390 = vrot.lane.b32.xlu0 %v4303, 124
    %v4391 = vpop.permute.xlu0 %4390
    %4400 = vrot.lane.b32.xlu0 %v4304, 124
    %v4401 = vpop.permute.xlu0 %4400
    %4402 = vrot.lane.b32.xlu0 %v4305, 124
    %v4403 = vpop.permute.xlu0 %4402
    %4404 = vrot.lane.b32.xlu0 %v4306, 124
    %v4405 = vpop.permute.xlu0 %4404
    %4406 = vrot.lane.b32.xlu0 %v4307, 124
    %v4407 = vpop.permute.xlu0 %4406
    %4416 = vrot.lane.b32.xlu0 %v4308, 123
    %v4417 = vpop.permute.xlu0 %4416
    %4418 = vrot.lane.b32.xlu0 %v4309, 123
    %v4419 = vpop.permute.xlu0 %4418
    %4420 = vrot.lane.b32.xlu0 %v4310, 123
    %v4421 = vpop.permute.xlu0 %4420
    %4422 = vrot.lane.b32.xlu0 %v4311, 123
    %v4423 = vpop.permute.xlu0 %4422
    %4432 = vrot.lane.b32.xlu0 %v4312, 122
    %v4433 = vpop.permute.xlu0 %4432
    %4434 = vrot.lane.b32.xlu0 %v4313, 122
    %v4435 = vpop.permute.xlu0 %4434
    %4436 = vrot.lane.b32.xlu0 %v4314, 122
    %v4437 = vpop.permute.xlu0 %4436
    %4438 = vrot.lane.b32.xlu0 %v4315, 122
    %v4439 = vpop.permute.xlu0 %4438
    %v4444 = vld [vmem:[#allocation19] sm:$0xff]
    %v4445 = vld [vmem:[#allocation19 + $0x8] sm:$0xff]
    %v4446 = vld [vmem:[#allocation19 + $0x10] sm:$0xf]
    %v4447 = vld [vmem:[#allocation19 + $0x14] sm:$0xff]
    %v4448 = vld [vmem:[#allocation19 + $0x1c] sm:$0xff]
    %v4449 = vld [vmem:[#allocation19 + $0x24] sm:$0xf]
    %v4450 = vld [vmem:[#allocation19 + $0x28] sm:$0xff]
    %v4451 = vld [vmem:[#allocation19 + $0x30] sm:$0xff]
    %v4452 = vld [vmem:[#allocation19 + $0x38] sm:$0xf]
    %v4453 = vld [vmem:[#allocation19 + $0x3c] sm:$0xff]
    %v4454 = vld [vmem:[#allocation19 + $0x44] sm:$0xff]
    %v4455 = vld [vmem:[#allocation19 + $0x4c] sm:$0xf]
    %v4456 = vld [vmem:[#allocation19 + $0x50] sm:$0xff]
    %v4457 = vld [vmem:[#allocation19 + $0x58] sm:$0xff]
    %v4458 = vld [vmem:[#allocation19 + $0x60] sm:$0xf]
    %v4459 = vld [vmem:[#allocation19 + $0x64] sm:$0xff]
    %v4460 = vld [vmem:[#allocation19 + $0x6c] sm:$0xff]
    %v4461 = vld [vmem:[#allocation19 + $0x74] sm:$0xf]
    %v4462 = vld [vmem:[#allocation19 + $0x78] sm:$0xff]
    %v4463 = vld [vmem:[#allocation19 + $0x80] sm:$0xff]
    %v4464 = vld [vmem:[#allocation19 + $0x88] sm:$0xf]
    %v4465 = vld [vmem:[#allocation19 + $0x8c] sm:$0xff]
    %v4466 = vld [vmem:[#allocation19 + $0x94] sm:$0xff]
    %v4467 = vld [vmem:[#allocation19 + $0x9c] sm:$0xf]
    %v4468 = vld [vmem:[#allocation19 + $0xa0] sm:$0xff]
    %v4469 = vld [vmem:[#allocation19 + $0xa8] sm:$0xff]
    %v4470 = vld [vmem:[#allocation19 + $0xb0] sm:$0xf]
    %v4471 = vld [vmem:[#allocation19 + $0xb4] sm:$0xff]
    %v4472 = vld [vmem:[#allocation19 + $0xbc] sm:$0xff]
    %v4473 = vld [vmem:[#allocation19 + $0xc4] sm:$0xf]
    %v4474 = vld [vmem:[#allocation19 + $0xc8] sm:$0xff]
    %v4475 = vld [vmem:[#allocation19 + $0xd0] sm:$0xff]
    %v4476 = vld [vmem:[#allocation19 + $0xd8] sm:$0xf]
    %v4477 = vld [vmem:[#allocation19 + $0xdc] sm:$0xff]
    %v4478 = vld [vmem:[#allocation19 + $0xe4] sm:$0xff]
    %v4479 = vld [vmem:[#allocation19 + $0xec] sm:$0xf]
    %v4480 = vld [vmem:[#allocation19 + $0xf0] sm:$0xff]
    %v4481 = vld [vmem:[#allocation19 + $0xf8] sm:$0xff]
    %v4482 = vld [vmem:[#allocation19 + $0x100] sm:$0xf]
    %v4483 = vld [vmem:[#allocation19 + $0x104] sm:$0xff]
    %v4484 = vld [vmem:[#allocation19 + $0x10c] sm:$0xff]
    %v4485 = vld [vmem:[#allocation19 + $0x114] sm:$0xf]
    %v4486 = vld [vmem:[#allocation19 + $0x118] sm:$0xff]
    %v4487 = vld [vmem:[#allocation19 + $0x120] sm:$0xff]
    %v4488 = vld [vmem:[#allocation19 + $0x128] sm:$0xf]
    %v4489 = vld [vmem:[#allocation19 + $0x12c] sm:$0xff]
    %v4490 = vld [vmem:[#allocation19 + $0x134] sm:$0xff]
    %v4491 = vld [vmem:[#allocation19 + $0x13c] sm:$0xf]
    %v4492 = vld [vmem:[#allocation20] sm:$0xff]
    %v4493 = vld [vmem:[#allocation20 + $0x8] sm:$0xff]
    %v4494 = vld [vmem:[#allocation20 + $0x10] sm:$0xff]
    %v4495 = vld [vmem:[#allocation20 + $0x18] sm:$0xff]
    %v4496 = vld [vmem:[#allocation20 + $0x20] sm:$0xff]
    %v4497 = vld [vmem:[#allocation20 + $0x28] sm:$0xff]
    %v4498 = vld [vmem:[#allocation20 + $0x30] sm:$0xff]
    %v4499 = vld [vmem:[#allocation20 + $0x38] sm:$0xff]
    %v4500 = vld [vmem:[#allocation20 + $0x40] sm:$0xff]
    %v4501 = vld [vmem:[#allocation20 + $0x48] sm:$0xff]
    %v4502 = vld [vmem:[#allocation20 + $0x50] sm:$0xff]
    %v4503 = vld [vmem:[#allocation20 + $0x58] sm:$0xff]
    %v4504 = vld [vmem:[#allocation20 + $0x60] sm:$0xff]
    %v4505 = vld [vmem:[#allocation20 + $0x68] sm:$0xff]
    %v4506 = vld [vmem:[#allocation20 + $0x70] sm:$0xff]
    %v4507 = vld [vmem:[#allocation20 + $0x78] sm:$0xff]
    %4509 = vset.pattern.permute.xlu0 0
    %4510 = vperm.xlu0 %4509, %v4492
    %v4511 = vpop.permute.xlu0 %4510
    %4514 = vset.pattern.permute.xlu0 0
    %4515 = vperm.xlu0 %4514, %v4493
    %v4516 = vpop.permute.xlu0 %4515
    %4519 = vset.pattern.permute.xlu0 0
    %4520 = vperm.xlu0 %4519, %v4494
    %v4521 = vpop.permute.xlu0 %4520
    %4524 = vset.pattern.permute.xlu0 0
    %4525 = vperm.xlu0 %4524, %v4495
    %v4526 = vpop.permute.xlu0 %4525
    %4529 = vset.pattern.permute.xlu0 0
    %4530 = vperm.xlu0 %4529, %v4496
    %v4531 = vpop.permute.xlu0 %4530
    %4534 = vset.pattern.permute.xlu0 0
    %4535 = vperm.xlu0 %4534, %v4497
    %v4536 = vpop.permute.xlu0 %4535
    %4539 = vset.pattern.permute.xlu0 0
    %4540 = vperm.xlu0 %4539, %v4498
    %v4541 = vpop.permute.xlu0 %4540
    %4544 = vset.pattern.permute.xlu0 0
    %4545 = vperm.xlu0 %4544, %v4499
    %v4546 = vpop.permute.xlu0 %4545
    %4549 = vset.pattern.permute.xlu0 0
    %4550 = vperm.xlu0 %4549, %v4500
    %v4551 = vpop.permute.xlu0 %4550
    %4554 = vset.pattern.permute.xlu0 0
    %4555 = vperm.xlu0 %4554, %v4501
    %v4556 = vpop.permute.xlu0 %4555
    %4559 = vset.pattern.permute.xlu0 0
    %4560 = vperm.xlu0 %4559, %v4502
    %v4561 = vpop.permute.xlu0 %4560
    %4564 = vset.pattern.permute.xlu0 0
    %4565 = vperm.xlu0 %4564, %v4503
    %v4566 = vpop.permute.xlu0 %4565
    %4569 = vset.pattern.permute.xlu0 0
    %4570 = vperm.xlu0 %4569, %v4504
    %v4571 = vpop.permute.xlu0 %4570
    %4574 = vset.pattern.permute.xlu0 0
    %4575 = vperm.xlu0 %4574, %v4505
    %v4576 = vpop.permute.xlu0 %4575
    %4579 = vset.pattern.permute.xlu0 0
    %4580 = vperm.xlu0 %4579, %v4506
    %v4581 = vpop.permute.xlu0 %4580
    %4584 = vset.pattern.permute.xlu0 0
    %4585 = vperm.xlu0 %4584, %v4507
    %v4586 = vpop.permute.xlu0 %4585
    %v4636 = vunpack.c.l.b16 %v4444
    %v4637 = vunpack.c.h.b16 %v4444
    %v4638 = vunpack.c.l.b16 %v4445
    %v4639 = vunpack.c.h.b16 %v4445
    %v4640 = vunpack.c.l.b16 %v4446
    %v4641 = vunpack.c.l.b16 %v4447
    %v4642 = vunpack.c.h.b16 %v4447
    %v4643 = vunpack.c.l.b16 %v4448
    %v4644 = vunpack.c.h.b16 %v4448
    %v4645 = vunpack.c.l.b16 %v4449
    %v4646 = vunpack.c.l.b16 %v4450
    %v4647 = vunpack.c.h.b16 %v4450
    %v4648 = vunpack.c.l.b16 %v4451
    %v4649 = vunpack.c.h.b16 %v4451
    %v4650 = vunpack.c.l.b16 %v4452
    %v4651 = vunpack.c.l.b16 %v4453
    %v4652 = vunpack.c.h.b16 %v4453
    %v4653 = vunpack.c.l.b16 %v4454
    %v4654 = vunpack.c.h.b16 %v4454
    %v4655 = vunpack.c.l.b16 %v4455
    %v4656 = vunpack.c.l.b16 %v4456
    %v4657 = vunpack.c.h.b16 %v4456
    %v4658 = vunpack.c.l.b16 %v4457
    %v4659 = vunpack.c.h.b16 %v4457
    %v4660 = vunpack.c.l.b16 %v4458
    %v4661 = vunpack.c.l.b16 %v4459
    %v4662 = vunpack.c.h.b16 %v4459
    %v4663 = vunpack.c.l.b16 %v4460
    %v4664 = vunpack.c.h.b16 %v4460
    %v4665 = vunpack.c.l.b16 %v4461
    %v4666 = vunpack.c.l.b16 %v4462
    %v4667 = vunpack.c.h.b16 %v4462
    %v4668 = vunpack.c.l.b16 %v4463
    %v4669 = vunpack.c.h.b16 %v4463
    %v4670 = vunpack.c.l.b16 %v4464
    %v4671 = vunpack.c.l.b16 %v4465
    %v4672 = vunpack.c.h.b16 %v4465
    %v4673 = vunpack.c.l.b16 %v4466
    %v4674 = vunpack.c.h.b16 %v4466
    %v4675 = vunpack.c.l.b16 %v4467
    %v4676 = vunpack.c.l.b16 %v4468
    %v4677 = vunpack.c.h.b16 %v4468
    %v4678 = vunpack.c.l.b16 %v4469
    %v4679 = vunpack.c.h.b16 %v4469
    %v4680 = vunpack.c.l.b16 %v4470
    %v4681 = vunpack.c.l.b16 %v4471
    %v4682 = vunpack.c.h.b16 %v4471
    %v4683 = vunpack.c.l.b16 %v4472
    %v4684 = vunpack.c.h.b16 %v4472
    %v4685 = vunpack.c.l.b16 %v4473
    %v4686 = vunpack.c.l.b16 %v4474
    %v4687 = vunpack.c.h.b16 %v4474
    %v4688 = vunpack.c.l.b16 %v4475
    %v4689 = vunpack.c.h.b16 %v4475
    %v4690 = vunpack.c.l.b16 %v4476
    %v4691 = vunpack.c.l.b16 %v4477
    %v4692 = vunpack.c.h.b16 %v4477
    %v4693 = vunpack.c.l.b16 %v4478
    %v4694 = vunpack.c.h.b16 %v4478
    %v4695 = vunpack.c.l.b16 %v4479
    %v4696 = vunpack.c.l.b16 %v4480
    %v4697 = vunpack.c.h.b16 %v4480
    %v4698 = vunpack.c.l.b16 %v4481
    %v4699 = vunpack.c.h.b16 %v4481
    %v4700 = vunpack.c.l.b16 %v4482
    %v4701 = vunpack.c.l.b16 %v4483
    %v4702 = vunpack.c.h.b16 %v4483
    %v4703 = vunpack.c.l.b16 %v4484
    %v4704 = vunpack.c.h.b16 %v4484
    %v4705 = vunpack.c.l.b16 %v4485
    %v4706 = vunpack.c.l.b16 %v4486
    %v4707 = vunpack.c.h.b16 %v4486
    %v4708 = vunpack.c.l.b16 %v4487
    %v4709 = vunpack.c.h.b16 %v4487
    %v4710 = vunpack.c.l.b16 %v4488
    %v4711 = vunpack.c.l.b16 %v4489
    %v4712 = vunpack.c.h.b16 %v4489
    %v4713 = vunpack.c.l.b16 %v4490
    %v4714 = vunpack.c.h.b16 %v4490
    %v4715 = vunpack.c.l.b16 %v4491
    %v4716 = vpack.c.b16 %v4641, %v4636
    %v4717 = vpack.c.b16 %v4642, %v4637
    %v4718 = vpack.c.b16 %v4643, %v4638
    %v4719 = vpack.c.b16 %v4644, %v4639
    %v4720 = vpack.c.b16 %v4645, %v4640
    %v4721 = vpack.c.b16 %v4651, %v4646
    %v4722 = vpack.c.b16 %v4652, %v4647
    %v4723 = vpack.c.b16 %v4653, %v4648
    %v4724 = vpack.c.b16 %v4654, %v4649
    %v4725 = vpack.c.b16 %v4655, %v4650
    %v4726 = vpack.c.b16 %v4661, %v4656
    %v4727 = vpack.c.b16 %v4662, %v4657
    %v4728 = vpack.c.b16 %v4663, %v4658
    %v4729 = vpack.c.b16 %v4664, %v4659
    %v4730 = vpack.c.b16 %v4665, %v4660
    %v4731 = vpack.c.b16 %v4671, %v4666
    %v4732 = vpack.c.b16 %v4672, %v4667
    %v4733 = vpack.c.b16 %v4673, %v4668
    %v4734 = vpack.c.b16 %v4674, %v4669
    %v4735 = vpack.c.b16 %v4675, %v4670
    %v4736 = vpack.c.b16 %v4681, %v4676
    %v4737 = vpack.c.b16 %v4682, %v4677
    %v4738 = vpack.c.b16 %v4683, %v4678
    %v4739 = vpack.c.b16 %v4684, %v4679
    %v4740 = vpack.c.b16 %v4685, %v4680
    %v4741 = vpack.c.b16 %v4691, %v4686
    %v4742 = vpack.c.b16 %v4692, %v4687
    %v4743 = vpack.c.b16 %v4693, %v4688
    %v4744 = vpack.c.b16 %v4694, %v4689
    %v4745 = vpack.c.b16 %v4695, %v4690
    %v4746 = vpack.c.b16 %v4701, %v4696
    %v4747 = vpack.c.b16 %v4702, %v4697
    %v4748 = vpack.c.b16 %v4703, %v4698
    %v4749 = vpack.c.b16 %v4704, %v4699
    %v4750 = vpack.c.b16 %v4705, %v4700
    %v4751 = vpack.c.b16 %v4711, %v4706
    %v4752 = vpack.c.b16 %v4712, %v4707
    %v4753 = vpack.c.b16 %v4713, %v4708
    %v4754 = vpack.c.b16 %v4714, %v4709
    %v4755 = vpack.c.b16 %v4715, %v4710
    %v4789 = vsel %vm1737, %v4720, 0
    %v4792 = vsel %vm1737, %v4725, 0
    %v4795 = vsel %vm1737, %v4730, 0
    %v4798 = vsel %vm1737, %v4735, 0
    %v4801 = vsel %vm1737, %v4740, 0
    %v4804 = vsel %vm1737, %v4745, 0
    %v4807 = vsel %vm1737, %v4750, 0
    %v4810 = vsel %vm1737, %v4755, 0
    %4812 = vmatprep.subr.bf16.mxu0 0
    %4813 = vmatpush1.bf16.msra.mxu0 %v4284
    %4814 = vmatprep.subr.bf16.mxu0 0
    %4815 = vmatpush1.bf16.msra.mxu0 %v4285
    %4816 = vmatprep.subr.bf16.mxu0 0
    %4817 = vmatpush1.bf16.msra.mxu0 %v4286
    %4818 = vmatprep.subr.bf16.mxu0 0
    %4819 = vmatpush1.bf16.msra.mxu0 %v4287
    %4820 = vmatprep.subr.bf16.mxu0 0
    %4821 = vmatpush1.bf16.msra.mxu0 %v4321
    %4822 = vmatprep.subr.bf16.mxu0 0
    %4823 = vmatpush1.bf16.msra.mxu0 %v4323
    %4824 = vmatprep.subr.bf16.mxu0 0
    %4825 = vmatpush1.bf16.msra.mxu0 %v4325
    %4826 = vmatprep.subr.bf16.mxu0 0
    %4827 = vmatpush1.bf16.msra.mxu0 %v4327
    %4828 = vmatprep.subr.bf16.mxu0 0
    %4829 = vmatpush1.bf16.msra.mxu0 %v4337
    %4830 = vmatprep.subr.bf16.mxu0 0
    %4831 = vmatpush1.bf16.msra.mxu0 %v4339
    %4832 = vmatprep.subr.bf16.mxu0 0
    %4833 = vmatpush1.bf16.msra.mxu0 %v4341
    %4834 = vmatprep.subr.bf16.mxu0 0
    %4835 = vmatpush1.bf16.msra.mxu0 %v4343
    %4836 = vmatprep.subr.bf16.mxu0 0
    %4837 = vmatpush1.bf16.msra.mxu0 %v4353
    %4838 = vmatprep.subr.bf16.mxu0 0
    %4839 = vmatpush1.bf16.msra.mxu0 %v4355
    %4840 = vmatprep.subr.bf16.mxu0 0
    %4841 = vmatpush1.bf16.msra.mxu0 %v4357
    %4842 = vmatprep.subr.bf16.mxu0 0
    %4843 = vmatpush1.bf16.msra.mxu0 %v4359
    %4844 = vmatprep.mubr.bf16.mxu0 %v4717
    %4845 = vmatmul.mubr.bf16.gmra.mrb[0].mxu0 %v4716
    %v4846 = vpop.f32.mrb[0].mxu0
    %v4847 = vadd.f32 %v4511, %v4846
    %v4848 = vpop.f32.mrb[0].mxu0
    %v4849 = vpop.f32.mrb[0].mxu0
    %v4850 = vadd.f32 %v4516, %v4849
    %v4851 = vpop.f32.mrb[0].mxu0
    %4852 = vmatprep.mubr.bf16.mxu0 %v4722
    %4853 = vmatmul.mubr.bf16.gmra.mrb[0].mxu0 %v4721
    %v4854 = vpop.f32.mrb[0].mxu0
    %v4855 = vadd.f32 %v4521, %v4854
    %v4856 = vpop.f32.mrb[0].mxu0
    %v4857 = vpop.f32.mrb[0].mxu0
    %v4858 = vadd.f32 %v4526, %v4857
    %v4859 = vpop.f32.mrb[0].mxu0
    %4860 = vmatprep.mubr.bf16.mxu0 %v4727
    %4861 = vmatmul.mubr.bf16.gmra.mrb[0].mxu0 %v4726
    %v4862 = vpop.f32.mrb[0].mxu0
    %v4863 = vadd.f32 %v4531, %v4862
    %v4864 = vpop.f32.mrb[0].mxu0
    %v4865 = vpop.f32.mrb[0].mxu0
    %v4866 = vadd.f32 %v4536, %v4865
    %v4867 = vpop.f32.mrb[0].mxu0
    %4868 = vmatprep.mubr.bf16.mxu0 %v4732
    %4869 = vmatmul.mubr.bf16.gmra.mrb[0].mxu0 %v4731
    %v4870 = vpop.f32.mrb[0].mxu0
    %v4871 = vadd.f32 %v4541, %v4870
    %v4872 = vpop.f32.mrb[0].mxu0
    %v4873 = vpop.f32.mrb[0].mxu0
    %v4874 = vadd.f32 %v4546, %v4873
    %v4875 = vpop.f32.mrb[0].mxu0
    %4876 = vmatprep.mubr.bf16.mxu0 %v4737
    %4877 = vmatmul.mubr.bf16.gmra.mrb[0].mxu0 %v4736
    %v4878 = vpop.f32.mrb[0].mxu0
    %v4879 = vadd.f32 %v4551, %v4878
    %v4880 = vpop.f32.mrb[0].mxu0
    %v4881 = vpop.f32.mrb[0].mxu0
    %v4882 = vadd.f32 %v4556, %v4881
    %v4883 = vpop.f32.mrb[0].mxu0
    %4884 = vmatprep.mubr.bf16.mxu0 %v4742
    %4885 = vmatmul.mubr.bf16.gmra.mrb[0].mxu0 %v4741
    %v4886 = vpop.f32.mrb[0].mxu0
    %v4887 = vadd.f32 %v4561, %v4886
    %v4888 = vpop.f32.mrb[0].mxu0
    %v4889 = vpop.f32.mrb[0].mxu0
    %v4890 = vadd.f32 %v4566, %v4889
    %v4891 = vpop.f32.mrb[0].mxu0
    %4892 = vmatprep.mubr.bf16.mxu0 %v4747
    %4893 = vmatmul.mubr.bf16.gmra.mrb[0].mxu0 %v4746
    %v4894 = vpop.f32.mrb[0].mxu0
    %v4895 = vadd.f32 %v4571, %v4894
    %v4896 = vpop.f32.mrb[0].mxu0
    %v4897 = vpop.f32.mrb[0].mxu0
    %v4898 = vadd.f32 %v4576, %v4897
    %v4899 = vpop.f32.mrb[0].mxu0
    %4900 = vmatprep.mubr.bf16.mxu0 %v4752
    %4901 = vmatmul.mubr.bf16.gmra.mrb[0].mxu0 %v4751
    %v4902 = vpop.f32.mrb[0].mxu0
    %v4903 = vadd.f32 %v4581, %v4902
    %v4904 = vpop.f32.mrb[0].mxu0
    %v4905 = vpop.f32.mrb[0].mxu0
    %v4906 = vadd.f32 %v4586, %v4905
    %v4907 = vpop.f32.mrb[0].mxu0
    %4908 = vdwg.mxu0
    %4909 = vmatprep.subr.bf16.mxu0 0
    %4910 = vmatpush1.bf16.msra.mxu0 %v4369
    %4911 = vmatprep.subr.bf16.mxu0 0
    %4912 = vmatpush1.bf16.msra.mxu0 %v4371
    %4913 = vmatprep.subr.bf16.mxu0 0
    %4914 = vmatpush1.bf16.msra.mxu0 %v4373
    %4915 = vmatprep.subr.bf16.mxu0 0
    %4916 = vmatpush1.bf16.msra.mxu0 %v4375
    %4917 = vmatprep.subr.bf16.mxu0 0
    %4918 = vmatpush1.bf16.msra.mxu0 %v4385
    %4919 = vmatprep.subr.bf16.mxu0 0
    %4920 = vmatpush1.bf16.msra.mxu0 %v4387
    %4921 = vmatprep.subr.bf16.mxu0 0
    %4922 = vmatpush1.bf16.msra.mxu0 %v4389
    %4923 = vmatprep.subr.bf16.mxu0 0
    %4924 = vmatpush1.bf16.msra.mxu0 %v4391
    %4925 = vmatprep.subr.bf16.mxu0 0
    %4926 = vmatpush1.bf16.msra.mxu0 %v4401
    %4927 = vmatprep.subr.bf16.mxu0 0
    %4928 = vmatpush1.bf16.msra.mxu0 %v4403
    %4929 = vmatprep.subr.bf16.mxu0 0
    %4930 = vmatpush1.bf16.msra.mxu0 %v4405
    %4931 = vmatprep.subr.bf16.mxu0 0
    %4932 = vmatpush1.bf16.msra.mxu0 %v4407
    %4933 = vmatprep.subr.bf16.mxu0 0
    %4934 = vmatpush1.bf16.msra.mxu0 %v4417
    %4935 = vmatprep.subr.bf16.mxu0 0
    %4936 = vmatpush1.bf16.msra.mxu0 %v4419
    %4937 = vmatprep.subr.bf16.mxu0 0
    %4938 = vmatpush1.bf16.msra.mxu0 %v4421
    %4939 = vmatprep.subr.bf16.mxu0 0
    %4940 = vmatpush1.bf16.msra.mxu0 %v4423
    %4941 = vmatprep.mubr.bf16.mxu0 %v4719
    %4942 = vmatmul.mubr.bf16.gmra.mrb[0].mxu0 %v4718
    %v4943 = vpop.f32.mrb[0].mxu0
    %v4944 = vadd.f32 %v4847, %v4943
    %v4945 = vpop.f32.mrb[0].mxu0
    %v4946 = vpop.f32.mrb[0].mxu0
    %v4947 = vadd.f32 %v4850, %v4946
    %v4948 = vpop.f32.mrb[0].mxu0
    %4949 = vmatprep.mubr.bf16.mxu0 %v4724
    %4950 = vmatmul.mubr.bf16.gmra.mrb[0].mxu0 %v4723
    %v4951 = vpop.f32.mrb[0].mxu0
    %v4952 = vadd.f32 %v4855, %v4951
    %v4953 = vpop.f32.mrb[0].mxu0
    %v4954 = vpop.f32.mrb[0].mxu0
    %v4955 = vadd.f32 %v4858, %v4954
    %v4956 = vpop.f32.mrb[0].mxu0
    %4957 = vmatprep.mubr.bf16.mxu0 %v4729
    %4958 = vmatmul.mubr.bf16.gmra.mrb[0].mxu0 %v4728
    %v4959 = vpop.f32.mrb[0].mxu0
    %v4960 = vadd.f32 %v4863, %v4959
    %v4961 = vpop.f32.mrb[0].mxu0
    %v4962 = vpop.f32.mrb[0].mxu0
    %v4963 = vadd.f32 %v4866, %v4962
    %v4964 = vpop.f32.mrb[0].mxu0
    %4965 = vmatprep.mubr.bf16.mxu0 %v4734
    %4966 = vmatmul.mubr.bf16.gmra.mrb[0].mxu0 %v4733
    %v4967 = vpop.f32.mrb[0].mxu0
    %v4968 = vadd.f32 %v4871, %v4967
    %v4969 = vpop.f32.mrb[0].mxu0
    %v4970 = vpop.f32.mrb[0].mxu0
    %v4971 = vadd.f32 %v4874, %v4970
    %v4972 = vpop.f32.mrb[0].mxu0
    %4973 = vmatprep.mubr.bf16.mxu0 %v4739
    %4974 = vmatmul.mubr.bf16.gmra.mrb[0].mxu0 %v4738
    %v4975 = vpop.f32.mrb[0].mxu0
    %v4976 = vadd.f32 %v4879, %v4975
    %v4977 = vpop.f32.mrb[0].mxu0
    %v4978 = vpop.f32.mrb[0].mxu0
    %v4979 = vadd.f32 %v4882, %v4978
    %v4980 = vpop.f32.mrb[0].mxu0
    %4981 = vmatprep.mubr.bf16.mxu0 %v4744
    %4982 = vmatmul.mubr.bf16.gmra.mrb[0].mxu0 %v4743
    %v4983 = vpop.f32.mrb[0].mxu0
    %v4984 = vadd.f32 %v4887, %v4983
    %v4985 = vpop.f32.mrb[0].mxu0
    %v4986 = vpop.f32.mrb[0].mxu0
    %v4987 = vadd.f32 %v4890, %v4986
    %v4988 = vpop.f32.mrb[0].mxu0
    %4989 = vmatprep.mubr.bf16.mxu0 %v4749
    %4990 = vmatmul.mubr.bf16.gmra.mrb[0].mxu0 %v4748
    %v4991 = vpop.f32.mrb[0].mxu0
    %v4992 = vadd.f32 %v4895, %v4991
    %v4993 = vpop.f32.mrb[0].mxu0
    %v4994 = vpop.f32.mrb[0].mxu0
    %v4995 = vadd.f32 %v4898, %v4994
    %v4996 = vpop.f32.mrb[0].mxu0
    %4997 = vmatprep.mubr.bf16.mxu0 %v4754
    %4998 = vmatmul.mubr.bf16.gmra.mrb[0].mxu0 %v4753
    %v4999 = vpop.f32.mrb[0].mxu0
    %v5000 = vadd.f32 %v4903, %v4999
    %v5001 = vpop.f32.mrb[0].mxu0
    %v5002 = vpop.f32.mrb[0].mxu0
    %v5003 = vadd.f32 %v4906, %v5002
    %v5004 = vpop.f32.mrb[0].mxu0
    %5005 = vdwg.mxu0
    %5006 = vmatprep.subr.bf16.mxu0 0
    %5007 = vmatpush1.bf16.msra.mxu0 %v4433
    %5008 = vmatprep.subr.bf16.mxu0 0
    %5009 = vmatpush1.bf16.msra.mxu0 %v4435
    %5010 = vmatprep.subr.bf16.mxu0 0
    %5011 = vmatpush1.bf16.msra.mxu0 %v4437
    %5012 = vmatprep.subr.bf16.mxu0 0
    %5013 = vmatpush1.bf16.msra.mxu0 %v4439
    %5014 = vmatprep.subr.bf16.mxu0 0
    %5015 = vmatpush1.bf16.msra.mxu0 0
    %5016 = vmatprep.subr.bf16.mxu0 0
    %5017 = vmatpush1.bf16.msra.mxu0 0
    %5018 = vmatprep.subr.bf16.mxu0 0
    %5019 = vmatpush1.bf16.msra.mxu0 0
    %5020 = vmatprep.subr.bf16.mxu0 0
    %5021 = vmatpush1.bf16.msra.mxu0 0
    %5022 = vmatprep.subr.bf16.mxu0 0
    %5023 = vmatpush1.bf16.msra.mxu0 0
    %5024 = vmatprep.subr.bf16.mxu0 0
    %5025 = vmatpush1.bf16.msra.mxu0 0
    %5026 = vmatprep.subr.bf16.mxu0 0
    %5027 = vmatpush1.bf16.msra.mxu0 0
    %5028 = vmatprep.subr.bf16.mxu0 0
    %5029 = vmatpush1.bf16.msra.mxu0 0
    %5030 = vmatprep.subr.bf16.mxu0 0
    %5031 = vmatpush1.bf16.msra.mxu0 0
    %5032 = vmatprep.subr.bf16.mxu0 0
    %5033 = vmatpush1.bf16.msra.mxu0 0
    %5034 = vmatprep.subr.bf16.mxu0 0
    %5035 = vmatpush1.bf16.msra.mxu0 0
    %5036 = vmatprep.subr.bf16.mxu0 0
    %5037 = vmatpush1.bf16.msra.mxu0 0
    %5038 = vmatprep.mubr.bf16.mxu0 0
    %5039 = vmatmul.mubr.bf16.gmra.mrb[0].mxu0 %v4789
    %v5040 = vpop.f32.mrb[0].mxu0
    %v5041 = vadd.f32 %v4944, %v5040
    %v5042 = vpop.f32.mrb[0].mxu0
    %v5043 = vpop.f32.mrb[0].mxu0
    %v5044 = vadd.f32 %v4947, %v5043
    %v5045 = vpop.f32.mrb[0].mxu0
    %5046 = vmatprep.mubr.bf16.mxu0 0
    %5047 = vmatmul.mubr.bf16.gmra.mrb[0].mxu0 %v4792
    %v5048 = vpop.f32.mrb[0].mxu0
    %v5049 = vadd.f32 %v4952, %v5048
    %v5050 = vpop.f32.mrb[0].mxu0
    %v5051 = vpop.f32.mrb[0].mxu0
    %v5052 = vadd.f32 %v4955, %v5051
    %v5053 = vpop.f32.mrb[0].mxu0
    %5054 = vmatprep.mubr.bf16.mxu0 0
    %5055 = vmatmul.mubr.bf16.gmra.mrb[0].mxu0 %v4795
    %v5056 = vpop.f32.mrb[0].mxu0
    %v5057 = vadd.f32 %v4960, %v5056
    %v5058 = vpop.f32.mrb[0].mxu0
    %v5059 = vpop.f32.mrb[0].mxu0
    %v5060 = vadd.f32 %v4963, %v5059
    %v5061 = vpop.f32.mrb[0].mxu0
    %5062 = vmatprep.mubr.bf16.mxu0 0
    %5063 = vmatmul.mubr.bf16.gmra.mrb[0].mxu0 %v4798
    %v5064 = vpop.f32.mrb[0].mxu0
    %v5065 = vadd.f32 %v4968, %v5064
    %v5066 = vpop.f32.mrb[0].mxu0
    %v5067 = vpop.f32.mrb[0].mxu0
    %v5068 = vadd.f32 %v4971, %v5067
    %v5069 = vpop.f32.mrb[0].mxu0
    %5070 = vmatprep.mubr.bf16.mxu0 0
    %5071 = vmatmul.mubr.bf16.gmra.mrb[0].mxu0 %v4801
    %v5072 = vpop.f32.mrb[0].mxu0
    %v5073 = vadd.f32 %v4976, %v5072
    %v5074 = vpop.f32.mrb[0].mxu0
    %v5075 = vpop.f32.mrb[0].mxu0
    %v5076 = vadd.f32 %v4979, %v5075
    %v5077 = vpop.f32.mrb[0].mxu0
    %5078 = vmatprep.mubr.bf16.mxu0 0
    %5079 = vmatmul.mubr.bf16.gmra.mrb[0].mxu0 %v4804
    %v5080 = vpop.f32.mrb[0].mxu0
    %v5081 = vadd.f32 %v4984, %v5080
    %v5082 = vpop.f32.mrb[0].mxu0
    %v5083 = vpop.f32.mrb[0].mxu0
    %v5084 = vadd.f32 %v4987, %v5083
    %v5085 = vpop.f32.mrb[0].mxu0
    %5086 = vmatprep.mubr.bf16.mxu0 0
    %5087 = vmatmul.mubr.bf16.gmra.mrb[0].mxu0 %v4807
    %v5088 = vpop.f32.mrb[0].mxu0
    %v5089 = vadd.f32 %v4992, %v5088
    %v5090 = vpop.f32.mrb[0].mxu0
    %v5091 = vpop.f32.mrb[0].mxu0
    %v5092 = vadd.f32 %v4995, %v5091
    %v5093 = vpop.f32.mrb[0].mxu0
    %5094 = vmatprep.mubr.bf16.mxu0 0
    %5095 = vmatmul.mubr.bf16.gmra.mrb[0].mxu0 %v4810
    %v5096 = vpop.f32.mrb[0].mxu0
    %v5097 = vadd.f32 %v5000, %v5096
    %v5098 = vpop.f32.mrb[0].mxu0
    %v5099 = vpop.f32.mrb[0].mxu0
    %v5100 = vadd.f32 %v5003, %v5099
    %v5101 = vpop.f32.mrb[0].mxu0
    %5102 = vdwg.mxu0
    %v5103 = vmax.f32 %v5041, 0.0
    %v5104 = vmax.f32 %v5044, 0.0
    %v5105 = vmax.f32 %v5049, 0.0
    %v5106 = vmax.f32 %v5052, 0.0
    %v5107 = vmax.f32 %v5057, 0.0
    %v5108 = vmax.f32 %v5060, 0.0
    %v5109 = vmax.f32 %v5065, 0.0
    %v5110 = vmax.f32 %v5068, 0.0
    %v5111 = vmax.f32 %v5073, 0.0
    %v5112 = vmax.f32 %v5076, 0.0
    %v5113 = vmax.f32 %v5081, 0.0
    %v5114 = vmax.f32 %v5084, 0.0
    %v5115 = vmax.f32 %v5089, 0.0
    %v5116 = vmax.f32 %v5092, 0.0
    %v5117 = vmax.f32 %v5097, 0.0
    %v5118 = vmax.f32 %v5100, 0.0
    %v5119 = vpack.c.bf16 %v5104, %v5103
    %v5120 = vpack.c.bf16 %v5106, %v5105
    %v5121 = vpack.c.bf16 %v5108, %v5107
    %v5122 = vpack.c.bf16 %v5110, %v5109
    %v5123 = vpack.c.bf16 %v5112, %v5111
    %v5124 = vpack.c.bf16 %v5114, %v5113
    %v5125 = vpack.c.bf16 %v5116, %v5115
    %v5126 = vpack.c.bf16 %v5118, %v5117
    %5135 = vrot.lane.b32.xlu0 %v5119, 3
    %v5136 = vpop.permute.xlu0 %5135
    %5137 = vrot.lane.b32.xlu0 %v5120, 3
    %v5138 = vpop.permute.xlu0 %5137
    %5139 = vrot.lane.b32.xlu0 %v5121, 3
    %v5140 = vpop.permute.xlu0 %5139
    %5141 = vrot.lane.b32.xlu0 %v5122, 3
    %v5142 = vpop.permute.xlu0 %5141
    %5143 = vrot.lane.b32.xlu0 %v5123, 3
    %v5144 = vpop.permute.xlu0 %5143
    %5145 = vrot.lane.b32.xlu0 %v5124, 3
    %v5146 = vpop.permute.xlu0 %5145
    %5147 = vrot.lane.b32.xlu0 %v5125, 3
    %v5148 = vpop.permute.xlu0 %5147
    %5149 = vrot.lane.b32.xlu0 %v5126, 3
    %v5150 = vpop.permute.xlu0 %5149
    %v5152 = vsel %vm362, 0, %v5136
    %v5154 = vsel %vm362, 0, %v5138
    %v5156 = vsel %vm362, 0, %v5140
    %v5158 = vsel %vm362, 0, %v5142
    %v5160 = vsel %vm362, 0, %v5144
    %v5162 = vsel %vm362, 0, %v5146
    %v5164 = vsel %vm362, 0, %v5148
    %v5166 = vsel %vm362, 0, %v5150
    %v5167 = vsel %vm388, %v5152, 0
    %v5169 = vsel %vm388, %v5154, 0
    %v5171 = vsel %vm388, %v5156, 0
    %v5173 = vsel %vm388, %v5158, 0
    %v5175 = vsel %vm388, %v5160, 0
    %v5177 = vsel %vm388, %v5162, 0
    %v5179 = vsel %vm388, %v5164, 0
    %v5181 = vsel %vm388, %v5166, 0
    %v5183 = vmul.bf16 %v5167, %v419
    %v5184 = vmul.bf16 %v5169, %v419
    %v5185 = vmul.bf16 %v5171, %v419
    %v5186 = vmul.bf16 %v5173, %v419
    %v5187 = vmul.bf16 %v5175, %v419
    %v5188 = vmul.bf16 %v5177, %v419
    %v5189 = vmul.bf16 %v5179, %v419
    %v5190 = vmul.bf16 %v5181, %v419
    %v5191 = vmul.bf16 %v5167, %v441
    %v5192 = vmul.bf16 %v5169, %v441
    %v5193 = vmul.bf16 %v5171, %v441
    %v5194 = vmul.bf16 %v5173, %v441
    %v5195 = vmul.bf16 %v5175, %v441
    %v5196 = vmul.bf16 %v5177, %v441
    %v5197 = vmul.bf16 %v5179, %v441
    %v5198 = vmul.bf16 %v5181, %v441
    %v5199 = vmul.bf16 %v5167, %v464
    %v5200 = vmul.bf16 %v5169, %v464
    %v5201 = vmul.bf16 %v5171, %v464
    %v5202 = vmul.bf16 %v5173, %v464
    %v5203 = vmul.bf16 %v5175, %v464
    %v5204 = vmul.bf16 %v5177, %v464
    %v5205 = vmul.bf16 %v5179, %v464
    %v5206 = vmul.bf16 %v5181, %v464
    %v5207 = vmul.bf16 %v5167, %v487
    %v5208 = vmul.bf16 %v5169, %v487
    %v5209 = vmul.bf16 %v5171, %v487
    %v5210 = vmul.bf16 %v5173, %v487
    %v5211 = vmul.bf16 %v5175, %v487
    %v5212 = vmul.bf16 %v5177, %v487
    %v5213 = vmul.bf16 %v5179, %v487
    %v5214 = vmul.bf16 %v5181, %v487
    %v5215 = vmul.bf16 %v5167, %v510
    %v5216 = vmul.bf16 %v5169, %v510
    %v5217 = vmul.bf16 %v5171, %v510
    %v5218 = vmul.bf16 %v5173, %v510
    %v5219 = vmul.bf16 %v5175, %v510
    %v5220 = vmul.bf16 %v5177, %v510
    %v5221 = vmul.bf16 %v5179, %v510
    %v5222 = vmul.bf16 %v5181, %v510
    %v5223 = vmul.bf16 %v5167, %v533
    %v5224 = vmul.bf16 %v5169, %v533
    %v5225 = vmul.bf16 %v5171, %v533
    %v5226 = vmul.bf16 %v5173, %v533
    %v5227 = vmul.bf16 %v5175, %v533
    %v5228 = vmul.bf16 %v5177, %v533
    %v5229 = vmul.bf16 %v5179, %v533
    %v5230 = vmul.bf16 %v5181, %v533
    %v5231 = vmul.bf16 %v5167, %v556
    %v5232 = vmul.bf16 %v5169, %v556
    %v5233 = vmul.bf16 %v5171, %v556
    %v5234 = vmul.bf16 %v5173, %v556
    %v5235 = vmul.bf16 %v5175, %v556
    %v5236 = vmul.bf16 %v5177, %v556
    %v5237 = vmul.bf16 %v5179, %v556
    %v5238 = vmul.bf16 %v5181, %v556
    %v5239 = vmul.bf16 %v5167, %v579
    %v5240 = vmul.bf16 %v5169, %v579
    %v5241 = vmul.bf16 %v5171, %v579
    %v5242 = vmul.bf16 %v5173, %v579
    %v5243 = vmul.bf16 %v5175, %v579
    %v5244 = vmul.bf16 %v5177, %v579
    %v5245 = vmul.bf16 %v5179, %v579
    %v5246 = vmul.bf16 %v5181, %v579
    %5255 = vrot.lane.b32.xlu0 %v5191, 127
    %v5256 = vpop.permute.xlu0 %5255
    %5257 = vrot.lane.b32.xlu0 %v5192, 127
    %v5258 = vpop.permute.xlu0 %5257
    %5259 = vrot.lane.b32.xlu0 %v5193, 127
    %v5260 = vpop.permute.xlu0 %5259
    %5261 = vrot.lane.b32.xlu0 %v5194, 127
    %v5262 = vpop.permute.xlu0 %5261
    %5263 = vrot.lane.b32.xlu0 %v5195, 127
    %v5264 = vpop.permute.xlu0 %5263
    %5265 = vrot.lane.b32.xlu0 %v5196, 127
    %v5266 = vpop.permute.xlu0 %5265
    %5267 = vrot.lane.b32.xlu0 %v5197, 127
    %v5268 = vpop.permute.xlu0 %5267
    %5269 = vrot.lane.b32.xlu0 %v5198, 127
    %v5270 = vpop.permute.xlu0 %5269
    %5287 = vrot.lane.b32.xlu0 %v5199, 126
    %v5288 = vpop.permute.xlu0 %5287
    %5289 = vrot.lane.b32.xlu0 %v5200, 126
    %v5290 = vpop.permute.xlu0 %5289
    %5291 = vrot.lane.b32.xlu0 %v5201, 126
    %v5292 = vpop.permute.xlu0 %5291
    %5293 = vrot.lane.b32.xlu0 %v5202, 126
    %v5294 = vpop.permute.xlu0 %5293
    %5295 = vrot.lane.b32.xlu0 %v5203, 126
    %v5296 = vpop.permute.xlu0 %5295
    %5297 = vrot.lane.b32.xlu0 %v5204, 126
    %v5298 = vpop.permute.xlu0 %5297
    %5299 = vrot.lane.b32.xlu0 %v5205, 126
    %v5300 = vpop.permute.xlu0 %5299
    %5301 = vrot.lane.b32.xlu0 %v5206, 126
    %v5302 = vpop.permute.xlu0 %5301
    %5319 = vrot.lane.b32.xlu0 %v5207, 126
    %v5320 = vpop.permute.xlu0 %5319
    %5321 = vrot.lane.b32.xlu0 %v5208, 126
    %v5322 = vpop.permute.xlu0 %5321
    %5323 = vrot.lane.b32.xlu0 %v5209, 126
    %v5324 = vpop.permute.xlu0 %5323
    %5325 = vrot.lane.b32.xlu0 %v5210, 126
    %v5326 = vpop.permute.xlu0 %5325
    %5327 = vrot.lane.b32.xlu0 %v5211, 126
    %v5328 = vpop.permute.xlu0 %5327
    %5329 = vrot.lane.b32.xlu0 %v5212, 126
    %v5330 = vpop.permute.xlu0 %5329
    %5331 = vrot.lane.b32.xlu0 %v5213, 126
    %v5332 = vpop.permute.xlu0 %5331
    %5333 = vrot.lane.b32.xlu0 %v5214, 126
    %v5334 = vpop.permute.xlu0 %5333
    %5351 = vrot.lane.b32.xlu0 %v5167, 125
    %v5352 = vpop.permute.xlu0 %5351
    %5353 = vrot.lane.b32.xlu0 %v5169, 125
    %v5354 = vpop.permute.xlu0 %5353
    %5355 = vrot.lane.b32.xlu0 %v5171, 125
    %v5356 = vpop.permute.xlu0 %5355
    %5357 = vrot.lane.b32.xlu0 %v5173, 125
    %v5358 = vpop.permute.xlu0 %5357
    %5359 = vrot.lane.b32.xlu0 %v5175, 125
    %v5360 = vpop.permute.xlu0 %5359
    %5361 = vrot.lane.b32.xlu0 %v5177, 125
    %v5362 = vpop.permute.xlu0 %5361
    %5363 = vrot.lane.b32.xlu0 %v5179, 125
    %v5364 = vpop.permute.xlu0 %5363
    %5365 = vrot.lane.b32.xlu0 %v5181, 125
    %v5366 = vpop.permute.xlu0 %5365
    %5383 = vrot.lane.b32.xlu0 %v5215, 124
    %v5384 = vpop.permute.xlu0 %5383
    %5385 = vrot.lane.b32.xlu0 %v5216, 124
    %v5386 = vpop.permute.xlu0 %5385
    %5387 = vrot.lane.b32.xlu0 %v5217, 124
    %v5388 = vpop.permute.xlu0 %5387
    %5389 = vrot.lane.b32.xlu0 %v5218, 124
    %v5390 = vpop.permute.xlu0 %5389
    %5391 = vrot.lane.b32.xlu0 %v5219, 124
    %v5392 = vpop.permute.xlu0 %5391
    %5393 = vrot.lane.b32.xlu0 %v5220, 124
    %v5394 = vpop.permute.xlu0 %5393
    %5395 = vrot.lane.b32.xlu0 %v5221, 124
    %v5396 = vpop.permute.xlu0 %5395
    %5397 = vrot.lane.b32.xlu0 %v5222, 124
    %v5398 = vpop.permute.xlu0 %5397
    %5415 = vrot.lane.b32.xlu0 %v5223, 124
    %v5416 = vpop.permute.xlu0 %5415
    %5417 = vrot.lane.b32.xlu0 %v5224, 124
    %v5418 = vpop.permute.xlu0 %5417
    %5419 = vrot.lane.b32.xlu0 %v5225, 124
    %v5420 = vpop.permute.xlu0 %5419
    %5421 = vrot.lane.b32.xlu0 %v5226, 124
    %v5422 = vpop.permute.xlu0 %5421
    %5423 = vrot.lane.b32.xlu0 %v5227, 124
    %v5424 = vpop.permute.xlu0 %5423
    %5425 = vrot.lane.b32.xlu0 %v5228, 124
    %v5426 = vpop.permute.xlu0 %5425
    %5427 = vrot.lane.b32.xlu0 %v5229, 124
    %v5428 = vpop.permute.xlu0 %5427
    %5429 = vrot.lane.b32.xlu0 %v5230, 124
    %v5430 = vpop.permute.xlu0 %5429
    %5447 = vrot.lane.b32.xlu0 %v5231, 123
    %v5448 = vpop.permute.xlu0 %5447
    %5449 = vrot.lane.b32.xlu0 %v5232, 123
    %v5450 = vpop.permute.xlu0 %5449
    %5451 = vrot.lane.b32.xlu0 %v5233, 123
    %v5452 = vpop.permute.xlu0 %5451
    %5453 = vrot.lane.b32.xlu0 %v5234, 123
    %v5454 = vpop.permute.xlu0 %5453
    %5455 = vrot.lane.b32.xlu0 %v5235, 123
    %v5456 = vpop.permute.xlu0 %5455
    %5457 = vrot.lane.b32.xlu0 %v5236, 123
    %v5458 = vpop.permute.xlu0 %5457
    %5459 = vrot.lane.b32.xlu0 %v5237, 123
    %v5460 = vpop.permute.xlu0 %5459
    %5461 = vrot.lane.b32.xlu0 %v5238, 123
    %v5462 = vpop.permute.xlu0 %5461
    %5479 = vrot.lane.b32.xlu0 %v5239, 122
    %v5480 = vpop.permute.xlu0 %5479
    %5481 = vrot.lane.b32.xlu0 %v5240, 122
    %v5482 = vpop.permute.xlu0 %5481
    %5483 = vrot.lane.b32.xlu0 %v5241, 122
    %v5484 = vpop.permute.xlu0 %5483
    %5485 = vrot.lane.b32.xlu0 %v5242, 122
    %v5486 = vpop.permute.xlu0 %5485
    %5487 = vrot.lane.b32.xlu0 %v5243, 122
    %v5488 = vpop.permute.xlu0 %5487
    %5489 = vrot.lane.b32.xlu0 %v5244, 122
    %v5490 = vpop.permute.xlu0 %5489
    %5491 = vrot.lane.b32.xlu0 %v5245, 122
    %v5492 = vpop.permute.xlu0 %5491
    %5493 = vrot.lane.b32.xlu0 %v5246, 122
    %v5494 = vpop.permute.xlu0 %5493
    %v5503 = vld [vmem:[#allocation22] sm:$0xff]
    %v5504 = vld [vmem:[#allocation22 + $0x8] sm:$0xff]
    %v5505 = vld [vmem:[#allocation22 + $0x10] sm:$0xff]
    %v5506 = vld [vmem:[#allocation22 + $0x18] sm:$0xff]
    %v5507 = vld [vmem:[#allocation22 + $0x20] sm:$0xf]
    %v5508 = vld [vmem:[#allocation22 + $0x24] sm:$0xff]
    %v5509 = vld [vmem:[#allocation22 + $0x2c] sm:$0xff]
    %v5510 = vld [vmem:[#allocation22 + $0x34] sm:$0xff]
    %v5511 = vld [vmem:[#allocation22 + $0x3c] sm:$0xff]
    %v5512 = vld [vmem:[#allocation22 + $0x44] sm:$0xf]
    %v5513 = vld [vmem:[#allocation22 + $0x48] sm:$0xff]
    %v5514 = vld [vmem:[#allocation22 + $0x50] sm:$0xff]
    %v5515 = vld [vmem:[#allocation22 + $0x58] sm:$0xff]
    %v5516 = vld [vmem:[#allocation22 + $0x60] sm:$0xff]
    %v5517 = vld [vmem:[#allocation22 + $0x68] sm:$0xf]
    %v5518 = vld [vmem:[#allocation22 + $0x6c] sm:$0xff]
    %v5519 = vld [vmem:[#allocation22 + $0x74] sm:$0xff]
    %v5520 = vld [vmem:[#allocation22 + $0x7c] sm:$0xff]
    %v5521 = vld [vmem:[#allocation22 + $0x84] sm:$0xff]
    %v5522 = vld [vmem:[#allocation22 + $0x8c] sm:$0xf]
    %v5523 = vld [vmem:[#allocation22 + $0x90] sm:$0xff]
    %v5524 = vld [vmem:[#allocation22 + $0x98] sm:$0xff]
    %v5525 = vld [vmem:[#allocation22 + $0xa0] sm:$0xff]
    %v5526 = vld [vmem:[#allocation22 + $0xa8] sm:$0xff]
    %v5527 = vld [vmem:[#allocation22 + $0xb0] sm:$0xf]
    %v5528 = vld [vmem:[#allocation22 + $0xb4] sm:$0xff]
    %v5529 = vld [vmem:[#allocation22 + $0xbc] sm:$0xff]
    %v5530 = vld [vmem:[#allocation22 + $0xc4] sm:$0xff]
    %v5531 = vld [vmem:[#allocation22 + $0xcc] sm:$0xff]
    %v5532 = vld [vmem:[#allocation22 + $0xd4] sm:$0xf]
    %v5533 = vld [vmem:[#allocation22 + $0xd8] sm:$0xff]
    %v5534 = vld [vmem:[#allocation22 + $0xe0] sm:$0xff]
    %v5535 = vld [vmem:[#allocation22 + $0xe8] sm:$0xff]
    %v5536 = vld [vmem:[#allocation22 + $0xf0] sm:$0xff]
    %v5537 = vld [vmem:[#allocation22 + $0xf8] sm:$0xf]
    %v5538 = vld [vmem:[#allocation22 + $0xfc] sm:$0xff]
    %v5539 = vld [vmem:[#allocation22 + $0x104] sm:$0xff]
    %v5540 = vld [vmem:[#allocation22 + $0x10c] sm:$0xff]
    %v5541 = vld [vmem:[#allocation22 + $0x114] sm:$0xff]
    %v5542 = vld [vmem:[#allocation22 + $0x11c] sm:$0xf]
    %v5543 = vld [vmem:[#allocation22 + $0x120] sm:$0xff]
    %v5544 = vld [vmem:[#allocation22 + $0x128] sm:$0xff]
    %v5545 = vld [vmem:[#allocation22 + $0x130] sm:$0xff]
    %v5546 = vld [vmem:[#allocation22 + $0x138] sm:$0xff]
    %v5547 = vld [vmem:[#allocation22 + $0x140] sm:$0xf]
    %v5548 = vld [vmem:[#allocation22 + $0x144] sm:$0xff]
    %v5549 = vld [vmem:[#allocation22 + $0x14c] sm:$0xff]
    %v5550 = vld [vmem:[#allocation22 + $0x154] sm:$0xff]
    %v5551 = vld [vmem:[#allocation22 + $0x15c] sm:$0xff]
    %v5552 = vld [vmem:[#allocation22 + $0x164] sm:$0xf]
    %v5553 = vld [vmem:[#allocation22 + $0x168] sm:$0xff]
    %v5554 = vld [vmem:[#allocation22 + $0x170] sm:$0xff]
    %v5555 = vld [vmem:[#allocation22 + $0x178] sm:$0xff]
    %v5556 = vld [vmem:[#allocation22 + $0x180] sm:$0xff]
    %v5557 = vld [vmem:[#allocation22 + $0x188] sm:$0xf]
    %v5558 = vld [vmem:[#allocation22 + $0x18c] sm:$0xff]
    %v5559 = vld [vmem:[#allocation22 + $0x194] sm:$0xff]
    %v5560 = vld [vmem:[#allocation22 + $0x19c] sm:$0xff]
    %v5561 = vld [vmem:[#allocation22 + $0x1a4] sm:$0xff]
    %v5562 = vld [vmem:[#allocation22 + $0x1ac] sm:$0xf]
    %v5563 = vld [vmem:[#allocation22 + $0x1b0] sm:$0xff]
    %v5564 = vld [vmem:[#allocation22 + $0x1b8] sm:$0xff]
    %v5565 = vld [vmem:[#allocation22 + $0x1c0] sm:$0xff]
    %v5566 = vld [vmem:[#allocation22 + $0x1c8] sm:$0xff]
    %v5567 = vld [vmem:[#allocation22 + $0x1d0] sm:$0xf]
    %v5568 = vld [vmem:[#allocation22 + $0x1d4] sm:$0xff]
    %v5569 = vld [vmem:[#allocation22 + $0x1dc] sm:$0xff]
    %v5570 = vld [vmem:[#allocation22 + $0x1e4] sm:$0xff]
    %v5571 = vld [vmem:[#allocation22 + $0x1ec] sm:$0xff]
    %v5572 = vld [vmem:[#allocation22 + $0x1f4] sm:$0xf]
    %v5573 = vld [vmem:[#allocation22 + $0x1f8] sm:$0xff]
    %v5574 = vld [vmem:[#allocation22 + $0x200] sm:$0xff]
    %v5575 = vld [vmem:[#allocation22 + $0x208] sm:$0xff]
    %v5576 = vld [vmem:[#allocation22 + $0x210] sm:$0xff]
    %v5577 = vld [vmem:[#allocation22 + $0x218] sm:$0xf]
    %v5578 = vld [vmem:[#allocation22 + $0x21c] sm:$0xff]
    %v5579 = vld [vmem:[#allocation22 + $0x224] sm:$0xff]
    %v5580 = vld [vmem:[#allocation22 + $0x22c] sm:$0xff]
    %v5581 = vld [vmem:[#allocation22 + $0x234] sm:$0xff]
    %v5582 = vld [vmem:[#allocation22 + $0x23c] sm:$0xf]
    %v5583 = vld [vmem:[#allocation22 + $0x240] sm:$0xff]
    %v5584 = vld [vmem:[#allocation22 + $0x248] sm:$0xff]
    %v5585 = vld [vmem:[#allocation22 + $0x250] sm:$0xff]
    %v5586 = vld [vmem:[#allocation22 + $0x258] sm:$0xff]
    %v5587 = vld [vmem:[#allocation22 + $0x260] sm:$0xf]
    %v5588 = vld [vmem:[#allocation22 + $0x264] sm:$0xff]
    %v5589 = vld [vmem:[#allocation22 + $0x26c] sm:$0xff]
    %v5590 = vld [vmem:[#allocation22 + $0x274] sm:$0xff]
    %v5591 = vld [vmem:[#allocation22 + $0x27c] sm:$0xff]
    %v5592 = vld [vmem:[#allocation22 + $0x284] sm:$0xf]
    %v5593 = vld [vmem:[#allocation22 + $0x288] sm:$0xff]
    %v5594 = vld [vmem:[#allocation22 + $0x290] sm:$0xff]
    %v5595 = vld [vmem:[#allocation22 + $0x298] sm:$0xff]
    %v5596 = vld [vmem:[#allocation22 + $0x2a0] sm:$0xff]
    %v5597 = vld [vmem:[#allocation22 + $0x2a8] sm:$0xf]
    %v5598 = vld [vmem:[#allocation22 + $0x2ac] sm:$0xff]
    %v5599 = vld [vmem:[#allocation22 + $0x2b4] sm:$0xff]
    %v5600 = vld [vmem:[#allocation22 + $0x2bc] sm:$0xff]
    %v5601 = vld [vmem:[#allocation22 + $0x2c4] sm:$0xff]
    %v5602 = vld [vmem:[#allocation22 + $0x2cc] sm:$0xf]
    %v5603 = vld [vmem:[#allocation22 + $0x2d0] sm:$0xff]
    %v5604 = vld [vmem:[#allocation22 + $0x2d8] sm:$0xff]
    %v5605 = vld [vmem:[#allocation22 + $0x2e0] sm:$0xff]
    %v5606 = vld [vmem:[#allocation22 + $0x2e8] sm:$0xff]
    %v5607 = vld [vmem:[#allocation22 + $0x2f0] sm:$0xf]
    %v5608 = vld [vmem:[#allocation22 + $0x2f4] sm:$0xff]
    %v5609 = vld [vmem:[#allocation22 + $0x2fc] sm:$0xff]
    %v5610 = vld [vmem:[#allocation22 + $0x304] sm:$0xff]
    %v5611 = vld [vmem:[#allocation22 + $0x30c] sm:$0xff]
    %v5612 = vld [vmem:[#allocation22 + $0x314] sm:$0xf]
    %v5613 = vld [vmem:[#allocation22 + $0x318] sm:$0xff]
    %v5614 = vld [vmem:[#allocation22 + $0x320] sm:$0xff]
    %v5615 = vld [vmem:[#allocation22 + $0x328] sm:$0xff]
    %v5616 = vld [vmem:[#allocation22 + $0x330] sm:$0xff]
    %v5617 = vld [vmem:[#allocation22 + $0x338] sm:$0xf]
    %v5618 = vld [vmem:[#allocation22 + $0x33c] sm:$0xff]
    %v5619 = vld [vmem:[#allocation22 + $0x344] sm:$0xff]
    %v5620 = vld [vmem:[#allocation22 + $0x34c] sm:$0xff]
    %v5621 = vld [vmem:[#allocation22 + $0x354] sm:$0xff]
    %v5622 = vld [vmem:[#allocation22 + $0x35c] sm:$0xf]
    %v5623 = vld [vmem:[#allocation23] sm:$0xff]
    %v5624 = vld [vmem:[#allocation23 + $0x8] sm:$0xff]
    %v5625 = vld [vmem:[#allocation23 + $0x10] sm:$0xff]
    %v5626 = vld [vmem:[#allocation23 + $0x18] sm:$0xff]
    %v5627 = vld [vmem:[#allocation23 + $0x20] sm:$0xff]
    %v5628 = vld [vmem:[#allocation23 + $0x28] sm:$0xff]
    %v5629 = vld [vmem:[#allocation23 + $0x30] sm:$0xff]
    %v5630 = vld [vmem:[#allocation23 + $0x38] sm:$0xff]
    %v5631 = vld [vmem:[#allocation23 + $0x40] sm:$0xff]
    %v5632 = vld [vmem:[#allocation23 + $0x48] sm:$0xff]
    %v5633 = vld [vmem:[#allocation23 + $0x50] sm:$0xff]
    %v5634 = vld [vmem:[#allocation23 + $0x58] sm:$0xff]
    %v5635 = vld [vmem:[#allocation23 + $0x60] sm:$0xff]
    %v5636 = vld [vmem:[#allocation23 + $0x68] sm:$0xff]
    %v5637 = vld [vmem:[#allocation23 + $0x70] sm:$0xff]
    %v5638 = vld [vmem:[#allocation23 + $0x78] sm:$0xff]
    %v5639 = vld [vmem:[#allocation23 + $0x80] sm:$0xff]
    %v5640 = vld [vmem:[#allocation23 + $0x88] sm:$0xff]
    %v5641 = vld [vmem:[#allocation23 + $0x90] sm:$0xff]
    %v5642 = vld [vmem:[#allocation23 + $0x98] sm:$0xff]
    %v5643 = vld [vmem:[#allocation23 + $0xa0] sm:$0xff]
    %v5644 = vld [vmem:[#allocation23 + $0xa8] sm:$0xff]
    %v5645 = vld [vmem:[#allocation23 + $0xb0] sm:$0xff]
    %v5646 = vld [vmem:[#allocation23 + $0xb8] sm:$0xff]
    %5648 = vset.pattern.permute.xlu0 0
    %5649 = vperm.xlu0 %5648, %v5623
    %v5650 = vpop.permute.xlu0 %5649
    %5653 = vset.pattern.permute.xlu0 0
    %5654 = vperm.xlu0 %5653, %v5624
    %v5655 = vpop.permute.xlu0 %5654
    %5658 = vset.pattern.permute.xlu0 0
    %5659 = vperm.xlu0 %5658, %v5625
    %v5660 = vpop.permute.xlu0 %5659
    %5663 = vset.pattern.permute.xlu0 0
    %5664 = vperm.xlu0 %5663, %v5626
    %v5665 = vpop.permute.xlu0 %5664
    %5668 = vset.pattern.permute.xlu0 0
    %5669 = vperm.xlu0 %5668, %v5627
    %v5670 = vpop.permute.xlu0 %5669
    %5673 = vset.pattern.permute.xlu0 0
    %5674 = vperm.xlu0 %5673, %v5628
    %v5675 = vpop.permute.xlu0 %5674
    %5678 = vset.pattern.permute.xlu0 0
    %5679 = vperm.xlu0 %5678, %v5629
    %v5680 = vpop.permute.xlu0 %5679
    %5683 = vset.pattern.permute.xlu0 0
    %5684 = vperm.xlu0 %5683, %v5630
    %v5685 = vpop.permute.xlu0 %5684
    %5688 = vset.pattern.permute.xlu0 0
    %5689 = vperm.xlu0 %5688, %v5631
    %v5690 = vpop.permute.xlu0 %5689
    %5693 = vset.pattern.permute.xlu0 0
    %5694 = vperm.xlu0 %5693, %v5632
    %v5695 = vpop.permute.xlu0 %5694
    %5698 = vset.pattern.permute.xlu0 0
    %5699 = vperm.xlu0 %5698, %v5633
    %v5700 = vpop.permute.xlu0 %5699
    %5703 = vset.pattern.permute.xlu0 0
    %5704 = vperm.xlu0 %5703, %v5634
    %v5705 = vpop.permute.xlu0 %5704
    %5708 = vset.pattern.permute.xlu0 0
    %5709 = vperm.xlu0 %5708, %v5635
    %v5710 = vpop.permute.xlu0 %5709
    %5713 = vset.pattern.permute.xlu0 0
    %5714 = vperm.xlu0 %5713, %v5636
    %v5715 = vpop.permute.xlu0 %5714
    %5718 = vset.pattern.permute.xlu0 0
    %5719 = vperm.xlu0 %5718, %v5637
    %v5720 = vpop.permute.xlu0 %5719
    %5723 = vset.pattern.permute.xlu0 0
    %5724 = vperm.xlu0 %5723, %v5638
    %v5725 = vpop.permute.xlu0 %5724
    %5728 = vset.pattern.permute.xlu0 0
    %5729 = vperm.xlu0 %5728, %v5639
    %v5730 = vpop.permute.xlu0 %5729
    %5733 = vset.pattern.permute.xlu0 0
    %5734 = vperm.xlu0 %5733, %v5640
    %v5735 = vpop.permute.xlu0 %5734
    %5738 = vset.pattern.permute.xlu0 0
    %5739 = vperm.xlu0 %5738, %v5641
    %v5740 = vpop.permute.xlu0 %5739
    %5743 = vset.pattern.permute.xlu0 0
    %5744 = vperm.xlu0 %5743, %v5642
    %v5745 = vpop.permute.xlu0 %5744
    %5748 = vset.pattern.permute.xlu0 0
    %5749 = vperm.xlu0 %5748, %v5643
    %v5750 = vpop.permute.xlu0 %5749
    %5753 = vset.pattern.permute.xlu0 0
    %5754 = vperm.xlu0 %5753, %v5644
    %v5755 = vpop.permute.xlu0 %5754
    %5758 = vset.pattern.permute.xlu0 0
    %5759 = vperm.xlu0 %5758, %v5645
    %v5760 = vpop.permute.xlu0 %5759
    %5763 = vset.pattern.permute.xlu0 0
    %5764 = vperm.xlu0 %5763, %v5646
    %v5765 = vpop.permute.xlu0 %5764
    %v5887 = vunpack.c.l.b16 %v5503
    %v5888 = vunpack.c.h.b16 %v5503
    %v5889 = vunpack.c.l.b16 %v5504
    %v5890 = vunpack.c.h.b16 %v5504
    %v5891 = vunpack.c.l.b16 %v5505
    %v5892 = vunpack.c.h.b16 %v5505
    %v5893 = vunpack.c.l.b16 %v5506
    %v5894 = vunpack.c.h.b16 %v5506
    %v5895 = vunpack.c.l.b16 %v5507
    %v5896 = vunpack.c.l.b16 %v5508
    %v5897 = vunpack.c.h.b16 %v5508
    %v5898 = vunpack.c.l.b16 %v5509
    %v5899 = vunpack.c.h.b16 %v5509
    %v5900 = vunpack.c.l.b16 %v5510
    %v5901 = vunpack.c.h.b16 %v5510
    %v5902 = vunpack.c.l.b16 %v5511
    %v5903 = vunpack.c.h.b16 %v5511
    %v5904 = vunpack.c.l.b16 %v5512
    %v5905 = vunpack.c.l.b16 %v5513
    %v5906 = vunpack.c.h.b16 %v5513
    %v5907 = vunpack.c.l.b16 %v5514
    %v5908 = vunpack.c.h.b16 %v5514
    %v5909 = vunpack.c.l.b16 %v5515
    %v5910 = vunpack.c.h.b16 %v5515
    %v5911 = vunpack.c.l.b16 %v5516
    %v5912 = vunpack.c.h.b16 %v5516
    %v5913 = vunpack.c.l.b16 %v5517
    %v5914 = vunpack.c.l.b16 %v5518
    %v5915 = vunpack.c.h.b16 %v5518
    %v5916 = vunpack.c.l.b16 %v5519
    %v5917 = vunpack.c.h.b16 %v5519
    %v5918 = vunpack.c.l.b16 %v5520
    %v5919 = vunpack.c.h.b16 %v5520
    %v5920 = vunpack.c.l.b16 %v5521
    %v5921 = vunpack.c.h.b16 %v5521
    %v5922 = vunpack.c.l.b16 %v5522
    %v5923 = vunpack.c.l.b16 %v5523
    %v5924 = vunpack.c.h.b16 %v5523
    %v5925 = vunpack.c.l.b16 %v5524
    %v5926 = vunpack.c.h.b16 %v5524
    %v5927 = vunpack.c.l.b16 %v5525
    %v5928 = vunpack.c.h.b16 %v5525
    %v5929 = vunpack.c.l.b16 %v5526
    %v5930 = vunpack.c.h.b16 %v5526
    %v5931 = vunpack.c.l.b16 %v5527
    %v5932 = vunpack.c.l.b16 %v5528
    %v5933 = vunpack.c.h.b16 %v5528
    %v5934 = vunpack.c.l.b16 %v5529
    %v5935 = vunpack.c.h.b16 %v5529
    %v5936 = vunpack.c.l.b16 %v5530
    %v5937 = vunpack.c.h.b16 %v5530
    %v5938 = vunpack.c.l.b16 %v5531
    %v5939 = vunpack.c.h.b16 %v5531
    %v5940 = vunpack.c.l.b16 %v5532
    %v5941 = vunpack.c.l.b16 %v5533
    %v5942 = vunpack.c.h.b16 %v5533
    %v5943 = vunpack.c.l.b16 %v5534
    %v5944 = vunpack.c.h.b16 %v5534
    %v5945 = vunpack.c.l.b16 %v5535
    %v5946 = vunpack.c.h.b16 %v5535
    %v5947 = vunpack.c.l.b16 %v5536
    %v5948 = vunpack.c.h.b16 %v5536
    %v5949 = vunpack.c.l.b16 %v5537
    %v5950 = vunpack.c.l.b16 %v5538
    %v5951 = vunpack.c.h.b16 %v5538
    %v5952 = vunpack.c.l.b16 %v5539
    %v5953 = vunpack.c.h.b16 %v5539
    %v5954 = vunpack.c.l.b16 %v5540
    %v5955 = vunpack.c.h.b16 %v5540
    %v5956 = vunpack.c.l.b16 %v5541
    %v5957 = vunpack.c.h.b16 %v5541
    %v5958 = vunpack.c.l.b16 %v5542
    %v5959 = vunpack.c.l.b16 %v5543
    %v5960 = vunpack.c.h.b16 %v5543
    %v5961 = vunpack.c.l.b16 %v5544
    %v5962 = vunpack.c.h.b16 %v5544
    %v5963 = vunpack.c.l.b16 %v5545
    %v5964 = vunpack.c.h.b16 %v5545
    %v5965 = vunpack.c.l.b16 %v5546
    %v5966 = vunpack.c.h.b16 %v5546
    %v5967 = vunpack.c.l.b16 %v5547
    %v5968 = vunpack.c.l.b16 %v5548
    %v5969 = vunpack.c.h.b16 %v5548
    %v5970 = vunpack.c.l.b16 %v5549
    %v5971 = vunpack.c.h.b16 %v5549
    %v5972 = vunpack.c.l.b16 %v5550
    %v5973 = vunpack.c.h.b16 %v5550
    %v5974 = vunpack.c.l.b16 %v5551
    %v5975 = vunpack.c.h.b16 %v5551
    %v5976 = vunpack.c.l.b16 %v5552
    %v5977 = vunpack.c.l.b16 %v5553
    %v5978 = vunpack.c.h.b16 %v5553
    %v5979 = vunpack.c.l.b16 %v5554
    %v5980 = vunpack.c.h.b16 %v5554
    %v5981 = vunpack.c.l.b16 %v5555
    %v5982 = vunpack.c.h.b16 %v5555
    %v5983 = vunpack.c.l.b16 %v5556
    %v5984 = vunpack.c.h.b16 %v5556
    %v5985 = vunpack.c.l.b16 %v5557
    %v5986 = vunpack.c.l.b16 %v5558
    %v5987 = vunpack.c.h.b16 %v5558
    %v5988 = vunpack.c.l.b16 %v5559
    %v5989 = vunpack.c.h.b16 %v5559
    %v5990 = vunpack.c.l.b16 %v5560
    %v5991 = vunpack.c.h.b16 %v5560
    %v5992 = vunpack.c.l.b16 %v5561
    %v5993 = vunpack.c.h.b16 %v5561
    %v5994 = vunpack.c.l.b16 %v5562
    %v5995 = vunpack.c.l.b16 %v5563
    %v5996 = vunpack.c.h.b16 %v5563
    %v5997 = vunpack.c.l.b16 %v5564
    %v5998 = vunpack.c.h.b16 %v5564
    %v5999 = vunpack.c.l.b16 %v5565
    %v6000 = vunpack.c.h.b16 %v5565
    %v6001 = vunpack.c.l.b16 %v5566
    %v6002 = vunpack.c.h.b16 %v5566
    %v6003 = vunpack.c.l.b16 %v5567
    %v6004 = vunpack.c.l.b16 %v5568
    %v6005 = vunpack.c.h.b16 %v5568
    %v6006 = vunpack.c.l.b16 %v5569
    %v6007 = vunpack.c.h.b16 %v5569
    %v6008 = vunpack.c.l.b16 %v5570
    %v6009 = vunpack.c.h.b16 %v5570
    %v6010 = vunpack.c.l.b16 %v5571
    %v6011 = vunpack.c.h.b16 %v5571
    %v6012 = vunpack.c.l.b16 %v5572
    %v6013 = vunpack.c.l.b16 %v5573
    %v6014 = vunpack.c.h.b16 %v5573
    %v6015 = vunpack.c.l.b16 %v5574
    %v6016 = vunpack.c.h.b16 %v5574
    %v6017 = vunpack.c.l.b16 %v5575
    %v6018 = vunpack.c.h.b16 %v5575
    %v6019 = vunpack.c.l.b16 %v5576
    %v6020 = vunpack.c.h.b16 %v5576
    %v6021 = vunpack.c.l.b16 %v5577
    %v6022 = vunpack.c.l.b16 %v5578
    %v6023 = vunpack.c.h.b16 %v5578
    %v6024 = vunpack.c.l.b16 %v5579
    %v6025 = vunpack.c.h.b16 %v5579
    %v6026 = vunpack.c.l.b16 %v5580
    %v6027 = vunpack.c.h.b16 %v5580
    %v6028 = vunpack.c.l.b16 %v5581
    %v6029 = vunpack.c.h.b16 %v5581
    %v6030 = vunpack.c.l.b16 %v5582
    %v6031 = vunpack.c.l.b16 %v5583
    %v6032 = vunpack.c.h.b16 %v5583
    %v6033 = vunpack.c.l.b16 %v5584
    %v6034 = vunpack.c.h.b16 %v5584
    %v6035 = vunpack.c.l.b16 %v5585
    %v6036 = vunpack.c.h.b16 %v5585
    %v6037 = vunpack.c.l.b16 %v5586
    %v6038 = vunpack.c.h.b16 %v5586
    %v6039 = vunpack.c.l.b16 %v5587
    %v6040 = vunpack.c.l.b16 %v5588
    %v6041 = vunpack.c.h.b16 %v5588
    %v6042 = vunpack.c.l.b16 %v5589
    %v6043 = vunpack.c.h.b16 %v5589
    %v6044 = vunpack.c.l.b16 %v5590
    %v6045 = vunpack.c.h.b16 %v5590
    %v6046 = vunpack.c.l.b16 %v5591
    %v6047 = vunpack.c.h.b16 %v5591
    %v6048 = vunpack.c.l.b16 %v5592
    %v6049 = vunpack.c.l.b16 %v5593
    %v6050 = vunpack.c.h.b16 %v5593
    %v6051 = vunpack.c.l.b16 %v5594
    %v6052 = vunpack.c.h.b16 %v5594
    %v6053 = vunpack.c.l.b16 %v5595
    %v6054 = vunpack.c.h.b16 %v5595
    %v6055 = vunpack.c.l.b16 %v5596
    %v6056 = vunpack.c.h.b16 %v5596
    %v6057 = vunpack.c.l.b16 %v5597
    %v6058 = vunpack.c.l.b16 %v5598
    %v6059 = vunpack.c.h.b16 %v5598
    %v6060 = vunpack.c.l.b16 %v5599
    %v6061 = vunpack.c.h.b16 %v5599
    %v6062 = vunpack.c.l.b16 %v5600
    %v6063 = vunpack.c.h.b16 %v5600
    %v6064 = vunpack.c.l.b16 %v5601
    %v6065 = vunpack.c.h.b16 %v5601
    %v6066 = vunpack.c.l.b16 %v5602
    %v6067 = vunpack.c.l.b16 %v5603
    %v6068 = vunpack.c.h.b16 %v5603
    %v6069 = vunpack.c.l.b16 %v5604
    %v6070 = vunpack.c.h.b16 %v5604
    %v6071 = vunpack.c.l.b16 %v5605
    %v6072 = vunpack.c.h.b16 %v5605
    %v6073 = vunpack.c.l.b16 %v5606
    %v6074 = vunpack.c.h.b16 %v5606
    %v6075 = vunpack.c.l.b16 %v5607
    %v6076 = vunpack.c.l.b16 %v5608
    %v6077 = vunpack.c.h.b16 %v5608
    %v6078 = vunpack.c.l.b16 %v5609
    %v6079 = vunpack.c.h.b16 %v5609
    %v6080 = vunpack.c.l.b16 %v5610
    %v6081 = vunpack.c.h.b16 %v5610
    %v6082 = vunpack.c.l.b16 %v5611
    %v6083 = vunpack.c.h.b16 %v5611
    %v6084 = vunpack.c.l.b16 %v5612
    %v6085 = vunpack.c.l.b16 %v5613
    %v6086 = vunpack.c.h.b16 %v5613
    %v6087 = vunpack.c.l.b16 %v5614
    %v6088 = vunpack.c.h.b16 %v5614
    %v6089 = vunpack.c.l.b16 %v5615
    %v6090 = vunpack.c.h.b16 %v5615
    %v6091 = vunpack.c.l.b16 %v5616
    %v6092 = vunpack.c.h.b16 %v5616
    %v6093 = vunpack.c.l.b16 %v5617
    %v6094 = vunpack.c.l.b16 %v5618
    %v6095 = vunpack.c.h.b16 %v5618
    %v6096 = vunpack.c.l.b16 %v5619
    %v6097 = vunpack.c.h.b16 %v5619
    %v6098 = vunpack.c.l.b16 %v5620
    %v6099 = vunpack.c.h.b16 %v5620
    %v6100 = vunpack.c.l.b16 %v5621
    %v6101 = vunpack.c.h.b16 %v5621
    %v6102 = vunpack.c.l.b16 %v5622
    %v6103 = vpack.c.b16 %v5896, %v5887
    %v6104 = vpack.c.b16 %v5897, %v5888
    %v6105 = vpack.c.b16 %v5898, %v5889
    %v6106 = vpack.c.b16 %v5899, %v5890
    %v6107 = vpack.c.b16 %v5900, %v5891
    %v6108 = vpack.c.b16 %v5901, %v5892
    %v6109 = vpack.c.b16 %v5902, %v5893
    %v6110 = vpack.c.b16 %v5903, %v5894
    %v6111 = vpack.c.b16 %v5904, %v5895
    %v6112 = vpack.c.b16 %v5914, %v5905
    %v6113 = vpack.c.b16 %v5915, %v5906
    %v6114 = vpack.c.b16 %v5916, %v5907
    %v6115 = vpack.c.b16 %v5917, %v5908
    %v6116 = vpack.c.b16 %v5918, %v5909
    %v6117 = vpack.c.b16 %v5919, %v5910
    %v6118 = vpack.c.b16 %v5920, %v5911
    %v6119 = vpack.c.b16 %v5921, %v5912
    %v6120 = vpack.c.b16 %v5922, %v5913
    %v6121 = vpack.c.b16 %v5932, %v5923
    %v6122 = vpack.c.b16 %v5933, %v5924
    %v6123 = vpack.c.b16 %v5934, %v5925
    %v6124 = vpack.c.b16 %v5935, %v5926
    %v6125 = vpack.c.b16 %v5936, %v5927
    %v6126 = vpack.c.b16 %v5937, %v5928
    %v6127 = vpack.c.b16 %v5938, %v5929
    %v6128 = vpack.c.b16 %v5939, %v5930
    %v6129 = vpack.c.b16 %v5940, %v5931
    %v6130 = vpack.c.b16 %v5950, %v5941
    %v6131 = vpack.c.b16 %v5951, %v5942
    %v6132 = vpack.c.b16 %v5952, %v5943
    %v6133 = vpack.c.b16 %v5953, %v5944
    %v6134 = vpack.c.b16 %v5954, %v5945
    %v6135 = vpack.c.b16 %v5955, %v5946
    %v6136 = vpack.c.b16 %v5956, %v5947
    %v6137 = vpack.c.b16 %v5957, %v5948
    %v6138 = vpack.c.b16 %v5958, %v5949
    %v6139 = vpack.c.b16 %v5968, %v5959
    %v6140 = vpack.c.b16 %v5969, %v5960
    %v6141 = vpack.c.b16 %v5970, %v5961
    %v6142 = vpack.c.b16 %v5971, %v5962
    %v6143 = vpack.c.b16 %v5972, %v5963
    %v6144 = vpack.c.b16 %v5973, %v5964
    %v6145 = vpack.c.b16 %v5974, %v5965
    %v6146 = vpack.c.b16 %v5975, %v5966
    %v6147 = vpack.c.b16 %v5976, %v5967
    %v6148 = vpack.c.b16 %v5986, %v5977
    %v6149 = vpack.c.b16 %v5987, %v5978
    %v6150 = vpack.c.b16 %v5988, %v5979
    %v6151 = vpack.c.b16 %v5989, %v5980
    %v6152 = vpack.c.b16 %v5990, %v5981
    %v6153 = vpack.c.b16 %v5991, %v5982
    %v6154 = vpack.c.b16 %v5992, %v5983
    %v6155 = vpack.c.b16 %v5993, %v5984
    %v6156 = vpack.c.b16 %v5994, %v5985
    %v6157 = vpack.c.b16 %v6004, %v5995
    %v6158 = vpack.c.b16 %v6005, %v5996
    %v6159 = vpack.c.b16 %v6006, %v5997
    %v6160 = vpack.c.b16 %v6007, %v5998
    %v6161 = vpack.c.b16 %v6008, %v5999
    %v6162 = vpack.c.b16 %v6009, %v6000
    %v6163 = vpack.c.b16 %v6010, %v6001
    %v6164 = vpack.c.b16 %v6011, %v6002
    %v6165 = vpack.c.b16 %v6012, %v6003
    %v6166 = vpack.c.b16 %v6022, %v6013
    %v6167 = vpack.c.b16 %v6023, %v6014
    %v6168 = vpack.c.b16 %v6024, %v6015
    %v6169 = vpack.c.b16 %v6025, %v6016
    %v6170 = vpack.c.b16 %v6026, %v6017
    %v6171 = vpack.c.b16 %v6027, %v6018
    %v6172 = vpack.c.b16 %v6028, %v6019
    %v6173 = vpack.c.b16 %v6029, %v6020
    %v6174 = vpack.c.b16 %v6030, %v6021
    %v6175 = vpack.c.b16 %v6040, %v6031
    %v6176 = vpack.c.b16 %v6041, %v6032
    %v6177 = vpack.c.b16 %v6042, %v6033
    %v6178 = vpack.c.b16 %v6043, %v6034
    %v6179 = vpack.c.b16 %v6044, %v6035
    %v6180 = vpack.c.b16 %v6045, %v6036
    %v6181 = vpack.c.b16 %v6046, %v6037
    %v6182 = vpack.c.b16 %v6047, %v6038
    %v6183 = vpack.c.b16 %v6048, %v6039
    %v6184 = vpack.c.b16 %v6058, %v6049
    %v6185 = vpack.c.b16 %v6059, %v6050
    %v6186 = vpack.c.b16 %v6060, %v6051
    %v6187 = vpack.c.b16 %v6061, %v6052
    %v6188 = vpack.c.b16 %v6062, %v6053
    %v6189 = vpack.c.b16 %v6063, %v6054
    %v6190 = vpack.c.b16 %v6064, %v6055
    %v6191 = vpack.c.b16 %v6065, %v6056
    %v6192 = vpack.c.b16 %v6066, %v6057
    %v6193 = vpack.c.b16 %v6076, %v6067
    %v6194 = vpack.c.b16 %v6077, %v6068
    %v6195 = vpack.c.b16 %v6078, %v6069
    %v6196 = vpack.c.b16 %v6079, %v6070
    %v6197 = vpack.c.b16 %v6080, %v6071
    %v6198 = vpack.c.b16 %v6081, %v6072
    %v6199 = vpack.c.b16 %v6082, %v6073
    %v6200 = vpack.c.b16 %v6083, %v6074
    %v6201 = vpack.c.b16 %v6084, %v6075
    %v6202 = vpack.c.b16 %v6094, %v6085
    %v6203 = vpack.c.b16 %v6095, %v6086
    %v6204 = vpack.c.b16 %v6096, %v6087
    %v6205 = vpack.c.b16 %v6097, %v6088
    %v6206 = vpack.c.b16 %v6098, %v6089
    %v6207 = vpack.c.b16 %v6099, %v6090
    %v6208 = vpack.c.b16 %v6100, %v6091
    %v6209 = vpack.c.b16 %v6101, %v6092
    %v6210 = vpack.c.b16 %v6102, %v6093
    %6319 = vmatprep.subr.bf16.mxu0 0
    %6320 = vmatpush1.bf16.msra.mxu0 %v5183
    %6321 = vmatprep.subr.bf16.mxu0 0
    %6322 = vmatpush1.bf16.msra.mxu0 %v5184
    %6323 = vmatprep.subr.bf16.mxu0 0
    %6324 = vmatpush1.bf16.msra.mxu0 %v5185
    %6325 = vmatprep.subr.bf16.mxu0 0
    %6326 = vmatpush1.bf16.msra.mxu0 %v5186
    %6327 = vmatprep.subr.bf16.mxu0 0
    %6328 = vmatpush1.bf16.msra.mxu0 %v5187
    %6329 = vmatprep.subr.bf16.mxu0 0
    %6330 = vmatpush1.bf16.msra.mxu0 %v5188
    %6331 = vmatprep.subr.bf16.mxu0 0
    %6332 = vmatpush1.bf16.msra.mxu0 %v5189
    %6333 = vmatprep.subr.bf16.mxu0 0
    %6334 = vmatpush1.bf16.msra.mxu0 %v5190
    %6335 = vmatprep.subr.bf16.mxu0 0
    %6336 = vmatpush1.bf16.msra.mxu0 %v5256
    %6337 = vmatprep.subr.bf16.mxu0 0
    %6338 = vmatpush1.bf16.msra.mxu0 %v5258
    %6339 = vmatprep.subr.bf16.mxu0 0
    %6340 = vmatpush1.bf16.msra.mxu0 %v5260
    %6341 = vmatprep.subr.bf16.mxu0 0
    %6342 = vmatpush1.bf16.msra.mxu0 %v5262
    %6343 = vmatprep.subr.bf16.mxu0 0
    %6344 = vmatpush1.bf16.msra.mxu0 %v5264
    %6345 = vmatprep.subr.bf16.mxu0 0
    %6346 = vmatpush1.bf16.msra.mxu0 %v5266
    %6347 = vmatprep.subr.bf16.mxu0 0
    %6348 = vmatpush1.bf16.msra.mxu0 %v5268
    %6349 = vmatprep.subr.bf16.mxu0 0
    %6350 = vmatpush1.bf16.msra.mxu0 %v5270
    %6351 = vmatprep.mubr.bf16.mxu0 %v6104
    %6352 = vmatmul.mubr.bf16.gmra.mrb[0].mxu0 %v6103
    %v6353 = vpop.f32.mrb[0].mxu0
    %v6354 = vadd.f32 %v5650, %v6353
    %v6355 = vpop.f32.mrb[0].mxu0
    %v6356 = vpop.f32.mrb[0].mxu0
    %v6357 = vadd.f32 %v5655, %v6356
    %v6358 = vpop.f32.mrb[0].mxu0
    %6359 = vmatprep.mubr.bf16.mxu0 %v6113
    %6360 = vmatmul.mubr.bf16.gmra.mrb[0].mxu0 %v6112
    %v6361 = vpop.f32.mrb[0].mxu0
    %v6362 = vadd.f32 %v5660, %v6361
    %v6363 = vpop.f32.mrb[0].mxu0
    %v6364 = vpop.f32.mrb[0].mxu0
    %v6365 = vadd.f32 %v5665, %v6364
    %v6366 = vpop.f32.mrb[0].mxu0
    %6367 = vmatprep.mubr.bf16.mxu0 %v6122
    %6368 = vmatmul.mubr.bf16.gmra.mrb[0].mxu0 %v6121
    %v6369 = vpop.f32.mrb[0].mxu0
    %v6370 = vadd.f32 %v5670, %v6369
    %v6371 = vpop.f32.mrb[0].mxu0
    %v6372 = vpop.f32.mrb[0].mxu0
    %v6373 = vadd.f32 %v5675, %v6372
    %v6374 = vpop.f32.mrb[0].mxu0
    %6375 = vmatprep.mubr.bf16.mxu0 %v6131
    %6376 = vmatmul.mubr.bf16.gmra.mrb[0].mxu0 %v6130
    %v6377 = vpop.f32.mrb[0].mxu0
    %v6378 = vadd.f32 %v5680, %v6377
    %v6379 = vpop.f32.mrb[0].mxu0
    %v6380 = vpop.f32.mrb[0].mxu0
    %v6381 = vadd.f32 %v5685, %v6380
    %v6382 = vpop.f32.mrb[0].mxu0
    %6383 = vmatprep.mubr.bf16.mxu0 %v6140
    %6384 = vmatmul.mubr.bf16.gmra.mrb[0].mxu0 %v6139
    %v6385 = vpop.f32.mrb[0].mxu0
    %v6386 = vadd.f32 %v5690, %v6385
    %v6387 = vpop.f32.mrb[0].mxu0
    %v6388 = vpop.f32.mrb[0].mxu0
    %v6389 = vadd.f32 %v5695, %v6388
    %v6390 = vpop.f32.mrb[0].mxu0
    %6391 = vmatprep.mubr.bf16.mxu0 %v6149
    %6392 = vmatmul.mubr.bf16.gmra.mrb[0].mxu0 %v6148
    %v6393 = vpop.f32.mrb[0].mxu0
    %v6394 = vadd.f32 %v5700, %v6393
    %v6395 = vpop.f32.mrb[0].mxu0
    %v6396 = vpop.f32.mrb[0].mxu0
    %v6397 = vadd.f32 %v5705, %v6396
    %v6398 = vpop.f32.mrb[0].mxu0
    %6399 = vmatprep.mubr.bf16.mxu0 %v6158
    %6400 = vmatmul.mubr.bf16.gmra.mrb[0].mxu0 %v6157
    %v6401 = vpop.f32.mrb[0].mxu0
    %v6402 = vadd.f32 %v5710, %v6401
    %v6403 = vpop.f32.mrb[0].mxu0
    %v6404 = vpop.f32.mrb[0].mxu0
    %v6405 = vadd.f32 %v5715, %v6404
    %v6406 = vpop.f32.mrb[0].mxu0
    %6407 = vmatprep.mubr.bf16.mxu0 %v6167
    %6408 = vmatmul.mubr.bf16.gmra.mrb[0].mxu0 %v6166
    %v6409 = vpop.f32.mrb[0].mxu0
    %v6410 = vadd.f32 %v5720, %v6409
    %v6411 = vpop.f32.mrb[0].mxu0
    %v6412 = vpop.f32.mrb[0].mxu0
    %v6413 = vadd.f32 %v5725, %v6412
    %v6414 = vpop.f32.mrb[0].mxu0
    %6415 = vmatprep.mubr.bf16.mxu0 %v6176
    %6416 = vmatmul.mubr.bf16.gmra.mrb[0].mxu0 %v6175
    %v6417 = vpop.f32.mrb[0].mxu0
    %v6418 = vadd.f32 %v5730, %v6417
    %v6419 = vpop.f32.mrb[0].mxu0
    %v6420 = vpop.f32.mrb[0].mxu0
    %v6421 = vadd.f32 %v5735, %v6420
    %v6422 = vpop.f32.mrb[0].mxu0
    %6423 = vmatprep.mubr.bf16.mxu0 %v6185
    %6424 = vmatmul.mubr.bf16.gmra.mrb[0].mxu0 %v6184
    %v6425 = vpop.f32.mrb[0].mxu0
    %v6426 = vadd.f32 %v5740, %v6425
    %v6427 = vpop.f32.mrb[0].mxu0
    %v6428 = vpop.f32.mrb[0].mxu0
    %v6429 = vadd.f32 %v5745, %v6428
    %v6430 = vpop.f32.mrb[0].mxu0
    %6431 = vmatprep.mubr.bf16.mxu0 %v6194
    %6432 = vmatmul.mubr.bf16.gmra.mrb[0].mxu0 %v6193
    %v6433 = vpop.f32.mrb[0].mxu0
    %v6434 = vadd.f32 %v5750, %v6433
    %v6435 = vpop.f32.mrb[0].mxu0
    %v6436 = vpop.f32.mrb[0].mxu0
    %v6437 = vadd.f32 %v5755, %v6436
    %v6438 = vpop.f32.mrb[0].mxu0
    %6439 = vmatprep.mubr.bf16.mxu0 %v6203
    %6440 = vmatmul.mubr.bf16.gmra.mrb[0].mxu0 %v6202
    %v6441 = vpop.f32.mrb[0].mxu0
    %v6442 = vadd.f32 %v5760, %v6441
    %v6443 = vpop.f32.mrb[0].mxu0
    %v6444 = vpop.f32.mrb[0].mxu0
    %v6445 = vadd.f32 %v5765, %v6444
    %v6446 = vpop.f32.mrb[0].mxu0
    %6447 = vdwg.mxu0
    %6448 = vmatprep.subr.bf16.mxu0 0
    %6449 = vmatpush1.bf16.msra.mxu0 %v5288
    %6450 = vmatprep.subr.bf16.mxu0 0
    %6451 = vmatpush1.bf16.msra.mxu0 %v5290
    %6452 = vmatprep.subr.bf16.mxu0 0
    %6453 = vmatpush1.bf16.msra.mxu0 %v5292
    %6454 = vmatprep.subr.bf16.mxu0 0
    %6455 = vmatpush1.bf16.msra.mxu0 %v5294
    %6456 = vmatprep.subr.bf16.mxu0 0
    %6457 = vmatpush1.bf16.msra.mxu0 %v5296
    %6458 = vmatprep.subr.bf16.mxu0 0
    %6459 = vmatpush1.bf16.msra.mxu0 %v5298
    %6460 = vmatprep.subr.bf16.mxu0 0
    %6461 = vmatpush1.bf16.msra.mxu0 %v5300
    %6462 = vmatprep.subr.bf16.mxu0 0
    %6463 = vmatpush1.bf16.msra.mxu0 %v5302
    %6464 = vmatprep.subr.bf16.mxu0 0
    %6465 = vmatpush1.bf16.msra.mxu0 %v5320
    %6466 = vmatprep.subr.bf16.mxu0 0
    %6467 = vmatpush1.bf16.msra.mxu0 %v5322
    %6468 = vmatprep.subr.bf16.mxu0 0
    %6469 = vmatpush1.bf16.msra.mxu0 %v5324
    %6470 = vmatprep.subr.bf16.mxu0 0
    %6471 = vmatpush1.bf16.msra.mxu0 %v5326
    %6472 = vmatprep.subr.bf16.mxu0 0
    %6473 = vmatpush1.bf16.msra.mxu0 %v5328
    %6474 = vmatprep.subr.bf16.mxu0 0
    %6475 = vmatpush1.bf16.msra.mxu0 %v5330
    %6476 = vmatprep.subr.bf16.mxu0 0
    %6477 = vmatpush1.bf16.msra.mxu0 %v5332
    %6478 = vmatprep.subr.bf16.mxu0 0
    %6479 = vmatpush1.bf16.msra.mxu0 %v5334
    %6480 = vmatprep.mubr.bf16.mxu0 %v6106
    %6481 = vmatmul.mubr.bf16.gmra.mrb[0].mxu0 %v6105
    %v6482 = vpop.f32.mrb[0].mxu0
    %v6483 = vadd.f32 %v6354, %v6482
    %v6484 = vpop.f32.mrb[0].mxu0
    %v6485 = vpop.f32.mrb[0].mxu0
    %v6486 = vadd.f32 %v6357, %v6485
    %v6487 = vpop.f32.mrb[0].mxu0
    %6488 = vmatprep.mubr.bf16.mxu0 %v6115
    %6489 = vmatmul.mubr.bf16.gmra.mrb[0].mxu0 %v6114
    %v6490 = vpop.f32.mrb[0].mxu0
    %v6491 = vadd.f32 %v6362, %v6490
    %v6492 = vpop.f32.mrb[0].mxu0
    %v6493 = vpop.f32.mrb[0].mxu0
    %v6494 = vadd.f32 %v6365, %v6493
    %v6495 = vpop.f32.mrb[0].mxu0
    %6496 = vmatprep.mubr.bf16.mxu0 %v6124
    %6497 = vmatmul.mubr.bf16.gmra.mrb[0].mxu0 %v6123
    %v6498 = vpop.f32.mrb[0].mxu0
    %v6499 = vadd.f32 %v6370, %v6498
    %v6500 = vpop.f32.mrb[0].mxu0
    %v6501 = vpop.f32.mrb[0].mxu0
    %v6502 = vadd.f32 %v6373, %v6501
    %v6503 = vpop.f32.mrb[0].mxu0
    %6504 = vmatprep.mubr.bf16.mxu0 %v6133
    %6505 = vmatmul.mubr.bf16.gmra.mrb[0].mxu0 %v6132
    %v6506 = vpop.f32.mrb[0].mxu0
    %v6507 = vadd.f32 %v6378, %v6506
    %v6508 = vpop.f32.mrb[0].mxu0
    %v6509 = vpop.f32.mrb[0].mxu0
    %v6510 = vadd.f32 %v6381, %v6509
    %v6511 = vpop.f32.mrb[0].mxu0
    %6512 = vmatprep.mubr.bf16.mxu0 %v6142
    %6513 = vmatmul.mubr.bf16.gmra.mrb[0].mxu0 %v6141
    %v6514 = vpop.f32.mrb[0].mxu0
    %v6515 = vadd.f32 %v6386, %v6514
    %v6516 = vpop.f32.mrb[0].mxu0
    %v6517 = vpop.f32.mrb[0].mxu0
    %v6518 = vadd.f32 %v6389, %v6517
    %v6519 = vpop.f32.mrb[0].mxu0
    %6520 = vmatprep.mubr.bf16.mxu0 %v6151
    %6521 = vmatmul.mubr.bf16.gmra.mrb[0].mxu0 %v6150
    %v6522 = vpop.f32.mrb[0].mxu0
    %v6523 = vadd.f32 %v6394, %v6522
    %v6524 = vpop.f32.mrb[0].mxu0
    %v6525 = vpop.f32.mrb[0].mxu0
    %v6526 = vadd.f32 %v6397, %v6525
    %v6527 = vpop.f32.mrb[0].mxu0
    %6528 = vmatprep.mubr.bf16.mxu0 %v6160
    %6529 = vmatmul.mubr.bf16.gmra.mrb[0].mxu0 %v6159
    %v6530 = vpop.f32.mrb[0].mxu0
    %v6531 = vadd.f32 %v6402, %v6530
    %v6532 = vpop.f32.mrb[0].mxu0
    %v6533 = vpop.f32.mrb[0].mxu0
    %v6534 = vadd.f32 %v6405, %v6533
    %v6535 = vpop.f32.mrb[0].mxu0
    %6536 = vmatprep.mubr.bf16.mxu0 %v6169
    %6537 = vmatmul.mubr.bf16.gmra.mrb[0].mxu0 %v6168
    %v6538 = vpop.f32.mrb[0].mxu0
    %v6539 = vadd.f32 %v6410, %v6538
    %v6540 = vpop.f32.mrb[0].mxu0
    %v6541 = vpop.f32.mrb[0].mxu0
    %v6542 = vadd.f32 %v6413, %v6541
    %v6543 = vpop.f32.mrb[0].mxu0
    %6544 = vmatprep.mubr.bf16.mxu0 %v6178
    %6545 = vmatmul.mubr.bf16.gmra.mrb[0].mxu0 %v6177
    %v6546 = vpop.f32.mrb[0].mxu0
    %v6547 = vadd.f32 %v6418, %v6546
    %v6548 = vpop.f32.mrb[0].mxu0
    %v6549 = vpop.f32.mrb[0].mxu0
    %v6550 = vadd.f32 %v6421, %v6549
    %v6551 = vpop.f32.mrb[0].mxu0
    %6552 = vmatprep.mubr.bf16.mxu0 %v6187
    %6553 = vmatmul.mubr.bf16.gmra.mrb[0].mxu0 %v6186
    %v6554 = vpop.f32.mrb[0].mxu0
    %v6555 = vadd.f32 %v6426, %v6554
    %v6556 = vpop.f32.mrb[0].mxu0
    %v6557 = vpop.f32.mrb[0].mxu0
    %v6558 = vadd.f32 %v6429, %v6557
    %v6559 = vpop.f32.mrb[0].mxu0
    %6560 = vmatprep.mubr.bf16.mxu0 %v6196
    %6561 = vmatmul.mubr.bf16.gmra.mrb[0].mxu0 %v6195
    %v6562 = vpop.f32.mrb[0].mxu0
    %v6563 = vadd.f32 %v6434, %v6562
    %v6564 = vpop.f32.mrb[0].mxu0
    %v6565 = vpop.f32.mrb[0].mxu0
    %v6566 = vadd.f32 %v6437, %v6565
    %v6567 = vpop.f32.mrb[0].mxu0
    %6568 = vmatprep.mubr.bf16.mxu0 %v6205
    %6569 = vmatmul.mubr.bf16.gmra.mrb[0].mxu0 %v6204
    %v6570 = vpop.f32.mrb[0].mxu0
    %v6571 = vadd.f32 %v6442, %v6570
    %v6572 = vpop.f32.mrb[0].mxu0
    %v6573 = vpop.f32.mrb[0].mxu0
    %v6574 = vadd.f32 %v6445, %v6573
    %v6575 = vpop.f32.mrb[0].mxu0
    %6576 = vdwg.mxu0
    %6577 = vmatprep.subr.bf16.mxu0 0
    %6578 = vmatpush1.bf16.msra.mxu0 %v5352
    %6579 = vmatprep.subr.bf16.mxu0 0
    %6580 = vmatpush1.bf16.msra.mxu0 %v5354
    %6581 = vmatprep.subr.bf16.mxu0 0
    %6582 = vmatpush1.bf16.msra.mxu0 %v5356
    %6583 = vmatprep.subr.bf16.mxu0 0
    %6584 = vmatpush1.bf16.msra.mxu0 %v5358
    %6585 = vmatprep.subr.bf16.mxu0 0
    %6586 = vmatpush1.bf16.msra.mxu0 %v5360
    %6587 = vmatprep.subr.bf16.mxu0 0
    %6588 = vmatpush1.bf16.msra.mxu0 %v5362
    %6589 = vmatprep.subr.bf16.mxu0 0
    %6590 = vmatpush1.bf16.msra.mxu0 %v5364
    %6591 = vmatprep.subr.bf16.mxu0 0
    %6592 = vmatpush1.bf16.msra.mxu0 %v5366
    %6593 = vmatprep.subr.bf16.mxu0 0
    %6594 = vmatpush1.bf16.msra.mxu0 %v5384
    %6595 = vmatprep.subr.bf16.mxu0 0
    %6596 = vmatpush1.bf16.msra.mxu0 %v5386
    %6597 = vmatprep.subr.bf16.mxu0 0
    %6598 = vmatpush1.bf16.msra.mxu0 %v5388
    %6599 = vmatprep.subr.bf16.mxu0 0
    %6600 = vmatpush1.bf16.msra.mxu0 %v5390
    %6601 = vmatprep.subr.bf16.mxu0 0
    %6602 = vmatpush1.bf16.msra.mxu0 %v5392
    %6603 = vmatprep.subr.bf16.mxu0 0
    %6604 = vmatpush1.bf16.msra.mxu0 %v5394
    %6605 = vmatprep.subr.bf16.mxu0 0
    %6606 = vmatpush1.bf16.msra.mxu0 %v5396
    %6607 = vmatprep.subr.bf16.mxu0 0
    %6608 = vmatpush1.bf16.msra.mxu0 %v5398
    %6609 = vmatprep.mubr.bf16.mxu0 %v6108
    %6610 = vmatmul.mubr.bf16.gmra.mrb[0].mxu0 %v6107
    %v6611 = vpop.f32.mrb[0].mxu0
    %v6612 = vadd.f32 %v6483, %v6611
    %v6613 = vpop.f32.mrb[0].mxu0
    %v6614 = vpop.f32.mrb[0].mxu0
    %v6615 = vadd.f32 %v6486, %v6614
    %v6616 = vpop.f32.mrb[0].mxu0
    %6617 = vmatprep.mubr.bf16.mxu0 %v6117
    %6618 = vmatmul.mubr.bf16.gmra.mrb[0].mxu0 %v6116
    %v6619 = vpop.f32.mrb[0].mxu0
    %v6620 = vadd.f32 %v6491, %v6619
    %v6621 = vpop.f32.mrb[0].mxu0
    %v6622 = vpop.f32.mrb[0].mxu0
    %v6623 = vadd.f32 %v6494, %v6622
    %v6624 = vpop.f32.mrb[0].mxu0
    %6625 = vmatprep.mubr.bf16.mxu0 %v6126
    %6626 = vmatmul.mubr.bf16.gmra.mrb[0].mxu0 %v6125
    %v6627 = vpop.f32.mrb[0].mxu0
    %v6628 = vadd.f32 %v6499, %v6627
    %v6629 = vpop.f32.mrb[0].mxu0
    %v6630 = vpop.f32.mrb[0].mxu0
    %v6631 = vadd.f32 %v6502, %v6630
    %v6632 = vpop.f32.mrb[0].mxu0
    %6633 = vmatprep.mubr.bf16.mxu0 %v6135
    %6634 = vmatmul.mubr.bf16.gmra.mrb[0].mxu0 %v6134
    %v6635 = vpop.f32.mrb[0].mxu0
    %v6636 = vadd.f32 %v6507, %v6635
    %v6637 = vpop.f32.mrb[0].mxu0
    %v6638 = vpop.f32.mrb[0].mxu0
    %v6639 = vadd.f32 %v6510, %v6638
    %v6640 = vpop.f32.mrb[0].mxu0
    %6641 = vmatprep.mubr.bf16.mxu0 %v6144
    %6642 = vmatmul.mubr.bf16.gmra.mrb[0].mxu0 %v6143
    %v6643 = vpop.f32.mrb[0].mxu0
    %v6644 = vadd.f32 %v6515, %v6643
    %v6645 = vpop.f32.mrb[0].mxu0
    %v6646 = vpop.f32.mrb[0].mxu0
    %v6647 = vadd.f32 %v6518, %v6646
    %v6648 = vpop.f32.mrb[0].mxu0
    %6649 = vmatprep.mubr.bf16.mxu0 %v6153
    %6650 = vmatmul.mubr.bf16.gmra.mrb[0].mxu0 %v6152
    %v6651 = vpop.f32.mrb[0].mxu0
    %v6652 = vadd.f32 %v6523, %v6651
    %v6653 = vpop.f32.mrb[0].mxu0
    %v6654 = vpop.f32.mrb[0].mxu0
    %v6655 = vadd.f32 %v6526, %v6654
    %v6656 = vpop.f32.mrb[0].mxu0
    %6657 = vmatprep.mubr.bf16.mxu0 %v6162
    %6658 = vmatmul.mubr.bf16.gmra.mrb[0].mxu0 %v6161
    %v6659 = vpop.f32.mrb[0].mxu0
    %v6660 = vadd.f32 %v6531, %v6659
    %v6661 = vpop.f32.mrb[0].mxu0
    %v6662 = vpop.f32.mrb[0].mxu0
    %v6663 = vadd.f32 %v6534, %v6662
    %v6664 = vpop.f32.mrb[0].mxu0
    %6665 = vmatprep.mubr.bf16.mxu0 %v6171
    %6666 = vmatmul.mubr.bf16.gmra.mrb[0].mxu0 %v6170
    %v6667 = vpop.f32.mrb[0].mxu0
    %v6668 = vadd.f32 %v6539, %v6667
    %v6669 = vpop.f32.mrb[0].mxu0
    %v6670 = vpop.f32.mrb[0].mxu0
    %v6671 = vadd.f32 %v6542, %v6670
    %v6672 = vpop.f32.mrb[0].mxu0
    %6673 = vmatprep.mubr.bf16.mxu0 %v6180
    %6674 = vmatmul.mubr.bf16.gmra.mrb[0].mxu0 %v6179
    %v6675 = vpop.f32.mrb[0].mxu0
    %v6676 = vadd.f32 %v6547, %v6675
    %v6677 = vpop.f32.mrb[0].mxu0
    %v6678 = vpop.f32.mrb[0].mxu0
    %v6679 = vadd.f32 %v6550, %v6678
    %v6680 = vpop.f32.mrb[0].mxu0
    %6681 = vmatprep.mubr.bf16.mxu0 %v6189
    %6682 = vmatmul.mubr.bf16.gmra.mrb[0].mxu0 %v6188
    %v6683 = vpop.f32.mrb[0].mxu0
    %v6684 = vadd.f32 %v6555, %v6683
    %v6685 = vpop.f32.mrb[0].mxu0
    %v6686 = vpop.f32.mrb[0].mxu0
    %v6687 = vadd.f32 %v6558, %v6686
    %v6688 = vpop.f32.mrb[0].mxu0
    %6689 = vmatprep.mubr.bf16.mxu0 %v6198
    %6690 = vmatmul.mubr.bf16.gmra.mrb[0].mxu0 %v6197
    %v6691 = vpop.f32.mrb[0].mxu0
    %v6692 = vadd.f32 %v6563, %v6691
    %v6693 = vpop.f32.mrb[0].mxu0
    %v6694 = vpop.f32.mrb[0].mxu0
    %v6695 = vadd.f32 %v6566, %v6694
    %v6696 = vpop.f32.mrb[0].mxu0
    %6697 = vmatprep.mubr.bf16.mxu0 %v6207
    %6698 = vmatmul.mubr.bf16.gmra.mrb[0].mxu0 %v6206
    %v6699 = vpop.f32.mrb[0].mxu0
    %v6700 = vadd.f32 %v6571, %v6699
    %v6701 = vpop.f32.mrb[0].mxu0
    %v6702 = vpop.f32.mrb[0].mxu0
    %v6703 = vadd.f32 %v6574, %v6702
    %v6704 = vpop.f32.mrb[0].mxu0
    %6705 = vdwg.mxu0
    %6706 = vmatprep.subr.bf16.mxu0 0
    %6707 = vmatpush1.bf16.msra.mxu0 %v5416
    %6708 = vmatprep.subr.bf16.mxu0 0
    %6709 = vmatpush1.bf16.msra.mxu0 %v5418
    %6710 = vmatprep.subr.bf16.mxu0 0
    %6711 = vmatpush1.bf16.msra.mxu0 %v5420
    %6712 = vmatprep.subr.bf16.mxu0 0
    %6713 = vmatpush1.bf16.msra.mxu0 %v5422
    %6714 = vmatprep.subr.bf16.mxu0 0
    %6715 = vmatpush1.bf16.msra.mxu0 %v5424
    %6716 = vmatprep.subr.bf16.mxu0 0
    %6717 = vmatpush1.bf16.msra.mxu0 %v5426
    %6718 = vmatprep.subr.bf16.mxu0 0
    %6719 = vmatpush1.bf16.msra.mxu0 %v5428
    %6720 = vmatprep.subr.bf16.mxu0 0
    %6721 = vmatpush1.bf16.msra.mxu0 %v5430
    %6722 = vmatprep.subr.bf16.mxu0 0
    %6723 = vmatpush1.bf16.msra.mxu0 %v5448
    %6724 = vmatprep.subr.bf16.mxu0 0
    %6725 = vmatpush1.bf16.msra.mxu0 %v5450
    %6726 = vmatprep.subr.bf16.mxu0 0
    %6727 = vmatpush1.bf16.msra.mxu0 %v5452
    %6728 = vmatprep.subr.bf16.mxu0 0
    %6729 = vmatpush1.bf16.msra.mxu0 %v5454
    %6730 = vmatprep.subr.bf16.mxu0 0
    %6731 = vmatpush1.bf16.msra.mxu0 %v5456
    %6732 = vmatprep.subr.bf16.mxu0 0
    %6733 = vmatpush1.bf16.msra.mxu0 %v5458
    %6734 = vmatprep.subr.bf16.mxu0 0
    %6735 = vmatpush1.bf16.msra.mxu0 %v5460
    %6736 = vmatprep.subr.bf16.mxu0 0
    %6737 = vmatpush1.bf16.msra.mxu0 %v5462
    %6738 = vmatprep.mubr.bf16.mxu0 %v6110
    %6739 = vmatmul.mubr.bf16.gmra.mrb[0].mxu0 %v6109
    %v6740 = vpop.f32.mrb[0].mxu0
    %v6741 = vadd.f32 %v6612, %v6740
    %v6742 = vpop.f32.mrb[0].mxu0
    %v6743 = vpop.f32.mrb[0].mxu0
    %v6744 = vadd.f32 %v6615, %v6743
    %v6745 = vpop.f32.mrb[0].mxu0
    %6746 = vmatprep.mubr.bf16.mxu0 %v6119
    %6747 = vmatmul.mubr.bf16.gmra.mrb[0].mxu0 %v6118
    %v6748 = vpop.f32.mrb[0].mxu0
    %v6749 = vadd.f32 %v6620, %v6748
    %v6750 = vpop.f32.mrb[0].mxu0
    %v6751 = vpop.f32.mrb[0].mxu0
    %v6752 = vadd.f32 %v6623, %v6751
    %v6753 = vpop.f32.mrb[0].mxu0
    %6754 = vmatprep.mubr.bf16.mxu0 %v6128
    %6755 = vmatmul.mubr.bf16.gmra.mrb[0].mxu0 %v6127
    %v6756 = vpop.f32.mrb[0].mxu0
    %v6757 = vadd.f32 %v6628, %v6756
    %v6758 = vpop.f32.mrb[0].mxu0
    %v6759 = vpop.f32.mrb[0].mxu0
    %v6760 = vadd.f32 %v6631, %v6759
    %v6761 = vpop.f32.mrb[0].mxu0
    %6762 = vmatprep.mubr.bf16.mxu0 %v6137
    %6763 = vmatmul.mubr.bf16.gmra.mrb[0].mxu0 %v6136
    %v6764 = vpop.f32.mrb[0].mxu0
    %v6765 = vadd.f32 %v6636, %v6764
    %v6766 = vpop.f32.mrb[0].mxu0
    %v6767 = vpop.f32.mrb[0].mxu0
    %v6768 = vadd.f32 %v6639, %v6767
    %v6769 = vpop.f32.mrb[0].mxu0
    %6770 = vmatprep.mubr.bf16.mxu0 %v6146
    %6771 = vmatmul.mubr.bf16.gmra.mrb[0].mxu0 %v6145
    %v6772 = vpop.f32.mrb[0].mxu0
    %v6773 = vadd.f32 %v6644, %v6772
    %v6774 = vpop.f32.mrb[0].mxu0
    %v6775 = vpop.f32.mrb[0].mxu0
    %v6776 = vadd.f32 %v6647, %v6775
    %v6777 = vpop.f32.mrb[0].mxu0
    %6778 = vmatprep.mubr.bf16.mxu0 %v6155
    %6779 = vmatmul.mubr.bf16.gmra.mrb[0].mxu0 %v6154
    %v6780 = vpop.f32.mrb[0].mxu0
    %v6781 = vadd.f32 %v6652, %v6780
    %v6782 = vpop.f32.mrb[0].mxu0
    %v6783 = vpop.f32.mrb[0].mxu0
    %v6784 = vadd.f32 %v6655, %v6783
    %v6785 = vpop.f32.mrb[0].mxu0
    %6786 = vmatprep.mubr.bf16.mxu0 %v6164
    %6787 = vmatmul.mubr.bf16.gmra.mrb[0].mxu0 %v6163
    %v6788 = vpop.f32.mrb[0].mxu0
    %v6789 = vadd.f32 %v6660, %v6788
    %v6790 = vpop.f32.mrb[0].mxu0
    %v6791 = vpop.f32.mrb[0].mxu0
    %v6792 = vadd.f32 %v6663, %v6791
    %v6793 = vpop.f32.mrb[0].mxu0
    %6794 = vmatprep.mubr.bf16.mxu0 %v6173
    %6795 = vmatmul.mubr.bf16.gmra.mrb[0].mxu0 %v6172
    %v6796 = vpop.f32.mrb[0].mxu0
    %v6797 = vadd.f32 %v6668, %v6796
    %v6798 = vpop.f32.mrb[0].mxu0
    %v6799 = vpop.f32.mrb[0].mxu0
    %v6800 = vadd.f32 %v6671, %v6799
    %v6801 = vpop.f32.mrb[0].mxu0
    %6802 = vmatprep.mubr.bf16.mxu0 %v6182
    %6803 = vmatmul.mubr.bf16.gmra.mrb[0].mxu0 %v6181
    %v6804 = vpop.f32.mrb[0].mxu0
    %v6805 = vadd.f32 %v6676, %v6804
    %v6806 = vpop.f32.mrb[0].mxu0
    %v6807 = vpop.f32.mrb[0].mxu0
    %v6808 = vadd.f32 %v6679, %v6807
    %v6809 = vpop.f32.mrb[0].mxu0
    %6810 = vmatprep.mubr.bf16.mxu0 %v6191
    %6811 = vmatmul.mubr.bf16.gmra.mrb[0].mxu0 %v6190
    %v6812 = vpop.f32.mrb[0].mxu0
    %v6813 = vadd.f32 %v6684, %v6812
    %v6814 = vpop.f32.mrb[0].mxu0
    %v6815 = vpop.f32.mrb[0].mxu0
    %v6816 = vadd.f32 %v6687, %v6815
    %v6817 = vpop.f32.mrb[0].mxu0
    %6818 = vmatprep.mubr.bf16.mxu0 %v6200
    %6819 = vmatmul.mubr.bf16.gmra.mrb[0].mxu0 %v6199
    %v6820 = vpop.f32.mrb[0].mxu0
    %v6821 = vadd.f32 %v6692, %v6820
    %v6822 = vpop.f32.mrb[0].mxu0
    %v6823 = vpop.f32.mrb[0].mxu0
    %v6824 = vadd.f32 %v6695, %v6823
    %v6825 = vpop.f32.mrb[0].mxu0
    %6826 = vmatprep.mubr.bf16.mxu0 %v6209
    %6827 = vmatmul.mubr.bf16.gmra.mrb[0].mxu0 %v6208
    %v6828 = vpop.f32.mrb[0].mxu0
    %v6829 = vadd.f32 %v6700, %v6828
    %v6830 = vpop.f32.mrb[0].mxu0
    %v6831 = vpop.f32.mrb[0].mxu0
    %v6832 = vadd.f32 %v6703, %v6831
    %v6833 = vpop.f32.mrb[0].mxu0
    %6834 = vdwg.mxu0
    %6835 = vmatprep.subr.bf16.mxu0 0
    %6836 = vmatpush1.bf16.msra.mxu0 %v5480
    %6837 = vmatprep.subr.bf16.mxu0 0
    %6838 = vmatpush1.bf16.msra.mxu0 %v5482
    %6839 = vmatprep.subr.bf16.mxu0 0
    %6840 = vmatpush1.bf16.msra.mxu0 %v5484
    %6841 = vmatprep.subr.bf16.mxu0 0
    %6842 = vmatpush1.bf16.msra.mxu0 %v5486
    %6843 = vmatprep.subr.bf16.mxu0 0
    %6844 = vmatpush1.bf16.msra.mxu0 %v5488
    %6845 = vmatprep.subr.bf16.mxu0 0
    %6846 = vmatpush1.bf16.msra.mxu0 %v5490
    %6847 = vmatprep.subr.bf16.mxu0 0
    %6848 = vmatpush1.bf16.msra.mxu0 %v5492
    %6849 = vmatprep.subr.bf16.mxu0 0
    %6850 = vmatpush1.bf16.msra.mxu0 %v5494
    %6851 = vmatprep.subr.bf16.mxu0 0
    %6852 = vmatpush1.bf16.msra.mxu0 0
    %6853 = vmatprep.subr.bf16.mxu0 0
    %6854 = vmatpush1.bf16.msra.mxu0 0
    %6855 = vmatprep.subr.bf16.mxu0 0
    %6856 = vmatpush1.bf16.msra.mxu0 0
    %6857 = vmatprep.subr.bf16.mxu0 0
    %6858 = vmatpush1.bf16.msra.mxu0 0
    %6859 = vmatprep.subr.bf16.mxu0 0
    %6860 = vmatpush1.bf16.msra.mxu0 0
    %6861 = vmatprep.subr.bf16.mxu0 0
    %6862 = vmatpush1.bf16.msra.mxu0 0
    %6863 = vmatprep.subr.bf16.mxu0 0
    %6864 = vmatpush1.bf16.msra.mxu0 0
    %6865 = vmatprep.subr.bf16.mxu0 0
    %6866 = vmatpush1.bf16.msra.mxu0 0
    %6867 = vmatprep.mubr.bf16.mxu0 0
    %6868 = vmatmul.mubr.bf16.gmra.mrb[0].mxu0 %v6111
    %v6869 = vpop.f32.mrb[0].mxu0
    %v6870 = vadd.f32 %v6741, %v6869
    %v6871 = vpop.f32.mrb[0].mxu0
    %v6872 = vpop.f32.mrb[0].mxu0
    %v6873 = vadd.f32 %v6744, %v6872
    %v6874 = vpop.f32.mrb[0].mxu0
    %6875 = vmatprep.mubr.bf16.mxu0 0
    %6876 = vmatmul.mubr.bf16.gmra.mrb[0].mxu0 %v6120
    %v6877 = vpop.f32.mrb[0].mxu0
    %v6878 = vadd.f32 %v6749, %v6877
    %v6879 = vpop.f32.mrb[0].mxu0
    %v6880 = vpop.f32.mrb[0].mxu0
    %v6881 = vadd.f32 %v6752, %v6880
    %v6882 = vpop.f32.mrb[0].mxu0
    %6883 = vmatprep.mubr.bf16.mxu0 0
    %6884 = vmatmul.mubr.bf16.gmra.mrb[0].mxu0 %v6129
    %v6885 = vpop.f32.mrb[0].mxu0
    %v6886 = vadd.f32 %v6757, %v6885
    %v6887 = vpop.f32.mrb[0].mxu0
    %v6888 = vpop.f32.mrb[0].mxu0
    %v6889 = vadd.f32 %v6760, %v6888
    %v6890 = vpop.f32.mrb[0].mxu0
    %6891 = vmatprep.mubr.bf16.mxu0 0
    %6892 = vmatmul.mubr.bf16.gmra.mrb[0].mxu0 %v6138
    %v6893 = vpop.f32.mrb[0].mxu0
    %v6894 = vadd.f32 %v6765, %v6893
    %v6895 = vpop.f32.mrb[0].mxu0
    %v6896 = vpop.f32.mrb[0].mxu0
    %v6897 = vadd.f32 %v6768, %v6896
    %v6898 = vpop.f32.mrb[0].mxu0
    %6899 = vmatprep.mubr.bf16.mxu0 0
    %6900 = vmatmul.mubr.bf16.gmra.mrb[0].mxu0 %v6147
    %v6901 = vpop.f32.mrb[0].mxu0
    %v6902 = vadd.f32 %v6773, %v6901
    %v6903 = vpop.f32.mrb[0].mxu0
    %v6904 = vpop.f32.mrb[0].mxu0
    %v6905 = vadd.f32 %v6776, %v6904
    %v6906 = vpop.f32.mrb[0].mxu0
    %6907 = vmatprep.mubr.bf16.mxu0 0
    %6908 = vmatmul.mubr.bf16.gmra.mrb[0].mxu0 %v6156
    %v6909 = vpop.f32.mrb[0].mxu0
    %v6910 = vadd.f32 %v6781, %v6909
    %v6911 = vpop.f32.mrb[0].mxu0
    %v6912 = vpop.f32.mrb[0].mxu0
    %v6913 = vadd.f32 %v6784, %v6912
    %v6914 = vpop.f32.mrb[0].mxu0
    %6915 = vmatprep.mubr.bf16.mxu0 0
    %6916 = vmatmul.mubr.bf16.gmra.mrb[0].mxu0 %v6165
    %v6917 = vpop.f32.mrb[0].mxu0
    %v6918 = vadd.f32 %v6789, %v6917
    %v6919 = vpop.f32.mrb[0].mxu0
    %v6920 = vpop.f32.mrb[0].mxu0
    %v6921 = vadd.f32 %v6792, %v6920
    %v6922 = vpop.f32.mrb[0].mxu0
    %6923 = vmatprep.mubr.bf16.mxu0 0
    %6924 = vmatmul.mubr.bf16.gmra.mrb[0].mxu0 %v6174
    %v6925 = vpop.f32.mrb[0].mxu0
    %v6926 = vadd.f32 %v6797, %v6925
    %v6927 = vpop.f32.mrb[0].mxu0
    %v6928 = vpop.f32.mrb[0].mxu0
    %v6929 = vadd.f32 %v6800, %v6928
    %v6930 = vpop.f32.mrb[0].mxu0
    %6931 = vmatprep.mubr.bf16.mxu0 0
    %6932 = vmatmul.mubr.bf16.gmra.mrb[0].mxu0 %v6183
    %v6933 = vpop.f32.mrb[0].mxu0
    %v6934 = vadd.f32 %v6805, %v6933
    %v6935 = vpop.f32.mrb[0].mxu0
    %v6936 = vpop.f32.mrb[0].mxu0
    %v6937 = vadd.f32 %v6808, %v6936
    %v6938 = vpop.f32.mrb[0].mxu0
    %6939 = vmatprep.mubr.bf16.mxu0 0
    %6940 = vmatmul.mubr.bf16.gmra.mrb[0].mxu0 %v6192
    %v6941 = vpop.f32.mrb[0].mxu0
    %v6942 = vadd.f32 %v6813, %v6941
    %v6943 = vpop.f32.mrb[0].mxu0
    %v6944 = vpop.f32.mrb[0].mxu0
    %v6945 = vadd.f32 %v6816, %v6944
    %v6946 = vpop.f32.mrb[0].mxu0
    %6947 = vmatprep.mubr.bf16.mxu0 0
    %6948 = vmatmul.mubr.bf16.gmra.mrb[0].mxu0 %v6201
    %v6949 = vpop.f32.mrb[0].mxu0
    %v6950 = vadd.f32 %v6821, %v6949
    %v6951 = vpop.f32.mrb[0].mxu0
    %v6952 = vpop.f32.mrb[0].mxu0
    %v6953 = vadd.f32 %v6824, %v6952
    %v6954 = vpop.f32.mrb[0].mxu0
    %6955 = vmatprep.mubr.bf16.mxu0 0
    %6956 = vmatmul.mubr.bf16.gmra.mrb[0].mxu0 %v6210
    %v6957 = vpop.f32.mrb[0].mxu0
    %v6958 = vadd.f32 %v6829, %v6957
    %v6959 = vpop.f32.mrb[0].mxu0
    %v6960 = vpop.f32.mrb[0].mxu0
    %v6961 = vadd.f32 %v6832, %v6960
    %v6962 = vpop.f32.mrb[0].mxu0
    %6963 = vdwg.mxu0
    %v6964 = vtanh.pop %v6870
    %v6965 = vtanh.pop %v6873
    %v6966 = vtanh.pop %v6878
    %v6967 = vtanh.pop %v6881
    %v6968 = vtanh.pop %v6886
    %v6969 = vtanh.pop %v6889
    %v6970 = vtanh.pop %v6894
    %v6971 = vtanh.pop %v6897
    %v6972 = vtanh.pop %v6902
    %v6973 = vtanh.pop %v6905
    %v6974 = vtanh.pop %v6910
    %v6975 = vtanh.pop %v6913
    %v6976 = vtanh.pop %v6918
    %v6977 = vtanh.pop %v6921
    %v6978 = vtanh.pop %v6926
    %v6979 = vtanh.pop %v6929
    %v6980 = vtanh.pop %v6934
    %v6981 = vtanh.pop %v6937
    %v6982 = vtanh.pop %v6942
    %v6983 = vtanh.pop %v6945
    %v6984 = vtanh.pop %v6950
    %v6985 = vtanh.pop %v6953
    %v6986 = vtanh.pop %v6958
    %v6987 = vtanh.pop %v6961
    %vm6988 = vcmask 64512
    %6989 = vst.msk [vmem:[#allocation25] sm:$0xff] %vm6988, %v6964
    %6990 = vst.msk [vmem:[#allocation25 + $0x8] sm:$0xff] %vm6988, %v6965
    %6991 = vst.msk [vmem:[#allocation25 + $0x10] sm:$0xff] %vm6988, %v6966
    %6992 = vst.msk [vmem:[#allocation25 + $0x18] sm:$0xff] %vm6988, %v6967
    %6993 = vst.msk [vmem:[#allocation25 + $0x20] sm:$0xff] %vm6988, %v6968
    %6994 = vst.msk [vmem:[#allocation25 + $0x28] sm:$0xff] %vm6988, %v6969
    %6995 = vst.msk [vmem:[#allocation25 + $0x30] sm:$0xff] %vm6988, %v6970
    %6996 = vst.msk [vmem:[#allocation25 + $0x38] sm:$0xff] %vm6988, %v6971
    %6997 = vst.msk [vmem:[#allocation25 + $0x40] sm:$0xff] %vm6988, %v6972
    %6998 = vst.msk [vmem:[#allocation25 + $0x48] sm:$0xff] %vm6988, %v6973
    %6999 = vst.msk [vmem:[#allocation25 + $0x50] sm:$0xff] %vm6988, %v6974
    %7000 = vst.msk [vmem:[#allocation25 + $0x58] sm:$0xff] %vm6988, %v6975
    %7001 = vst.msk [vmem:[#allocation25 + $0x60] sm:$0xff] %vm6988, %v6976
    %7002 = vst.msk [vmem:[#allocation25 + $0x68] sm:$0xff] %vm6988, %v6977
    %7003 = vst.msk [vmem:[#allocation25 + $0x70] sm:$0xff] %vm6988, %v6978
    %7004 = vst.msk [vmem:[#allocation25 + $0x78] sm:$0xff] %vm6988, %v6979
    %7005 = vst.msk [vmem:[#allocation25 + $0x80] sm:$0xff] %vm6988, %v6980
    %7006 = vst.msk [vmem:[#allocation25 + $0x88] sm:$0xff] %vm6988, %v6981
    %7007 = vst.msk [vmem:[#allocation25 + $0x90] sm:$0xff] %vm6988, %v6982
    %7008 = vst.msk [vmem:[#allocation25 + $0x98] sm:$0xff] %vm6988, %v6983
    %7009 = vst.msk [vmem:[#allocation25 + $0xa0] sm:$0xff] %vm6988, %v6984
    %7010 = vst.msk [vmem:[#allocation25 + $0xa8] sm:$0xff] %vm6988, %v6985
    %7011 = vst.msk [vmem:[#allocation25 + $0xb0] sm:$0xff] %vm6988, %v6986
    %7012 = vst.msk [vmem:[#allocation25 + $0xb8] sm:$0xff] %vm6988, %v6987
    // Predicated region
    $region114: #{generator_forward.1} parent=1 // pred_check
      _
    $region115: #{generator_forward.1} parent=1 // pred_check_branch
      %7014 = sbr.rel (0) target = $region117
    $region116: #{generator_forward.1} parent=1 // pred_region
      %s7016 = ssub.s32 3072, 3072
      %7017 = vsyncadd [#allocation4], %s7016
      %s7018 = sshll.u32 [#allocation25], 4
      %s7019 = int_to_ptr.vmem [resolvable:$true] %s7018
      %7024 = dma.vmem_to_hbm [thread:$0]  %s7019, 3072, %s14, [#allocation4], 128, 128, 8
    $region117: #{generator_forward.1} parent=1 // pred_fallthru
      _
    // Predicated region
    $region118: #{generator_forward.1} parent=1 // pred_check
      _
    $region119: #{generator_forward.1} parent=1 // pred_check_branch
      %7026 = sbr.rel (0) target = $region121
    $region120: #{generator_forward.1} parent=1 // pred_region
      %7027 = dma.done [#allocation4], 3072
    $region121: #{generator_forward.1} parent=1 // pred_fallthru
      _
    %7028 = vsyncpa [#allocation3], 1
    %7029 = vsyncpa [#allocation6], 1
    %7030 = vsyncpa [#allocation9], 1
    %7031 = vsyncpa [#allocation12], 1
    %7032 = vsyncpa [#allocation15], 1
    %7033 = vsyncpa [#allocation18], 1
    %7034 = vsyncpa [#allocation21], 1
    %7035 = vsyncpa [#allocation24], 1
    %7036 = vsyncpa [#allocation4], 1

</llo_original>
